<compile_context>
chip_gen: v7x
topology: tpu7x:2x2x1
jax: 0.10.0
libtpu: 0.0.40
codegen_flags: <defaults>
</compile_context>

<pallas_src>
import functools

import jax
import jax.numpy as jnp
import numpy as np
from jax.experimental import pallas as pl
from jax.experimental.pallas import tpu as pltpu

D = 128        # model dim
H = 4          # attention heads
HD = D // H    # head dim (32)
L = 4          # transformer encoder layers
FF = 128       # feedforward dim
NEG_SLOPE = 0.01
LN_EPS = 1e-5

# fixed parameter ordering used by both the kernel and the wrapper
PARAM_ORDER = [
    "f_w", "f_b",
    "wqkv", "bqkv", "wo", "bo",
    "ln1g", "ln1b",
    "w1", "b1", "w2", "b2",
    "ln2g", "ln2b",
    "g1w", "g1b", "g2w", "g2b", "g3w", "g3b",
]


def _leaky_relu(x):
    return jnp.where(x >= 0, x, NEG_SLOPE * x)


def _layer_norm(x, g, b):
    mu = jnp.mean(x, axis=-1, keepdims=True)
    xc = x - mu
    var = jnp.mean(xc * xc, axis=-1, keepdims=True)
    return xc * jax.lax.rsqrt(var + LN_EPS) * g + b


def shape_ebm_kernel(centers_ref, mask_ref,
                     fw_ref, fb_ref,
                     wqkv_ref, bqkv_ref, wo_ref, bo_ref,
                     ln1g_ref, ln1b_ref,
                     w1_ref, b1_ref, w2_ref, b2_ref,
                     ln2g_ref, ln2b_ref,
                     g1w_ref, g1b_ref, g2w_ref, g2b_ref, g3w_ref, g3b_ref,
                     out_ref):
    Bt, N, _ = centers_ref.shape
    M = Bt * N

    # --- f_net -------------------------------------------------------------
    c = centers_ref[...]                                   # (Bt, N, 2)
    c = c - jnp.mean(c, axis=1, keepdims=True)             # center coords over N
    fw = fw_ref[...]                                       # (2, D)
    # Linear(2,128) as two VPU broadcast FMAs (K=2 MXU dot would be wasteful)
    feats = _leaky_relu(c[:, :, 0:1] * fw[0:1, :]
                        + c[:, :, 1:2] * fw[1:2, :]
                        + fb_ref[...])                     # (Bt, N, D)
    feats = feats.reshape(M, D)                            # flatten for dense matmuls

    # src_key_padding_mask -> additive bias along the key axis (hoisted once)
    real = mask_ref[...]                                   # (Bt, 1, N)
    kbias = jnp.broadcast_to((1.0 - real) * jnp.float32(-1e9), (Bt, N, N))

    # --- 4 post-norm TransformerEncoderLayers (batch_first, eval mode) ------
    for l in range(L):
        # fused QKV: (M,128) @ (128,384); softmax scale already folded into Q
        qkv = jnp.dot(feats, wqkv_ref[l],
                      preferred_element_type=jnp.float32) + bqkv_ref[l]   # (M, 3D)
        heads = []
        for h in range(H):
            qh = qkv[:, h * HD:(h + 1) * HD].reshape(Bt, N, HD)
            kh = qkv[:, D + h * HD:D + (h + 1) * HD].reshape(Bt, N, HD)
            vh = qkv[:, 2 * D + h * HD:2 * D + (h + 1) * HD].reshape(Bt, N, HD)
            s = jnp.einsum("bqd,bkd->bqk", qh, kh,
                           preferred_element_type=jnp.float32) + kbias    # (Bt,N,N)
            s = s - jnp.max(s, axis=-1, keepdims=True)
            p = jnp.exp(s)
            p = p / jnp.sum(p, axis=-1, keepdims=True)
            oh = jnp.einsum("bqk,bkd->bqd", p, vh,
                            preferred_element_type=jnp.float32)           # (Bt,N,HD)
            heads.append(oh.reshape(M, HD))
        # fused output projection: concat heads on lanes -> one full-depth dot
        attn = jnp.concatenate(heads, axis=-1)                            # (M, D)
        attn = jnp.dot(attn, wo_ref[l],
                       preferred_element_type=jnp.float32) + bo_ref[l]
        feats = _layer_norm(feats + attn, ln1g_ref[l], ln1b_ref[l])

        ff = jnp.maximum(
            jnp.dot(feats, w1_ref[l], preferred_element_type=jnp.float32)
            + b1_ref[l], 0.0)                              # ReLU (default activation)
        ff = jnp.dot(ff, w2_ref[l], preferred_element_type=jnp.float32) + b2_ref[l]
        feats = _layer_norm(feats + ff, ln2g_ref[l], ln2b_ref[l])

    # mean over ALL positions (matches the PyTorch code: padding included in mean)
    pooled = jnp.mean(feats.reshape(Bt, N, D), axis=1)     # (Bt, D)

    # g_net: Linear+LeakyReLU, Linear+LeakyReLU, Linear(128,1)
    g = _leaky_relu(jnp.dot(pooled, g1w_ref[...],
                            preferred_element_type=jnp.float32) + g1b_ref[...])
    g = _leaky_relu(jnp.dot(g, g2w_ref[...],
                            preferred_element_type=jnp.float32) + g2b_ref[...])
    # final Linear(128,1) as a lane reduction (avoids a 1-lane-wide MXU dot)
    e = jnp.sum(g * g3w_ref[...], axis=-1, keepdims=True) + g3b_ref[...]  # (Bt, 1)

    # lane-dense output slab; column 0 holds the energy (sliced out in the wrapper)
    out_ref[...] = jnp.broadcast_to(e, out_ref.shape).astype(out_ref.dtype)


def init_params(key):
    ks = jax.random.split(key, 16)

    def rnd(k, shape, scale=0.05):
        return (scale * jax.random.normal(k, shape)).astype(jnp.float32)

    p = {
        "f_w": rnd(ks[0], (2, D)),                 # x @ W form of Linear(2,128)
        "f_b": rnd(ks[1], (1, D)),
        # per-layer, per-head attention weights: [L, {q,k,v}, H, D, HD]
        "wqkv": rnd(ks[2], (L, 3, H, D, HD)),
        "bqkv": rnd(ks[3], (L, 3, H, 1, HD)),
        "wo": rnd(ks[4], (L, H, HD, D)),           # out_proj, split by head rows
        "bo": rnd(ks[5], (L, 1, D)),
        "ln1g": jnp.ones((L, 1, D), jnp.float32),
        "ln1b": jnp.zeros((L, 1, D), jnp.float32),
        "w1": rnd(ks[6], (L, D, FF)),
        "b1": rnd(ks[7], (L, 1, FF)),
        "w2": rnd(ks[8], (L, FF, D)),
        "b2": rnd(ks[9], (L, 1, D)),
        "ln2g": jnp.ones((L, 1, D), jnp.float32),
        "ln2b": jnp.zeros((L, 1, D), jnp.float32),
        "g1w": rnd(ks[10], (D, D)),
        "g1b": rnd(ks[11], (1, D)),
        "g2w": rnd(ks[12], (D, D)),
        "g2b": rnd(ks[13], (1, D)),
        "g3w": rnd(ks[14], (D, 1)),
        "g3b": rnd(ks[15], (1, 1)),
    }
    return p


def _fuse_params(p):
    """Wrapper-side layout plumbing: fuse QKV / out-proj, fold softmax scale."""
    scale = jnp.float32(1.0 / np.sqrt(HD))
    wqkv = p["wqkv"].at[:, 0].multiply(scale)              # fold 1/sqrt(HD) into Q
    bqkv = p["bqkv"].at[:, 0].multiply(scale)
    # (L, 3, H, D, HD) -> (L, D, 3*H*HD): column = (qkv_type*H + head)*HD + d
    wqkv_f = jnp.transpose(wqkv, (0, 3, 1, 2, 4)).reshape(L, D, 3 * D)
    bqkv_f = jnp.transpose(bqkv, (0, 3, 1, 2, 4)).reshape(L, 1, 3 * D)
    fused = dict(p)
    fused["wqkv"] = wqkv_f
    fused["bqkv"] = bqkv_f
    fused["wo"] = p["wo"].reshape(L, D, D)                 # rows stacked in head order
    fused["g3w"] = p["g3w"].reshape(1, D)                  # row vector for lane reduce
    return fused


@functools.partial(jax.jit, static_argnames=("block_b",))
def shape_ebm_forward(centers, mask, params, block_b=32):
    B, N, _ = centers.shape
    Bt = min(B, block_b)                                   # batch elements per step
    n_blocks = -(-B // Bt)
    B_pad = Bt * n_blocks

    centers = centers.astype(jnp.float32)
    mask_f = mask.astype(jnp.float32)
    if B_pad != B:
        # pad with fully-masked dummy elements (numerically safe, sliced out below)
        centers = jnp.pad(centers, ((0, B_pad - B), (0, 0), (0, 0)))
        mask_f = jnp.pad(mask_f, ((0, B_pad - B), (0, 0)))
    mask_f = mask_f.reshape(B_pad, 1, N)

    fused = _fuse_params(params)
    plist = [fused[name] for name in PARAM_ORDER]

    def full_spec(p):
        nd = p.ndim
        return pl.BlockSpec(p.shape, lambda b, nd=nd: (0,) * nd)

    in_specs = [
        pl.BlockSpec((Bt, N, 2), lambda b: (b, 0, 0)),     # centers: Bt elements/step
        pl.BlockSpec((Bt, 1, N), lambda b: (b, 0, 0)),     # mask
    ] + [full_spec(p) for p in plist]

    out = pl.pallas_call(
        shape_ebm_kernel,
        out_shape=jax.ShapeDtypeStruct((B_pad, D), jnp.float32),
        grid_spec=pltpu.PrefetchScalarGridSpec(
            num_scalar_prefetch=0,
            grid=(n_blocks,),
            in_specs=in_specs,
            out_specs=pl.BlockSpec((Bt, D), lambda b: (b, 0)),
        ),
        compiler_params=pltpu.CompilerParams(
            dimension_semantics=("parallel",)),
    )(centers, mask_f, *plist)
    return out[:B, :1]                                     # (B, 1) energies


def reference_forward(centers, mask, p):
    """Pure-JAX reference (same math, original per-head synthetic param layout)."""
    x = centers - centers.mean(axis=1, keepdims=True)
    feats = _leaky_relu(x @ p["f_w"] + p["f_b"][0])                     # (B,N,D)
    kbias = (1.0 - mask.astype(jnp.float32))[:, None, :] * jnp.float32(-1e30)
    scale = 1.0 / np.sqrt(HD)
    for l in range(L):
        attn = jnp.zeros_like(feats)
        for h in range(H):
            qh = feats @ p["wqkv"][l, 0, h] + p["bqkv"][l, 0, h][0]
            kh = feats @ p["wqkv"][l, 1, h] + p["bqkv"][l, 1, h][0]
            vh = feats @ p["wqkv"][l, 2, h] + p["bqkv"][l, 2, h][0]
            s = jnp.einsum("bqd,bkd->bqk", qh, kh) * scale + kbias
            pm = jax.nn.softmax(s, axis=-1)
            attn = attn + jnp.einsum("bqk,bkd->bqd", pm, vh) @ p["wo"][l, h]
        attn = attn + p["bo"][l][0]
        feats = _layer_norm(feats + attn, p["ln1g"][l][0], p["ln1b"][l][0])
        ff = jax.nn.relu(feats @ p["w1"][l] + p["b1"][l][0])
        ff = ff @ p["w2"][l] + p["b2"][l][0]
        feats = _layer_norm(feats + ff, p["ln2g"][l][0], p["ln2b"][l][0])
    pooled = feats.mean(axis=1)                                          # (B, D)
    g = _leaky_relu(pooled @ p["g1w"] + p["g1b"][0])
    g = _leaky_relu(g @ p["g2w"] + p["g2b"][0])
    return g @ p["g3w"] + p["g3b"][0]                                    # (B, 1)


if __name__ == "__main__":
    key = jax.random.PRNGKey(0)
    kp, kc, km, kn = jax.random.split(key, 4)

    params = init_params(kp)

    # small demo (B=2, N=8): single grid step, Bt = B
    B, N = 2, 8
    sbox_centers = jax.random.normal(kc, (B, N, 2), jnp.float32)
    mask = jnp.array([[1, 1, 1, 1, 1, 1, 0, 0],
                      [1, 1, 1, 1, 1, 1, 1, 1]], jnp.int32)

    energy = shape_ebm_forward(sbox_centers, mask, params)
    energy = jax.block_until_ready(energy)
    ref = reference_forward(sbox_centers, mask, params)
    assert energy.shape == (B, 1)
    np.testing.assert_allclose(np.asarray(energy), np.asarray(ref),
                               rtol=1e-3, atol=1e-4)

    # larger batch exercising the batched path (Bt=32, padding 40 -> 64, grid=2)
    B2 = 40
    centers2 = jax.random.normal(km, (B2, N, 2), jnp.float32)
    mask2 = (jax.random.uniform(kn, (B2, N)) > 0.3).astype(jnp.int32)
    mask2 = mask2.at[:, 0].set(1)
    energy2 = jax.block_until_ready(shape_ebm_forward(centers2, mask2, params))
    ref2 = reference_forward(centers2, mask2, params)
    np.testing.assert_allclose(np.asarray(energy2), np.asarray(ref2),
                               rtol=1e-3, atol=1e-4)

    print("KERNEL_OK")
</pallas_src>

<mosaic_0001>
module attributes {stable_mosaic.version = 11 : i64} {
  func.func @shape_ebm_kernel(%arg0: i32, %arg1: memref<2x8x2xf32, #tpu.memory_space<vmem>>, %arg2: memref<2x1x8xf32, #tpu.memory_space<vmem>>, %arg3: memref<2x128xf32, #tpu.memory_space<vmem>>, %arg4: memref<1x128xf32, #tpu.memory_space<vmem>>, %arg5: memref<4x128x384xf32, #tpu.memory_space<vmem>>, %arg6: memref<4x1x384xf32, #tpu.memory_space<vmem>>, %arg7: memref<4x128x128xf32, #tpu.memory_space<vmem>>, %arg8: memref<4x1x128xf32, #tpu.memory_space<vmem>>, %arg9: memref<4x1x128xf32, #tpu.memory_space<vmem>>, %arg10: memref<4x1x128xf32, #tpu.memory_space<vmem>>, %arg11: memref<4x128x128xf32, #tpu.memory_space<vmem>>, %arg12: memref<4x1x128xf32, #tpu.memory_space<vmem>>, %arg13: memref<4x128x128xf32, #tpu.memory_space<vmem>>, %arg14: memref<4x1x128xf32, #tpu.memory_space<vmem>>, %arg15: memref<4x1x128xf32, #tpu.memory_space<vmem>>, %arg16: memref<4x1x128xf32, #tpu.memory_space<vmem>>, %arg17: memref<128x128xf32, #tpu.memory_space<vmem>>, %arg18: memref<1x128xf32, #tpu.memory_space<vmem>>, %arg19: memref<128x128xf32, #tpu.memory_space<vmem>>, %arg20: memref<1x128xf32, #tpu.memory_space<vmem>>, %arg21: memref<1x128xf32, #tpu.memory_space<vmem>>, %arg22: memref<1x1xf32, #tpu.memory_space<vmem>>, %arg23: memref<2x128xf32, #tpu.memory_space<vmem>>) attributes {dimension_semantics = [#tpu.dimension_semantics<parallel>], iteration_bounds = array<i64: 1>, scalar_prefetch = 0 : i64, scratch_operands = 0 : i64, tpu.core_type = #tpu.core_type<tc>, window_params = [{transform_indices = @transform_0, window_bounds = array<i64: 2, 8, 2>}, {transform_indices = @transform_1, window_bounds = array<i64: 2, 1, 8>}, {pipeline_mode = #tpu.pipeline_mode<synchronous>, transform_indices = @transform_2, window_bounds = array<i64: 2, 128>}, {pipeline_mode = #tpu.pipeline_mode<synchronous>, transform_indices = @transform_3, window_bounds = array<i64: 1, 128>}, {pipeline_mode = #tpu.pipeline_mode<synchronous>, transform_indices = @transform_4, window_bounds = array<i64: 4, 128, 384>}, {pipeline_mode = #tpu.pipeline_mode<synchronous>, transform_indices = @transform_5, window_bounds = array<i64: 4, 1, 384>}, {pipeline_mode = #tpu.pipeline_mode<synchronous>, transform_indices = @transform_6, window_bounds = array<i64: 4, 128, 128>}, {pipeline_mode = #tpu.pipeline_mode<synchronous>, transform_indices = @transform_7, window_bounds = array<i64: 4, 1, 128>}, {pipeline_mode = #tpu.pipeline_mode<synchronous>, transform_indices = @transform_8, window_bounds = array<i64: 4, 1, 128>}, {pipeline_mode = #tpu.pipeline_mode<synchronous>, transform_indices = @transform_9, window_bounds = array<i64: 4, 1, 128>}, {pipeline_mode = #tpu.pipeline_mode<synchronous>, transform_indices = @transform_10, window_bounds = array<i64: 4, 128, 128>}, {pipeline_mode = #tpu.pipeline_mode<synchronous>, transform_indices = @transform_11, window_bounds = array<i64: 4, 1, 128>}, {pipeline_mode = #tpu.pipeline_mode<synchronous>, transform_indices = @transform_12, window_bounds = array<i64: 4, 128, 128>}, {pipeline_mode = #tpu.pipeline_mode<synchronous>, transform_indices = @transform_13, window_bounds = array<i64: 4, 1, 128>}, {pipeline_mode = #tpu.pipeline_mode<synchronous>, transform_indices = @transform_14, window_bounds = array<i64: 4, 1, 128>}, {pipeline_mode = #tpu.pipeline_mode<synchronous>, transform_indices = @transform_15, window_bounds = array<i64: 4, 1, 128>}, {pipeline_mode = #tpu.pipeline_mode<synchronous>, transform_indices = @transform_16, window_bounds = array<i64: 128, 128>}, {pipeline_mode = #tpu.pipeline_mode<synchronous>, transform_indices = @transform_17, window_bounds = array<i64: 1, 128>}, {pipeline_mode = #tpu.pipeline_mode<synchronous>, transform_indices = @transform_18, window_bounds = array<i64: 128, 128>}, {pipeline_mode = #tpu.pipeline_mode<synchronous>, transform_indices = @transform_19, window_bounds = array<i64: 1, 128>}, {pipeline_mode = #tpu.pipeline_mode<synchronous>, transform_indices = @transform_20, window_bounds = array<i64: 1, 128>}, {pipeline_mode = #tpu.pipeline_mode<synchronous>, transform_indices = @transform_21, window_bounds = array<i64: 1, 1>}, {transform_indices = @transform_22, window_bounds = array<i64: 2, 128>}]} {
    %c0 = arith.constant 0 : index
    %c0_0 = arith.constant 0 : index
    %c0_1 = arith.constant 0 : index
    %0 = vector.load %arg1[%c0, %c0_0, %c0_1] : memref<2x8x2xf32, #tpu.memory_space<vmem>>, vector<2x8x2xf32>
    %cst = arith.constant dense<0.000000e+00> : vector<2x2xf32>
    %1 = vector.multi_reduction <add>, %0, %cst [1] : vector<2x8x2xf32> to vector<2x2xf32>
    %2 = vector.shape_cast %1 : vector<2x2xf32> to vector<2x1x2xf32>
    %cst_2 = arith.constant 8.000000e+00 : f32
    %3 = vector.broadcast %cst_2 : f32 to vector<2x1x2xf32>
    %4 = arith.divf %2, %3 : vector<2x1x2xf32>
    %5 = vector.broadcast %4 : vector<2x1x2xf32> to vector<2x8x2xf32>
    %6 = arith.subf %0, %5 : vector<2x8x2xf32>
    %c0_3 = arith.constant 0 : index
    %c0_4 = arith.constant 0 : index
    %7 = vector.load %arg3[%c0_3, %c0_4] : memref<2x128xf32, #tpu.memory_space<vmem>>, vector<2x128xf32>
    %8 = vector.extract_strided_slice %6 {offsets = [0, 0, 0], sizes = [2, 8, 1], strides = [1, 1, 1]} : vector<2x8x2xf32> to vector<2x8x1xf32>
    %9 = vector.extract_strided_slice %7 {offsets = [0, 0], sizes = [1, 128], strides = [1, 1]} : vector<2x128xf32> to vector<1x128xf32>
    %10 = vector.shape_cast %9 : vector<1x128xf32> to vector<1x1x128xf32>
    %11 = vector.broadcast %8 : vector<2x8x1xf32> to vector<2x8x128xf32>
    %12 = vector.broadcast %10 : vector<1x1x128xf32> to vector<2x8x128xf32>
    %13 = arith.mulf %11, %12 : vector<2x8x128xf32>
    %14 = vector.extract_strided_slice %6 {offsets = [0, 0, 1], sizes = [2, 8, 1], strides = [1, 1, 1]} : vector<2x8x2xf32> to vector<2x8x1xf32>
    %15 = vector.extract_strided_slice %7 {offsets = [1, 0], sizes = [1, 128], strides = [1, 1]} : vector<2x128xf32> to vector<1x128xf32>
    %16 = vector.shape_cast %15 : vector<1x128xf32> to vector<1x1x128xf32>
    %17 = vector.broadcast %14 : vector<2x8x1xf32> to vector<2x8x128xf32>
    %18 = vector.broadcast %16 : vector<1x1x128xf32> to vector<2x8x128xf32>
    %19 = arith.mulf %17, %18 : vector<2x8x128xf32>
    %20 = arith.addf %13, %19 : vector<2x8x128xf32>
    %c0_5 = arith.constant 0 : index
    %c0_6 = arith.constant 0 : index
    %21 = vector.load %arg4[%c0_5, %c0_6] : memref<1x128xf32, #tpu.memory_space<vmem>>, vector<1x128xf32>
    %22 = vector.shape_cast %21 : vector<1x128xf32> to vector<1x1x128xf32>
    %23 = vector.broadcast %22 : vector<1x1x128xf32> to vector<2x8x128xf32>
    %24 = arith.addf %20, %23 : vector<2x8x128xf32>
    %cst_7 = arith.constant 0.000000e+00 : f32
    %25 = vector.broadcast %cst_7 : f32 to vector<2x8x128xf32>
    %26 = arith.cmpf oge, %24, %25 : vector<2x8x128xf32>
    %cst_8 = arith.constant 0.00999999977 : f32
    %27 = vector.broadcast %cst_8 : f32 to vector<2x8x128xf32>
    %28 = arith.mulf %27, %24 : vector<2x8x128xf32>
    %29 = arith.select %26, %24, %28 : vector<2x8x128xi1>, vector<2x8x128xf32>
    %30 = vector.shape_cast %29 : vector<2x8x128xf32> to vector<16x128xf32>
    %c0_9 = arith.constant 0 : index
    %c0_10 = arith.constant 0 : index
    %c0_11 = arith.constant 0 : index
    %31 = vector.load %arg2[%c0_9, %c0_10, %c0_11] : memref<2x1x8xf32, #tpu.memory_space<vmem>>, vector<2x1x8xf32>
    %cst_12 = arith.constant 1.000000e+00 : f32
    %32 = vector.broadcast %cst_12 : f32 to vector<2x1x8xf32>
    %33 = arith.subf %32, %31 : vector<2x1x8xf32>
    %cst_13 = arith.constant -1.000000e+09 : f32
    %34 = vector.broadcast %cst_13 : f32 to vector<2x1x8xf32>
    %35 = arith.mulf %33, %34 : vector<2x1x8xf32>
    %36 = vector.shape_cast %35 : vector<2x1x8xf32> to vector<2x1x8xf32>
    %37 = vector.broadcast %36 : vector<2x1x8xf32> to vector<2x8x8xf32>
    %c0_14 = arith.constant 0 : index
    %c0_15 = arith.constant 0 : index
    %c0_16 = arith.constant 0 : index
    %38 = vector.load %arg5[%c0_14, %c0_15, %c0_16] : memref<4x128x384xf32, #tpu.memory_space<vmem>>, vector<1x128x384xf32>
    %39 = vector.shape_cast %38 : vector<1x128x384xf32> to vector<128x384xf32>
    %cst_17 = arith.constant dense<0.000000e+00> : vector<16x384xf32>
    %40 = tpu.matmul %30, %39, %cst_17 {dimension_numbers = #tpu.dot_dimension_numbers<[1], [0], [0], [1], [0, 0, 1, 1], [], []>} : vector<16x128xf32>, vector<128x384xf32>, vector<16x384xf32> -> vector<16x384xf32>
    %c0_18 = arith.constant 0 : index
    %c0_19 = arith.constant 0 : index
    %c0_20 = arith.constant 0 : index
    %41 = vector.load %arg6[%c0_18, %c0_19, %c0_20] : memref<4x1x384xf32, #tpu.memory_space<vmem>>, vector<1x1x384xf32>
    %42 = vector.shape_cast %41 : vector<1x1x384xf32> to vector<1x384xf32>
    %43 = vector.broadcast %42 : vector<1x384xf32> to vector<16x384xf32>
    %44 = arith.addf %40, %43 : vector<16x384xf32>
    %45 = vector.extract_strided_slice %44 {offsets = [0, 0], sizes = [16, 32], strides = [1, 1]} : vector<16x384xf32> to vector<16x32xf32>
    %46 = vector.shape_cast %45 : vector<16x32xf32> to vector<2x8x32xf32>
    %47 = vector.extract_strided_slice %44 {offsets = [0, 128], sizes = [16, 32], strides = [1, 1]} : vector<16x384xf32> to vector<16x32xf32>
    %48 = vector.shape_cast %47 : vector<16x32xf32> to vector<2x8x32xf32>
    %49 = vector.extract_strided_slice %44 {offsets = [0, 256], sizes = [16, 32], strides = [1, 1]} : vector<16x384xf32> to vector<16x32xf32>
    %50 = vector.shape_cast %49 : vector<16x32xf32> to vector<2x8x32xf32>
    "tpu.trace_start"() <{level = 10 : i32, message = "bqd,bkd->bqk"}> : () -> ()
    %cst_21 = arith.constant dense<0.000000e+00> : vector<2x8x8xf32>
    %51 = tpu.matmul %46, %48, %cst_21 {dimension_numbers = #tpu.dot_dimension_numbers<[2], [2], [1], [1], [0, 0, 0, 1, 1, 1], [0], [0]>} : vector<2x8x32xf32>, vector<2x8x32xf32>, vector<2x8x8xf32> -> vector<2x8x8xf32>
    "tpu.trace_stop"() : () -> ()
    %52 = arith.addf %51, %37 : vector<2x8x8xf32>
    %cst_22 = arith.constant dense<0xFF800000> : vector<2x8xf32>
    %53 = vector.multi_reduction <maximumf>, %52, %cst_22 [2] : vector<2x8x8xf32> to vector<2x8xf32>
    %54 = vector.shape_cast %53 : vector<2x8xf32> to vector<2x8x1xf32>
    %55 = vector.broadcast %54 : vector<2x8x1xf32> to vector<2x8x8xf32>
    %56 = arith.subf %52, %55 : vector<2x8x8xf32>
    %57 = math.exp %56 : vector<2x8x8xf32>
    %cst_23 = arith.constant dense<0.000000e+00> : vector<2x8xf32>
    %58 = vector.multi_reduction <add>, %57, %cst_23 [2] : vector<2x8x8xf32> to vector<2x8xf32>
    %59 = vector.shape_cast %58 : vector<2x8xf32> to vector<2x8x1xf32>
    %60 = vector.broadcast %59 : vector<2x8x1xf32> to vector<2x8x8xf32>
    %61 = arith.divf %57, %60 : vector<2x8x8xf32>
    "tpu.trace_start"() <{level = 10 : i32, message = "bqk,bkd->bqd"}> : () -> ()
    %cst_24 = arith.constant dense<0.000000e+00> : vector<2x8x32xf32>
    %62 = tpu.matmul %61, %50, %cst_24 {dimension_numbers = #tpu.dot_dimension_numbers<[2], [1], [1], [2], [0, 0, 0, 1, 1, 2], [0], [0]>} : vector<2x8x8xf32>, vector<2x8x32xf32>, vector<2x8x32xf32> -> vector<2x8x32xf32>
    "tpu.trace_stop"() : () -> ()
    %63 = vector.shape_cast %62 : vector<2x8x32xf32> to vector<16x32xf32>
    %64 = vector.extract_strided_slice %44 {offsets = [0, 32], sizes = [16, 32], strides = [1, 1]} : vector<16x384xf32> to vector<16x32xf32>
    %65 = vector.shape_cast %64 : vector<16x32xf32> to vector<2x8x32xf32>
    %66 = vector.extract_strided_slice %44 {offsets = [0, 160], sizes = [16, 32], strides = [1, 1]} : vector<16x384xf32> to vector<16x32xf32>
    %67 = vector.shape_cast %66 : vector<16x32xf32> to vector<2x8x32xf32>
    %68 = vector.extract_strided_slice %44 {offsets = [0, 288], sizes = [16, 32], strides = [1, 1]} : vector<16x384xf32> to vector<16x32xf32>
    %69 = vector.shape_cast %68 : vector<16x32xf32> to vector<2x8x32xf32>
    "tpu.trace_start"() <{level = 10 : i32, message = "bqd,bkd->bqk"}> : () -> ()
    %cst_25 = arith.constant dense<0.000000e+00> : vector<2x8x8xf32>
    %70 = tpu.matmul %65, %67, %cst_25 {dimension_numbers = #tpu.dot_dimension_numbers<[2], [2], [1], [1], [0, 0, 0, 1, 1, 1], [0], [0]>} : vector<2x8x32xf32>, vector<2x8x32xf32>, vector<2x8x8xf32> -> vector<2x8x8xf32>
    "tpu.trace_stop"() : () -> ()
    %71 = arith.addf %70, %37 : vector<2x8x8xf32>
    %cst_26 = arith.constant dense<0xFF800000> : vector<2x8xf32>
    %72 = vector.multi_reduction <maximumf>, %71, %cst_26 [2] : vector<2x8x8xf32> to vector<2x8xf32>
    %73 = vector.shape_cast %72 : vector<2x8xf32> to vector<2x8x1xf32>
    %74 = vector.broadcast %73 : vector<2x8x1xf32> to vector<2x8x8xf32>
    %75 = arith.subf %71, %74 : vector<2x8x8xf32>
    %76 = math.exp %75 : vector<2x8x8xf32>
    %cst_27 = arith.constant dense<0.000000e+00> : vector<2x8xf32>
    %77 = vector.multi_reduction <add>, %76, %cst_27 [2] : vector<2x8x8xf32> to vector<2x8xf32>
    %78 = vector.shape_cast %77 : vector<2x8xf32> to vector<2x8x1xf32>
    %79 = vector.broadcast %78 : vector<2x8x1xf32> to vector<2x8x8xf32>
    %80 = arith.divf %76, %79 : vector<2x8x8xf32>
    "tpu.trace_start"() <{level = 10 : i32, message = "bqk,bkd->bqd"}> : () -> ()
    %cst_28 = arith.constant dense<0.000000e+00> : vector<2x8x32xf32>
    %81 = tpu.matmul %80, %69, %cst_28 {dimension_numbers = #tpu.dot_dimension_numbers<[2], [1], [1], [2], [0, 0, 0, 1, 1, 2], [0], [0]>} : vector<2x8x8xf32>, vector<2x8x32xf32>, vector<2x8x32xf32> -> vector<2x8x32xf32>
    "tpu.trace_stop"() : () -> ()
    %82 = vector.shape_cast %81 : vector<2x8x32xf32> to vector<16x32xf32>
    %83 = vector.extract_strided_slice %44 {offsets = [0, 64], sizes = [16, 32], strides = [1, 1]} : vector<16x384xf32> to vector<16x32xf32>
    %84 = vector.shape_cast %83 : vector<16x32xf32> to vector<2x8x32xf32>
    %85 = vector.extract_strided_slice %44 {offsets = [0, 192], sizes = [16, 32], strides = [1, 1]} : vector<16x384xf32> to vector<16x32xf32>
    %86 = vector.shape_cast %85 : vector<16x32xf32> to vector<2x8x32xf32>
    %87 = vector.extract_strided_slice %44 {offsets = [0, 320], sizes = [16, 32], strides = [1, 1]} : vector<16x384xf32> to vector<16x32xf32>
    %88 = vector.shape_cast %87 : vector<16x32xf32> to vector<2x8x32xf32>
    "tpu.trace_start"() <{level = 10 : i32, message = "bqd,bkd->bqk"}> : () -> ()
    %cst_29 = arith.constant dense<0.000000e+00> : vector<2x8x8xf32>
    %89 = tpu.matmul %84, %86, %cst_29 {dimension_numbers = #tpu.dot_dimension_numbers<[2], [2], [1], [1], [0, 0, 0, 1, 1, 1], [0], [0]>} : vector<2x8x32xf32>, vector<2x8x32xf32>, vector<2x8x8xf32> -> vector<2x8x8xf32>
    "tpu.trace_stop"() : () -> ()
    %90 = arith.addf %89, %37 : vector<2x8x8xf32>
    %cst_30 = arith.constant dense<0xFF800000> : vector<2x8xf32>
    %91 = vector.multi_reduction <maximumf>, %90, %cst_30 [2] : vector<2x8x8xf32> to vector<2x8xf32>
    %92 = vector.shape_cast %91 : vector<2x8xf32> to vector<2x8x1xf32>
    %93 = vector.broadcast %92 : vector<2x8x1xf32> to vector<2x8x8xf32>
    %94 = arith.subf %90, %93 : vector<2x8x8xf32>
    %95 = math.exp %94 : vector<2x8x8xf32>
    %cst_31 = arith.constant dense<0.000000e+00> : vector<2x8xf32>
    %96 = vector.multi_reduction <add>, %95, %cst_31 [2] : vector<2x8x8xf32> to vector<2x8xf32>
    %97 = vector.shape_cast %96 : vector<2x8xf32> to vector<2x8x1xf32>
    %98 = vector.broadcast %97 : vector<2x8x1xf32> to vector<2x8x8xf32>
    %99 = arith.divf %95, %98 : vector<2x8x8xf32>
    "tpu.trace_start"() <{level = 10 : i32, message = "bqk,bkd->bqd"}> : () -> ()
    %cst_32 = arith.constant dense<0.000000e+00> : vector<2x8x32xf32>
    %100 = tpu.matmul %99, %88, %cst_32 {dimension_numbers = #tpu.dot_dimension_numbers<[2], [1], [1], [2], [0, 0, 0, 1, 1, 2], [0], [0]>} : vector<2x8x8xf32>, vector<2x8x32xf32>, vector<2x8x32xf32> -> vector<2x8x32xf32>
    "tpu.trace_stop"() : () -> ()
    %101 = vector.shape_cast %100 : vector<2x8x32xf32> to vector<16x32xf32>
    %102 = vector.extract_strided_slice %44 {offsets = [0, 96], sizes = [16, 32], strides = [1, 1]} : vector<16x384xf32> to vector<16x32xf32>
    %103 = vector.shape_cast %102 : vector<16x32xf32> to vector<2x8x32xf32>
    %104 = vector.extract_strided_slice %44 {offsets = [0, 224], sizes = [16, 32], strides = [1, 1]} : vector<16x384xf32> to vector<16x32xf32>
    %105 = vector.shape_cast %104 : vector<16x32xf32> to vector<2x8x32xf32>
    %106 = vector.extract_strided_slice %44 {offsets = [0, 352], sizes = [16, 32], strides = [1, 1]} : vector<16x384xf32> to vector<16x32xf32>
    %107 = vector.shape_cast %106 : vector<16x32xf32> to vector<2x8x32xf32>
    "tpu.trace_start"() <{level = 10 : i32, message = "bqd,bkd->bqk"}> : () -> ()
    %cst_33 = arith.constant dense<0.000000e+00> : vector<2x8x8xf32>
    %108 = tpu.matmul %103, %105, %cst_33 {dimension_numbers = #tpu.dot_dimension_numbers<[2], [2], [1], [1], [0, 0, 0, 1, 1, 1], [0], [0]>} : vector<2x8x32xf32>, vector<2x8x32xf32>, vector<2x8x8xf32> -> vector<2x8x8xf32>
    "tpu.trace_stop"() : () -> ()
    %109 = arith.addf %108, %37 : vector<2x8x8xf32>
    %cst_34 = arith.constant dense<0xFF800000> : vector<2x8xf32>
    %110 = vector.multi_reduction <maximumf>, %109, %cst_34 [2] : vector<2x8x8xf32> to vector<2x8xf32>
    %111 = vector.shape_cast %110 : vector<2x8xf32> to vector<2x8x1xf32>
    %112 = vector.broadcast %111 : vector<2x8x1xf32> to vector<2x8x8xf32>
    %113 = arith.subf %109, %112 : vector<2x8x8xf32>
    %114 = math.exp %113 : vector<2x8x8xf32>
    %cst_35 = arith.constant dense<0.000000e+00> : vector<2x8xf32>
    %115 = vector.multi_reduction <add>, %114, %cst_35 [2] : vector<2x8x8xf32> to vector<2x8xf32>
    %116 = vector.shape_cast %115 : vector<2x8xf32> to vector<2x8x1xf32>
    %117 = vector.broadcast %116 : vector<2x8x1xf32> to vector<2x8x8xf32>
    %118 = arith.divf %114, %117 : vector<2x8x8xf32>
    "tpu.trace_start"() <{level = 10 : i32, message = "bqk,bkd->bqd"}> : () -> ()
    %cst_36 = arith.constant dense<0.000000e+00> : vector<2x8x32xf32>
    %119 = tpu.matmul %118, %107, %cst_36 {dimension_numbers = #tpu.dot_dimension_numbers<[2], [1], [1], [2], [0, 0, 0, 1, 1, 2], [0], [0]>} : vector<2x8x8xf32>, vector<2x8x32xf32>, vector<2x8x32xf32> -> vector<2x8x32xf32>
    "tpu.trace_stop"() : () -> ()
    %120 = vector.shape_cast %119 : vector<2x8x32xf32> to vector<16x32xf32>
    %121 = tpu.concatenate %63, %82, %101, %120 in 1 : vector<16x32xf32>, vector<16x32xf32>, vector<16x32xf32>, vector<16x32xf32> -> vector<16x128xf32>
    %c0_37 = arith.constant 0 : index
    %c0_38 = arith.constant 0 : index
    %c0_39 = arith.constant 0 : index
    %122 = vector.load %arg7[%c0_37, %c0_38, %c0_39] : memref<4x128x128xf32, #tpu.memory_space<vmem>>, vector<1x128x128xf32>
    %123 = vector.shape_cast %122 : vector<1x128x128xf32> to vector<128x128xf32>
    %cst_40 = arith.constant dense<0.000000e+00> : vector<16x128xf32>
    %124 = tpu.matmul %121, %123, %cst_40 {dimension_numbers = #tpu.dot_dimension_numbers<[1], [0], [0], [1], [0, 0, 1, 1], [], []>} : vector<16x128xf32>, vector<128x128xf32>, vector<16x128xf32> -> vector<16x128xf32>
    %c0_41 = arith.constant 0 : index
    %c0_42 = arith.constant 0 : index
    %c0_43 = arith.constant 0 : index
    %125 = vector.load %arg8[%c0_41, %c0_42, %c0_43] : memref<4x1x128xf32, #tpu.memory_space<vmem>>, vector<1x1x128xf32>
    %126 = vector.shape_cast %125 : vector<1x1x128xf32> to vector<1x128xf32>
    %127 = vector.broadcast %126 : vector<1x128xf32> to vector<16x128xf32>
    %128 = arith.addf %124, %127 : vector<16x128xf32>
    %129 = arith.addf %30, %128 : vector<16x128xf32>
    %c0_44 = arith.constant 0 : index
    %c0_45 = arith.constant 0 : index
    %c0_46 = arith.constant 0 : index
    %130 = vector.load %arg9[%c0_44, %c0_45, %c0_46] : memref<4x1x128xf32, #tpu.memory_space<vmem>>, vector<1x1x128xf32>
    %131 = vector.shape_cast %130 : vector<1x1x128xf32> to vector<1x128xf32>
    %c0_47 = arith.constant 0 : index
    %c0_48 = arith.constant 0 : index
    %c0_49 = arith.constant 0 : index
    %132 = vector.load %arg10[%c0_47, %c0_48, %c0_49] : memref<4x1x128xf32, #tpu.memory_space<vmem>>, vector<1x1x128xf32>
    %133 = vector.shape_cast %132 : vector<1x1x128xf32> to vector<1x128xf32>
    %cst_50 = arith.constant dense<0.000000e+00> : vector<16xf32>
    %134 = vector.multi_reduction <add>, %129, %cst_50 [1] : vector<16x128xf32> to vector<16xf32>
    %135 = vector.shape_cast %134 : vector<16xf32> to vector<16x1xf32>
    %cst_51 = arith.constant 1.280000e+02 : f32
    %136 = vector.broadcast %cst_51 : f32 to vector<16x1xf32>
    %137 = arith.divf %135, %136 : vector<16x1xf32>
    %138 = vector.broadcast %137 : vector<16x1xf32> to vector<16x128xf32>
    %139 = arith.subf %129, %138 : vector<16x128xf32>
    %140 = arith.mulf %139, %139 : vector<16x128xf32>
    %cst_52 = arith.constant dense<0.000000e+00> : vector<16xf32>
    %141 = vector.multi_reduction <add>, %140, %cst_52 [1] : vector<16x128xf32> to vector<16xf32>
    %142 = vector.shape_cast %141 : vector<16xf32> to vector<16x1xf32>
    %cst_53 = arith.constant 1.280000e+02 : f32
    %143 = vector.broadcast %cst_53 : f32 to vector<16x1xf32>
    %144 = arith.divf %142, %143 : vector<16x1xf32>
    %cst_54 = arith.constant 9.99999974E-6 : f32
    %145 = vector.broadcast %cst_54 : f32 to vector<16x1xf32>
    %146 = arith.addf %144, %145 : vector<16x1xf32>
    %147 = math.rsqrt %146 : vector<16x1xf32>
    %148 = vector.broadcast %147 : vector<16x1xf32> to vector<16x128xf32>
    %149 = arith.mulf %139, %148 : vector<16x128xf32>
    %150 = vector.broadcast %131 : vector<1x128xf32> to vector<16x128xf32>
    %151 = arith.mulf %149, %150 : vector<16x128xf32>
    %152 = vector.broadcast %133 : vector<1x128xf32> to vector<16x128xf32>
    %153 = arith.addf %151, %152 : vector<16x128xf32>
    %c0_55 = arith.constant 0 : index
    %c0_56 = arith.constant 0 : index
    %c0_57 = arith.constant 0 : index
    %154 = vector.load %arg11[%c0_55, %c0_56, %c0_57] : memref<4x128x128xf32, #tpu.memory_space<vmem>>, vector<1x128x128xf32>
    %155 = vector.shape_cast %154 : vector<1x128x128xf32> to vector<128x128xf32>
    %cst_58 = arith.constant dense<0.000000e+00> : vector<16x128xf32>
    %156 = tpu.matmul %153, %155, %cst_58 {dimension_numbers = #tpu.dot_dimension_numbers<[1], [0], [0], [1], [0, 0, 1, 1], [], []>} : vector<16x128xf32>, vector<128x128xf32>, vector<16x128xf32> -> vector<16x128xf32>
    %c0_59 = arith.constant 0 : index
    %c0_60 = arith.constant 0 : index
    %c0_61 = arith.constant 0 : index
    %157 = vector.load %arg12[%c0_59, %c0_60, %c0_61] : memref<4x1x128xf32, #tpu.memory_space<vmem>>, vector<1x1x128xf32>
    %158 = vector.shape_cast %157 : vector<1x1x128xf32> to vector<1x128xf32>
    %159 = vector.broadcast %158 : vector<1x128xf32> to vector<16x128xf32>
    %160 = arith.addf %156, %159 : vector<16x128xf32>
    %cst_62 = arith.constant 0.000000e+00 : f32
    %161 = vector.broadcast %cst_62 : f32 to vector<16x128xf32>
    %162 = arith.maximumf %160, %161 : vector<16x128xf32>
    %c0_63 = arith.constant 0 : index
    %c0_64 = arith.constant 0 : index
    %c0_65 = arith.constant 0 : index
    %163 = vector.load %arg13[%c0_63, %c0_64, %c0_65] : memref<4x128x128xf32, #tpu.memory_space<vmem>>, vector<1x128x128xf32>
    %164 = vector.shape_cast %163 : vector<1x128x128xf32> to vector<128x128xf32>
    %cst_66 = arith.constant dense<0.000000e+00> : vector<16x128xf32>
    %165 = tpu.matmul %162, %164, %cst_66 {dimension_numbers = #tpu.dot_dimension_numbers<[1], [0], [0], [1], [0, 0, 1, 1], [], []>} : vector<16x128xf32>, vector<128x128xf32>, vector<16x128xf32> -> vector<16x128xf32>
    %c0_67 = arith.constant 0 : index
    %c0_68 = arith.constant 0 : index
    %c0_69 = arith.constant 0 : index
    %166 = vector.load %arg14[%c0_67, %c0_68, %c0_69] : memref<4x1x128xf32, #tpu.memory_space<vmem>>, vector<1x1x128xf32>
    %167 = vector.shape_cast %166 : vector<1x1x128xf32> to vector<1x128xf32>
    %168 = vector.broadcast %167 : vector<1x128xf32> to vector<16x128xf32>
    %169 = arith.addf %165, %168 : vector<16x128xf32>
    %170 = arith.addf %153, %169 : vector<16x128xf32>
    %c0_70 = arith.constant 0 : index
    %c0_71 = arith.constant 0 : index
    %c0_72 = arith.constant 0 : index
    %171 = vector.load %arg15[%c0_70, %c0_71, %c0_72] : memref<4x1x128xf32, #tpu.memory_space<vmem>>, vector<1x1x128xf32>
    %172 = vector.shape_cast %171 : vector<1x1x128xf32> to vector<1x128xf32>
    %c0_73 = arith.constant 0 : index
    %c0_74 = arith.constant 0 : index
    %c0_75 = arith.constant 0 : index
    %173 = vector.load %arg16[%c0_73, %c0_74, %c0_75] : memref<4x1x128xf32, #tpu.memory_space<vmem>>, vector<1x1x128xf32>
    %174 = vector.shape_cast %173 : vector<1x1x128xf32> to vector<1x128xf32>
    %cst_76 = arith.constant dense<0.000000e+00> : vector<16xf32>
    %175 = vector.multi_reduction <add>, %170, %cst_76 [1] : vector<16x128xf32> to vector<16xf32>
    %176 = vector.shape_cast %175 : vector<16xf32> to vector<16x1xf32>
    %cst_77 = arith.constant 1.280000e+02 : f32
    %177 = vector.broadcast %cst_77 : f32 to vector<16x1xf32>
    %178 = arith.divf %176, %177 : vector<16x1xf32>
    %179 = vector.broadcast %178 : vector<16x1xf32> to vector<16x128xf32>
    %180 = arith.subf %170, %179 : vector<16x128xf32>
    %181 = arith.mulf %180, %180 : vector<16x128xf32>
    %cst_78 = arith.constant dense<0.000000e+00> : vector<16xf32>
    %182 = vector.multi_reduction <add>, %181, %cst_78 [1] : vector<16x128xf32> to vector<16xf32>
    %183 = vector.shape_cast %182 : vector<16xf32> to vector<16x1xf32>
    %cst_79 = arith.constant 1.280000e+02 : f32
    %184 = vector.broadcast %cst_79 : f32 to vector<16x1xf32>
    %185 = arith.divf %183, %184 : vector<16x1xf32>
    %cst_80 = arith.constant 9.99999974E-6 : f32
    %186 = vector.broadcast %cst_80 : f32 to vector<16x1xf32>
    %187 = arith.addf %185, %186 : vector<16x1xf32>
    %188 = math.rsqrt %187 : vector<16x1xf32>
    %189 = vector.broadcast %188 : vector<16x1xf32> to vector<16x128xf32>
    %190 = arith.mulf %180, %189 : vector<16x128xf32>
    %191 = vector.broadcast %172 : vector<1x128xf32> to vector<16x128xf32>
    %192 = arith.mulf %190, %191 : vector<16x128xf32>
    %193 = vector.broadcast %174 : vector<1x128xf32> to vector<16x128xf32>
    %194 = arith.addf %192, %193 : vector<16x128xf32>
    %c1 = arith.constant 1 : index
    %c0_81 = arith.constant 0 : index
    %c0_82 = arith.constant 0 : index
    %195 = vector.load %arg5[%c1, %c0_81, %c0_82] : memref<4x128x384xf32, #tpu.memory_space<vmem>>, vector<1x128x384xf32>
    %196 = vector.shape_cast %195 : vector<1x128x384xf32> to vector<128x384xf32>
    %cst_83 = arith.constant dense<0.000000e+00> : vector<16x384xf32>
    %197 = tpu.matmul %194, %196, %cst_83 {dimension_numbers = #tpu.dot_dimension_numbers<[1], [0], [0], [1], [0, 0, 1, 1], [], []>} : vector<16x128xf32>, vector<128x384xf32>, vector<16x384xf32> -> vector<16x384xf32>
    %c1_84 = arith.constant 1 : index
    %c0_85 = arith.constant 0 : index
    %c0_86 = arith.constant 0 : index
    %198 = vector.load %arg6[%c1_84, %c0_85, %c0_86] : memref<4x1x384xf32, #tpu.memory_space<vmem>>, vector<1x1x384xf32>
    %199 = vector.shape_cast %198 : vector<1x1x384xf32> to vector<1x384xf32>
    %200 = vector.broadcast %199 : vector<1x384xf32> to vector<16x384xf32>
    %201 = arith.addf %197, %200 : vector<16x384xf32>
    %202 = vector.extract_strided_slice %201 {offsets = [0, 0], sizes = [16, 32], strides = [1, 1]} : vector<16x384xf32> to vector<16x32xf32>
    %203 = vector.shape_cast %202 : vector<16x32xf32> to vector<2x8x32xf32>
    %204 = vector.extract_strided_slice %201 {offsets = [0, 128], sizes = [16, 32], strides = [1, 1]} : vector<16x384xf32> to vector<16x32xf32>
    %205 = vector.shape_cast %204 : vector<16x32xf32> to vector<2x8x32xf32>
    %206 = vector.extract_strided_slice %201 {offsets = [0, 256], sizes = [16, 32], strides = [1, 1]} : vector<16x384xf32> to vector<16x32xf32>
    %207 = vector.shape_cast %206 : vector<16x32xf32> to vector<2x8x32xf32>
    "tpu.trace_start"() <{level = 10 : i32, message = "bqd,bkd->bqk"}> : () -> ()
    %cst_87 = arith.constant dense<0.000000e+00> : vector<2x8x8xf32>
    %208 = tpu.matmul %203, %205, %cst_87 {dimension_numbers = #tpu.dot_dimension_numbers<[2], [2], [1], [1], [0, 0, 0, 1, 1, 1], [0], [0]>} : vector<2x8x32xf32>, vector<2x8x32xf32>, vector<2x8x8xf32> -> vector<2x8x8xf32>
    "tpu.trace_stop"() : () -> ()
    %209 = arith.addf %208, %37 : vector<2x8x8xf32>
    %cst_88 = arith.constant dense<0xFF800000> : vector<2x8xf32>
    %210 = vector.multi_reduction <maximumf>, %209, %cst_88 [2] : vector<2x8x8xf32> to vector<2x8xf32>
    %211 = vector.shape_cast %210 : vector<2x8xf32> to vector<2x8x1xf32>
    %212 = vector.broadcast %211 : vector<2x8x1xf32> to vector<2x8x8xf32>
    %213 = arith.subf %209, %212 : vector<2x8x8xf32>
    %214 = math.exp %213 : vector<2x8x8xf32>
    %cst_89 = arith.constant dense<0.000000e+00> : vector<2x8xf32>
    %215 = vector.multi_reduction <add>, %214, %cst_89 [2] : vector<2x8x8xf32> to vector<2x8xf32>
    %216 = vector.shape_cast %215 : vector<2x8xf32> to vector<2x8x1xf32>
    %217 = vector.broadcast %216 : vector<2x8x1xf32> to vector<2x8x8xf32>
    %218 = arith.divf %214, %217 : vector<2x8x8xf32>
    "tpu.trace_start"() <{level = 10 : i32, message = "bqk,bkd->bqd"}> : () -> ()
    %cst_90 = arith.constant dense<0.000000e+00> : vector<2x8x32xf32>
    %219 = tpu.matmul %218, %207, %cst_90 {dimension_numbers = #tpu.dot_dimension_numbers<[2], [1], [1], [2], [0, 0, 0, 1, 1, 2], [0], [0]>} : vector<2x8x8xf32>, vector<2x8x32xf32>, vector<2x8x32xf32> -> vector<2x8x32xf32>
    "tpu.trace_stop"() : () -> ()
    %220 = vector.shape_cast %219 : vector<2x8x32xf32> to vector<16x32xf32>
    %221 = vector.extract_strided_slice %201 {offsets = [0, 32], sizes = [16, 32], strides = [1, 1]} : vector<16x384xf32> to vector<16x32xf32>
    %222 = vector.shape_cast %221 : vector<16x32xf32> to vector<2x8x32xf32>
    %223 = vector.extract_strided_slice %201 {offsets = [0, 160], sizes = [16, 32], strides = [1, 1]} : vector<16x384xf32> to vector<16x32xf32>
    %224 = vector.shape_cast %223 : vector<16x32xf32> to vector<2x8x32xf32>
    %225 = vector.extract_strided_slice %201 {offsets = [0, 288], sizes = [16, 32], strides = [1, 1]} : vector<16x384xf32> to vector<16x32xf32>
    %226 = vector.shape_cast %225 : vector<16x32xf32> to vector<2x8x32xf32>
    "tpu.trace_start"() <{level = 10 : i32, message = "bqd,bkd->bqk"}> : () -> ()
    %cst_91 = arith.constant dense<0.000000e+00> : vector<2x8x8xf32>
    %227 = tpu.matmul %222, %224, %cst_91 {dimension_numbers = #tpu.dot_dimension_numbers<[2], [2], [1], [1], [0, 0, 0, 1, 1, 1], [0], [0]>} : vector<2x8x32xf32>, vector<2x8x32xf32>, vector<2x8x8xf32> -> vector<2x8x8xf32>
    "tpu.trace_stop"() : () -> ()
    %228 = arith.addf %227, %37 : vector<2x8x8xf32>
    %cst_92 = arith.constant dense<0xFF800000> : vector<2x8xf32>
    %229 = vector.multi_reduction <maximumf>, %228, %cst_92 [2] : vector<2x8x8xf32> to vector<2x8xf32>
    %230 = vector.shape_cast %229 : vector<2x8xf32> to vector<2x8x1xf32>
    %231 = vector.broadcast %230 : vector<2x8x1xf32> to vector<2x8x8xf32>
    %232 = arith.subf %228, %231 : vector<2x8x8xf32>
    %233 = math.exp %232 : vector<2x8x8xf32>
    %cst_93 = arith.constant dense<0.000000e+00> : vector<2x8xf32>
    %234 = vector.multi_reduction <add>, %233, %cst_93 [2] : vector<2x8x8xf32> to vector<2x8xf32>
    %235 = vector.shape_cast %234 : vector<2x8xf32> to vector<2x8x1xf32>
    %236 = vector.broadcast %235 : vector<2x8x1xf32> to vector<2x8x8xf32>
    %237 = arith.divf %233, %236 : vector<2x8x8xf32>
    "tpu.trace_start"() <{level = 10 : i32, message = "bqk,bkd->bqd"}> : () -> ()
    %cst_94 = arith.constant dense<0.000000e+00> : vector<2x8x32xf32>
    %238 = tpu.matmul %237, %226, %cst_94 {dimension_numbers = #tpu.dot_dimension_numbers<[2], [1], [1], [2], [0, 0, 0, 1, 1, 2], [0], [0]>} : vector<2x8x8xf32>, vector<2x8x32xf32>, vector<2x8x32xf32> -> vector<2x8x32xf32>
    "tpu.trace_stop"() : () -> ()
    %239 = vector.shape_cast %238 : vector<2x8x32xf32> to vector<16x32xf32>
    %240 = vector.extract_strided_slice %201 {offsets = [0, 64], sizes = [16, 32], strides = [1, 1]} : vector<16x384xf32> to vector<16x32xf32>
    %241 = vector.shape_cast %240 : vector<16x32xf32> to vector<2x8x32xf32>
    %242 = vector.extract_strided_slice %201 {offsets = [0, 192], sizes = [16, 32], strides = [1, 1]} : vector<16x384xf32> to vector<16x32xf32>
    %243 = vector.shape_cast %242 : vector<16x32xf32> to vector<2x8x32xf32>
    %244 = vector.extract_strided_slice %201 {offsets = [0, 320], sizes = [16, 32], strides = [1, 1]} : vector<16x384xf32> to vector<16x32xf32>
    %245 = vector.shape_cast %244 : vector<16x32xf32> to vector<2x8x32xf32>
    "tpu.trace_start"() <{level = 10 : i32, message = "bqd,bkd->bqk"}> : () -> ()
    %cst_95 = arith.constant dense<0.000000e+00> : vector<2x8x8xf32>
    %246 = tpu.matmul %241, %243, %cst_95 {dimension_numbers = #tpu.dot_dimension_numbers<[2], [2], [1], [1], [0, 0, 0, 1, 1, 1], [0], [0]>} : vector<2x8x32xf32>, vector<2x8x32xf32>, vector<2x8x8xf32> -> vector<2x8x8xf32>
    "tpu.trace_stop"() : () -> ()
    %247 = arith.addf %246, %37 : vector<2x8x8xf32>
    %cst_96 = arith.constant dense<0xFF800000> : vector<2x8xf32>
    %248 = vector.multi_reduction <maximumf>, %247, %cst_96 [2] : vector<2x8x8xf32> to vector<2x8xf32>
    %249 = vector.shape_cast %248 : vector<2x8xf32> to vector<2x8x1xf32>
    %250 = vector.broadcast %249 : vector<2x8x1xf32> to vector<2x8x8xf32>
    %251 = arith.subf %247, %250 : vector<2x8x8xf32>
    %252 = math.exp %251 : vector<2x8x8xf32>
    %cst_97 = arith.constant dense<0.000000e+00> : vector<2x8xf32>
    %253 = vector.multi_reduction <add>, %252, %cst_97 [2] : vector<2x8x8xf32> to vector<2x8xf32>
    %254 = vector.shape_cast %253 : vector<2x8xf32> to vector<2x8x1xf32>
    %255 = vector.broadcast %254 : vector<2x8x1xf32> to vector<2x8x8xf32>
    %256 = arith.divf %252, %255 : vector<2x8x8xf32>
    "tpu.trace_start"() <{level = 10 : i32, message = "bqk,bkd->bqd"}> : () -> ()
    %cst_98 = arith.constant dense<0.000000e+00> : vector<2x8x32xf32>
    %257 = tpu.matmul %256, %245, %cst_98 {dimension_numbers = #tpu.dot_dimension_numbers<[2], [1], [1], [2], [0, 0, 0, 1, 1, 2], [0], [0]>} : vector<2x8x8xf32>, vector<2x8x32xf32>, vector<2x8x32xf32> -> vector<2x8x32xf32>
    "tpu.trace_stop"() : () -> ()
    %258 = vector.shape_cast %257 : vector<2x8x32xf32> to vector<16x32xf32>
    %259 = vector.extract_strided_slice %201 {offsets = [0, 96], sizes = [16, 32], strides = [1, 1]} : vector<16x384xf32> to vector<16x32xf32>
    %260 = vector.shape_cast %259 : vector<16x32xf32> to vector<2x8x32xf32>
    %261 = vector.extract_strided_slice %201 {offsets = [0, 224], sizes = [16, 32], strides = [1, 1]} : vector<16x384xf32> to vector<16x32xf32>
    %262 = vector.shape_cast %261 : vector<16x32xf32> to vector<2x8x32xf32>
    %263 = vector.extract_strided_slice %201 {offsets = [0, 352], sizes = [16, 32], strides = [1, 1]} : vector<16x384xf32> to vector<16x32xf32>
    %264 = vector.shape_cast %263 : vector<16x32xf32> to vector<2x8x32xf32>
    "tpu.trace_start"() <{level = 10 : i32, message = "bqd,bkd->bqk"}> : () -> ()
    %cst_99 = arith.constant dense<0.000000e+00> : vector<2x8x8xf32>
    %265 = tpu.matmul %260, %262, %cst_99 {dimension_numbers = #tpu.dot_dimension_numbers<[2], [2], [1], [1], [0, 0, 0, 1, 1, 1], [0], [0]>} : vector<2x8x32xf32>, vector<2x8x32xf32>, vector<2x8x8xf32> -> vector<2x8x8xf32>
    "tpu.trace_stop"() : () -> ()
    %266 = arith.addf %265, %37 : vector<2x8x8xf32>
    %cst_100 = arith.constant dense<0xFF800000> : vector<2x8xf32>
    %267 = vector.multi_reduction <maximumf>, %266, %cst_100 [2] : vector<2x8x8xf32> to vector<2x8xf32>
    %268 = vector.shape_cast %267 : vector<2x8xf32> to vector<2x8x1xf32>
    %269 = vector.broadcast %268 : vector<2x8x1xf32> to vector<2x8x8xf32>
    %270 = arith.subf %266, %269 : vector<2x8x8xf32>
    %271 = math.exp %270 : vector<2x8x8xf32>
    %cst_101 = arith.constant dense<0.000000e+00> : vector<2x8xf32>
    %272 = vector.multi_reduction <add>, %271, %cst_101 [2] : vector<2x8x8xf32> to vector<2x8xf32>
    %273 = vector.shape_cast %272 : vector<2x8xf32> to vector<2x8x1xf32>
    %274 = vector.broadcast %273 : vector<2x8x1xf32> to vector<2x8x8xf32>
    %275 = arith.divf %271, %274 : vector<2x8x8xf32>
    "tpu.trace_start"() <{level = 10 : i32, message = "bqk,bkd->bqd"}> : () -> ()
    %cst_102 = arith.constant dense<0.000000e+00> : vector<2x8x32xf32>
    %276 = tpu.matmul %275, %264, %cst_102 {dimension_numbers = #tpu.dot_dimension_numbers<[2], [1], [1], [2], [0, 0, 0, 1, 1, 2], [0], [0]>} : vector<2x8x8xf32>, vector<2x8x32xf32>, vector<2x8x32xf32> -> vector<2x8x32xf32>
    "tpu.trace_stop"() : () -> ()
    %277 = vector.shape_cast %276 : vector<2x8x32xf32> to vector<16x32xf32>
    %278 = tpu.concatenate %220, %239, %258, %277 in 1 : vector<16x32xf32>, vector<16x32xf32>, vector<16x32xf32>, vector<16x32xf32> -> vector<16x128xf32>
    %c1_103 = arith.constant 1 : index
    %c0_104 = arith.constant 0 : index
    %c0_105 = arith.constant 0 : index
    %279 = vector.load %arg7[%c1_103, %c0_104, %c0_105] : memref<4x128x128xf32, #tpu.memory_space<vmem>>, vector<1x128x128xf32>
    %280 = vector.shape_cast %279 : vector<1x128x128xf32> to vector<128x128xf32>
    %cst_106 = arith.constant dense<0.000000e+00> : vector<16x128xf32>
    %281 = tpu.matmul %278, %280, %cst_106 {dimension_numbers = #tpu.dot_dimension_numbers<[1], [0], [0], [1], [0, 0, 1, 1], [], []>} : vector<16x128xf32>, vector<128x128xf32>, vector<16x128xf32> -> vector<16x128xf32>
    %c1_107 = arith.constant 1 : index
    %c0_108 = arith.constant 0 : index
    %c0_109 = arith.constant 0 : index
    %282 = vector.load %arg8[%c1_107, %c0_108, %c0_109] : memref<4x1x128xf32, #tpu.memory_space<vmem>>, vector<1x1x128xf32>
    %283 = vector.shape_cast %282 : vector<1x1x128xf32> to vector<1x128xf32>
    %284 = vector.broadcast %283 : vector<1x128xf32> to vector<16x128xf32>
    %285 = arith.addf %281, %284 : vector<16x128xf32>
    %286 = arith.addf %194, %285 : vector<16x128xf32>
    %c1_110 = arith.constant 1 : index
    %c0_111 = arith.constant 0 : index
    %c0_112 = arith.constant 0 : index
    %287 = vector.load %arg9[%c1_110, %c0_111, %c0_112] : memref<4x1x128xf32, #tpu.memory_space<vmem>>, vector<1x1x128xf32>
    %288 = vector.shape_cast %287 : vector<1x1x128xf32> to vector<1x128xf32>
    %c1_113 = arith.constant 1 : index
    %c0_114 = arith.constant 0 : index
    %c0_115 = arith.constant 0 : index
    %289 = vector.load %arg10[%c1_113, %c0_114, %c0_115] : memref<4x1x128xf32, #tpu.memory_space<vmem>>, vector<1x1x128xf32>
    %290 = vector.shape_cast %289 : vector<1x1x128xf32> to vector<1x128xf32>
    %cst_116 = arith.constant dense<0.000000e+00> : vector<16xf32>
    %291 = vector.multi_reduction <add>, %286, %cst_116 [1] : vector<16x128xf32> to vector<16xf32>
    %292 = vector.shape_cast %291 : vector<16xf32> to vector<16x1xf32>
    %cst_117 = arith.constant 1.280000e+02 : f32
    %293 = vector.broadcast %cst_117 : f32 to vector<16x1xf32>
    %294 = arith.divf %292, %293 : vector<16x1xf32>
    %295 = vector.broadcast %294 : vector<16x1xf32> to vector<16x128xf32>
    %296 = arith.subf %286, %295 : vector<16x128xf32>
    %297 = arith.mulf %296, %296 : vector<16x128xf32>
    %cst_118 = arith.constant dense<0.000000e+00> : vector<16xf32>
    %298 = vector.multi_reduction <add>, %297, %cst_118 [1] : vector<16x128xf32> to vector<16xf32>
    %299 = vector.shape_cast %298 : vector<16xf32> to vector<16x1xf32>
    %cst_119 = arith.constant 1.280000e+02 : f32
    %300 = vector.broadcast %cst_119 : f32 to vector<16x1xf32>
    %301 = arith.divf %299, %300 : vector<16x1xf32>
    %cst_120 = arith.constant 9.99999974E-6 : f32
    %302 = vector.broadcast %cst_120 : f32 to vector<16x1xf32>
    %303 = arith.addf %301, %302 : vector<16x1xf32>
    %304 = math.rsqrt %303 : vector<16x1xf32>
    %305 = vector.broadcast %304 : vector<16x1xf32> to vector<16x128xf32>
    %306 = arith.mulf %296, %305 : vector<16x128xf32>
    %307 = vector.broadcast %288 : vector<1x128xf32> to vector<16x128xf32>
    %308 = arith.mulf %306, %307 : vector<16x128xf32>
    %309 = vector.broadcast %290 : vector<1x128xf32> to vector<16x128xf32>
    %310 = arith.addf %308, %309 : vector<16x128xf32>
    %c1_121 = arith.constant 1 : index
    %c0_122 = arith.constant 0 : index
    %c0_123 = arith.constant 0 : index
    %311 = vector.load %arg11[%c1_121, %c0_122, %c0_123] : memref<4x128x128xf32, #tpu.memory_space<vmem>>, vector<1x128x128xf32>
    %312 = vector.shape_cast %311 : vector<1x128x128xf32> to vector<128x128xf32>
    %cst_124 = arith.constant dense<0.000000e+00> : vector<16x128xf32>
    %313 = tpu.matmul %310, %312, %cst_124 {dimension_numbers = #tpu.dot_dimension_numbers<[1], [0], [0], [1], [0, 0, 1, 1], [], []>} : vector<16x128xf32>, vector<128x128xf32>, vector<16x128xf32> -> vector<16x128xf32>
    %c1_125 = arith.constant 1 : index
    %c0_126 = arith.constant 0 : index
    %c0_127 = arith.constant 0 : index
    %314 = vector.load %arg12[%c1_125, %c0_126, %c0_127] : memref<4x1x128xf32, #tpu.memory_space<vmem>>, vector<1x1x128xf32>
    %315 = vector.shape_cast %314 : vector<1x1x128xf32> to vector<1x128xf32>
    %316 = vector.broadcast %315 : vector<1x128xf32> to vector<16x128xf32>
    %317 = arith.addf %313, %316 : vector<16x128xf32>
    %cst_128 = arith.constant 0.000000e+00 : f32
    %318 = vector.broadcast %cst_128 : f32 to vector<16x128xf32>
    %319 = arith.maximumf %317, %318 : vector<16x128xf32>
    %c1_129 = arith.constant 1 : index
    %c0_130 = arith.constant 0 : index
    %c0_131 = arith.constant 0 : index
    %320 = vector.load %arg13[%c1_129, %c0_130, %c0_131] : memref<4x128x128xf32, #tpu.memory_space<vmem>>, vector<1x128x128xf32>
    %321 = vector.shape_cast %320 : vector<1x128x128xf32> to vector<128x128xf32>
    %cst_132 = arith.constant dense<0.000000e+00> : vector<16x128xf32>
    %322 = tpu.matmul %319, %321, %cst_132 {dimension_numbers = #tpu.dot_dimension_numbers<[1], [0], [0], [1], [0, 0, 1, 1], [], []>} : vector<16x128xf32>, vector<128x128xf32>, vector<16x128xf32> -> vector<16x128xf32>
    %c1_133 = arith.constant 1 : index
    %c0_134 = arith.constant 0 : index
    %c0_135 = arith.constant 0 : index
    %323 = vector.load %arg14[%c1_133, %c0_134, %c0_135] : memref<4x1x128xf32, #tpu.memory_space<vmem>>, vector<1x1x128xf32>
    %324 = vector.shape_cast %323 : vector<1x1x128xf32> to vector<1x128xf32>
    %325 = vector.broadcast %324 : vector<1x128xf32> to vector<16x128xf32>
    %326 = arith.addf %322, %325 : vector<16x128xf32>
    %327 = arith.addf %310, %326 : vector<16x128xf32>
    %c1_136 = arith.constant 1 : index
    %c0_137 = arith.constant 0 : index
    %c0_138 = arith.constant 0 : index
    %328 = vector.load %arg15[%c1_136, %c0_137, %c0_138] : memref<4x1x128xf32, #tpu.memory_space<vmem>>, vector<1x1x128xf32>
    %329 = vector.shape_cast %328 : vector<1x1x128xf32> to vector<1x128xf32>
    %c1_139 = arith.constant 1 : index
    %c0_140 = arith.constant 0 : index
    %c0_141 = arith.constant 0 : index
    %330 = vector.load %arg16[%c1_139, %c0_140, %c0_141] : memref<4x1x128xf32, #tpu.memory_space<vmem>>, vector<1x1x128xf32>
    %331 = vector.shape_cast %330 : vector<1x1x128xf32> to vector<1x128xf32>
    %cst_142 = arith.constant dense<0.000000e+00> : vector<16xf32>
    %332 = vector.multi_reduction <add>, %327, %cst_142 [1] : vector<16x128xf32> to vector<16xf32>
    %333 = vector.shape_cast %332 : vector<16xf32> to vector<16x1xf32>
    %cst_143 = arith.constant 1.280000e+02 : f32
    %334 = vector.broadcast %cst_143 : f32 to vector<16x1xf32>
    %335 = arith.divf %333, %334 : vector<16x1xf32>
    %336 = vector.broadcast %335 : vector<16x1xf32> to vector<16x128xf32>
    %337 = arith.subf %327, %336 : vector<16x128xf32>
    %338 = arith.mulf %337, %337 : vector<16x128xf32>
    %cst_144 = arith.constant dense<0.000000e+00> : vector<16xf32>
    %339 = vector.multi_reduction <add>, %338, %cst_144 [1] : vector<16x128xf32> to vector<16xf32>
    %340 = vector.shape_cast %339 : vector<16xf32> to vector<16x1xf32>
    %cst_145 = arith.constant 1.280000e+02 : f32
    %341 = vector.broadcast %cst_145 : f32 to vector<16x1xf32>
    %342 = arith.divf %340, %341 : vector<16x1xf32>
    %cst_146 = arith.constant 9.99999974E-6 : f32
    %343 = vector.broadcast %cst_146 : f32 to vector<16x1xf32>
    %344 = arith.addf %342, %343 : vector<16x1xf32>
    %345 = math.rsqrt %344 : vector<16x1xf32>
    %346 = vector.broadcast %345 : vector<16x1xf32> to vector<16x128xf32>
    %347 = arith.mulf %337, %346 : vector<16x128xf32>
    %348 = vector.broadcast %329 : vector<1x128xf32> to vector<16x128xf32>
    %349 = arith.mulf %347, %348 : vector<16x128xf32>
    %350 = vector.broadcast %331 : vector<1x128xf32> to vector<16x128xf32>
    %351 = arith.addf %349, %350 : vector<16x128xf32>
    %c2 = arith.constant 2 : index
    %c0_147 = arith.constant 0 : index
    %c0_148 = arith.constant 0 : index
    %352 = vector.load %arg5[%c2, %c0_147, %c0_148] : memref<4x128x384xf32, #tpu.memory_space<vmem>>, vector<1x128x384xf32>
    %353 = vector.shape_cast %352 : vector<1x128x384xf32> to vector<128x384xf32>
    %cst_149 = arith.constant dense<0.000000e+00> : vector<16x384xf32>
    %354 = tpu.matmul %351, %353, %cst_149 {dimension_numbers = #tpu.dot_dimension_numbers<[1], [0], [0], [1], [0, 0, 1, 1], [], []>} : vector<16x128xf32>, vector<128x384xf32>, vector<16x384xf32> -> vector<16x384xf32>
    %c2_150 = arith.constant 2 : index
    %c0_151 = arith.constant 0 : index
    %c0_152 = arith.constant 0 : index
    %355 = vector.load %arg6[%c2_150, %c0_151, %c0_152] : memref<4x1x384xf32, #tpu.memory_space<vmem>>, vector<1x1x384xf32>
    %356 = vector.shape_cast %355 : vector<1x1x384xf32> to vector<1x384xf32>
    %357 = vector.broadcast %356 : vector<1x384xf32> to vector<16x384xf32>
    %358 = arith.addf %354, %357 : vector<16x384xf32>
    %359 = vector.extract_strided_slice %358 {offsets = [0, 0], sizes = [16, 32], strides = [1, 1]} : vector<16x384xf32> to vector<16x32xf32>
    %360 = vector.shape_cast %359 : vector<16x32xf32> to vector<2x8x32xf32>
    %361 = vector.extract_strided_slice %358 {offsets = [0, 128], sizes = [16, 32], strides = [1, 1]} : vector<16x384xf32> to vector<16x32xf32>
    %362 = vector.shape_cast %361 : vector<16x32xf32> to vector<2x8x32xf32>
    %363 = vector.extract_strided_slice %358 {offsets = [0, 256], sizes = [16, 32], strides = [1, 1]} : vector<16x384xf32> to vector<16x32xf32>
    %364 = vector.shape_cast %363 : vector<16x32xf32> to vector<2x8x32xf32>
    "tpu.trace_start"() <{level = 10 : i32, message = "bqd,bkd->bqk"}> : () -> ()
    %cst_153 = arith.constant dense<0.000000e+00> : vector<2x8x8xf32>
    %365 = tpu.matmul %360, %362, %cst_153 {dimension_numbers = #tpu.dot_dimension_numbers<[2], [2], [1], [1], [0, 0, 0, 1, 1, 1], [0], [0]>} : vector<2x8x32xf32>, vector<2x8x32xf32>, vector<2x8x8xf32> -> vector<2x8x8xf32>
    "tpu.trace_stop"() : () -> ()
    %366 = arith.addf %365, %37 : vector<2x8x8xf32>
    %cst_154 = arith.constant dense<0xFF800000> : vector<2x8xf32>
    %367 = vector.multi_reduction <maximumf>, %366, %cst_154 [2] : vector<2x8x8xf32> to vector<2x8xf32>
    %368 = vector.shape_cast %367 : vector<2x8xf32> to vector<2x8x1xf32>
    %369 = vector.broadcast %368 : vector<2x8x1xf32> to vector<2x8x8xf32>
    %370 = arith.subf %366, %369 : vector<2x8x8xf32>
    %371 = math.exp %370 : vector<2x8x8xf32>
    %cst_155 = arith.constant dense<0.000000e+00> : vector<2x8xf32>
    %372 = vector.multi_reduction <add>, %371, %cst_155 [2] : vector<2x8x8xf32> to vector<2x8xf32>
    %373 = vector.shape_cast %372 : vector<2x8xf32> to vector<2x8x1xf32>
    %374 = vector.broadcast %373 : vector<2x8x1xf32> to vector<2x8x8xf32>
    %375 = arith.divf %371, %374 : vector<2x8x8xf32>
    "tpu.trace_start"() <{level = 10 : i32, message = "bqk,bkd->bqd"}> : () -> ()
    %cst_156 = arith.constant dense<0.000000e+00> : vector<2x8x32xf32>
    %376 = tpu.matmul %375, %364, %cst_156 {dimension_numbers = #tpu.dot_dimension_numbers<[2], [1], [1], [2], [0, 0, 0, 1, 1, 2], [0], [0]>} : vector<2x8x8xf32>, vector<2x8x32xf32>, vector<2x8x32xf32> -> vector<2x8x32xf32>
    "tpu.trace_stop"() : () -> ()
    %377 = vector.shape_cast %376 : vector<2x8x32xf32> to vector<16x32xf32>
    %378 = vector.extract_strided_slice %358 {offsets = [0, 32], sizes = [16, 32], strides = [1, 1]} : vector<16x384xf32> to vector<16x32xf32>
    %379 = vector.shape_cast %378 : vector<16x32xf32> to vector<2x8x32xf32>
    %380 = vector.extract_strided_slice %358 {offsets = [0, 160], sizes = [16, 32], strides = [1, 1]} : vector<16x384xf32> to vector<16x32xf32>
    %381 = vector.shape_cast %380 : vector<16x32xf32> to vector<2x8x32xf32>
    %382 = vector.extract_strided_slice %358 {offsets = [0, 288], sizes = [16, 32], strides = [1, 1]} : vector<16x384xf32> to vector<16x32xf32>
    %383 = vector.shape_cast %382 : vector<16x32xf32> to vector<2x8x32xf32>
    "tpu.trace_start"() <{level = 10 : i32, message = "bqd,bkd->bqk"}> : () -> ()
    %cst_157 = arith.constant dense<0.000000e+00> : vector<2x8x8xf32>
    %384 = tpu.matmul %379, %381, %cst_157 {dimension_numbers = #tpu.dot_dimension_numbers<[2], [2], [1], [1], [0, 0, 0, 1, 1, 1], [0], [0]>} : vector<2x8x32xf32>, vector<2x8x32xf32>, vector<2x8x8xf32> -> vector<2x8x8xf32>
    "tpu.trace_stop"() : () -> ()
    %385 = arith.addf %384, %37 : vector<2x8x8xf32>
    %cst_158 = arith.constant dense<0xFF800000> : vector<2x8xf32>
    %386 = vector.multi_reduction <maximumf>, %385, %cst_158 [2] : vector<2x8x8xf32> to vector<2x8xf32>
    %387 = vector.shape_cast %386 : vector<2x8xf32> to vector<2x8x1xf32>
    %388 = vector.broadcast %387 : vector<2x8x1xf32> to vector<2x8x8xf32>
    %389 = arith.subf %385, %388 : vector<2x8x8xf32>
    %390 = math.exp %389 : vector<2x8x8xf32>
    %cst_159 = arith.constant dense<0.000000e+00> : vector<2x8xf32>
    %391 = vector.multi_reduction <add>, %390, %cst_159 [2] : vector<2x8x8xf32> to vector<2x8xf32>
    %392 = vector.shape_cast %391 : vector<2x8xf32> to vector<2x8x1xf32>
    %393 = vector.broadcast %392 : vector<2x8x1xf32> to vector<2x8x8xf32>
    %394 = arith.divf %390, %393 : vector<2x8x8xf32>
    "tpu.trace_start"() <{level = 10 : i32, message = "bqk,bkd->bqd"}> : () -> ()
    %cst_160 = arith.constant dense<0.000000e+00> : vector<2x8x32xf32>
    %395 = tpu.matmul %394, %383, %cst_160 {dimension_numbers = #tpu.dot_dimension_numbers<[2], [1], [1], [2], [0, 0, 0, 1, 1, 2], [0], [0]>} : vector<2x8x8xf32>, vector<2x8x32xf32>, vector<2x8x32xf32> -> vector<2x8x32xf32>
    "tpu.trace_stop"() : () -> ()
    %396 = vector.shape_cast %395 : vector<2x8x32xf32> to vector<16x32xf32>
    %397 = vector.extract_strided_slice %358 {offsets = [0, 64], sizes = [16, 32], strides = [1, 1]} : vector<16x384xf32> to vector<16x32xf32>
    %398 = vector.shape_cast %397 : vector<16x32xf32> to vector<2x8x32xf32>
    %399 = vector.extract_strided_slice %358 {offsets = [0, 192], sizes = [16, 32], strides = [1, 1]} : vector<16x384xf32> to vector<16x32xf32>
    %400 = vector.shape_cast %399 : vector<16x32xf32> to vector<2x8x32xf32>
    %401 = vector.extract_strided_slice %358 {offsets = [0, 320], sizes = [16, 32], strides = [1, 1]} : vector<16x384xf32> to vector<16x32xf32>
    %402 = vector.shape_cast %401 : vector<16x32xf32> to vector<2x8x32xf32>
    "tpu.trace_start"() <{level = 10 : i32, message = "bqd,bkd->bqk"}> : () -> ()
    %cst_161 = arith.constant dense<0.000000e+00> : vector<2x8x8xf32>
    %403 = tpu.matmul %398, %400, %cst_161 {dimension_numbers = #tpu.dot_dimension_numbers<[2], [2], [1], [1], [0, 0, 0, 1, 1, 1], [0], [0]>} : vector<2x8x32xf32>, vector<2x8x32xf32>, vector<2x8x8xf32> -> vector<2x8x8xf32>
    "tpu.trace_stop"() : () -> ()
    %404 = arith.addf %403, %37 : vector<2x8x8xf32>
    %cst_162 = arith.constant dense<0xFF800000> : vector<2x8xf32>
    %405 = vector.multi_reduction <maximumf>, %404, %cst_162 [2] : vector<2x8x8xf32> to vector<2x8xf32>
    %406 = vector.shape_cast %405 : vector<2x8xf32> to vector<2x8x1xf32>
    %407 = vector.broadcast %406 : vector<2x8x1xf32> to vector<2x8x8xf32>
    %408 = arith.subf %404, %407 : vector<2x8x8xf32>
    %409 = math.exp %408 : vector<2x8x8xf32>
    %cst_163 = arith.constant dense<0.000000e+00> : vector<2x8xf32>
    %410 = vector.multi_reduction <add>, %409, %cst_163 [2] : vector<2x8x8xf32> to vector<2x8xf32>
    %411 = vector.shape_cast %410 : vector<2x8xf32> to vector<2x8x1xf32>
    %412 = vector.broadcast %411 : vector<2x8x1xf32> to vector<2x8x8xf32>
    %413 = arith.divf %409, %412 : vector<2x8x8xf32>
    "tpu.trace_start"() <{level = 10 : i32, message = "bqk,bkd->bqd"}> : () -> ()
    %cst_164 = arith.constant dense<0.000000e+00> : vector<2x8x32xf32>
    %414 = tpu.matmul %413, %402, %cst_164 {dimension_numbers = #tpu.dot_dimension_numbers<[2], [1], [1], [2], [0, 0, 0, 1, 1, 2], [0], [0]>} : vector<2x8x8xf32>, vector<2x8x32xf32>, vector<2x8x32xf32> -> vector<2x8x32xf32>
    "tpu.trace_stop"() : () -> ()
    %415 = vector.shape_cast %414 : vector<2x8x32xf32> to vector<16x32xf32>
    %416 = vector.extract_strided_slice %358 {offsets = [0, 96], sizes = [16, 32], strides = [1, 1]} : vector<16x384xf32> to vector<16x32xf32>
    %417 = vector.shape_cast %416 : vector<16x32xf32> to vector<2x8x32xf32>
    %418 = vector.extract_strided_slice %358 {offsets = [0, 224], sizes = [16, 32], strides = [1, 1]} : vector<16x384xf32> to vector<16x32xf32>
    %419 = vector.shape_cast %418 : vector<16x32xf32> to vector<2x8x32xf32>
    %420 = vector.extract_strided_slice %358 {offsets = [0, 352], sizes = [16, 32], strides = [1, 1]} : vector<16x384xf32> to vector<16x32xf32>
    %421 = vector.shape_cast %420 : vector<16x32xf32> to vector<2x8x32xf32>
    "tpu.trace_start"() <{level = 10 : i32, message = "bqd,bkd->bqk"}> : () -> ()
    %cst_165 = arith.constant dense<0.000000e+00> : vector<2x8x8xf32>
    %422 = tpu.matmul %417, %419, %cst_165 {dimension_numbers = #tpu.dot_dimension_numbers<[2], [2], [1], [1], [0, 0, 0, 1, 1, 1], [0], [0]>} : vector<2x8x32xf32>, vector<2x8x32xf32>, vector<2x8x8xf32> -> vector<2x8x8xf32>
    "tpu.trace_stop"() : () -> ()
    %423 = arith.addf %422, %37 : vector<2x8x8xf32>
    %cst_166 = arith.constant dense<0xFF800000> : vector<2x8xf32>
    %424 = vector.multi_reduction <maximumf>, %423, %cst_166 [2] : vector<2x8x8xf32> to vector<2x8xf32>
    %425 = vector.shape_cast %424 : vector<2x8xf32> to vector<2x8x1xf32>
    %426 = vector.broadcast %425 : vector<2x8x1xf32> to vector<2x8x8xf32>
    %427 = arith.subf %423, %426 : vector<2x8x8xf32>
    %428 = math.exp %427 : vector<2x8x8xf32>
    %cst_167 = arith.constant dense<0.000000e+00> : vector<2x8xf32>
    %429 = vector.multi_reduction <add>, %428, %cst_167 [2] : vector<2x8x8xf32> to vector<2x8xf32>
    %430 = vector.shape_cast %429 : vector<2x8xf32> to vector<2x8x1xf32>
    %431 = vector.broadcast %430 : vector<2x8x1xf32> to vector<2x8x8xf32>
    %432 = arith.divf %428, %431 : vector<2x8x8xf32>
    "tpu.trace_start"() <{level = 10 : i32, message = "bqk,bkd->bqd"}> : () -> ()
    %cst_168 = arith.constant dense<0.000000e+00> : vector<2x8x32xf32>
    %433 = tpu.matmul %432, %421, %cst_168 {dimension_numbers = #tpu.dot_dimension_numbers<[2], [1], [1], [2], [0, 0, 0, 1, 1, 2], [0], [0]>} : vector<2x8x8xf32>, vector<2x8x32xf32>, vector<2x8x32xf32> -> vector<2x8x32xf32>
    "tpu.trace_stop"() : () -> ()
    %434 = vector.shape_cast %433 : vector<2x8x32xf32> to vector<16x32xf32>
    %435 = tpu.concatenate %377, %396, %415, %434 in 1 : vector<16x32xf32>, vector<16x32xf32>, vector<16x32xf32>, vector<16x32xf32> -> vector<16x128xf32>
    %c2_169 = arith.constant 2 : index
    %c0_170 = arith.constant 0 : index
    %c0_171 = arith.constant 0 : index
    %436 = vector.load %arg7[%c2_169, %c0_170, %c0_171] : memref<4x128x128xf32, #tpu.memory_space<vmem>>, vector<1x128x128xf32>
    %437 = vector.shape_cast %436 : vector<1x128x128xf32> to vector<128x128xf32>
    %cst_172 = arith.constant dense<0.000000e+00> : vector<16x128xf32>
    %438 = tpu.matmul %435, %437, %cst_172 {dimension_numbers = #tpu.dot_dimension_numbers<[1], [0], [0], [1], [0, 0, 1, 1], [], []>} : vector<16x128xf32>, vector<128x128xf32>, vector<16x128xf32> -> vector<16x128xf32>
    %c2_173 = arith.constant 2 : index
    %c0_174 = arith.constant 0 : index
    %c0_175 = arith.constant 0 : index
    %439 = vector.load %arg8[%c2_173, %c0_174, %c0_175] : memref<4x1x128xf32, #tpu.memory_space<vmem>>, vector<1x1x128xf32>
    %440 = vector.shape_cast %439 : vector<1x1x128xf32> to vector<1x128xf32>
    %441 = vector.broadcast %440 : vector<1x128xf32> to vector<16x128xf32>
    %442 = arith.addf %438, %441 : vector<16x128xf32>
    %443 = arith.addf %351, %442 : vector<16x128xf32>
    %c2_176 = arith.constant 2 : index
    %c0_177 = arith.constant 0 : index
    %c0_178 = arith.constant 0 : index
    %444 = vector.load %arg9[%c2_176, %c0_177, %c0_178] : memref<4x1x128xf32, #tpu.memory_space<vmem>>, vector<1x1x128xf32>
    %445 = vector.shape_cast %444 : vector<1x1x128xf32> to vector<1x128xf32>
    %c2_179 = arith.constant 2 : index
    %c0_180 = arith.constant 0 : index
    %c0_181 = arith.constant 0 : index
    %446 = vector.load %arg10[%c2_179, %c0_180, %c0_181] : memref<4x1x128xf32, #tpu.memory_space<vmem>>, vector<1x1x128xf32>
    %447 = vector.shape_cast %446 : vector<1x1x128xf32> to vector<1x128xf32>
    %cst_182 = arith.constant dense<0.000000e+00> : vector<16xf32>
    %448 = vector.multi_reduction <add>, %443, %cst_182 [1] : vector<16x128xf32> to vector<16xf32>
    %449 = vector.shape_cast %448 : vector<16xf32> to vector<16x1xf32>
    %cst_183 = arith.constant 1.280000e+02 : f32
    %450 = vector.broadcast %cst_183 : f32 to vector<16x1xf32>
    %451 = arith.divf %449, %450 : vector<16x1xf32>
    %452 = vector.broadcast %451 : vector<16x1xf32> to vector<16x128xf32>
    %453 = arith.subf %443, %452 : vector<16x128xf32>
    %454 = arith.mulf %453, %453 : vector<16x128xf32>
    %cst_184 = arith.constant dense<0.000000e+00> : vector<16xf32>
    %455 = vector.multi_reduction <add>, %454, %cst_184 [1] : vector<16x128xf32> to vector<16xf32>
    %456 = vector.shape_cast %455 : vector<16xf32> to vector<16x1xf32>
    %cst_185 = arith.constant 1.280000e+02 : f32
    %457 = vector.broadcast %cst_185 : f32 to vector<16x1xf32>
    %458 = arith.divf %456, %457 : vector<16x1xf32>
    %cst_186 = arith.constant 9.99999974E-6 : f32
    %459 = vector.broadcast %cst_186 : f32 to vector<16x1xf32>
    %460 = arith.addf %458, %459 : vector<16x1xf32>
    %461 = math.rsqrt %460 : vector<16x1xf32>
    %462 = vector.broadcast %461 : vector<16x1xf32> to vector<16x128xf32>
    %463 = arith.mulf %453, %462 : vector<16x128xf32>
    %464 = vector.broadcast %445 : vector<1x128xf32> to vector<16x128xf32>
    %465 = arith.mulf %463, %464 : vector<16x128xf32>
    %466 = vector.broadcast %447 : vector<1x128xf32> to vector<16x128xf32>
    %467 = arith.addf %465, %466 : vector<16x128xf32>
    %c2_187 = arith.constant 2 : index
    %c0_188 = arith.constant 0 : index
    %c0_189 = arith.constant 0 : index
    %468 = vector.load %arg11[%c2_187, %c0_188, %c0_189] : memref<4x128x128xf32, #tpu.memory_space<vmem>>, vector<1x128x128xf32>
    %469 = vector.shape_cast %468 : vector<1x128x128xf32> to vector<128x128xf32>
    %cst_190 = arith.constant dense<0.000000e+00> : vector<16x128xf32>
    %470 = tpu.matmul %467, %469, %cst_190 {dimension_numbers = #tpu.dot_dimension_numbers<[1], [0], [0], [1], [0, 0, 1, 1], [], []>} : vector<16x128xf32>, vector<128x128xf32>, vector<16x128xf32> -> vector<16x128xf32>
    %c2_191 = arith.constant 2 : index
    %c0_192 = arith.constant 0 : index
    %c0_193 = arith.constant 0 : index
    %471 = vector.load %arg12[%c2_191, %c0_192, %c0_193] : memref<4x1x128xf32, #tpu.memory_space<vmem>>, vector<1x1x128xf32>
    %472 = vector.shape_cast %471 : vector<1x1x128xf32> to vector<1x128xf32>
    %473 = vector.broadcast %472 : vector<1x128xf32> to vector<16x128xf32>
    %474 = arith.addf %470, %473 : vector<16x128xf32>
    %cst_194 = arith.constant 0.000000e+00 : f32
    %475 = vector.broadcast %cst_194 : f32 to vector<16x128xf32>
    %476 = arith.maximumf %474, %475 : vector<16x128xf32>
    %c2_195 = arith.constant 2 : index
    %c0_196 = arith.constant 0 : index
    %c0_197 = arith.constant 0 : index
    %477 = vector.load %arg13[%c2_195, %c0_196, %c0_197] : memref<4x128x128xf32, #tpu.memory_space<vmem>>, vector<1x128x128xf32>
    %478 = vector.shape_cast %477 : vector<1x128x128xf32> to vector<128x128xf32>
    %cst_198 = arith.constant dense<0.000000e+00> : vector<16x128xf32>
    %479 = tpu.matmul %476, %478, %cst_198 {dimension_numbers = #tpu.dot_dimension_numbers<[1], [0], [0], [1], [0, 0, 1, 1], [], []>} : vector<16x128xf32>, vector<128x128xf32>, vector<16x128xf32> -> vector<16x128xf32>
    %c2_199 = arith.constant 2 : index
    %c0_200 = arith.constant 0 : index
    %c0_201 = arith.constant 0 : index
    %480 = vector.load %arg14[%c2_199, %c0_200, %c0_201] : memref<4x1x128xf32, #tpu.memory_space<vmem>>, vector<1x1x128xf32>
    %481 = vector.shape_cast %480 : vector<1x1x128xf32> to vector<1x128xf32>
    %482 = vector.broadcast %481 : vector<1x128xf32> to vector<16x128xf32>
    %483 = arith.addf %479, %482 : vector<16x128xf32>
    %484 = arith.addf %467, %483 : vector<16x128xf32>
    %c2_202 = arith.constant 2 : index
    %c0_203 = arith.constant 0 : index
    %c0_204 = arith.constant 0 : index
    %485 = vector.load %arg15[%c2_202, %c0_203, %c0_204] : memref<4x1x128xf32, #tpu.memory_space<vmem>>, vector<1x1x128xf32>
    %486 = vector.shape_cast %485 : vector<1x1x128xf32> to vector<1x128xf32>
    %c2_205 = arith.constant 2 : index
    %c0_206 = arith.constant 0 : index
    %c0_207 = arith.constant 0 : index
    %487 = vector.load %arg16[%c2_205, %c0_206, %c0_207] : memref<4x1x128xf32, #tpu.memory_space<vmem>>, vector<1x1x128xf32>
    %488 = vector.shape_cast %487 : vector<1x1x128xf32> to vector<1x128xf32>
    %cst_208 = arith.constant dense<0.000000e+00> : vector<16xf32>
    %489 = vector.multi_reduction <add>, %484, %cst_208 [1] : vector<16x128xf32> to vector<16xf32>
    %490 = vector.shape_cast %489 : vector<16xf32> to vector<16x1xf32>
    %cst_209 = arith.constant 1.280000e+02 : f32
    %491 = vector.broadcast %cst_209 : f32 to vector<16x1xf32>
    %492 = arith.divf %490, %491 : vector<16x1xf32>
    %493 = vector.broadcast %492 : vector<16x1xf32> to vector<16x128xf32>
    %494 = arith.subf %484, %493 : vector<16x128xf32>
    %495 = arith.mulf %494, %494 : vector<16x128xf32>
    %cst_210 = arith.constant dense<0.000000e+00> : vector<16xf32>
    %496 = vector.multi_reduction <add>, %495, %cst_210 [1] : vector<16x128xf32> to vector<16xf32>
    %497 = vector.shape_cast %496 : vector<16xf32> to vector<16x1xf32>
    %cst_211 = arith.constant 1.280000e+02 : f32
    %498 = vector.broadcast %cst_211 : f32 to vector<16x1xf32>
    %499 = arith.divf %497, %498 : vector<16x1xf32>
    %cst_212 = arith.constant 9.99999974E-6 : f32
    %500 = vector.broadcast %cst_212 : f32 to vector<16x1xf32>
    %501 = arith.addf %499, %500 : vector<16x1xf32>
    %502 = math.rsqrt %501 : vector<16x1xf32>
    %503 = vector.broadcast %502 : vector<16x1xf32> to vector<16x128xf32>
    %504 = arith.mulf %494, %503 : vector<16x128xf32>
    %505 = vector.broadcast %486 : vector<1x128xf32> to vector<16x128xf32>
    %506 = arith.mulf %504, %505 : vector<16x128xf32>
    %507 = vector.broadcast %488 : vector<1x128xf32> to vector<16x128xf32>
    %508 = arith.addf %506, %507 : vector<16x128xf32>
    %c3 = arith.constant 3 : index
    %c0_213 = arith.constant 0 : index
    %c0_214 = arith.constant 0 : index
    %509 = vector.load %arg5[%c3, %c0_213, %c0_214] : memref<4x128x384xf32, #tpu.memory_space<vmem>>, vector<1x128x384xf32>
    %510 = vector.shape_cast %509 : vector<1x128x384xf32> to vector<128x384xf32>
    %cst_215 = arith.constant dense<0.000000e+00> : vector<16x384xf32>
    %511 = tpu.matmul %508, %510, %cst_215 {dimension_numbers = #tpu.dot_dimension_numbers<[1], [0], [0], [1], [0, 0, 1, 1], [], []>} : vector<16x128xf32>, vector<128x384xf32>, vector<16x384xf32> -> vector<16x384xf32>
    %c3_216 = arith.constant 3 : index
    %c0_217 = arith.constant 0 : index
    %c0_218 = arith.constant 0 : index
    %512 = vector.load %arg6[%c3_216, %c0_217, %c0_218] : memref<4x1x384xf32, #tpu.memory_space<vmem>>, vector<1x1x384xf32>
    %513 = vector.shape_cast %512 : vector<1x1x384xf32> to vector<1x384xf32>
    %514 = vector.broadcast %513 : vector<1x384xf32> to vector<16x384xf32>
    %515 = arith.addf %511, %514 : vector<16x384xf32>
    %516 = vector.extract_strided_slice %515 {offsets = [0, 0], sizes = [16, 32], strides = [1, 1]} : vector<16x384xf32> to vector<16x32xf32>
    %517 = vector.shape_cast %516 : vector<16x32xf32> to vector<2x8x32xf32>
    %518 = vector.extract_strided_slice %515 {offsets = [0, 128], sizes = [16, 32], strides = [1, 1]} : vector<16x384xf32> to vector<16x32xf32>
    %519 = vector.shape_cast %518 : vector<16x32xf32> to vector<2x8x32xf32>
    %520 = vector.extract_strided_slice %515 {offsets = [0, 256], sizes = [16, 32], strides = [1, 1]} : vector<16x384xf32> to vector<16x32xf32>
    %521 = vector.shape_cast %520 : vector<16x32xf32> to vector<2x8x32xf32>
    "tpu.trace_start"() <{level = 10 : i32, message = "bqd,bkd->bqk"}> : () -> ()
    %cst_219 = arith.constant dense<0.000000e+00> : vector<2x8x8xf32>
    %522 = tpu.matmul %517, %519, %cst_219 {dimension_numbers = #tpu.dot_dimension_numbers<[2], [2], [1], [1], [0, 0, 0, 1, 1, 1], [0], [0]>} : vector<2x8x32xf32>, vector<2x8x32xf32>, vector<2x8x8xf32> -> vector<2x8x8xf32>
    "tpu.trace_stop"() : () -> ()
    %523 = arith.addf %522, %37 : vector<2x8x8xf32>
    %cst_220 = arith.constant dense<0xFF800000> : vector<2x8xf32>
    %524 = vector.multi_reduction <maximumf>, %523, %cst_220 [2] : vector<2x8x8xf32> to vector<2x8xf32>
    %525 = vector.shape_cast %524 : vector<2x8xf32> to vector<2x8x1xf32>
    %526 = vector.broadcast %525 : vector<2x8x1xf32> to vector<2x8x8xf32>
    %527 = arith.subf %523, %526 : vector<2x8x8xf32>
    %528 = math.exp %527 : vector<2x8x8xf32>
    %cst_221 = arith.constant dense<0.000000e+00> : vector<2x8xf32>
    %529 = vector.multi_reduction <add>, %528, %cst_221 [2] : vector<2x8x8xf32> to vector<2x8xf32>
    %530 = vector.shape_cast %529 : vector<2x8xf32> to vector<2x8x1xf32>
    %531 = vector.broadcast %530 : vector<2x8x1xf32> to vector<2x8x8xf32>
    %532 = arith.divf %528, %531 : vector<2x8x8xf32>
    "tpu.trace_start"() <{level = 10 : i32, message = "bqk,bkd->bqd"}> : () -> ()
    %cst_222 = arith.constant dense<0.000000e+00> : vector<2x8x32xf32>
    %533 = tpu.matmul %532, %521, %cst_222 {dimension_numbers = #tpu.dot_dimension_numbers<[2], [1], [1], [2], [0, 0, 0, 1, 1, 2], [0], [0]>} : vector<2x8x8xf32>, vector<2x8x32xf32>, vector<2x8x32xf32> -> vector<2x8x32xf32>
    "tpu.trace_stop"() : () -> ()
    %534 = vector.shape_cast %533 : vector<2x8x32xf32> to vector<16x32xf32>
    %535 = vector.extract_strided_slice %515 {offsets = [0, 32], sizes = [16, 32], strides = [1, 1]} : vector<16x384xf32> to vector<16x32xf32>
    %536 = vector.shape_cast %535 : vector<16x32xf32> to vector<2x8x32xf32>
    %537 = vector.extract_strided_slice %515 {offsets = [0, 160], sizes = [16, 32], strides = [1, 1]} : vector<16x384xf32> to vector<16x32xf32>
    %538 = vector.shape_cast %537 : vector<16x32xf32> to vector<2x8x32xf32>
    %539 = vector.extract_strided_slice %515 {offsets = [0, 288], sizes = [16, 32], strides = [1, 1]} : vector<16x384xf32> to vector<16x32xf32>
    %540 = vector.shape_cast %539 : vector<16x32xf32> to vector<2x8x32xf32>
    "tpu.trace_start"() <{level = 10 : i32, message = "bqd,bkd->bqk"}> : () -> ()
    %cst_223 = arith.constant dense<0.000000e+00> : vector<2x8x8xf32>
    %541 = tpu.matmul %536, %538, %cst_223 {dimension_numbers = #tpu.dot_dimension_numbers<[2], [2], [1], [1], [0, 0, 0, 1, 1, 1], [0], [0]>} : vector<2x8x32xf32>, vector<2x8x32xf32>, vector<2x8x8xf32> -> vector<2x8x8xf32>
    "tpu.trace_stop"() : () -> ()
    %542 = arith.addf %541, %37 : vector<2x8x8xf32>
    %cst_224 = arith.constant dense<0xFF800000> : vector<2x8xf32>
    %543 = vector.multi_reduction <maximumf>, %542, %cst_224 [2] : vector<2x8x8xf32> to vector<2x8xf32>
    %544 = vector.shape_cast %543 : vector<2x8xf32> to vector<2x8x1xf32>
    %545 = vector.broadcast %544 : vector<2x8x1xf32> to vector<2x8x8xf32>
    %546 = arith.subf %542, %545 : vector<2x8x8xf32>
    %547 = math.exp %546 : vector<2x8x8xf32>
    %cst_225 = arith.constant dense<0.000000e+00> : vector<2x8xf32>
    %548 = vector.multi_reduction <add>, %547, %cst_225 [2] : vector<2x8x8xf32> to vector<2x8xf32>
    %549 = vector.shape_cast %548 : vector<2x8xf32> to vector<2x8x1xf32>
    %550 = vector.broadcast %549 : vector<2x8x1xf32> to vector<2x8x8xf32>
    %551 = arith.divf %547, %550 : vector<2x8x8xf32>
    "tpu.trace_start"() <{level = 10 : i32, message = "bqk,bkd->bqd"}> : () -> ()
    %cst_226 = arith.constant dense<0.000000e+00> : vector<2x8x32xf32>
    %552 = tpu.matmul %551, %540, %cst_226 {dimension_numbers = #tpu.dot_dimension_numbers<[2], [1], [1], [2], [0, 0, 0, 1, 1, 2], [0], [0]>} : vector<2x8x8xf32>, vector<2x8x32xf32>, vector<2x8x32xf32> -> vector<2x8x32xf32>
    "tpu.trace_stop"() : () -> ()
    %553 = vector.shape_cast %552 : vector<2x8x32xf32> to vector<16x32xf32>
    %554 = vector.extract_strided_slice %515 {offsets = [0, 64], sizes = [16, 32], strides = [1, 1]} : vector<16x384xf32> to vector<16x32xf32>
    %555 = vector.shape_cast %554 : vector<16x32xf32> to vector<2x8x32xf32>
    %556 = vector.extract_strided_slice %515 {offsets = [0, 192], sizes = [16, 32], strides = [1, 1]} : vector<16x384xf32> to vector<16x32xf32>
    %557 = vector.shape_cast %556 : vector<16x32xf32> to vector<2x8x32xf32>
    %558 = vector.extract_strided_slice %515 {offsets = [0, 320], sizes = [16, 32], strides = [1, 1]} : vector<16x384xf32> to vector<16x32xf32>
    %559 = vector.shape_cast %558 : vector<16x32xf32> to vector<2x8x32xf32>
    "tpu.trace_start"() <{level = 10 : i32, message = "bqd,bkd->bqk"}> : () -> ()
    %cst_227 = arith.constant dense<0.000000e+00> : vector<2x8x8xf32>
    %560 = tpu.matmul %555, %557, %cst_227 {dimension_numbers = #tpu.dot_dimension_numbers<[2], [2], [1], [1], [0, 0, 0, 1, 1, 1], [0], [0]>} : vector<2x8x32xf32>, vector<2x8x32xf32>, vector<2x8x8xf32> -> vector<2x8x8xf32>
    "tpu.trace_stop"() : () -> ()
    %561 = arith.addf %560, %37 : vector<2x8x8xf32>
    %cst_228 = arith.constant dense<0xFF800000> : vector<2x8xf32>
    %562 = vector.multi_reduction <maximumf>, %561, %cst_228 [2] : vector<2x8x8xf32> to vector<2x8xf32>
    %563 = vector.shape_cast %562 : vector<2x8xf32> to vector<2x8x1xf32>
    %564 = vector.broadcast %563 : vector<2x8x1xf32> to vector<2x8x8xf32>
    %565 = arith.subf %561, %564 : vector<2x8x8xf32>
    %566 = math.exp %565 : vector<2x8x8xf32>
    %cst_229 = arith.constant dense<0.000000e+00> : vector<2x8xf32>
    %567 = vector.multi_reduction <add>, %566, %cst_229 [2] : vector<2x8x8xf32> to vector<2x8xf32>
    %568 = vector.shape_cast %567 : vector<2x8xf32> to vector<2x8x1xf32>
    %569 = vector.broadcast %568 : vector<2x8x1xf32> to vector<2x8x8xf32>
    %570 = arith.divf %566, %569 : vector<2x8x8xf32>
    "tpu.trace_start"() <{level = 10 : i32, message = "bqk,bkd->bqd"}> : () -> ()
    %cst_230 = arith.constant dense<0.000000e+00> : vector<2x8x32xf32>
    %571 = tpu.matmul %570, %559, %cst_230 {dimension_numbers = #tpu.dot_dimension_numbers<[2], [1], [1], [2], [0, 0, 0, 1, 1, 2], [0], [0]>} : vector<2x8x8xf32>, vector<2x8x32xf32>, vector<2x8x32xf32> -> vector<2x8x32xf32>
    "tpu.trace_stop"() : () -> ()
    %572 = vector.shape_cast %571 : vector<2x8x32xf32> to vector<16x32xf32>
    %573 = vector.extract_strided_slice %515 {offsets = [0, 96], sizes = [16, 32], strides = [1, 1]} : vector<16x384xf32> to vector<16x32xf32>
    %574 = vector.shape_cast %573 : vector<16x32xf32> to vector<2x8x32xf32>
    %575 = vector.extract_strided_slice %515 {offsets = [0, 224], sizes = [16, 32], strides = [1, 1]} : vector<16x384xf32> to vector<16x32xf32>
    %576 = vector.shape_cast %575 : vector<16x32xf32> to vector<2x8x32xf32>
    %577 = vector.extract_strided_slice %515 {offsets = [0, 352], sizes = [16, 32], strides = [1, 1]} : vector<16x384xf32> to vector<16x32xf32>
    %578 = vector.shape_cast %577 : vector<16x32xf32> to vector<2x8x32xf32>
    "tpu.trace_start"() <{level = 10 : i32, message = "bqd,bkd->bqk"}> : () -> ()
    %cst_231 = arith.constant dense<0.000000e+00> : vector<2x8x8xf32>
    %579 = tpu.matmul %574, %576, %cst_231 {dimension_numbers = #tpu.dot_dimension_numbers<[2], [2], [1], [1], [0, 0, 0, 1, 1, 1], [0], [0]>} : vector<2x8x32xf32>, vector<2x8x32xf32>, vector<2x8x8xf32> -> vector<2x8x8xf32>
    "tpu.trace_stop"() : () -> ()
    %580 = arith.addf %579, %37 : vector<2x8x8xf32>
    %cst_232 = arith.constant dense<0xFF800000> : vector<2x8xf32>
    %581 = vector.multi_reduction <maximumf>, %580, %cst_232 [2] : vector<2x8x8xf32> to vector<2x8xf32>
    %582 = vector.shape_cast %581 : vector<2x8xf32> to vector<2x8x1xf32>
    %583 = vector.broadcast %582 : vector<2x8x1xf32> to vector<2x8x8xf32>
    %584 = arith.subf %580, %583 : vector<2x8x8xf32>
    %585 = math.exp %584 : vector<2x8x8xf32>
    %cst_233 = arith.constant dense<0.000000e+00> : vector<2x8xf32>
    %586 = vector.multi_reduction <add>, %585, %cst_233 [2] : vector<2x8x8xf32> to vector<2x8xf32>
    %587 = vector.shape_cast %586 : vector<2x8xf32> to vector<2x8x1xf32>
    %588 = vector.broadcast %587 : vector<2x8x1xf32> to vector<2x8x8xf32>
    %589 = arith.divf %585, %588 : vector<2x8x8xf32>
    "tpu.trace_start"() <{level = 10 : i32, message = "bqk,bkd->bqd"}> : () -> ()
    %cst_234 = arith.constant dense<0.000000e+00> : vector<2x8x32xf32>
    %590 = tpu.matmul %589, %578, %cst_234 {dimension_numbers = #tpu.dot_dimension_numbers<[2], [1], [1], [2], [0, 0, 0, 1, 1, 2], [0], [0]>} : vector<2x8x8xf32>, vector<2x8x32xf32>, vector<2x8x32xf32> -> vector<2x8x32xf32>
    "tpu.trace_stop"() : () -> ()
    %591 = vector.shape_cast %590 : vector<2x8x32xf32> to vector<16x32xf32>
    %592 = tpu.concatenate %534, %553, %572, %591 in 1 : vector<16x32xf32>, vector<16x32xf32>, vector<16x32xf32>, vector<16x32xf32> -> vector<16x128xf32>
    %c3_235 = arith.constant 3 : index
    %c0_236 = arith.constant 0 : index
    %c0_237 = arith.constant 0 : index
    %593 = vector.load %arg7[%c3_235, %c0_236, %c0_237] : memref<4x128x128xf32, #tpu.memory_space<vmem>>, vector<1x128x128xf32>
    %594 = vector.shape_cast %593 : vector<1x128x128xf32> to vector<128x128xf32>
    %cst_238 = arith.constant dense<0.000000e+00> : vector<16x128xf32>
    %595 = tpu.matmul %592, %594, %cst_238 {dimension_numbers = #tpu.dot_dimension_numbers<[1], [0], [0], [1], [0, 0, 1, 1], [], []>} : vector<16x128xf32>, vector<128x128xf32>, vector<16x128xf32> -> vector<16x128xf32>
    %c3_239 = arith.constant 3 : index
    %c0_240 = arith.constant 0 : index
    %c0_241 = arith.constant 0 : index
    %596 = vector.load %arg8[%c3_239, %c0_240, %c0_241] : memref<4x1x128xf32, #tpu.memory_space<vmem>>, vector<1x1x128xf32>
    %597 = vector.shape_cast %596 : vector<1x1x128xf32> to vector<1x128xf32>
    %598 = vector.broadcast %597 : vector<1x128xf32> to vector<16x128xf32>
    %599 = arith.addf %595, %598 : vector<16x128xf32>
    %600 = arith.addf %508, %599 : vector<16x128xf32>
    %c3_242 = arith.constant 3 : index
    %c0_243 = arith.constant 0 : index
    %c0_244 = arith.constant 0 : index
    %601 = vector.load %arg9[%c3_242, %c0_243, %c0_244] : memref<4x1x128xf32, #tpu.memory_space<vmem>>, vector<1x1x128xf32>
    %602 = vector.shape_cast %601 : vector<1x1x128xf32> to vector<1x128xf32>
    %c3_245 = arith.constant 3 : index
    %c0_246 = arith.constant 0 : index
    %c0_247 = arith.constant 0 : index
    %603 = vector.load %arg10[%c3_245, %c0_246, %c0_247] : memref<4x1x128xf32, #tpu.memory_space<vmem>>, vector<1x1x128xf32>
    %604 = vector.shape_cast %603 : vector<1x1x128xf32> to vector<1x128xf32>
    %cst_248 = arith.constant dense<0.000000e+00> : vector<16xf32>
    %605 = vector.multi_reduction <add>, %600, %cst_248 [1] : vector<16x128xf32> to vector<16xf32>
    %606 = vector.shape_cast %605 : vector<16xf32> to vector<16x1xf32>
    %cst_249 = arith.constant 1.280000e+02 : f32
    %607 = vector.broadcast %cst_249 : f32 to vector<16x1xf32>
    %608 = arith.divf %606, %607 : vector<16x1xf32>
    %609 = vector.broadcast %608 : vector<16x1xf32> to vector<16x128xf32>
    %610 = arith.subf %600, %609 : vector<16x128xf32>
    %611 = arith.mulf %610, %610 : vector<16x128xf32>
    %cst_250 = arith.constant dense<0.000000e+00> : vector<16xf32>
    %612 = vector.multi_reduction <add>, %611, %cst_250 [1] : vector<16x128xf32> to vector<16xf32>
    %613 = vector.shape_cast %612 : vector<16xf32> to vector<16x1xf32>
    %cst_251 = arith.constant 1.280000e+02 : f32
    %614 = vector.broadcast %cst_251 : f32 to vector<16x1xf32>
    %615 = arith.divf %613, %614 : vector<16x1xf32>
    %cst_252 = arith.constant 9.99999974E-6 : f32
    %616 = vector.broadcast %cst_252 : f32 to vector<16x1xf32>
    %617 = arith.addf %615, %616 : vector<16x1xf32>
    %618 = math.rsqrt %617 : vector<16x1xf32>
    %619 = vector.broadcast %618 : vector<16x1xf32> to vector<16x128xf32>
    %620 = arith.mulf %610, %619 : vector<16x128xf32>
    %621 = vector.broadcast %602 : vector<1x128xf32> to vector<16x128xf32>
    %622 = arith.mulf %620, %621 : vector<16x128xf32>
    %623 = vector.broadcast %604 : vector<1x128xf32> to vector<16x128xf32>
    %624 = arith.addf %622, %623 : vector<16x128xf32>
    %c3_253 = arith.constant 3 : index
    %c0_254 = arith.constant 0 : index
    %c0_255 = arith.constant 0 : index
    %625 = vector.load %arg11[%c3_253, %c0_254, %c0_255] : memref<4x128x128xf32, #tpu.memory_space<vmem>>, vector<1x128x128xf32>
    %626 = vector.shape_cast %625 : vector<1x128x128xf32> to vector<128x128xf32>
    %cst_256 = arith.constant dense<0.000000e+00> : vector<16x128xf32>
    %627 = tpu.matmul %624, %626, %cst_256 {dimension_numbers = #tpu.dot_dimension_numbers<[1], [0], [0], [1], [0, 0, 1, 1], [], []>} : vector<16x128xf32>, vector<128x128xf32>, vector<16x128xf32> -> vector<16x128xf32>
    %c3_257 = arith.constant 3 : index
    %c0_258 = arith.constant 0 : index
    %c0_259 = arith.constant 0 : index
    %628 = vector.load %arg12[%c3_257, %c0_258, %c0_259] : memref<4x1x128xf32, #tpu.memory_space<vmem>>, vector<1x1x128xf32>
    %629 = vector.shape_cast %628 : vector<1x1x128xf32> to vector<1x128xf32>
    %630 = vector.broadcast %629 : vector<1x128xf32> to vector<16x128xf32>
    %631 = arith.addf %627, %630 : vector<16x128xf32>
    %cst_260 = arith.constant 0.000000e+00 : f32
    %632 = vector.broadcast %cst_260 : f32 to vector<16x128xf32>
    %633 = arith.maximumf %631, %632 : vector<16x128xf32>
    %c3_261 = arith.constant 3 : index
    %c0_262 = arith.constant 0 : index
    %c0_263 = arith.constant 0 : index
    %634 = vector.load %arg13[%c3_261, %c0_262, %c0_263] : memref<4x128x128xf32, #tpu.memory_space<vmem>>, vector<1x128x128xf32>
    %635 = vector.shape_cast %634 : vector<1x128x128xf32> to vector<128x128xf32>
    %cst_264 = arith.constant dense<0.000000e+00> : vector<16x128xf32>
    %636 = tpu.matmul %633, %635, %cst_264 {dimension_numbers = #tpu.dot_dimension_numbers<[1], [0], [0], [1], [0, 0, 1, 1], [], []>} : vector<16x128xf32>, vector<128x128xf32>, vector<16x128xf32> -> vector<16x128xf32>
    %c3_265 = arith.constant 3 : index
    %c0_266 = arith.constant 0 : index
    %c0_267 = arith.constant 0 : index
    %637 = vector.load %arg14[%c3_265, %c0_266, %c0_267] : memref<4x1x128xf32, #tpu.memory_space<vmem>>, vector<1x1x128xf32>
    %638 = vector.shape_cast %637 : vector<1x1x128xf32> to vector<1x128xf32>
    %639 = vector.broadcast %638 : vector<1x128xf32> to vector<16x128xf32>
    %640 = arith.addf %636, %639 : vector<16x128xf32>
    %641 = arith.addf %624, %640 : vector<16x128xf32>
    %c3_268 = arith.constant 3 : index
    %c0_269 = arith.constant 0 : index
    %c0_270 = arith.constant 0 : index
    %642 = vector.load %arg15[%c3_268, %c0_269, %c0_270] : memref<4x1x128xf32, #tpu.memory_space<vmem>>, vector<1x1x128xf32>
    %643 = vector.shape_cast %642 : vector<1x1x128xf32> to vector<1x128xf32>
    %c3_271 = arith.constant 3 : index
    %c0_272 = arith.constant 0 : index
    %c0_273 = arith.constant 0 : index
    %644 = vector.load %arg16[%c3_271, %c0_272, %c0_273] : memref<4x1x128xf32, #tpu.memory_space<vmem>>, vector<1x1x128xf32>
    %645 = vector.shape_cast %644 : vector<1x1x128xf32> to vector<1x128xf32>
    %cst_274 = arith.constant dense<0.000000e+00> : vector<16xf32>
    %646 = vector.multi_reduction <add>, %641, %cst_274 [1] : vector<16x128xf32> to vector<16xf32>
    %647 = vector.shape_cast %646 : vector<16xf32> to vector<16x1xf32>
    %cst_275 = arith.constant 1.280000e+02 : f32
    %648 = vector.broadcast %cst_275 : f32 to vector<16x1xf32>
    %649 = arith.divf %647, %648 : vector<16x1xf32>
    %650 = vector.broadcast %649 : vector<16x1xf32> to vector<16x128xf32>
    %651 = arith.subf %641, %650 : vector<16x128xf32>
    %652 = arith.mulf %651, %651 : vector<16x128xf32>
    %cst_276 = arith.constant dense<0.000000e+00> : vector<16xf32>
    %653 = vector.multi_reduction <add>, %652, %cst_276 [1] : vector<16x128xf32> to vector<16xf32>
    %654 = vector.shape_cast %653 : vector<16xf32> to vector<16x1xf32>
    %cst_277 = arith.constant 1.280000e+02 : f32
    %655 = vector.broadcast %cst_277 : f32 to vector<16x1xf32>
    %656 = arith.divf %654, %655 : vector<16x1xf32>
    %cst_278 = arith.constant 9.99999974E-6 : f32
    %657 = vector.broadcast %cst_278 : f32 to vector<16x1xf32>
    %658 = arith.addf %656, %657 : vector<16x1xf32>
    %659 = math.rsqrt %658 : vector<16x1xf32>
    %660 = vector.broadcast %659 : vector<16x1xf32> to vector<16x128xf32>
    %661 = arith.mulf %651, %660 : vector<16x128xf32>
    %662 = vector.broadcast %643 : vector<1x128xf32> to vector<16x128xf32>
    %663 = arith.mulf %661, %662 : vector<16x128xf32>
    %664 = vector.broadcast %645 : vector<1x128xf32> to vector<16x128xf32>
    %665 = arith.addf %663, %664 : vector<16x128xf32>
    %666 = vector.shape_cast %665 : vector<16x128xf32> to vector<2x8x128xf32>
    %cst_279 = arith.constant dense<0.000000e+00> : vector<2x128xf32>
    %667 = vector.multi_reduction <add>, %666, %cst_279 [1] : vector<2x8x128xf32> to vector<2x128xf32>
    %cst_280 = arith.constant 8.000000e+00 : f32
    %668 = vector.broadcast %cst_280 : f32 to vector<2x128xf32>
    %669 = arith.divf %667, %668 : vector<2x128xf32>
    %c0_281 = arith.constant 0 : index
    %c0_282 = arith.constant 0 : index
    %670 = vector.load %arg17[%c0_281, %c0_282] : memref<128x128xf32, #tpu.memory_space<vmem>>, vector<128x128xf32>
    %cst_283 = arith.constant dense<0.000000e+00> : vector<2x128xf32>
    %671 = tpu.matmul %669, %670, %cst_283 {dimension_numbers = #tpu.dot_dimension_numbers<[1], [0], [0], [1], [0, 0, 1, 1], [], []>} : vector<2x128xf32>, vector<128x128xf32>, vector<2x128xf32> -> vector<2x128xf32>
    %c0_284 = arith.constant 0 : index
    %c0_285 = arith.constant 0 : index
    %672 = vector.load %arg18[%c0_284, %c0_285] : memref<1x128xf32, #tpu.memory_space<vmem>>, vector<1x128xf32>
    %673 = vector.broadcast %672 : vector<1x128xf32> to vector<2x128xf32>
    %674 = arith.addf %671, %673 : vector<2x128xf32>
    %cst_286 = arith.constant 0.000000e+00 : f32
    %675 = vector.broadcast %cst_286 : f32 to vector<2x128xf32>
    %676 = arith.cmpf oge, %674, %675 : vector<2x128xf32>
    %cst_287 = arith.constant 0.00999999977 : f32
    %677 = vector.broadcast %cst_287 : f32 to vector<2x128xf32>
    %678 = arith.mulf %677, %674 : vector<2x128xf32>
    %679 = arith.select %676, %674, %678 : vector<2x128xi1>, vector<2x128xf32>
    %c0_288 = arith.constant 0 : index
    %c0_289 = arith.constant 0 : index
    %680 = vector.load %arg19[%c0_288, %c0_289] : memref<128x128xf32, #tpu.memory_space<vmem>>, vector<128x128xf32>
    %cst_290 = arith.constant dense<0.000000e+00> : vector<2x128xf32>
    %681 = tpu.matmul %679, %680, %cst_290 {dimension_numbers = #tpu.dot_dimension_numbers<[1], [0], [0], [1], [0, 0, 1, 1], [], []>} : vector<2x128xf32>, vector<128x128xf32>, vector<2x128xf32> -> vector<2x128xf32>
    %c0_291 = arith.constant 0 : index
    %c0_292 = arith.constant 0 : index
    %682 = vector.load %arg20[%c0_291, %c0_292] : memref<1x128xf32, #tpu.memory_space<vmem>>, vector<1x128xf32>
    %683 = vector.broadcast %682 : vector<1x128xf32> to vector<2x128xf32>
    %684 = arith.addf %681, %683 : vector<2x128xf32>
    %cst_293 = arith.constant 0.000000e+00 : f32
    %685 = vector.broadcast %cst_293 : f32 to vector<2x128xf32>
    %686 = arith.cmpf oge, %684, %685 : vector<2x128xf32>
    %cst_294 = arith.constant 0.00999999977 : f32
    %687 = vector.broadcast %cst_294 : f32 to vector<2x128xf32>
    %688 = arith.mulf %687, %684 : vector<2x128xf32>
    %689 = arith.select %686, %684, %688 : vector<2x128xi1>, vector<2x128xf32>
    %c0_295 = arith.constant 0 : index
    %c0_296 = arith.constant 0 : index
    %690 = vector.load %arg21[%c0_295, %c0_296] : memref<1x128xf32, #tpu.memory_space<vmem>>, vector<1x128xf32>
    %691 = vector.broadcast %690 : vector<1x128xf32> to vector<2x128xf32>
    %692 = arith.mulf %689, %691 : vector<2x128xf32>
    %cst_297 = arith.constant dense<0.000000e+00> : vector<2xf32>
    %693 = vector.multi_reduction <add>, %692, %cst_297 [1] : vector<2x128xf32> to vector<2xf32>
    %694 = vector.shape_cast %693 : vector<2xf32> to vector<2x1xf32>
    %c0_298 = arith.constant 0 : index
    %c0_299 = arith.constant 0 : index
    %695 = vector.load %arg22[%c0_298, %c0_299] : memref<1x1xf32, #tpu.memory_space<vmem>>, vector<1x1xf32>
    %696 = vector.broadcast %695 : vector<1x1xf32> to vector<2x1xf32>
    %697 = arith.addf %694, %696 : vector<2x1xf32>
    %698 = vector.shape_cast %697 : vector<2x1xf32> to vector<2x1xf32>
    %699 = vector.broadcast %698 : vector<2x1xf32> to vector<2x128xf32>
    %c0_300 = arith.constant 0 : index
    %c0_301 = arith.constant 0 : index
    %700 = vector.load %arg23[%c0_300, %c0_301] : memref<2x128xf32, #tpu.memory_space<vmem>>, vector<2x128xf32>
    tpu.vector_store %arg23[%c0_300, %c0_301], %699 {strides = array<i32>} : memref<2x128xf32, #tpu.memory_space<vmem>>, vector<2x128xf32>,
    return
  }
  func.func @transform_0(%arg0: i32) -> (i32, i32, i32) {
    %c0_i32 = arith.constant 0 : i32
    %c0_i32_0 = arith.constant 0 : i32
    %c0_i32_1 = arith.constant 0 : i32
    return %arg0, %c0_i32, %c0_i32_0 : i32, i32, i32
  }
  func.func @transform_1(%arg0: i32) -> (i32, i32, i32) {
    %c0_i32 = arith.constant 0 : i32
    %c0_i32_0 = arith.constant 0 : i32
    %c0_i32_1 = arith.constant 0 : i32
    return %arg0, %c0_i32, %c0_i32_0 : i32, i32, i32
  }
  func.func @transform_2(%arg0: i32) -> (i32, i32) {
    %c0_i32 = arith.constant 0 : i32
    %c0_i32_0 = arith.constant 0 : i32
    %c0_i32_1 = arith.constant 0 : i32
    return %c0_i32, %c0_i32_0 : i32, i32
  }
  func.func @transform_3(%arg0: i32) -> (i32, i32) {
    %c0_i32 = arith.constant 0 : i32
    %c0_i32_0 = arith.constant 0 : i32
    %c0_i32_1 = arith.constant 0 : i32
    return %c0_i32, %c0_i32_0 : i32, i32
  }
  func.func @transform_4(%arg0: i32) -> (i32, i32, i32) {
    %c0_i32 = arith.constant 0 : i32
    %c0_i32_0 = arith.constant 0 : i32
    %c0_i32_1 = arith.constant 0 : i32
    %c0_i32_2 = arith.constant 0 : i32
    return %c0_i32, %c0_i32_0, %c0_i32_1 : i32, i32, i32
  }
  func.func @transform_5(%arg0: i32) -> (i32, i32, i32) {
    %c0_i32 = arith.constant 0 : i32
    %c0_i32_0 = arith.constant 0 : i32
    %c0_i32_1 = arith.constant 0 : i32
    %c0_i32_2 = arith.constant 0 : i32
    return %c0_i32, %c0_i32_0, %c0_i32_1 : i32, i32, i32
  }
  func.func @transform_6(%arg0: i32) -> (i32, i32, i32) {
    %c0_i32 = arith.constant 0 : i32
    %c0_i32_0 = arith.constant 0 : i32
    %c0_i32_1 = arith.constant 0 : i32
    %c0_i32_2 = arith.constant 0 : i32
    return %c0_i32, %c0_i32_0, %c0_i32_1 : i32, i32, i32
  }
  func.func @transform_7(%arg0: i32) -> (i32, i32, i32) {
    %c0_i32 = arith.constant 0 : i32
    %c0_i32_0 = arith.constant 0 : i32
    %c0_i32_1 = arith.constant 0 : i32
    %c0_i32_2 = arith.constant 0 : i32
    return %c0_i32, %c0_i32_0, %c0_i32_1 : i32, i32, i32
  }
  func.func @transform_8(%arg0: i32) -> (i32, i32, i32) {
    %c0_i32 = arith.constant 0 : i32
    %c0_i32_0 = arith.constant 0 : i32
    %c0_i32_1 = arith.constant 0 : i32
    %c0_i32_2 = arith.constant 0 : i32
    return %c0_i32, %c0_i32_0, %c0_i32_1 : i32, i32, i32
  }
  func.func @transform_9(%arg0: i32) -> (i32, i32, i32) {
    %c0_i32 = arith.constant 0 : i32
    %c0_i32_0 = arith.constant 0 : i32
    %c0_i32_1 = arith.constant 0 : i32
    %c0_i32_2 = arith.constant 0 : i32
    return %c0_i32, %c0_i32_0, %c0_i32_1 : i32, i32, i32
  }
  func.func @transform_10(%arg0: i32) -> (i32, i32, i32) {
    %c0_i32 = arith.constant 0 : i32
    %c0_i32_0 = arith.constant 0 : i32
    %c0_i32_1 = arith.constant 0 : i32
    %c0_i32_2 = arith.constant 0 : i32
    return %c0_i32, %c0_i32_0, %c0_i32_1 : i32, i32, i32
  }
  func.func @transform_11(%arg0: i32) -> (i32, i32, i32) {
    %c0_i32 = arith.constant 0 : i32
    %c0_i32_0 = arith.constant 0 : i32
    %c0_i32_1 = arith.constant 0 : i32
    %c0_i32_2 = arith.constant 0 : i32
    return %c0_i32, %c0_i32_0, %c0_i32_1 : i32, i32, i32
  }
  func.func @transform_12(%arg0: i32) -> (i32, i32, i32) {
    %c0_i32 = arith.constant 0 : i32
    %c0_i32_0 = arith.constant 0 : i32
    %c0_i32_1 = arith.constant 0 : i32
    %c0_i32_2 = arith.constant 0 : i32
    return %c0_i32, %c0_i32_0, %c0_i32_1 : i32, i32, i32
  }
  func.func @transform_13(%arg0: i32) -> (i32, i32, i32) {
    %c0_i32 = arith.constant 0 : i32
    %c0_i32_0 = arith.constant 0 : i32
    %c0_i32_1 = arith.constant 0 : i32
    %c0_i32_2 = arith.constant 0 : i32
    return %c0_i32, %c0_i32_0, %c0_i32_1 : i32, i32, i32
  }
  func.func @transform_14(%arg0: i32) -> (i32, i32, i32) {
    %c0_i32 = arith.constant 0 : i32
    %c0_i32_0 = arith.constant 0 : i32
    %c0_i32_1 = arith.constant 0 : i32
    %c0_i32_2 = arith.constant 0 : i32
    return %c0_i32, %c0_i32_0, %c0_i32_1 : i32, i32, i32
  }
  func.func @transform_15(%arg0: i32) -> (i32, i32, i32) {
    %c0_i32 = arith.constant 0 : i32
    %c0_i32_0 = arith.constant 0 : i32
    %c0_i32_1 = arith.constant 0 : i32
    %c0_i32_2 = arith.constant 0 : i32
    return %c0_i32, %c0_i32_0, %c0_i32_1 : i32, i32, i32
  }
  func.func @transform_16(%arg0: i32) -> (i32, i32) {
    %c0_i32 = arith.constant 0 : i32
    %c0_i32_0 = arith.constant 0 : i32
    %c0_i32_1 = arith.constant 0 : i32
    return %c0_i32, %c0_i32_0 : i32, i32
  }
  func.func @transform_17(%arg0: i32) -> (i32, i32) {
    %c0_i32 = arith.constant 0 : i32
    %c0_i32_0 = arith.constant 0 : i32
    %c0_i32_1 = arith.constant 0 : i32
    return %c0_i32, %c0_i32_0 : i32, i32
  }
  func.func @transform_18(%arg0: i32) -> (i32, i32) {
    %c0_i32 = arith.constant 0 : i32
    %c0_i32_0 = arith.constant 0 : i32
    %c0_i32_1 = arith.constant 0 : i32
    return %c0_i32, %c0_i32_0 : i32, i32
  }
  func.func @transform_19(%arg0: i32) -> (i32, i32) {
    %c0_i32 = arith.constant 0 : i32
    %c0_i32_0 = arith.constant 0 : i32
    %c0_i32_1 = arith.constant 0 : i32
    return %c0_i32, %c0_i32_0 : i32, i32
  }
  func.func @transform_20(%arg0: i32) -> (i32, i32) {
    %c0_i32 = arith.constant 0 : i32
    %c0_i32_0 = arith.constant 0 : i32
    %c0_i32_1 = arith.constant 0 : i32
    return %c0_i32, %c0_i32_0 : i32, i32
  }
  func.func @transform_21(%arg0: i32) -> (i32, i32) {
    %c0_i32 = arith.constant 0 : i32
    %c0_i32_0 = arith.constant 0 : i32
    %c0_i32_1 = arith.constant 0 : i32
    return %c0_i32, %c0_i32_0 : i32, i32
  }
  func.func @transform_22(%arg0: i32) -> (i32, i32) {
    %c0_i32 = arith.constant 0 : i32
    %c0_i32_0 = arith.constant 0 : i32
    return %arg0, %c0_i32 : i32, i32
  }
}

</mosaic_0001>

<llo_original>
// kernel: shape_ebm_forward.1
$region0: #{shape_ebm_forward.1}
  #allocation0 [shape = 'u32[]', space=smem, size = 0x4, offset = 0x4, fixed_abs, tag = 'smem constant byte address 0x4 - core index']
  #allocation1 [shape = 'u32[144,128]{1,0:T(1,128)}', space=vmem, size = 0x12000, scoped, tag = 'internal scratch']
  #allocation2 [shape = 'f32[1,1]{1,0:T(1,128)S(1)}', space=vmem, size = 0x200, scoped, tag = 'scoped memory for shape_ebm_forward.1']
  %s0 = inlined_call_operand.vmem [shape: f32[2,8,2], index: 0, kind: input, shape index: {}]
  %s1 = inlined_call_operand.vmem [shape: f32[2,1,8], index: 1, kind: input, shape index: {}]
  %s2 = inlined_call_operand.vmem [shape: f32[2,128], index: 2, kind: input, shape index: {}]
  %s3 = inlined_call_operand.vmem [shape: f32[1,128], index: 3, kind: input, shape index: {}]
  %s4 = inlined_call_operand.vmem [shape: f32[4,128,384], index: 4, kind: input, shape index: {}]
  %s5 = inlined_call_operand.vmem [shape: f32[4,1,384], index: 5, kind: input, shape index: {}]
  %s6 = inlined_call_operand.vmem [shape: f32[4,128,128], index: 6, kind: input, shape index: {}]
  %s7 = inlined_call_operand.vmem [shape: f32[4,1,128], index: 7, kind: input, shape index: {}]
  %s8 = inlined_call_operand.vmem [shape: f32[4,1,128], index: 8, kind: input, shape index: {}]
  %s9 = inlined_call_operand.vmem [shape: f32[4,1,128], index: 9, kind: input, shape index: {}]
  %s10 = inlined_call_operand.vmem [shape: f32[4,128,128], index: 10, kind: input, shape index: {}]
  %s11 = inlined_call_operand.vmem [shape: f32[4,1,128], index: 11, kind: input, shape index: {}]
  %s12 = inlined_call_operand.vmem [shape: f32[4,128,128], index: 12, kind: input, shape index: {}]
  %s13 = inlined_call_operand.vmem [shape: f32[4,1,128], index: 13, kind: input, shape index: {}]
  %s14 = inlined_call_operand.vmem [shape: f32[4,1,128], index: 14, kind: input, shape index: {}]
  %s15 = inlined_call_operand.vmem [shape: f32[4,1,128], index: 15, kind: input, shape index: {}]
  %s16 = inlined_call_operand.vmem [shape: f32[128,128], index: 16, kind: input, shape index: {}]
  %s17 = inlined_call_operand.vmem [shape: f32[1,128], index: 17, kind: input, shape index: {}]
  %s18 = inlined_call_operand.vmem [shape: f32[128,128], index: 18, kind: input, shape index: {}]
  %s19 = inlined_call_operand.vmem [shape: f32[1,128], index: 19, kind: input, shape index: {}]
  %s20 = inlined_call_operand.vmem [shape: f32[1,128], index: 20, kind: input, shape index: {}]
  %s21 = inlined_call_operand.<no memory space> [shape: f32[1,1], index: 21, kind: input, shape index: {}]
  %s22 = inlined_call_operand.vmem [shape: f32[2,128], index: 22, kind: output, shape index: {}]
  %s23 = sld [smem:[#allocation0]]
  $region98: #{shape_ebm_forward.1} parent=0
    _
  %s25 = ssub.s32 1, %s23
  %s26 = scalar_select 0, %s25, %s23
  %v27 = vstv %s21
  %28 = vst [vmem:[#allocation2] sm:$0x1] %v27
  // Predicated region
  $region2: #{shape_ebm_forward.1} parent=0 // pred_check
    _
  $region3: #{shape_ebm_forward.1} parent=0 // pred_check_branch
    %30 = sbr.rel (0) target = $region5
  $region4: #{shape_ebm_forward.1} parent=0 // pred_region
    _
  $region5: #{shape_ebm_forward.1} parent=0 // pred_fallthru
    _
  // Predicated region
  $region6: #{shape_ebm_forward.1} parent=0 // pred_check
    _
  $region7: #{shape_ebm_forward.1} parent=0 // pred_check_branch
    %32 = sbr.rel (0) target = $region9
  $region8: #{shape_ebm_forward.1} parent=0 // pred_region
    _
  $region9: #{shape_ebm_forward.1} parent=0 // pred_fallthru
    _
  // Predicated region
  $region10: #{shape_ebm_forward.1} parent=0 // pred_check
    _
  $region11: #{shape_ebm_forward.1} parent=0 // pred_check_branch
    %34 = sbr.rel (0) target = $region13
  $region12: #{shape_ebm_forward.1} parent=0 // pred_region
    _
  $region13: #{shape_ebm_forward.1} parent=0 // pred_fallthru
    _
  // Predicated region
  $region14: #{shape_ebm_forward.1} parent=0 // pred_check
    _
  $region15: #{shape_ebm_forward.1} parent=0 // pred_check_branch
    %36 = sbr.rel (0) target = $region17
  $region16: #{shape_ebm_forward.1} parent=0 // pred_region
    _
  $region17: #{shape_ebm_forward.1} parent=0 // pred_fallthru
    _
  // Predicated region
  $region18: #{shape_ebm_forward.1} parent=0 // pred_check
    _
  $region19: #{shape_ebm_forward.1} parent=0 // pred_check_branch
    %38 = sbr.rel (0) target = $region21
  $region20: #{shape_ebm_forward.1} parent=0 // pred_region
    _
  $region21: #{shape_ebm_forward.1} parent=0 // pred_fallthru
    _
  // Predicated region
  $region22: #{shape_ebm_forward.1} parent=0 // pred_check
    _
  $region23: #{shape_ebm_forward.1} parent=0 // pred_check_branch
    %40 = sbr.rel (0) target = $region25
  $region24: #{shape_ebm_forward.1} parent=0 // pred_region
    _
  $region25: #{shape_ebm_forward.1} parent=0 // pred_fallthru
    _
  // Predicated region
  $region26: #{shape_ebm_forward.1} parent=0 // pred_check
    _
  $region27: #{shape_ebm_forward.1} parent=0 // pred_check_branch
    %42 = sbr.rel (0) target = $region29
  $region28: #{shape_ebm_forward.1} parent=0 // pred_region
    _
  $region29: #{shape_ebm_forward.1} parent=0 // pred_fallthru
    _
  // Predicated region
  $region30: #{shape_ebm_forward.1} parent=0 // pred_check
    _
  $region31: #{shape_ebm_forward.1} parent=0 // pred_check_branch
    %44 = sbr.rel (0) target = $region33
  $region32: #{shape_ebm_forward.1} parent=0 // pred_region
    _
  $region33: #{shape_ebm_forward.1} parent=0 // pred_fallthru
    _
  // Predicated region
  $region34: #{shape_ebm_forward.1} parent=0 // pred_check
    _
  $region35: #{shape_ebm_forward.1} parent=0 // pred_check_branch
    %46 = sbr.rel (0) target = $region37
  $region36: #{shape_ebm_forward.1} parent=0 // pred_region
    _
  $region37: #{shape_ebm_forward.1} parent=0 // pred_fallthru
    _
  // Predicated region
  $region38: #{shape_ebm_forward.1} parent=0 // pred_check
    _
  $region39: #{shape_ebm_forward.1} parent=0 // pred_check_branch
    %48 = sbr.rel (0) target = $region41
  $region40: #{shape_ebm_forward.1} parent=0 // pred_region
    _
  $region41: #{shape_ebm_forward.1} parent=0 // pred_fallthru
    _
  // Predicated region
  $region42: #{shape_ebm_forward.1} parent=0 // pred_check
    _
  $region43: #{shape_ebm_forward.1} parent=0 // pred_check_branch
    %50 = sbr.rel (0) target = $region45
  $region44: #{shape_ebm_forward.1} parent=0 // pred_region
    _
  $region45: #{shape_ebm_forward.1} parent=0 // pred_fallthru
    _
  // Predicated region
  $region46: #{shape_ebm_forward.1} parent=0 // pred_check
    _
  $region47: #{shape_ebm_forward.1} parent=0 // pred_check_branch
    %52 = sbr.rel (0) target = $region49
  $region48: #{shape_ebm_forward.1} parent=0 // pred_region
    _
  $region49: #{shape_ebm_forward.1} parent=0 // pred_fallthru
    _
  // Predicated region
  $region50: #{shape_ebm_forward.1} parent=0 // pred_check
    _
  $region51: #{shape_ebm_forward.1} parent=0 // pred_check_branch
    %54 = sbr.rel (0) target = $region53
  $region52: #{shape_ebm_forward.1} parent=0 // pred_region
    _
  $region53: #{shape_ebm_forward.1} parent=0 // pred_fallthru
    _
  // Predicated region
  $region54: #{shape_ebm_forward.1} parent=0 // pred_check
    _
  $region55: #{shape_ebm_forward.1} parent=0 // pred_check_branch
    %56 = sbr.rel (0) target = $region57
  $region56: #{shape_ebm_forward.1} parent=0 // pred_region
    _
  $region57: #{shape_ebm_forward.1} parent=0 // pred_fallthru
    _
  // Predicated region
  $region58: #{shape_ebm_forward.1} parent=0 // pred_check
    _
  $region59: #{shape_ebm_forward.1} parent=0 // pred_check_branch
    %58 = sbr.rel (0) target = $region61
  $region60: #{shape_ebm_forward.1} parent=0 // pred_region
    _
  $region61: #{shape_ebm_forward.1} parent=0 // pred_fallthru
    _
  // Predicated region
  $region62: #{shape_ebm_forward.1} parent=0 // pred_check
    _
  $region63: #{shape_ebm_forward.1} parent=0 // pred_check_branch
    %60 = sbr.rel (0) target = $region65
  $region64: #{shape_ebm_forward.1} parent=0 // pred_region
    _
  $region65: #{shape_ebm_forward.1} parent=0 // pred_fallthru
    _
  // Predicated region
  $region66: #{shape_ebm_forward.1} parent=0 // pred_check
    _
  $region67: #{shape_ebm_forward.1} parent=0 // pred_check_branch
    %62 = sbr.rel (0) target = $region69
  $region68: #{shape_ebm_forward.1} parent=0 // pred_region
    _
  $region69: #{shape_ebm_forward.1} parent=0 // pred_fallthru
    _
  // Predicated region
  $region70: #{shape_ebm_forward.1} parent=0 // pred_check
    _
  $region71: #{shape_ebm_forward.1} parent=0 // pred_check_branch
    %64 = sbr.rel (0) target = $region73
  $region72: #{shape_ebm_forward.1} parent=0 // pred_region
    _
  $region73: #{shape_ebm_forward.1} parent=0 // pred_fallthru
    _
  // Predicated region
  $region74: #{shape_ebm_forward.1} parent=0 // pred_check
    _
  $region75: #{shape_ebm_forward.1} parent=0 // pred_check_branch
    %66 = sbr.rel (0) target = $region77
  $region76: #{shape_ebm_forward.1} parent=0 // pred_region
    _
  $region77: #{shape_ebm_forward.1} parent=0 // pred_fallthru
    _
  // Predicated region
  $region78: #{shape_ebm_forward.1} parent=0 // pred_check
    _
  $region79: #{shape_ebm_forward.1} parent=0 // pred_check_branch
    %68 = sbr.rel (0) target = $region81
  $region80: #{shape_ebm_forward.1} parent=0 // pred_region
    _
  $region81: #{shape_ebm_forward.1} parent=0 // pred_fallthru
    _
  // Predicated region
  $region82: #{shape_ebm_forward.1} parent=0 // pred_check
    _
  $region83: #{shape_ebm_forward.1} parent=0 // pred_check_branch
    %70 = sbr.rel (0) target = $region85
  $region84: #{shape_ebm_forward.1} parent=0 // pred_region
    _
  $region85: #{shape_ebm_forward.1} parent=0 // pred_fallthru
    _
  // Predicated region
  $region86: #{shape_ebm_forward.1} parent=0 // pred_check
    _
  $region87: #{shape_ebm_forward.1} parent=0 // pred_check_branch
    %72 = sbr.rel (0) target = $region89
  $region88: #{shape_ebm_forward.1} parent=0 // pred_region
    _
  $region89: #{shape_ebm_forward.1} parent=0 // pred_fallthru
    _
  %v73 = vld [vmem:[%s0] sm:$0xff]
  %v74 = vld [vmem:[%s0 + $0x8] sm:$0xff]
  %vm75 = vcmask 15360
  %v76 = vsel %vm75, %v73, 0.0
  %v77 = vrot.slane %v76, 4
  %v78 = vadd.f32 %v76, %v77
  %v79 = vrot.slane %v78, 2
  %v80 = vadd.f32 %v78, %v79
  %v81 = vrot.slane %v80, 1
  %v82 = vadd.f32 %v80, %v81
  %v83 = vsel %vm75, %v74, 0.0
  %v84 = vrot.slane %v83, 4
  %v85 = vadd.f32 %v83, %v84
  %v86 = vrot.slane %v85, 2
  %v87 = vadd.f32 %v85, %v86
  %v88 = vrot.slane %v87, 1
  %v89 = vadd.f32 %v87, %v88
  %v90 = vrcp.pop 8.0
  %v91 = vmul.f32 %v82, %v90
  %v92 = vmul.f32 %v89, %v90
  %v93 = vsub.f32 %v73, %v91
  %v94 = vsub.f32 %v74, %v92
  %v95 = vld [vmem:[%s2] sm:$0x3]
  %97 = vset.pattern.permute.xlu0 0
  %98 = vperm.xlu0 %97, %v93
  %v99 = vpop.permute.xlu0 %98
  %102 = vset.pattern.permute.xlu0 0
  %103 = vperm.xlu0 %102, %v94
  %v104 = vpop.permute.xlu0 %103
  %v106 = vlaneseq
  %v107 = vshrl.u32 %v106, 7
  %v108 = vsub.s32 0, %v107
  %v109 = vrot.slane %v95, %v108
  %v110 = vmul.f32 %v99, %v109
  %v111 = vmul.f32 %v104, %v109
  %112 = vset.pattern.permute.xlu0 1
  %113 = vperm.xlu0 %112, %v93
  %v114 = vpop.permute.xlu0 %113
  %116 = vset.pattern.permute.xlu0 1
  %117 = vperm.xlu0 %116, %v94
  %v118 = vpop.permute.xlu0 %117
  %v120 = vlaneseq
  %v121 = vshrl.u32 %v120, 7
  %v122 = vsub.s32 1, %v121
  %v123 = vrot.slane %v95, %v122
  %v124 = vmul.f32 %v114, %v123
  %v125 = vmul.f32 %v118, %v123
  %v126 = vadd.f32 %v110, %v124
  %v127 = vadd.f32 %v111, %v125
  %v128 = vld [vmem:[%s3] sm:$0x1]
  %v130 = vlaneseq
  %v131 = vshrl.u32 %v130, 7
  %v132 = vsub.s32 0, %v131
  %v133 = vrot.slane %v128, %v132
  %v135 = vadd.f32 %v126, %v133
  %v136 = vadd.f32 %v127, %v133
  %vm137 = vcmp.ge.f32.partialorder %v135, 0.0
  %vm138 = vcmp.ge.f32.partialorder %v136, 0.0
  %v139 = vmul.f32 %v135, 0.01
  %v140 = vmul.f32 %v136, 0.01
  %v141 = vsel %vm137, %v135, %v139
  %v142 = vsel %vm138, %v136, %v140
  %v143 = vld [vmem:[%s1] sm:$0x1]
  %v144 = vld [vmem:[%s1 + $0x1] sm:$0x1]
  %v145 = vsub.f32 1.0, %v143
  %v146 = vsub.f32 1.0, %v144
  %v147 = vmul.f32 %v145, -1e+09
  %v148 = vmul.f32 %v146, -1e+09
  %v151 = vlaneseq
  %v152 = vshrl.u32 %v151, 7
  %v153 = vsub.s32 0, %v152
  %v154 = vrot.slane %v147, %v153
  %v155 = vlaneseq
  %v156 = vshrl.u32 %v155, 7
  %v157 = vsub.s32 0, %v156
  %v158 = vrot.slane %v148, %v157
  %v161 = vld [vmem:[%s4] sm:$0xff]
  %v162 = vld [vmem:[%s4 + $0x8] sm:$0xff]
  %v163 = vld [vmem:[%s4 + $0x10] sm:$0xff]
  %v164 = vld [vmem:[%s4 + $0x18] sm:$0xff]
  %v165 = vld [vmem:[%s4 + $0x20] sm:$0xff]
  %v166 = vld [vmem:[%s4 + $0x28] sm:$0xff]
  %v167 = vld [vmem:[%s4 + $0x30] sm:$0xff]
  %v168 = vld [vmem:[%s4 + $0x38] sm:$0xff]
  %v169 = vld [vmem:[%s4 + $0x40] sm:$0xff]
  %v170 = vld [vmem:[%s4 + $0x48] sm:$0xff]
  %v171 = vld [vmem:[%s4 + $0x50] sm:$0xff]
  %v172 = vld [vmem:[%s4 + $0x58] sm:$0xff]
  %v173 = vld [vmem:[%s4 + $0x60] sm:$0xff]
  %v174 = vld [vmem:[%s4 + $0x68] sm:$0xff]
  %v175 = vld [vmem:[%s4 + $0x70] sm:$0xff]
  %v176 = vld [vmem:[%s4 + $0x78] sm:$0xff]
  %v177 = vld [vmem:[%s4 + $0x80] sm:$0xff]
  %v178 = vld [vmem:[%s4 + $0x88] sm:$0xff]
  %v179 = vld [vmem:[%s4 + $0x90] sm:$0xff]
  %v180 = vld [vmem:[%s4 + $0x98] sm:$0xff]
  %v181 = vld [vmem:[%s4 + $0xa0] sm:$0xff]
  %v182 = vld [vmem:[%s4 + $0xa8] sm:$0xff]
  %v183 = vld [vmem:[%s4 + $0xb0] sm:$0xff]
  %v184 = vld [vmem:[%s4 + $0xb8] sm:$0xff]
  %v185 = vld [vmem:[%s4 + $0xc0] sm:$0xff]
  %v186 = vld [vmem:[%s4 + $0xc8] sm:$0xff]
  %v187 = vld [vmem:[%s4 + $0xd0] sm:$0xff]
  %v188 = vld [vmem:[%s4 + $0xd8] sm:$0xff]
  %v189 = vld [vmem:[%s4 + $0xe0] sm:$0xff]
  %v190 = vld [vmem:[%s4 + $0xe8] sm:$0xff]
  %v191 = vld [vmem:[%s4 + $0xf0] sm:$0xff]
  %v192 = vld [vmem:[%s4 + $0xf8] sm:$0xff]
  %v193 = vld [vmem:[%s4 + $0x100] sm:$0xff]
  %v194 = vld [vmem:[%s4 + $0x108] sm:$0xff]
  %v195 = vld [vmem:[%s4 + $0x110] sm:$0xff]
  %v196 = vld [vmem:[%s4 + $0x118] sm:$0xff]
  %v197 = vld [vmem:[%s4 + $0x120] sm:$0xff]
  %v198 = vld [vmem:[%s4 + $0x128] sm:$0xff]
  %v199 = vld [vmem:[%s4 + $0x130] sm:$0xff]
  %v200 = vld [vmem:[%s4 + $0x138] sm:$0xff]
  %v201 = vld [vmem:[%s4 + $0x140] sm:$0xff]
  %v202 = vld [vmem:[%s4 + $0x148] sm:$0xff]
  %v203 = vld [vmem:[%s4 + $0x150] sm:$0xff]
  %v204 = vld [vmem:[%s4 + $0x158] sm:$0xff]
  %v205 = vld [vmem:[%s4 + $0x160] sm:$0xff]
  %v206 = vld [vmem:[%s4 + $0x168] sm:$0xff]
  %v207 = vld [vmem:[%s4 + $0x170] sm:$0xff]
  %v208 = vld [vmem:[%s4 + $0x178] sm:$0xff]
  %v209 = vld [vmem:[%s5] sm:$0x7]
  %v211 = vlaneseq
  %v212 = vshrl.u32 %v211, 7
  %v213 = vsub.s32 0, %v212
  %v214 = vrot.slane %v209, %v213
  %v215 = vlaneseq
  %v216 = vshrl.u32 %v215, 7
  %v217 = vsub.s32 1, %v216
  %v218 = vrot.slane %v209, %v217
  %v219 = vlaneseq
  %v220 = vshrl.u32 %v219, 7
  %v221 = vsub.s32 2, %v220
  %v222 = vrot.slane %v209, %v221
  %226 = vmatprep.subr.mxu0 %v162
  %227 = vmatpush1.msra.mxu0 %v161
  %228 = vmatprep.subr.mxu0 %v165
  %229 = vmatpush1.msra.mxu0 %v164
  %230 = vmatprep.subr.mxu0 %v168
  %231 = vmatpush1.msra.mxu0 %v167
  %232 = vmatprep.subr.mxu0 %v171
  %233 = vmatpush1.msra.mxu0 %v170
  %234 = vmatprep.subr.mxu0 %v174
  %235 = vmatpush1.msra.mxu0 %v173
  %236 = vmatprep.subr.mxu0 %v177
  %237 = vmatpush1.msra.mxu0 %v176
  %238 = vmatprep.subr.mxu0 %v180
  %239 = vmatpush1.msra.mxu0 %v179
  %240 = vmatprep.subr.mxu0 %v183
  %241 = vmatpush1.msra.mxu0 %v182
  %242 = vmatprep.subr.mxu0 %v186
  %243 = vmatpush1.msra.mxu0 %v185
  %244 = vmatprep.subr.mxu0 %v189
  %245 = vmatpush1.msra.mxu0 %v188
  %246 = vmatprep.subr.mxu0 %v192
  %247 = vmatpush1.msra.mxu0 %v191
  %248 = vmatprep.subr.mxu0 %v195
  %249 = vmatpush1.msra.mxu0 %v194
  %250 = vmatprep.subr.mxu0 %v198
  %251 = vmatpush1.msra.mxu0 %v197
  %252 = vmatprep.subr.mxu0 %v201
  %253 = vmatpush1.msra.mxu0 %v200
  %254 = vmatprep.subr.mxu0 %v204
  %255 = vmatpush1.msra.mxu0 %v203
  %256 = vmatprep.subr.mxu0 %v207
  %257 = vmatpush1.msra.mxu0 %v206
  %258 = vmatprep.subr.mxu0 0.0
  %259 = vmatpush1.msra.mxu0 0.0
  %260 = vmatprep.subr.mxu0 0.0
  %261 = vmatpush1.msra.mxu0 0.0
  %262 = vmatprep.subr.mxu0 0.0
  %263 = vmatpush1.msra.mxu0 0.0
  %264 = vmatprep.subr.mxu0 0.0
  %265 = vmatpush1.msra.mxu0 0.0
  %266 = vmatprep.subr.mxu0 0.0
  %267 = vmatpush1.msra.mxu0 0.0
  %268 = vmatprep.subr.mxu0 0.0
  %269 = vmatpush1.msra.mxu0 0.0
  %270 = vmatprep.subr.mxu0 0.0
  %271 = vmatpush1.msra.mxu0 0.0
  %272 = vmatprep.subr.mxu0 0.0
  %273 = vmatpush1.msra.mxu0 0.0
  %274 = vmatprep.subr.mxu0 0.0
  %275 = vmatpush1.msra.mxu0 0.0
  %276 = vmatprep.subr.mxu0 0.0
  %277 = vmatpush1.msra.mxu0 0.0
  %278 = vmatprep.subr.mxu0 0.0
  %279 = vmatpush1.msra.mxu0 0.0
  %280 = vmatprep.subr.mxu0 0.0
  %281 = vmatpush1.msra.mxu0 0.0
  %282 = vmatprep.subr.mxu0 0.0
  %283 = vmatpush1.msra.mxu0 0.0
  %284 = vmatprep.subr.mxu0 0.0
  %285 = vmatpush1.msra.mxu0 0.0
  %286 = vmatprep.subr.mxu0 0.0
  %287 = vmatpush1.msra.mxu0 0.0
  %288 = vmatprep.subr.mxu0 0.0
  %289 = vmatpush1.msra.mxu0 0.0
  %290 = vmatprep.mubr.f32.mxu0 0.0
  %291 = vmatmul.mubr.f32.gmra.mrb[0].mxu0 %v141
  %v292 = vpop.f32.mrb[0].mxu0
  %v293 = vadd.f32 %v214, %v292
  %v294 = vpop.f32.mrb[0].mxu0
  %v295 = vadd.f32 %v218, %v294
  %296 = vmatprep.mubr.f32.mxu0 0.0
  %297 = vmatmul.mubr.f32.gmra.mrb[0].mxu0 %v142
  %v298 = vpop.f32.mrb[0].mxu0
  %v299 = vadd.f32 %v214, %v298
  %v300 = vpop.f32.mrb[0].mxu0
  %v301 = vadd.f32 %v218, %v300
  %302 = vdwg.mxu0
  %303 = vmatprep.subr.mxu0 0.0
  %304 = vmatpush1.msra.mxu0 %v163
  %305 = vmatprep.subr.mxu0 0.0
  %306 = vmatpush1.msra.mxu0 %v166
  %307 = vmatprep.subr.mxu0 0.0
  %308 = vmatpush1.msra.mxu0 %v169
  %309 = vmatprep.subr.mxu0 0.0
  %310 = vmatpush1.msra.mxu0 %v172
  %311 = vmatprep.subr.mxu0 0.0
  %312 = vmatpush1.msra.mxu0 %v175
  %313 = vmatprep.subr.mxu0 0.0
  %314 = vmatpush1.msra.mxu0 %v178
  %315 = vmatprep.subr.mxu0 0.0
  %316 = vmatpush1.msra.mxu0 %v181
  %317 = vmatprep.subr.mxu0 0.0
  %318 = vmatpush1.msra.mxu0 %v184
  %319 = vmatprep.subr.mxu0 0.0
  %320 = vmatpush1.msra.mxu0 %v187
  %321 = vmatprep.subr.mxu0 0.0
  %322 = vmatpush1.msra.mxu0 %v190
  %323 = vmatprep.subr.mxu0 0.0
  %324 = vmatpush1.msra.mxu0 %v193
  %325 = vmatprep.subr.mxu0 0.0
  %326 = vmatpush1.msra.mxu0 %v196
  %327 = vmatprep.subr.mxu0 0.0
  %328 = vmatpush1.msra.mxu0 %v199
  %329 = vmatprep.subr.mxu0 0.0
  %330 = vmatpush1.msra.mxu0 %v202
  %331 = vmatprep.subr.mxu0 0.0
  %332 = vmatpush1.msra.mxu0 %v205
  %333 = vmatprep.subr.mxu0 0.0
  %334 = vmatpush1.msra.mxu0 %v208
  %335 = vmatprep.subr.mxu0 0.0
  %336 = vmatpush1.msra.mxu0 0.0
  %337 = vmatprep.subr.mxu0 0.0
  %338 = vmatpush1.msra.mxu0 0.0
  %339 = vmatprep.subr.mxu0 0.0
  %340 = vmatpush1.msra.mxu0 0.0
  %341 = vmatprep.subr.mxu0 0.0
  %342 = vmatpush1.msra.mxu0 0.0
  %343 = vmatprep.subr.mxu0 0.0
  %344 = vmatpush1.msra.mxu0 0.0
  %345 = vmatprep.subr.mxu0 0.0
  %346 = vmatpush1.msra.mxu0 0.0
  %347 = vmatprep.subr.mxu0 0.0
  %348 = vmatpush1.msra.mxu0 0.0
  %349 = vmatprep.subr.mxu0 0.0
  %350 = vmatpush1.msra.mxu0 0.0
  %351 = vmatprep.subr.mxu0 0.0
  %352 = vmatpush1.msra.mxu0 0.0
  %353 = vmatprep.subr.mxu0 0.0
  %354 = vmatpush1.msra.mxu0 0.0
  %355 = vmatprep.subr.mxu0 0.0
  %356 = vmatpush1.msra.mxu0 0.0
  %357 = vmatprep.subr.mxu0 0.0
  %358 = vmatpush1.msra.mxu0 0.0
  %359 = vmatprep.subr.mxu0 0.0
  %360 = vmatpush1.msra.mxu0 0.0
  %361 = vmatprep.subr.mxu0 0.0
  %362 = vmatpush1.msra.mxu0 0.0
  %363 = vmatprep.subr.mxu0 0.0
  %364 = vmatpush1.msra.mxu0 0.0
  %365 = vmatprep.subr.mxu0 0.0
  %366 = vmatpush1.msra.mxu0 0.0
  %367 = vmatprep.mubr.f32.mxu0 0.0
  %368 = vmatmul.mubr.f32.gmra.mrb[0].mxu0 %v141
  %v369 = vpop.f32.mrb[0].mxu0
  %v370 = vadd.f32 %v222, %v369
  %v371 = vpop.f32.mrb[0].mxu0
  %372 = vmatprep.mubr.f32.mxu0 0.0
  %373 = vmatmul.mubr.f32.gmra.mrb[0].mxu0 %v142
  %v374 = vpop.f32.mrb[0].mxu0
  %v375 = vadd.f32 %v222, %v374
  %v376 = vpop.f32.mrb[0].mxu0
  %377 = vdwg.mxu0
  %vm378 = vcmask 261120
  %v380 = vsel %vm378, %v293, 0
  %v383 = vsel %vm378, %v295, 0
  %385 = vmatprep.subr.mxu0 0.0
  %386 = vmatpush1.xpose.msra.mxu0 %v383
  %387 = vmatprep.subr.mxu0 0.0
  %388 = vmatpush1.xpose.msra.mxu0 0.0
  %389 = vmatprep.subr.mxu0 0.0
  %390 = vmatpush1.xpose.msra.mxu0 0.0
  %391 = vmatprep.subr.mxu0 0.0
  %392 = vmatpush1.xpose.msra.mxu0 0.0
  %393 = vmatprep.subr.mxu0 0.0
  %394 = vmatpush1.xpose.msra.mxu0 0.0
  %395 = vmatprep.subr.mxu0 0.0
  %396 = vmatpush1.xpose.msra.mxu0 0.0
  %397 = vmatprep.subr.mxu0 0.0
  %398 = vmatpush1.xpose.msra.mxu0 0.0
  %399 = vmatprep.subr.mxu0 0.0
  %400 = vmatpush1.xpose.msra.mxu0 0.0
  %401 = vmatprep.subr.mxu0 0.0
  %402 = vmatpush1.xpose.msra.mxu0 0.0
  %403 = vmatprep.subr.mxu0 0.0
  %404 = vmatpush1.xpose.msra.mxu0 0.0
  %405 = vmatprep.subr.mxu0 0.0
  %406 = vmatpush1.xpose.msra.mxu0 0.0
  %407 = vmatprep.subr.mxu0 0.0
  %408 = vmatpush1.xpose.msra.mxu0 0.0
  %409 = vmatprep.subr.mxu0 0.0
  %410 = vmatpush1.xpose.msra.mxu0 0.0
  %411 = vmatprep.subr.mxu0 0.0
  %412 = vmatpush1.xpose.msra.mxu0 0.0
  %413 = vmatprep.subr.mxu0 0.0
  %414 = vmatpush1.xpose.msra.mxu0 0.0
  %415 = vmatprep.subr.mxu0 0.0
  %416 = vmatpush1.xpose.msra.mxu0 0.0
  %417 = vmatprep.subr.mxu0 0.0
  %418 = vmatpush1.xpose.msra.mxu0 0.0
  %419 = vmatprep.subr.mxu0 0.0
  %420 = vmatpush1.xpose.msra.mxu0 0.0
  %421 = vmatprep.subr.mxu0 0.0
  %422 = vmatpush1.xpose.msra.mxu0 0.0
  %423 = vmatprep.subr.mxu0 0.0
  %424 = vmatpush1.xpose.msra.mxu0 0.0
  %425 = vmatprep.subr.mxu0 0.0
  %426 = vmatpush1.xpose.msra.mxu0 0.0
  %427 = vmatprep.subr.mxu0 0.0
  %428 = vmatpush1.xpose.msra.mxu0 0.0
  %429 = vmatprep.subr.mxu0 0.0
  %430 = vmatpush1.xpose.msra.mxu0 0.0
  %431 = vmatprep.subr.mxu0 0.0
  %432 = vmatpush1.xpose.msra.mxu0 0.0
  %433 = vmatprep.subr.mxu0 0.0
  %434 = vmatpush1.xpose.msra.mxu0 0.0
  %435 = vmatprep.subr.mxu0 0.0
  %436 = vmatpush1.xpose.msra.mxu0 0.0
  %437 = vmatprep.subr.mxu0 0.0
  %438 = vmatpush1.xpose.msra.mxu0 0.0
  %439 = vmatprep.subr.mxu0 0.0
  %440 = vmatpush1.xpose.msra.mxu0 0.0
  %441 = vmatprep.subr.mxu0 0.0
  %442 = vmatpush1.xpose.msra.mxu0 0.0
  %443 = vmatprep.subr.mxu0 0.0
  %444 = vmatpush1.xpose.msra.mxu0 0.0
  %445 = vmatprep.subr.mxu0 0.0
  %446 = vmatpush1.xpose.msra.mxu0 0.0
  %447 = vmatprep.subr.mxu0 0.0
  %448 = vmatpush1.xpose.msra.mxu0 0.0
  %449 = vmatprep.mubr.f32.mxu0 0.0
  %450 = vmatmul.mubr.f32.gmra.mrb[0].mxu0 %v380
  %v451 = vpop.f32.mrb[0].mxu0
  %v452 = vadd.f32 %v154, %v451
  %v453 = vpop.f32.mrb[0].mxu0
  %454 = vdwg.mxu0
  %v456 = vsel %vm378, %v299, 0
  %v459 = vsel %vm378, %v301, 0
  %461 = vmatprep.subr.mxu0 0.0
  %462 = vmatpush1.xpose.msra.mxu0 %v459
  %463 = vmatprep.subr.mxu0 0.0
  %464 = vmatpush1.xpose.msra.mxu0 0.0
  %465 = vmatprep.subr.mxu0 0.0
  %466 = vmatpush1.xpose.msra.mxu0 0.0
  %467 = vmatprep.subr.mxu0 0.0
  %468 = vmatpush1.xpose.msra.mxu0 0.0
  %469 = vmatprep.subr.mxu0 0.0
  %470 = vmatpush1.xpose.msra.mxu0 0.0
  %471 = vmatprep.subr.mxu0 0.0
  %472 = vmatpush1.xpose.msra.mxu0 0.0
  %473 = vmatprep.subr.mxu0 0.0
  %474 = vmatpush1.xpose.msra.mxu0 0.0
  %475 = vmatprep.subr.mxu0 0.0
  %476 = vmatpush1.xpose.msra.mxu0 0.0
  %477 = vmatprep.subr.mxu0 0.0
  %478 = vmatpush1.xpose.msra.mxu0 0.0
  %479 = vmatprep.subr.mxu0 0.0
  %480 = vmatpush1.xpose.msra.mxu0 0.0
  %481 = vmatprep.subr.mxu0 0.0
  %482 = vmatpush1.xpose.msra.mxu0 0.0
  %483 = vmatprep.subr.mxu0 0.0
  %484 = vmatpush1.xpose.msra.mxu0 0.0
  %485 = vmatprep.subr.mxu0 0.0
  %486 = vmatpush1.xpose.msra.mxu0 0.0
  %487 = vmatprep.subr.mxu0 0.0
  %488 = vmatpush1.xpose.msra.mxu0 0.0
  %489 = vmatprep.subr.mxu0 0.0
  %490 = vmatpush1.xpose.msra.mxu0 0.0
  %491 = vmatprep.subr.mxu0 0.0
  %492 = vmatpush1.xpose.msra.mxu0 0.0
  %493 = vmatprep.subr.mxu0 0.0
  %494 = vmatpush1.xpose.msra.mxu0 0.0
  %495 = vmatprep.subr.mxu0 0.0
  %496 = vmatpush1.xpose.msra.mxu0 0.0
  %497 = vmatprep.subr.mxu0 0.0
  %498 = vmatpush1.xpose.msra.mxu0 0.0
  %499 = vmatprep.subr.mxu0 0.0
  %500 = vmatpush1.xpose.msra.mxu0 0.0
  %501 = vmatprep.subr.mxu0 0.0
  %502 = vmatpush1.xpose.msra.mxu0 0.0
  %503 = vmatprep.subr.mxu0 0.0
  %504 = vmatpush1.xpose.msra.mxu0 0.0
  %505 = vmatprep.subr.mxu0 0.0
  %506 = vmatpush1.xpose.msra.mxu0 0.0
  %507 = vmatprep.subr.mxu0 0.0
  %508 = vmatpush1.xpose.msra.mxu0 0.0
  %509 = vmatprep.subr.mxu0 0.0
  %510 = vmatpush1.xpose.msra.mxu0 0.0
  %511 = vmatprep.subr.mxu0 0.0
  %512 = vmatpush1.xpose.msra.mxu0 0.0
  %513 = vmatprep.subr.mxu0 0.0
  %514 = vmatpush1.xpose.msra.mxu0 0.0
  %515 = vmatprep.subr.mxu0 0.0
  %516 = vmatpush1.xpose.msra.mxu0 0.0
  %517 = vmatprep.subr.mxu0 0.0
  %518 = vmatpush1.xpose.msra.mxu0 0.0
  %519 = vmatprep.subr.mxu0 0.0
  %520 = vmatpush1.xpose.msra.mxu0 0.0
  %521 = vmatprep.subr.mxu0 0.0
  %522 = vmatpush1.xpose.msra.mxu0 0.0
  %523 = vmatprep.subr.mxu0 0.0
  %524 = vmatpush1.xpose.msra.mxu0 0.0
  %525 = vmatprep.mubr.f32.mxu0 0.0
  %526 = vmatmul.mubr.f32.gmra.mrb[0].mxu0 %v456
  %v527 = vpop.f32.mrb[0].mxu0
  %v528 = vadd.f32 %v158, %v527
  %v529 = vpop.f32.mrb[0].mxu0
  %530 = vdwg.mxu0
  %vm531 = vcmask 64512
  %v532 = vsel %vm531, %v452, -inf
  %533 = vmax.xlane.f32.xlu0 %v532
  %v534 = vpop.xlane.xlu0 %533
  %v535 = vsel %vm531, %v528, -inf
  %536 = vmax.xlane.f32.xlu0 %v535
  %v537 = vpop.xlane.xlu0 %536
  %v538 = vsub.f32 %v452, %v534
  %v539 = vsub.f32 %v528, %v537
  %v540 = vmul.f32 %v538, 1.442695
  %v541 = vpow.pop %v540
  %v542 = vmul.f32 %v539, 1.442695
  %v543 = vpow.pop %v542
  %v544 = vsel %vm531, %v541, 0.0
  %545 = vadd.xlane.f32.xlu0 %v544
  %v546 = vpop.xlane.xlu0 %545
  %v547 = vsel %vm531, %v543, 0.0
  %548 = vadd.xlane.f32.xlu0 %v547
  %v549 = vpop.xlane.xlu0 %548
  %v550 = vrcp.pop %v546
  %v551 = vmul.f32 %v541, %v550
  %v552 = vrcp.pop %v549
  %v553 = vmul.f32 %v543, %v552
  %v555 = vsel %vm531, %v551, 0
  %557 = vmatprep.subr.mxu0 0.0
  %558 = vmatpush1.msra.mxu0 %v370
  %559 = vmatprep.subr.mxu0 0.0
  %560 = vmatpush1.msra.mxu0 0.0
  %561 = vmatprep.subr.mxu0 0.0
  %562 = vmatpush1.msra.mxu0 0.0
  %563 = vmatprep.subr.mxu0 0.0
  %564 = vmatpush1.msra.mxu0 0.0
  %565 = vmatprep.subr.mxu0 0.0
  %566 = vmatpush1.msra.mxu0 0.0
  %567 = vmatprep.subr.mxu0 0.0
  %568 = vmatpush1.msra.mxu0 0.0
  %569 = vmatprep.subr.mxu0 0.0
  %570 = vmatpush1.msra.mxu0 0.0
  %571 = vmatprep.subr.mxu0 0.0
  %572 = vmatpush1.msra.mxu0 0.0
  %573 = vmatprep.subr.mxu0 0.0
  %574 = vmatpush1.msra.mxu0 0.0
  %575 = vmatprep.subr.mxu0 0.0
  %576 = vmatpush1.msra.mxu0 0.0
  %577 = vmatprep.subr.mxu0 0.0
  %578 = vmatpush1.msra.mxu0 0.0
  %579 = vmatprep.subr.mxu0 0.0
  %580 = vmatpush1.msra.mxu0 0.0
  %581 = vmatprep.subr.mxu0 0.0
  %582 = vmatpush1.msra.mxu0 0.0
  %583 = vmatprep.subr.mxu0 0.0
  %584 = vmatpush1.msra.mxu0 0.0
  %585 = vmatprep.subr.mxu0 0.0
  %586 = vmatpush1.msra.mxu0 0.0
  %587 = vmatprep.subr.mxu0 0.0
  %588 = vmatpush1.msra.mxu0 0.0
  %589 = vmatprep.subr.mxu0 0.0
  %590 = vmatpush1.msra.mxu0 0.0
  %591 = vmatprep.subr.mxu0 0.0
  %592 = vmatpush1.msra.mxu0 0.0
  %593 = vmatprep.subr.mxu0 0.0
  %594 = vmatpush1.msra.mxu0 0.0
  %595 = vmatprep.subr.mxu0 0.0
  %596 = vmatpush1.msra.mxu0 0.0
  %597 = vmatprep.subr.mxu0 0.0
  %598 = vmatpush1.msra.mxu0 0.0
  %599 = vmatprep.subr.mxu0 0.0
  %600 = vmatpush1.msra.mxu0 0.0
  %601 = vmatprep.subr.mxu0 0.0
  %602 = vmatpush1.msra.mxu0 0.0
  %603 = vmatprep.subr.mxu0 0.0
  %604 = vmatpush1.msra.mxu0 0.0
  %605 = vmatprep.subr.mxu0 0.0
  %606 = vmatpush1.msra.mxu0 0.0
  %607 = vmatprep.subr.mxu0 0.0
  %608 = vmatpush1.msra.mxu0 0.0
  %609 = vmatprep.subr.mxu0 0.0
  %610 = vmatpush1.msra.mxu0 0.0
  %611 = vmatprep.subr.mxu0 0.0
  %612 = vmatpush1.msra.mxu0 0.0
  %613 = vmatprep.subr.mxu0 0.0
  %614 = vmatpush1.msra.mxu0 0.0
  %615 = vmatprep.subr.mxu0 0.0
  %616 = vmatpush1.msra.mxu0 0.0
  %617 = vmatprep.subr.mxu0 0.0
  %618 = vmatpush1.msra.mxu0 0.0
  %619 = vmatprep.subr.mxu0 0.0
  %620 = vmatpush1.msra.mxu0 0.0
  %621 = vmatprep.mubr.f32.mxu0 0.0
  %622 = vmatmul.mubr.f32.gmra.mrb[0].mxu0 %v555
  %v623 = vpop.f32.mrb[0].mxu0
  %v624 = vadd.f32 0.0, %v623
  %v625 = vpop.f32.mrb[0].mxu0
  %626 = vdwg.mxu0
  %v628 = vsel %vm531, %v553, 0
  %630 = vmatprep.subr.mxu0 0.0
  %631 = vmatpush1.msra.mxu0 %v375
  %632 = vmatprep.subr.mxu0 0.0
  %633 = vmatpush1.msra.mxu0 0.0
  %634 = vmatprep.subr.mxu0 0.0
  %635 = vmatpush1.msra.mxu0 0.0
  %636 = vmatprep.subr.mxu0 0.0
  %637 = vmatpush1.msra.mxu0 0.0
  %638 = vmatprep.subr.mxu0 0.0
  %639 = vmatpush1.msra.mxu0 0.0
  %640 = vmatprep.subr.mxu0 0.0
  %641 = vmatpush1.msra.mxu0 0.0
  %642 = vmatprep.subr.mxu0 0.0
  %643 = vmatpush1.msra.mxu0 0.0
  %644 = vmatprep.subr.mxu0 0.0
  %645 = vmatpush1.msra.mxu0 0.0
  %646 = vmatprep.subr.mxu0 0.0
  %647 = vmatpush1.msra.mxu0 0.0
  %648 = vmatprep.subr.mxu0 0.0
  %649 = vmatpush1.msra.mxu0 0.0
  %650 = vmatprep.subr.mxu0 0.0
  %651 = vmatpush1.msra.mxu0 0.0
  %652 = vmatprep.subr.mxu0 0.0
  %653 = vmatpush1.msra.mxu0 0.0
  %654 = vmatprep.subr.mxu0 0.0
  %655 = vmatpush1.msra.mxu0 0.0
  %656 = vmatprep.subr.mxu0 0.0
  %657 = vmatpush1.msra.mxu0 0.0
  %658 = vmatprep.subr.mxu0 0.0
  %659 = vmatpush1.msra.mxu0 0.0
  %660 = vmatprep.subr.mxu0 0.0
  %661 = vmatpush1.msra.mxu0 0.0
  %662 = vmatprep.subr.mxu0 0.0
  %663 = vmatpush1.msra.mxu0 0.0
  %664 = vmatprep.subr.mxu0 0.0
  %665 = vmatpush1.msra.mxu0 0.0
  %666 = vmatprep.subr.mxu0 0.0
  %667 = vmatpush1.msra.mxu0 0.0
  %668 = vmatprep.subr.mxu0 0.0
  %669 = vmatpush1.msra.mxu0 0.0
  %670 = vmatprep.subr.mxu0 0.0
  %671 = vmatpush1.msra.mxu0 0.0
  %672 = vmatprep.subr.mxu0 0.0
  %673 = vmatpush1.msra.mxu0 0.0
  %674 = vmatprep.subr.mxu0 0.0
  %675 = vmatpush1.msra.mxu0 0.0
  %676 = vmatprep.subr.mxu0 0.0
  %677 = vmatpush1.msra.mxu0 0.0
  %678 = vmatprep.subr.mxu0 0.0
  %679 = vmatpush1.msra.mxu0 0.0
  %680 = vmatprep.subr.mxu0 0.0
  %681 = vmatpush1.msra.mxu0 0.0
  %682 = vmatprep.subr.mxu0 0.0
  %683 = vmatpush1.msra.mxu0 0.0
  %684 = vmatprep.subr.mxu0 0.0
  %685 = vmatpush1.msra.mxu0 0.0
  %686 = vmatprep.subr.mxu0 0.0
  %687 = vmatpush1.msra.mxu0 0.0
  %688 = vmatprep.subr.mxu0 0.0
  %689 = vmatpush1.msra.mxu0 0.0
  %690 = vmatprep.subr.mxu0 0.0
  %691 = vmatpush1.msra.mxu0 0.0
  %692 = vmatprep.subr.mxu0 0.0
  %693 = vmatpush1.msra.mxu0 0.0
  %694 = vmatprep.mubr.f32.mxu0 0.0
  %695 = vmatmul.mubr.f32.gmra.mrb[0].mxu0 %v628
  %v696 = vpop.f32.mrb[0].mxu0
  %v697 = vadd.f32 0.0, %v696
  %v698 = vpop.f32.mrb[0].mxu0
  %699 = vdwg.mxu0
  %700 = vrot.lane.b32.xlu0 %v293, 96
  %v701 = vpop.permute.xlu0 %700
  %702 = vrot.lane.b32.xlu0 %v295, 96
  %v703 = vpop.permute.xlu0 %702
  %v704 = vsel %vm378, %v701, 0
  %v706 = vsel %vm378, %v703, 0
  %708 = vmatprep.subr.mxu0 0.0
  %709 = vmatpush1.xpose.msra.mxu0 %v706
  %710 = vmatprep.subr.mxu0 0.0
  %711 = vmatpush1.xpose.msra.mxu0 0.0
  %712 = vmatprep.subr.mxu0 0.0
  %713 = vmatpush1.xpose.msra.mxu0 0.0
  %714 = vmatprep.subr.mxu0 0.0
  %715 = vmatpush1.xpose.msra.mxu0 0.0
  %716 = vmatprep.subr.mxu0 0.0
  %717 = vmatpush1.xpose.msra.mxu0 0.0
  %718 = vmatprep.subr.mxu0 0.0
  %719 = vmatpush1.xpose.msra.mxu0 0.0
  %720 = vmatprep.subr.mxu0 0.0
  %721 = vmatpush1.xpose.msra.mxu0 0.0
  %722 = vmatprep.subr.mxu0 0.0
  %723 = vmatpush1.xpose.msra.mxu0 0.0
  %724 = vmatprep.subr.mxu0 0.0
  %725 = vmatpush1.xpose.msra.mxu0 0.0
  %726 = vmatprep.subr.mxu0 0.0
  %727 = vmatpush1.xpose.msra.mxu0 0.0
  %728 = vmatprep.subr.mxu0 0.0
  %729 = vmatpush1.xpose.msra.mxu0 0.0
  %730 = vmatprep.subr.mxu0 0.0
  %731 = vmatpush1.xpose.msra.mxu0 0.0
  %732 = vmatprep.subr.mxu0 0.0
  %733 = vmatpush1.xpose.msra.mxu0 0.0
  %734 = vmatprep.subr.mxu0 0.0
  %735 = vmatpush1.xpose.msra.mxu0 0.0
  %736 = vmatprep.subr.mxu0 0.0
  %737 = vmatpush1.xpose.msra.mxu0 0.0
  %738 = vmatprep.subr.mxu0 0.0
  %739 = vmatpush1.xpose.msra.mxu0 0.0
  %740 = vmatprep.subr.mxu0 0.0
  %741 = vmatpush1.xpose.msra.mxu0 0.0
  %742 = vmatprep.subr.mxu0 0.0
  %743 = vmatpush1.xpose.msra.mxu0 0.0
  %744 = vmatprep.subr.mxu0 0.0
  %745 = vmatpush1.xpose.msra.mxu0 0.0
  %746 = vmatprep.subr.mxu0 0.0
  %747 = vmatpush1.xpose.msra.mxu0 0.0
  %748 = vmatprep.subr.mxu0 0.0
  %749 = vmatpush1.xpose.msra.mxu0 0.0
  %750 = vmatprep.subr.mxu0 0.0
  %751 = vmatpush1.xpose.msra.mxu0 0.0
  %752 = vmatprep.subr.mxu0 0.0
  %753 = vmatpush1.xpose.msra.mxu0 0.0
  %754 = vmatprep.subr.mxu0 0.0
  %755 = vmatpush1.xpose.msra.mxu0 0.0
  %756 = vmatprep.subr.mxu0 0.0
  %757 = vmatpush1.xpose.msra.mxu0 0.0
  %758 = vmatprep.subr.mxu0 0.0
  %759 = vmatpush1.xpose.msra.mxu0 0.0
  %760 = vmatprep.subr.mxu0 0.0
  %761 = vmatpush1.xpose.msra.mxu0 0.0
  %762 = vmatprep.subr.mxu0 0.0
  %763 = vmatpush1.xpose.msra.mxu0 0.0
  %764 = vmatprep.subr.mxu0 0.0
  %765 = vmatpush1.xpose.msra.mxu0 0.0
  %766 = vmatprep.subr.mxu0 0.0
  %767 = vmatpush1.xpose.msra.mxu0 0.0
  %768 = vmatprep.subr.mxu0 0.0
  %769 = vmatpush1.xpose.msra.mxu0 0.0
  %770 = vmatprep.subr.mxu0 0.0
  %771 = vmatpush1.xpose.msra.mxu0 0.0
  %772 = vmatprep.mubr.f32.mxu0 0.0
  %773 = vmatmul.mubr.f32.gmra.mrb[0].mxu0 %v704
  %v774 = vpop.f32.mrb[0].mxu0
  %v775 = vadd.f32 %v154, %v774
  %v776 = vpop.f32.mrb[0].mxu0
  %777 = vdwg.mxu0
  %778 = vrot.lane.b32.xlu0 %v299, 96
  %v779 = vpop.permute.xlu0 %778
  %780 = vrot.lane.b32.xlu0 %v301, 96
  %v781 = vpop.permute.xlu0 %780
  %v782 = vsel %vm378, %v779, 0
  %v784 = vsel %vm378, %v781, 0
  %786 = vmatprep.subr.mxu0 0.0
  %787 = vmatpush1.xpose.msra.mxu0 %v784
  %788 = vmatprep.subr.mxu0 0.0
  %789 = vmatpush1.xpose.msra.mxu0 0.0
  %790 = vmatprep.subr.mxu0 0.0
  %791 = vmatpush1.xpose.msra.mxu0 0.0
  %792 = vmatprep.subr.mxu0 0.0
  %793 = vmatpush1.xpose.msra.mxu0 0.0
  %794 = vmatprep.subr.mxu0 0.0
  %795 = vmatpush1.xpose.msra.mxu0 0.0
  %796 = vmatprep.subr.mxu0 0.0
  %797 = vmatpush1.xpose.msra.mxu0 0.0
  %798 = vmatprep.subr.mxu0 0.0
  %799 = vmatpush1.xpose.msra.mxu0 0.0
  %800 = vmatprep.subr.mxu0 0.0
  %801 = vmatpush1.xpose.msra.mxu0 0.0
  %802 = vmatprep.subr.mxu0 0.0
  %803 = vmatpush1.xpose.msra.mxu0 0.0
  %804 = vmatprep.subr.mxu0 0.0
  %805 = vmatpush1.xpose.msra.mxu0 0.0
  %806 = vmatprep.subr.mxu0 0.0
  %807 = vmatpush1.xpose.msra.mxu0 0.0
  %808 = vmatprep.subr.mxu0 0.0
  %809 = vmatpush1.xpose.msra.mxu0 0.0
  %810 = vmatprep.subr.mxu0 0.0
  %811 = vmatpush1.xpose.msra.mxu0 0.0
  %812 = vmatprep.subr.mxu0 0.0
  %813 = vmatpush1.xpose.msra.mxu0 0.0
  %814 = vmatprep.subr.mxu0 0.0
  %815 = vmatpush1.xpose.msra.mxu0 0.0
  %816 = vmatprep.subr.mxu0 0.0
  %817 = vmatpush1.xpose.msra.mxu0 0.0
  %818 = vmatprep.subr.mxu0 0.0
  %819 = vmatpush1.xpose.msra.mxu0 0.0
  %820 = vmatprep.subr.mxu0 0.0
  %821 = vmatpush1.xpose.msra.mxu0 0.0
  %822 = vmatprep.subr.mxu0 0.0
  %823 = vmatpush1.xpose.msra.mxu0 0.0
  %824 = vmatprep.subr.mxu0 0.0
  %825 = vmatpush1.xpose.msra.mxu0 0.0
  %826 = vmatprep.subr.mxu0 0.0
  %827 = vmatpush1.xpose.msra.mxu0 0.0
  %828 = vmatprep.subr.mxu0 0.0
  %829 = vmatpush1.xpose.msra.mxu0 0.0
  %830 = vmatprep.subr.mxu0 0.0
  %831 = vmatpush1.xpose.msra.mxu0 0.0
  %832 = vmatprep.subr.mxu0 0.0
  %833 = vmatpush1.xpose.msra.mxu0 0.0
  %834 = vmatprep.subr.mxu0 0.0
  %835 = vmatpush1.xpose.msra.mxu0 0.0
  %836 = vmatprep.subr.mxu0 0.0
  %837 = vmatpush1.xpose.msra.mxu0 0.0
  %838 = vmatprep.subr.mxu0 0.0
  %839 = vmatpush1.xpose.msra.mxu0 0.0
  %840 = vmatprep.subr.mxu0 0.0
  %841 = vmatpush1.xpose.msra.mxu0 0.0
  %842 = vmatprep.subr.mxu0 0.0
  %843 = vmatpush1.xpose.msra.mxu0 0.0
  %844 = vmatprep.subr.mxu0 0.0
  %845 = vmatpush1.xpose.msra.mxu0 0.0
  %846 = vmatprep.subr.mxu0 0.0
  %847 = vmatpush1.xpose.msra.mxu0 0.0
  %848 = vmatprep.subr.mxu0 0.0
  %849 = vmatpush1.xpose.msra.mxu0 0.0
  %850 = vmatprep.mubr.f32.mxu0 0.0
  %851 = vmatmul.mubr.f32.gmra.mrb[0].mxu0 %v782
  %v852 = vpop.f32.mrb[0].mxu0
  %v853 = vadd.f32 %v158, %v852
  %v854 = vpop.f32.mrb[0].mxu0
  %855 = vdwg.mxu0
  %v856 = vsel %vm531, %v775, -inf
  %857 = vmax.xlane.f32.xlu0 %v856
  %v858 = vpop.xlane.xlu0 %857
  %v859 = vsel %vm531, %v853, -inf
  %860 = vmax.xlane.f32.xlu0 %v859
  %v861 = vpop.xlane.xlu0 %860
  %v862 = vsub.f32 %v775, %v858
  %v863 = vsub.f32 %v853, %v861
  %v864 = vmul.f32 %v862, 1.442695
  %v865 = vpow.pop %v864
  %v866 = vmul.f32 %v863, 1.442695
  %v867 = vpow.pop %v866
  %v868 = vsel %vm531, %v865, 0.0
  %869 = vadd.xlane.f32.xlu0 %v868
  %v870 = vpop.xlane.xlu0 %869
  %v871 = vsel %vm531, %v867, 0.0
  %872 = vadd.xlane.f32.xlu0 %v871
  %v873 = vpop.xlane.xlu0 %872
  %v874 = vrcp.pop %v870
  %v875 = vmul.f32 %v865, %v874
  %v876 = vrcp.pop %v873
  %v877 = vmul.f32 %v867, %v876
  %879 = vrot.lane.b32.xlu0 %v370, 96
  %v880 = vpop.permute.xlu0 %879
  %v883 = vsel %vm531, %v875, 0
  %885 = vmatprep.subr.mxu0 0.0
  %886 = vmatpush1.msra.mxu0 %v880
  %887 = vmatprep.subr.mxu0 0.0
  %888 = vmatpush1.msra.mxu0 0.0
  %889 = vmatprep.subr.mxu0 0.0
  %890 = vmatpush1.msra.mxu0 0.0
  %891 = vmatprep.subr.mxu0 0.0
  %892 = vmatpush1.msra.mxu0 0.0
  %893 = vmatprep.subr.mxu0 0.0
  %894 = vmatpush1.msra.mxu0 0.0
  %895 = vmatprep.subr.mxu0 0.0
  %896 = vmatpush1.msra.mxu0 0.0
  %897 = vmatprep.subr.mxu0 0.0
  %898 = vmatpush1.msra.mxu0 0.0
  %899 = vmatprep.subr.mxu0 0.0
  %900 = vmatpush1.msra.mxu0 0.0
  %901 = vmatprep.subr.mxu0 0.0
  %902 = vmatpush1.msra.mxu0 0.0
  %903 = vmatprep.subr.mxu0 0.0
  %904 = vmatpush1.msra.mxu0 0.0
  %905 = vmatprep.subr.mxu0 0.0
  %906 = vmatpush1.msra.mxu0 0.0
  %907 = vmatprep.subr.mxu0 0.0
  %908 = vmatpush1.msra.mxu0 0.0
  %909 = vmatprep.subr.mxu0 0.0
  %910 = vmatpush1.msra.mxu0 0.0
  %911 = vmatprep.subr.mxu0 0.0
  %912 = vmatpush1.msra.mxu0 0.0
  %913 = vmatprep.subr.mxu0 0.0
  %914 = vmatpush1.msra.mxu0 0.0
  %915 = vmatprep.subr.mxu0 0.0
  %916 = vmatpush1.msra.mxu0 0.0
  %917 = vmatprep.subr.mxu0 0.0
  %918 = vmatpush1.msra.mxu0 0.0
  %919 = vmatprep.subr.mxu0 0.0
  %920 = vmatpush1.msra.mxu0 0.0
  %921 = vmatprep.subr.mxu0 0.0
  %922 = vmatpush1.msra.mxu0 0.0
  %923 = vmatprep.subr.mxu0 0.0
  %924 = vmatpush1.msra.mxu0 0.0
  %925 = vmatprep.subr.mxu0 0.0
  %926 = vmatpush1.msra.mxu0 0.0
  %927 = vmatprep.subr.mxu0 0.0
  %928 = vmatpush1.msra.mxu0 0.0
  %929 = vmatprep.subr.mxu0 0.0
  %930 = vmatpush1.msra.mxu0 0.0
  %931 = vmatprep.subr.mxu0 0.0
  %932 = vmatpush1.msra.mxu0 0.0
  %933 = vmatprep.subr.mxu0 0.0
  %934 = vmatpush1.msra.mxu0 0.0
  %935 = vmatprep.subr.mxu0 0.0
  %936 = vmatpush1.msra.mxu0 0.0
  %937 = vmatprep.subr.mxu0 0.0
  %938 = vmatpush1.msra.mxu0 0.0
  %939 = vmatprep.subr.mxu0 0.0
  %940 = vmatpush1.msra.mxu0 0.0
  %941 = vmatprep.subr.mxu0 0.0
  %942 = vmatpush1.msra.mxu0 0.0
  %943 = vmatprep.subr.mxu0 0.0
  %944 = vmatpush1.msra.mxu0 0.0
  %945 = vmatprep.subr.mxu0 0.0
  %946 = vmatpush1.msra.mxu0 0.0
  %947 = vmatprep.subr.mxu0 0.0
  %948 = vmatpush1.msra.mxu0 0.0
  %949 = vmatprep.mubr.f32.mxu0 0.0
  %950 = vmatmul.mubr.f32.gmra.mrb[0].mxu0 %v883
  %v951 = vpop.f32.mrb[0].mxu0
  %v952 = vadd.f32 0.0, %v951
  %v953 = vpop.f32.mrb[0].mxu0
  %954 = vdwg.mxu0
  %956 = vrot.lane.b32.xlu0 %v375, 96
  %v957 = vpop.permute.xlu0 %956
  %v960 = vsel %vm531, %v877, 0
  %962 = vmatprep.subr.mxu0 0.0
  %963 = vmatpush1.msra.mxu0 %v957
  %964 = vmatprep.subr.mxu0 0.0
  %965 = vmatpush1.msra.mxu0 0.0
  %966 = vmatprep.subr.mxu0 0.0
  %967 = vmatpush1.msra.mxu0 0.0
  %968 = vmatprep.subr.mxu0 0.0
  %969 = vmatpush1.msra.mxu0 0.0
  %970 = vmatprep.subr.mxu0 0.0
  %971 = vmatpush1.msra.mxu0 0.0
  %972 = vmatprep.subr.mxu0 0.0
  %973 = vmatpush1.msra.mxu0 0.0
  %974 = vmatprep.subr.mxu0 0.0
  %975 = vmatpush1.msra.mxu0 0.0
  %976 = vmatprep.subr.mxu0 0.0
  %977 = vmatpush1.msra.mxu0 0.0
  %978 = vmatprep.subr.mxu0 0.0
  %979 = vmatpush1.msra.mxu0 0.0
  %980 = vmatprep.subr.mxu0 0.0
  %981 = vmatpush1.msra.mxu0 0.0
  %982 = vmatprep.subr.mxu0 0.0
  %983 = vmatpush1.msra.mxu0 0.0
  %984 = vmatprep.subr.mxu0 0.0
  %985 = vmatpush1.msra.mxu0 0.0
  %986 = vmatprep.subr.mxu0 0.0
  %987 = vmatpush1.msra.mxu0 0.0
  %988 = vmatprep.subr.mxu0 0.0
  %989 = vmatpush1.msra.mxu0 0.0
  %990 = vmatprep.subr.mxu0 0.0
  %991 = vmatpush1.msra.mxu0 0.0
  %992 = vmatprep.subr.mxu0 0.0
  %993 = vmatpush1.msra.mxu0 0.0
  %994 = vmatprep.subr.mxu0 0.0
  %995 = vmatpush1.msra.mxu0 0.0
  %996 = vmatprep.subr.mxu0 0.0
  %997 = vmatpush1.msra.mxu0 0.0
  %998 = vmatprep.subr.mxu0 0.0
  %999 = vmatpush1.msra.mxu0 0.0
  %1000 = vmatprep.subr.mxu0 0.0
  %1001 = vmatpush1.msra.mxu0 0.0
  %1002 = vmatprep.subr.mxu0 0.0
  %1003 = vmatpush1.msra.mxu0 0.0
  %1004 = vmatprep.subr.mxu0 0.0
  %1005 = vmatpush1.msra.mxu0 0.0
  %1006 = vmatprep.subr.mxu0 0.0
  %1007 = vmatpush1.msra.mxu0 0.0
  %1008 = vmatprep.subr.mxu0 0.0
  %1009 = vmatpush1.msra.mxu0 0.0
  %1010 = vmatprep.subr.mxu0 0.0
  %1011 = vmatpush1.msra.mxu0 0.0
  %1012 = vmatprep.subr.mxu0 0.0
  %1013 = vmatpush1.msra.mxu0 0.0
  %1014 = vmatprep.subr.mxu0 0.0
  %1015 = vmatpush1.msra.mxu0 0.0
  %1016 = vmatprep.subr.mxu0 0.0
  %1017 = vmatpush1.msra.mxu0 0.0
  %1018 = vmatprep.subr.mxu0 0.0
  %1019 = vmatpush1.msra.mxu0 0.0
  %1020 = vmatprep.subr.mxu0 0.0
  %1021 = vmatpush1.msra.mxu0 0.0
  %1022 = vmatprep.subr.mxu0 0.0
  %1023 = vmatpush1.msra.mxu0 0.0
  %1024 = vmatprep.subr.mxu0 0.0
  %1025 = vmatpush1.msra.mxu0 0.0
  %1026 = vmatprep.mubr.f32.mxu0 0.0
  %1027 = vmatmul.mubr.f32.gmra.mrb[0].mxu0 %v960
  %v1028 = vpop.f32.mrb[0].mxu0
  %v1029 = vadd.f32 0.0, %v1028
  %v1030 = vpop.f32.mrb[0].mxu0
  %1031 = vdwg.mxu0
  %1032 = vrot.lane.b32.xlu0 %v293, 64
  %v1033 = vpop.permute.xlu0 %1032
  %1034 = vrot.lane.b32.xlu0 %v295, 64
  %v1035 = vpop.permute.xlu0 %1034
  %v1036 = vsel %vm378, %v1033, 0
  %v1038 = vsel %vm378, %v1035, 0
  %1040 = vmatprep.subr.mxu0 0.0
  %1041 = vmatpush1.xpose.msra.mxu0 %v1038
  %1042 = vmatprep.subr.mxu0 0.0
  %1043 = vmatpush1.xpose.msra.mxu0 0.0
  %1044 = vmatprep.subr.mxu0 0.0
  %1045 = vmatpush1.xpose.msra.mxu0 0.0
  %1046 = vmatprep.subr.mxu0 0.0
  %1047 = vmatpush1.xpose.msra.mxu0 0.0
  %1048 = vmatprep.subr.mxu0 0.0
  %1049 = vmatpush1.xpose.msra.mxu0 0.0
  %1050 = vmatprep.subr.mxu0 0.0
  %1051 = vmatpush1.xpose.msra.mxu0 0.0
  %1052 = vmatprep.subr.mxu0 0.0
  %1053 = vmatpush1.xpose.msra.mxu0 0.0
  %1054 = vmatprep.subr.mxu0 0.0
  %1055 = vmatpush1.xpose.msra.mxu0 0.0
  %1056 = vmatprep.subr.mxu0 0.0
  %1057 = vmatpush1.xpose.msra.mxu0 0.0
  %1058 = vmatprep.subr.mxu0 0.0
  %1059 = vmatpush1.xpose.msra.mxu0 0.0
  %1060 = vmatprep.subr.mxu0 0.0
  %1061 = vmatpush1.xpose.msra.mxu0 0.0
  %1062 = vmatprep.subr.mxu0 0.0
  %1063 = vmatpush1.xpose.msra.mxu0 0.0
  %1064 = vmatprep.subr.mxu0 0.0
  %1065 = vmatpush1.xpose.msra.mxu0 0.0
  %1066 = vmatprep.subr.mxu0 0.0
  %1067 = vmatpush1.xpose.msra.mxu0 0.0
  %1068 = vmatprep.subr.mxu0 0.0
  %1069 = vmatpush1.xpose.msra.mxu0 0.0
  %1070 = vmatprep.subr.mxu0 0.0
  %1071 = vmatpush1.xpose.msra.mxu0 0.0
  %1072 = vmatprep.subr.mxu0 0.0
  %1073 = vmatpush1.xpose.msra.mxu0 0.0
  %1074 = vmatprep.subr.mxu0 0.0
  %1075 = vmatpush1.xpose.msra.mxu0 0.0
  %1076 = vmatprep.subr.mxu0 0.0
  %1077 = vmatpush1.xpose.msra.mxu0 0.0
  %1078 = vmatprep.subr.mxu0 0.0
  %1079 = vmatpush1.xpose.msra.mxu0 0.0
  %1080 = vmatprep.subr.mxu0 0.0
  %1081 = vmatpush1.xpose.msra.mxu0 0.0
  %1082 = vmatprep.subr.mxu0 0.0
  %1083 = vmatpush1.xpose.msra.mxu0 0.0
  %1084 = vmatprep.subr.mxu0 0.0
  %1085 = vmatpush1.xpose.msra.mxu0 0.0
  %1086 = vmatprep.subr.mxu0 0.0
  %1087 = vmatpush1.xpose.msra.mxu0 0.0
  %1088 = vmatprep.subr.mxu0 0.0
  %1089 = vmatpush1.xpose.msra.mxu0 0.0
  %1090 = vmatprep.subr.mxu0 0.0
  %1091 = vmatpush1.xpose.msra.mxu0 0.0
  %1092 = vmatprep.subr.mxu0 0.0
  %1093 = vmatpush1.xpose.msra.mxu0 0.0
  %1094 = vmatprep.subr.mxu0 0.0
  %1095 = vmatpush1.xpose.msra.mxu0 0.0
  %1096 = vmatprep.subr.mxu0 0.0
  %1097 = vmatpush1.xpose.msra.mxu0 0.0
  %1098 = vmatprep.subr.mxu0 0.0
  %1099 = vmatpush1.xpose.msra.mxu0 0.0
  %1100 = vmatprep.subr.mxu0 0.0
  %1101 = vmatpush1.xpose.msra.mxu0 0.0
  %1102 = vmatprep.subr.mxu0 0.0
  %1103 = vmatpush1.xpose.msra.mxu0 0.0
  %1104 = vmatprep.mubr.f32.mxu0 0.0
  %1105 = vmatmul.mubr.f32.gmra.mrb[0].mxu0 %v1036
  %v1106 = vpop.f32.mrb[0].mxu0
  %v1107 = vadd.f32 %v154, %v1106
  %v1108 = vpop.f32.mrb[0].mxu0
  %1109 = vdwg.mxu0
  %1110 = vrot.lane.b32.xlu0 %v299, 64
  %v1111 = vpop.permute.xlu0 %1110
  %1112 = vrot.lane.b32.xlu0 %v301, 64
  %v1113 = vpop.permute.xlu0 %1112
  %v1114 = vsel %vm378, %v1111, 0
  %v1116 = vsel %vm378, %v1113, 0
  %1118 = vmatprep.subr.mxu0 0.0
  %1119 = vmatpush1.xpose.msra.mxu0 %v1116
  %1120 = vmatprep.subr.mxu0 0.0
  %1121 = vmatpush1.xpose.msra.mxu0 0.0
  %1122 = vmatprep.subr.mxu0 0.0
  %1123 = vmatpush1.xpose.msra.mxu0 0.0
  %1124 = vmatprep.subr.mxu0 0.0
  %1125 = vmatpush1.xpose.msra.mxu0 0.0
  %1126 = vmatprep.subr.mxu0 0.0
  %1127 = vmatpush1.xpose.msra.mxu0 0.0
  %1128 = vmatprep.subr.mxu0 0.0
  %1129 = vmatpush1.xpose.msra.mxu0 0.0
  %1130 = vmatprep.subr.mxu0 0.0
  %1131 = vmatpush1.xpose.msra.mxu0 0.0
  %1132 = vmatprep.subr.mxu0 0.0
  %1133 = vmatpush1.xpose.msra.mxu0 0.0
  %1134 = vmatprep.subr.mxu0 0.0
  %1135 = vmatpush1.xpose.msra.mxu0 0.0
  %1136 = vmatprep.subr.mxu0 0.0
  %1137 = vmatpush1.xpose.msra.mxu0 0.0
  %1138 = vmatprep.subr.mxu0 0.0
  %1139 = vmatpush1.xpose.msra.mxu0 0.0
  %1140 = vmatprep.subr.mxu0 0.0
  %1141 = vmatpush1.xpose.msra.mxu0 0.0
  %1142 = vmatprep.subr.mxu0 0.0
  %1143 = vmatpush1.xpose.msra.mxu0 0.0
  %1144 = vmatprep.subr.mxu0 0.0
  %1145 = vmatpush1.xpose.msra.mxu0 0.0
  %1146 = vmatprep.subr.mxu0 0.0
  %1147 = vmatpush1.xpose.msra.mxu0 0.0
  %1148 = vmatprep.subr.mxu0 0.0
  %1149 = vmatpush1.xpose.msra.mxu0 0.0
  %1150 = vmatprep.subr.mxu0 0.0
  %1151 = vmatpush1.xpose.msra.mxu0 0.0
  %1152 = vmatprep.subr.mxu0 0.0
  %1153 = vmatpush1.xpose.msra.mxu0 0.0
  %1154 = vmatprep.subr.mxu0 0.0
  %1155 = vmatpush1.xpose.msra.mxu0 0.0
  %1156 = vmatprep.subr.mxu0 0.0
  %1157 = vmatpush1.xpose.msra.mxu0 0.0
  %1158 = vmatprep.subr.mxu0 0.0
  %1159 = vmatpush1.xpose.msra.mxu0 0.0
  %1160 = vmatprep.subr.mxu0 0.0
  %1161 = vmatpush1.xpose.msra.mxu0 0.0
  %1162 = vmatprep.subr.mxu0 0.0
  %1163 = vmatpush1.xpose.msra.mxu0 0.0
  %1164 = vmatprep.subr.mxu0 0.0
  %1165 = vmatpush1.xpose.msra.mxu0 0.0
  %1166 = vmatprep.subr.mxu0 0.0
  %1167 = vmatpush1.xpose.msra.mxu0 0.0
  %1168 = vmatprep.subr.mxu0 0.0
  %1169 = vmatpush1.xpose.msra.mxu0 0.0
  %1170 = vmatprep.subr.mxu0 0.0
  %1171 = vmatpush1.xpose.msra.mxu0 0.0
  %1172 = vmatprep.subr.mxu0 0.0
  %1173 = vmatpush1.xpose.msra.mxu0 0.0
  %1174 = vmatprep.subr.mxu0 0.0
  %1175 = vmatpush1.xpose.msra.mxu0 0.0
  %1176 = vmatprep.subr.mxu0 0.0
  %1177 = vmatpush1.xpose.msra.mxu0 0.0
  %1178 = vmatprep.subr.mxu0 0.0
  %1179 = vmatpush1.xpose.msra.mxu0 0.0
  %1180 = vmatprep.subr.mxu0 0.0
  %1181 = vmatpush1.xpose.msra.mxu0 0.0
  %1182 = vmatprep.mubr.f32.mxu0 0.0
  %1183 = vmatmul.mubr.f32.gmra.mrb[0].mxu0 %v1114
  %v1184 = vpop.f32.mrb[0].mxu0
  %v1185 = vadd.f32 %v158, %v1184
  %v1186 = vpop.f32.mrb[0].mxu0
  %1187 = vdwg.mxu0
  %v1188 = vsel %vm531, %v1107, -inf
  %1189 = vmax.xlane.f32.xlu0 %v1188
  %v1190 = vpop.xlane.xlu0 %1189
  %v1191 = vsel %vm531, %v1185, -inf
  %1192 = vmax.xlane.f32.xlu0 %v1191
  %v1193 = vpop.xlane.xlu0 %1192
  %v1194 = vsub.f32 %v1107, %v1190
  %v1195 = vsub.f32 %v1185, %v1193
  %v1196 = vmul.f32 %v1194, 1.442695
  %v1197 = vpow.pop %v1196
  %v1198 = vmul.f32 %v1195, 1.442695
  %v1199 = vpow.pop %v1198
  %v1200 = vsel %vm531, %v1197, 0.0
  %1201 = vadd.xlane.f32.xlu0 %v1200
  %v1202 = vpop.xlane.xlu0 %1201
  %v1203 = vsel %vm531, %v1199, 0.0
  %1204 = vadd.xlane.f32.xlu0 %v1203
  %v1205 = vpop.xlane.xlu0 %1204
  %v1206 = vrcp.pop %v1202
  %v1207 = vmul.f32 %v1197, %v1206
  %v1208 = vrcp.pop %v1205
  %v1209 = vmul.f32 %v1199, %v1208
  %1210 = vrot.lane.b32.xlu0 %v370, 64
  %v1211 = vpop.permute.xlu0 %1210
  %v1214 = vsel %vm531, %v1207, 0
  %1216 = vmatprep.subr.mxu0 0.0
  %1217 = vmatpush1.msra.mxu0 %v1211
  %1218 = vmatprep.subr.mxu0 0.0
  %1219 = vmatpush1.msra.mxu0 0.0
  %1220 = vmatprep.subr.mxu0 0.0
  %1221 = vmatpush1.msra.mxu0 0.0
  %1222 = vmatprep.subr.mxu0 0.0
  %1223 = vmatpush1.msra.mxu0 0.0
  %1224 = vmatprep.subr.mxu0 0.0
  %1225 = vmatpush1.msra.mxu0 0.0
  %1226 = vmatprep.subr.mxu0 0.0
  %1227 = vmatpush1.msra.mxu0 0.0
  %1228 = vmatprep.subr.mxu0 0.0
  %1229 = vmatpush1.msra.mxu0 0.0
  %1230 = vmatprep.subr.mxu0 0.0
  %1231 = vmatpush1.msra.mxu0 0.0
  %1232 = vmatprep.subr.mxu0 0.0
  %1233 = vmatpush1.msra.mxu0 0.0
  %1234 = vmatprep.subr.mxu0 0.0
  %1235 = vmatpush1.msra.mxu0 0.0
  %1236 = vmatprep.subr.mxu0 0.0
  %1237 = vmatpush1.msra.mxu0 0.0
  %1238 = vmatprep.subr.mxu0 0.0
  %1239 = vmatpush1.msra.mxu0 0.0
  %1240 = vmatprep.subr.mxu0 0.0
  %1241 = vmatpush1.msra.mxu0 0.0
  %1242 = vmatprep.subr.mxu0 0.0
  %1243 = vmatpush1.msra.mxu0 0.0
  %1244 = vmatprep.subr.mxu0 0.0
  %1245 = vmatpush1.msra.mxu0 0.0
  %1246 = vmatprep.subr.mxu0 0.0
  %1247 = vmatpush1.msra.mxu0 0.0
  %1248 = vmatprep.subr.mxu0 0.0
  %1249 = vmatpush1.msra.mxu0 0.0
  %1250 = vmatprep.subr.mxu0 0.0
  %1251 = vmatpush1.msra.mxu0 0.0
  %1252 = vmatprep.subr.mxu0 0.0
  %1253 = vmatpush1.msra.mxu0 0.0
  %1254 = vmatprep.subr.mxu0 0.0
  %1255 = vmatpush1.msra.mxu0 0.0
  %1256 = vmatprep.subr.mxu0 0.0
  %1257 = vmatpush1.msra.mxu0 0.0
  %1258 = vmatprep.subr.mxu0 0.0
  %1259 = vmatpush1.msra.mxu0 0.0
  %1260 = vmatprep.subr.mxu0 0.0
  %1261 = vmatpush1.msra.mxu0 0.0
  %1262 = vmatprep.subr.mxu0 0.0
  %1263 = vmatpush1.msra.mxu0 0.0
  %1264 = vmatprep.subr.mxu0 0.0
  %1265 = vmatpush1.msra.mxu0 0.0
  %1266 = vmatprep.subr.mxu0 0.0
  %1267 = vmatpush1.msra.mxu0 0.0
  %1268 = vmatprep.subr.mxu0 0.0
  %1269 = vmatpush1.msra.mxu0 0.0
  %1270 = vmatprep.subr.mxu0 0.0
  %1271 = vmatpush1.msra.mxu0 0.0
  %1272 = vmatprep.subr.mxu0 0.0
  %1273 = vmatpush1.msra.mxu0 0.0
  %1274 = vmatprep.subr.mxu0 0.0
  %1275 = vmatpush1.msra.mxu0 0.0
  %1276 = vmatprep.subr.mxu0 0.0
  %1277 = vmatpush1.msra.mxu0 0.0
  %1278 = vmatprep.subr.mxu0 0.0
  %1279 = vmatpush1.msra.mxu0 0.0
  %1280 = vmatprep.mubr.f32.mxu0 0.0
  %1281 = vmatmul.mubr.f32.gmra.mrb[0].mxu0 %v1214
  %v1282 = vpop.f32.mrb[0].mxu0
  %v1283 = vadd.f32 0.0, %v1282
  %v1284 = vpop.f32.mrb[0].mxu0
  %1285 = vdwg.mxu0
  %1286 = vrot.lane.b32.xlu0 %v375, 64
  %v1287 = vpop.permute.xlu0 %1286
  %v1290 = vsel %vm531, %v1209, 0
  %1292 = vmatprep.subr.mxu0 0.0
  %1293 = vmatpush1.msra.mxu0 %v1287
  %1294 = vmatprep.subr.mxu0 0.0
  %1295 = vmatpush1.msra.mxu0 0.0
  %1296 = vmatprep.subr.mxu0 0.0
  %1297 = vmatpush1.msra.mxu0 0.0
  %1298 = vmatprep.subr.mxu0 0.0
  %1299 = vmatpush1.msra.mxu0 0.0
  %1300 = vmatprep.subr.mxu0 0.0
  %1301 = vmatpush1.msra.mxu0 0.0
  %1302 = vmatprep.subr.mxu0 0.0
  %1303 = vmatpush1.msra.mxu0 0.0
  %1304 = vmatprep.subr.mxu0 0.0
  %1305 = vmatpush1.msra.mxu0 0.0
  %1306 = vmatprep.subr.mxu0 0.0
  %1307 = vmatpush1.msra.mxu0 0.0
  %1308 = vmatprep.subr.mxu0 0.0
  %1309 = vmatpush1.msra.mxu0 0.0
  %1310 = vmatprep.subr.mxu0 0.0
  %1311 = vmatpush1.msra.mxu0 0.0
  %1312 = vmatprep.subr.mxu0 0.0
  %1313 = vmatpush1.msra.mxu0 0.0
  %1314 = vmatprep.subr.mxu0 0.0
  %1315 = vmatpush1.msra.mxu0 0.0
  %1316 = vmatprep.subr.mxu0 0.0
  %1317 = vmatpush1.msra.mxu0 0.0
  %1318 = vmatprep.subr.mxu0 0.0
  %1319 = vmatpush1.msra.mxu0 0.0
  %1320 = vmatprep.subr.mxu0 0.0
  %1321 = vmatpush1.msra.mxu0 0.0
  %1322 = vmatprep.subr.mxu0 0.0
  %1323 = vmatpush1.msra.mxu0 0.0
  %1324 = vmatprep.subr.mxu0 0.0
  %1325 = vmatpush1.msra.mxu0 0.0
  %1326 = vmatprep.subr.mxu0 0.0
  %1327 = vmatpush1.msra.mxu0 0.0
  %1328 = vmatprep.subr.mxu0 0.0
  %1329 = vmatpush1.msra.mxu0 0.0
  %1330 = vmatprep.subr.mxu0 0.0
  %1331 = vmatpush1.msra.mxu0 0.0
  %1332 = vmatprep.subr.mxu0 0.0
  %1333 = vmatpush1.msra.mxu0 0.0
  %1334 = vmatprep.subr.mxu0 0.0
  %1335 = vmatpush1.msra.mxu0 0.0
  %1336 = vmatprep.subr.mxu0 0.0
  %1337 = vmatpush1.msra.mxu0 0.0
  %1338 = vmatprep.subr.mxu0 0.0
  %1339 = vmatpush1.msra.mxu0 0.0
  %1340 = vmatprep.subr.mxu0 0.0
  %1341 = vmatpush1.msra.mxu0 0.0
  %1342 = vmatprep.subr.mxu0 0.0
  %1343 = vmatpush1.msra.mxu0 0.0
  %1344 = vmatprep.subr.mxu0 0.0
  %1345 = vmatpush1.msra.mxu0 0.0
  %1346 = vmatprep.subr.mxu0 0.0
  %1347 = vmatpush1.msra.mxu0 0.0
  %1348 = vmatprep.subr.mxu0 0.0
  %1349 = vmatpush1.msra.mxu0 0.0
  %1350 = vmatprep.subr.mxu0 0.0
  %1351 = vmatpush1.msra.mxu0 0.0
  %1352 = vmatprep.subr.mxu0 0.0
  %1353 = vmatpush1.msra.mxu0 0.0
  %1354 = vmatprep.subr.mxu0 0.0
  %1355 = vmatpush1.msra.mxu0 0.0
  %1356 = vmatprep.mubr.f32.mxu0 0.0
  %1357 = vmatmul.mubr.f32.gmra.mrb[0].mxu0 %v1290
  %v1358 = vpop.f32.mrb[0].mxu0
  %v1359 = vadd.f32 0.0, %v1358
  %v1360 = vpop.f32.mrb[0].mxu0
  %1361 = vdwg.mxu0
  %1362 = vrot.lane.b32.xlu0 %v293, 32
  %v1363 = vpop.permute.xlu0 %1362
  %1364 = vrot.lane.b32.xlu0 %v295, 32
  %v1365 = vpop.permute.xlu0 %1364
  %v1366 = vsel %vm378, %v1363, 0
  %v1368 = vsel %vm378, %v1365, 0
  %1370 = vmatprep.subr.mxu0 0.0
  %1371 = vmatpush1.xpose.msra.mxu0 %v1368
  %1372 = vmatprep.subr.mxu0 0.0
  %1373 = vmatpush1.xpose.msra.mxu0 0.0
  %1374 = vmatprep.subr.mxu0 0.0
  %1375 = vmatpush1.xpose.msra.mxu0 0.0
  %1376 = vmatprep.subr.mxu0 0.0
  %1377 = vmatpush1.xpose.msra.mxu0 0.0
  %1378 = vmatprep.subr.mxu0 0.0
  %1379 = vmatpush1.xpose.msra.mxu0 0.0
  %1380 = vmatprep.subr.mxu0 0.0
  %1381 = vmatpush1.xpose.msra.mxu0 0.0
  %1382 = vmatprep.subr.mxu0 0.0
  %1383 = vmatpush1.xpose.msra.mxu0 0.0
  %1384 = vmatprep.subr.mxu0 0.0
  %1385 = vmatpush1.xpose.msra.mxu0 0.0
  %1386 = vmatprep.subr.mxu0 0.0
  %1387 = vmatpush1.xpose.msra.mxu0 0.0
  %1388 = vmatprep.subr.mxu0 0.0
  %1389 = vmatpush1.xpose.msra.mxu0 0.0
  %1390 = vmatprep.subr.mxu0 0.0
  %1391 = vmatpush1.xpose.msra.mxu0 0.0
  %1392 = vmatprep.subr.mxu0 0.0
  %1393 = vmatpush1.xpose.msra.mxu0 0.0
  %1394 = vmatprep.subr.mxu0 0.0
  %1395 = vmatpush1.xpose.msra.mxu0 0.0
  %1396 = vmatprep.subr.mxu0 0.0
  %1397 = vmatpush1.xpose.msra.mxu0 0.0
  %1398 = vmatprep.subr.mxu0 0.0
  %1399 = vmatpush1.xpose.msra.mxu0 0.0
  %1400 = vmatprep.subr.mxu0 0.0
  %1401 = vmatpush1.xpose.msra.mxu0 0.0
  %1402 = vmatprep.subr.mxu0 0.0
  %1403 = vmatpush1.xpose.msra.mxu0 0.0
  %1404 = vmatprep.subr.mxu0 0.0
  %1405 = vmatpush1.xpose.msra.mxu0 0.0
  %1406 = vmatprep.subr.mxu0 0.0
  %1407 = vmatpush1.xpose.msra.mxu0 0.0
  %1408 = vmatprep.subr.mxu0 0.0
  %1409 = vmatpush1.xpose.msra.mxu0 0.0
  %1410 = vmatprep.subr.mxu0 0.0
  %1411 = vmatpush1.xpose.msra.mxu0 0.0
  %1412 = vmatprep.subr.mxu0 0.0
  %1413 = vmatpush1.xpose.msra.mxu0 0.0
  %1414 = vmatprep.subr.mxu0 0.0
  %1415 = vmatpush1.xpose.msra.mxu0 0.0
  %1416 = vmatprep.subr.mxu0 0.0
  %1417 = vmatpush1.xpose.msra.mxu0 0.0
  %1418 = vmatprep.subr.mxu0 0.0
  %1419 = vmatpush1.xpose.msra.mxu0 0.0
  %1420 = vmatprep.subr.mxu0 0.0
  %1421 = vmatpush1.xpose.msra.mxu0 0.0
  %1422 = vmatprep.subr.mxu0 0.0
  %1423 = vmatpush1.xpose.msra.mxu0 0.0
  %1424 = vmatprep.subr.mxu0 0.0
  %1425 = vmatpush1.xpose.msra.mxu0 0.0
  %1426 = vmatprep.subr.mxu0 0.0
  %1427 = vmatpush1.xpose.msra.mxu0 0.0
  %1428 = vmatprep.subr.mxu0 0.0
  %1429 = vmatpush1.xpose.msra.mxu0 0.0
  %1430 = vmatprep.subr.mxu0 0.0
  %1431 = vmatpush1.xpose.msra.mxu0 0.0
  %1432 = vmatprep.subr.mxu0 0.0
  %1433 = vmatpush1.xpose.msra.mxu0 0.0
  %1434 = vmatprep.mubr.f32.mxu0 0.0
  %1435 = vmatmul.mubr.f32.gmra.mrb[0].mxu0 %v1366
  %v1436 = vpop.f32.mrb[0].mxu0
  %v1437 = vadd.f32 %v154, %v1436
  %v1438 = vpop.f32.mrb[0].mxu0
  %1439 = vdwg.mxu0
  %1440 = vrot.lane.b32.xlu0 %v299, 32
  %v1441 = vpop.permute.xlu0 %1440
  %1442 = vrot.lane.b32.xlu0 %v301, 32
  %v1443 = vpop.permute.xlu0 %1442
  %v1444 = vsel %vm378, %v1441, 0
  %v1446 = vsel %vm378, %v1443, 0
  %1448 = vmatprep.subr.mxu0 0.0
  %1449 = vmatpush1.xpose.msra.mxu0 %v1446
  %1450 = vmatprep.subr.mxu0 0.0
  %1451 = vmatpush1.xpose.msra.mxu0 0.0
  %1452 = vmatprep.subr.mxu0 0.0
  %1453 = vmatpush1.xpose.msra.mxu0 0.0
  %1454 = vmatprep.subr.mxu0 0.0
  %1455 = vmatpush1.xpose.msra.mxu0 0.0
  %1456 = vmatprep.subr.mxu0 0.0
  %1457 = vmatpush1.xpose.msra.mxu0 0.0
  %1458 = vmatprep.subr.mxu0 0.0
  %1459 = vmatpush1.xpose.msra.mxu0 0.0
  %1460 = vmatprep.subr.mxu0 0.0
  %1461 = vmatpush1.xpose.msra.mxu0 0.0
  %1462 = vmatprep.subr.mxu0 0.0
  %1463 = vmatpush1.xpose.msra.mxu0 0.0
  %1464 = vmatprep.subr.mxu0 0.0
  %1465 = vmatpush1.xpose.msra.mxu0 0.0
  %1466 = vmatprep.subr.mxu0 0.0
  %1467 = vmatpush1.xpose.msra.mxu0 0.0
  %1468 = vmatprep.subr.mxu0 0.0
  %1469 = vmatpush1.xpose.msra.mxu0 0.0
  %1470 = vmatprep.subr.mxu0 0.0
  %1471 = vmatpush1.xpose.msra.mxu0 0.0
  %1472 = vmatprep.subr.mxu0 0.0
  %1473 = vmatpush1.xpose.msra.mxu0 0.0
  %1474 = vmatprep.subr.mxu0 0.0
  %1475 = vmatpush1.xpose.msra.mxu0 0.0
  %1476 = vmatprep.subr.mxu0 0.0
  %1477 = vmatpush1.xpose.msra.mxu0 0.0
  %1478 = vmatprep.subr.mxu0 0.0
  %1479 = vmatpush1.xpose.msra.mxu0 0.0
  %1480 = vmatprep.subr.mxu0 0.0
  %1481 = vmatpush1.xpose.msra.mxu0 0.0
  %1482 = vmatprep.subr.mxu0 0.0
  %1483 = vmatpush1.xpose.msra.mxu0 0.0
  %1484 = vmatprep.subr.mxu0 0.0
  %1485 = vmatpush1.xpose.msra.mxu0 0.0
  %1486 = vmatprep.subr.mxu0 0.0
  %1487 = vmatpush1.xpose.msra.mxu0 0.0
  %1488 = vmatprep.subr.mxu0 0.0
  %1489 = vmatpush1.xpose.msra.mxu0 0.0
  %1490 = vmatprep.subr.mxu0 0.0
  %1491 = vmatpush1.xpose.msra.mxu0 0.0
  %1492 = vmatprep.subr.mxu0 0.0
  %1493 = vmatpush1.xpose.msra.mxu0 0.0
  %1494 = vmatprep.subr.mxu0 0.0
  %1495 = vmatpush1.xpose.msra.mxu0 0.0
  %1496 = vmatprep.subr.mxu0 0.0
  %1497 = vmatpush1.xpose.msra.mxu0 0.0
  %1498 = vmatprep.subr.mxu0 0.0
  %1499 = vmatpush1.xpose.msra.mxu0 0.0
  %1500 = vmatprep.subr.mxu0 0.0
  %1501 = vmatpush1.xpose.msra.mxu0 0.0
  %1502 = vmatprep.subr.mxu0 0.0
  %1503 = vmatpush1.xpose.msra.mxu0 0.0
  %1504 = vmatprep.subr.mxu0 0.0
  %1505 = vmatpush1.xpose.msra.mxu0 0.0
  %1506 = vmatprep.subr.mxu0 0.0
  %1507 = vmatpush1.xpose.msra.mxu0 0.0
  %1508 = vmatprep.subr.mxu0 0.0
  %1509 = vmatpush1.xpose.msra.mxu0 0.0
  %1510 = vmatprep.subr.mxu0 0.0
  %1511 = vmatpush1.xpose.msra.mxu0 0.0
  %1512 = vmatprep.mubr.f32.mxu0 0.0
  %1513 = vmatmul.mubr.f32.gmra.mrb[0].mxu0 %v1444
  %v1514 = vpop.f32.mrb[0].mxu0
  %v1515 = vadd.f32 %v158, %v1514
  %v1516 = vpop.f32.mrb[0].mxu0
  %1517 = vdwg.mxu0
  %v1518 = vsel %vm531, %v1437, -inf
  %1519 = vmax.xlane.f32.xlu0 %v1518
  %v1520 = vpop.xlane.xlu0 %1519
  %v1521 = vsel %vm531, %v1515, -inf
  %1522 = vmax.xlane.f32.xlu0 %v1521
  %v1523 = vpop.xlane.xlu0 %1522
  %v1524 = vsub.f32 %v1437, %v1520
  %v1525 = vsub.f32 %v1515, %v1523
  %v1526 = vmul.f32 %v1524, 1.442695
  %v1527 = vpow.pop %v1526
  %v1528 = vmul.f32 %v1525, 1.442695
  %v1529 = vpow.pop %v1528
  %v1530 = vsel %vm531, %v1527, 0.0
  %1531 = vadd.xlane.f32.xlu0 %v1530
  %v1532 = vpop.xlane.xlu0 %1531
  %v1533 = vsel %vm531, %v1529, 0.0
  %1534 = vadd.xlane.f32.xlu0 %v1533
  %v1535 = vpop.xlane.xlu0 %1534
  %v1536 = vrcp.pop %v1532
  %v1537 = vmul.f32 %v1527, %v1536
  %v1538 = vrcp.pop %v1535
  %v1539 = vmul.f32 %v1529, %v1538
  %1540 = vrot.lane.b32.xlu0 %v370, 32
  %v1541 = vpop.permute.xlu0 %1540
  %v1544 = vsel %vm531, %v1537, 0
  %1546 = vmatprep.subr.mxu0 0.0
  %1547 = vmatpush1.msra.mxu0 %v1541
  %1548 = vmatprep.subr.mxu0 0.0
  %1549 = vmatpush1.msra.mxu0 0.0
  %1550 = vmatprep.subr.mxu0 0.0
  %1551 = vmatpush1.msra.mxu0 0.0
  %1552 = vmatprep.subr.mxu0 0.0
  %1553 = vmatpush1.msra.mxu0 0.0
  %1554 = vmatprep.subr.mxu0 0.0
  %1555 = vmatpush1.msra.mxu0 0.0
  %1556 = vmatprep.subr.mxu0 0.0
  %1557 = vmatpush1.msra.mxu0 0.0
  %1558 = vmatprep.subr.mxu0 0.0
  %1559 = vmatpush1.msra.mxu0 0.0
  %1560 = vmatprep.subr.mxu0 0.0
  %1561 = vmatpush1.msra.mxu0 0.0
  %1562 = vmatprep.subr.mxu0 0.0
  %1563 = vmatpush1.msra.mxu0 0.0
  %1564 = vmatprep.subr.mxu0 0.0
  %1565 = vmatpush1.msra.mxu0 0.0
  %1566 = vmatprep.subr.mxu0 0.0
  %1567 = vmatpush1.msra.mxu0 0.0
  %1568 = vmatprep.subr.mxu0 0.0
  %1569 = vmatpush1.msra.mxu0 0.0
  %1570 = vmatprep.subr.mxu0 0.0
  %1571 = vmatpush1.msra.mxu0 0.0
  %1572 = vmatprep.subr.mxu0 0.0
  %1573 = vmatpush1.msra.mxu0 0.0
  %1574 = vmatprep.subr.mxu0 0.0
  %1575 = vmatpush1.msra.mxu0 0.0
  %1576 = vmatprep.subr.mxu0 0.0
  %1577 = vmatpush1.msra.mxu0 0.0
  %1578 = vmatprep.subr.mxu0 0.0
  %1579 = vmatpush1.msra.mxu0 0.0
  %1580 = vmatprep.subr.mxu0 0.0
  %1581 = vmatpush1.msra.mxu0 0.0
  %1582 = vmatprep.subr.mxu0 0.0
  %1583 = vmatpush1.msra.mxu0 0.0
  %1584 = vmatprep.subr.mxu0 0.0
  %1585 = vmatpush1.msra.mxu0 0.0
  %1586 = vmatprep.subr.mxu0 0.0
  %1587 = vmatpush1.msra.mxu0 0.0
  %1588 = vmatprep.subr.mxu0 0.0
  %1589 = vmatpush1.msra.mxu0 0.0
  %1590 = vmatprep.subr.mxu0 0.0
  %1591 = vmatpush1.msra.mxu0 0.0
  %1592 = vmatprep.subr.mxu0 0.0
  %1593 = vmatpush1.msra.mxu0 0.0
  %1594 = vmatprep.subr.mxu0 0.0
  %1595 = vmatpush1.msra.mxu0 0.0
  %1596 = vmatprep.subr.mxu0 0.0
  %1597 = vmatpush1.msra.mxu0 0.0
  %1598 = vmatprep.subr.mxu0 0.0
  %1599 = vmatpush1.msra.mxu0 0.0
  %1600 = vmatprep.subr.mxu0 0.0
  %1601 = vmatpush1.msra.mxu0 0.0
  %1602 = vmatprep.subr.mxu0 0.0
  %1603 = vmatpush1.msra.mxu0 0.0
  %1604 = vmatprep.subr.mxu0 0.0
  %1605 = vmatpush1.msra.mxu0 0.0
  %1606 = vmatprep.subr.mxu0 0.0
  %1607 = vmatpush1.msra.mxu0 0.0
  %1608 = vmatprep.subr.mxu0 0.0
  %1609 = vmatpush1.msra.mxu0 0.0
  %1610 = vmatprep.mubr.f32.mxu0 0.0
  %1611 = vmatmul.mubr.f32.gmra.mrb[0].mxu0 %v1544
  %v1612 = vpop.f32.mrb[0].mxu0
  %v1613 = vadd.f32 0.0, %v1612
  %v1614 = vpop.f32.mrb[0].mxu0
  %1615 = vdwg.mxu0
  %1616 = vrot.lane.b32.xlu0 %v375, 32
  %v1617 = vpop.permute.xlu0 %1616
  %v1620 = vsel %vm531, %v1539, 0
  %1622 = vmatprep.subr.mxu0 0.0
  %1623 = vmatpush1.msra.mxu0 %v1617
  %1624 = vmatprep.subr.mxu0 0.0
  %1625 = vmatpush1.msra.mxu0 0.0
  %1626 = vmatprep.subr.mxu0 0.0
  %1627 = vmatpush1.msra.mxu0 0.0
  %1628 = vmatprep.subr.mxu0 0.0
  %1629 = vmatpush1.msra.mxu0 0.0
  %1630 = vmatprep.subr.mxu0 0.0
  %1631 = vmatpush1.msra.mxu0 0.0
  %1632 = vmatprep.subr.mxu0 0.0
  %1633 = vmatpush1.msra.mxu0 0.0
  %1634 = vmatprep.subr.mxu0 0.0
  %1635 = vmatpush1.msra.mxu0 0.0
  %1636 = vmatprep.subr.mxu0 0.0
  %1637 = vmatpush1.msra.mxu0 0.0
  %1638 = vmatprep.subr.mxu0 0.0
  %1639 = vmatpush1.msra.mxu0 0.0
  %1640 = vmatprep.subr.mxu0 0.0
  %1641 = vmatpush1.msra.mxu0 0.0
  %1642 = vmatprep.subr.mxu0 0.0
  %1643 = vmatpush1.msra.mxu0 0.0
  %1644 = vmatprep.subr.mxu0 0.0
  %1645 = vmatpush1.msra.mxu0 0.0
  %1646 = vmatprep.subr.mxu0 0.0
  %1647 = vmatpush1.msra.mxu0 0.0
  %1648 = vmatprep.subr.mxu0 0.0
  %1649 = vmatpush1.msra.mxu0 0.0
  %1650 = vmatprep.subr.mxu0 0.0
  %1651 = vmatpush1.msra.mxu0 0.0
  %1652 = vmatprep.subr.mxu0 0.0
  %1653 = vmatpush1.msra.mxu0 0.0
  %1654 = vmatprep.subr.mxu0 0.0
  %1655 = vmatpush1.msra.mxu0 0.0
  %1656 = vmatprep.subr.mxu0 0.0
  %1657 = vmatpush1.msra.mxu0 0.0
  %1658 = vmatprep.subr.mxu0 0.0
  %1659 = vmatpush1.msra.mxu0 0.0
  %1660 = vmatprep.subr.mxu0 0.0
  %1661 = vmatpush1.msra.mxu0 0.0
  %1662 = vmatprep.subr.mxu0 0.0
  %1663 = vmatpush1.msra.mxu0 0.0
  %1664 = vmatprep.subr.mxu0 0.0
  %1665 = vmatpush1.msra.mxu0 0.0
  %1666 = vmatprep.subr.mxu0 0.0
  %1667 = vmatpush1.msra.mxu0 0.0
  %1668 = vmatprep.subr.mxu0 0.0
  %1669 = vmatpush1.msra.mxu0 0.0
  %1670 = vmatprep.subr.mxu0 0.0
  %1671 = vmatpush1.msra.mxu0 0.0
  %1672 = vmatprep.subr.mxu0 0.0
  %1673 = vmatpush1.msra.mxu0 0.0
  %1674 = vmatprep.subr.mxu0 0.0
  %1675 = vmatpush1.msra.mxu0 0.0
  %1676 = vmatprep.subr.mxu0 0.0
  %1677 = vmatpush1.msra.mxu0 0.0
  %1678 = vmatprep.subr.mxu0 0.0
  %1679 = vmatpush1.msra.mxu0 0.0
  %1680 = vmatprep.subr.mxu0 0.0
  %1681 = vmatpush1.msra.mxu0 0.0
  %1682 = vmatprep.subr.mxu0 0.0
  %1683 = vmatpush1.msra.mxu0 0.0
  %1684 = vmatprep.subr.mxu0 0.0
  %1685 = vmatpush1.msra.mxu0 0.0
  %1686 = vmatprep.mubr.f32.mxu0 0.0
  %1687 = vmatmul.mubr.f32.gmra.mrb[0].mxu0 %v1620
  %v1688 = vpop.f32.mrb[0].mxu0
  %v1689 = vadd.f32 0.0, %v1688
  %v1690 = vpop.f32.mrb[0].mxu0
  %1691 = vdwg.mxu0
  %1694 = vrot.lane.b32.xlu0 %v952, 32
  %v1695 = vpop.permute.xlu0 %1694
  %1696 = vrot.lane.b32.xlu0 %v1029, 32
  %v1697 = vpop.permute.xlu0 %1696
  %1702 = vrot.lane.b32.xlu0 %v1283, 64
  %v1703 = vpop.permute.xlu0 %1702
  %1704 = vrot.lane.b32.xlu0 %v1359, 64
  %v1705 = vpop.permute.xlu0 %1704
  %1710 = vrot.lane.b32.xlu0 %v1613, 96
  %v1711 = vpop.permute.xlu0 %1710
  %1712 = vrot.lane.b32.xlu0 %v1689, 96
  %v1713 = vpop.permute.xlu0 %1712
  %v1716 = vsel %vm378, %v624, %v1695
  %v1717 = vsel %vm378, %v697, %v1697
  %vm1718 = vcmask 523264
  %v1719 = vsel %vm1718, %v1716, %v1703
  %v1720 = vsel %vm1718, %v1717, %v1705
  %vm1721 = vcmask 785408
  %v1722 = vsel %vm1721, %v1719, %v1711
  %v1723 = vsel %vm1721, %v1720, %v1713
  %v1724 = vld [vmem:[%s6] sm:$0xff]
  %v1725 = vld [vmem:[%s6 + $0x8] sm:$0xff]
  %v1726 = vld [vmem:[%s6 + $0x10] sm:$0xff]
  %v1727 = vld [vmem:[%s6 + $0x18] sm:$0xff]
  %v1728 = vld [vmem:[%s6 + $0x20] sm:$0xff]
  %v1729 = vld [vmem:[%s6 + $0x28] sm:$0xff]
  %v1730 = vld [vmem:[%s6 + $0x30] sm:$0xff]
  %v1731 = vld [vmem:[%s6 + $0x38] sm:$0xff]
  %v1732 = vld [vmem:[%s6 + $0x40] sm:$0xff]
  %v1733 = vld [vmem:[%s6 + $0x48] sm:$0xff]
  %v1734 = vld [vmem:[%s6 + $0x50] sm:$0xff]
  %v1735 = vld [vmem:[%s6 + $0x58] sm:$0xff]
  %v1736 = vld [vmem:[%s6 + $0x60] sm:$0xff]
  %v1737 = vld [vmem:[%s6 + $0x68] sm:$0xff]
  %v1738 = vld [vmem:[%s6 + $0x70] sm:$0xff]
  %v1739 = vld [vmem:[%s6 + $0x78] sm:$0xff]
  %v1740 = vld [vmem:[%s7] sm:$0x1]
  %v1742 = vlaneseq
  %v1743 = vshrl.u32 %v1742, 7
  %v1744 = vsub.s32 0, %v1743
  %v1745 = vrot.slane %v1740, %v1744
  %1747 = vmatprep.subr.mxu0 0.0
  %1748 = vmatpush1.msra.mxu0 %v1724
  %1749 = vmatprep.subr.mxu0 0.0
  %1750 = vmatpush1.msra.mxu0 %v1725
  %1751 = vmatprep.subr.mxu0 0.0
  %1752 = vmatpush1.msra.mxu0 %v1726
  %1753 = vmatprep.subr.mxu0 0.0
  %1754 = vmatpush1.msra.mxu0 %v1727
  %1755 = vmatprep.subr.mxu0 0.0
  %1756 = vmatpush1.msra.mxu0 %v1728
  %1757 = vmatprep.subr.mxu0 0.0
  %1758 = vmatpush1.msra.mxu0 %v1729
  %1759 = vmatprep.subr.mxu0 0.0
  %1760 = vmatpush1.msra.mxu0 %v1730
  %1761 = vmatprep.subr.mxu0 0.0
  %1762 = vmatpush1.msra.mxu0 %v1731
  %1763 = vmatprep.subr.mxu0 0.0
  %1764 = vmatpush1.msra.mxu0 %v1732
  %1765 = vmatprep.subr.mxu0 0.0
  %1766 = vmatpush1.msra.mxu0 %v1733
  %1767 = vmatprep.subr.mxu0 0.0
  %1768 = vmatpush1.msra.mxu0 %v1734
  %1769 = vmatprep.subr.mxu0 0.0
  %1770 = vmatpush1.msra.mxu0 %v1735
  %1771 = vmatprep.subr.mxu0 0.0
  %1772 = vmatpush1.msra.mxu0 %v1736
  %1773 = vmatprep.subr.mxu0 0.0
  %1774 = vmatpush1.msra.mxu0 %v1737
  %1775 = vmatprep.subr.mxu0 0.0
  %1776 = vmatpush1.msra.mxu0 %v1738
  %1777 = vmatprep.subr.mxu0 0.0
  %1778 = vmatpush1.msra.mxu0 %v1739
  %1779 = vmatprep.subr.mxu0 0.0
  %1780 = vmatpush1.msra.mxu0 0.0
  %1781 = vmatprep.subr.mxu0 0.0
  %1782 = vmatpush1.msra.mxu0 0.0
  %1783 = vmatprep.subr.mxu0 0.0
  %1784 = vmatpush1.msra.mxu0 0.0
  %1785 = vmatprep.subr.mxu0 0.0
  %1786 = vmatpush1.msra.mxu0 0.0
  %1787 = vmatprep.subr.mxu0 0.0
  %1788 = vmatpush1.msra.mxu0 0.0
  %1789 = vmatprep.subr.mxu0 0.0
  %1790 = vmatpush1.msra.mxu0 0.0
  %1791 = vmatprep.subr.mxu0 0.0
  %1792 = vmatpush1.msra.mxu0 0.0
  %1793 = vmatprep.subr.mxu0 0.0
  %1794 = vmatpush1.msra.mxu0 0.0
  %1795 = vmatprep.subr.mxu0 0.0
  %1796 = vmatpush1.msra.mxu0 0.0
  %1797 = vmatprep.subr.mxu0 0.0
  %1798 = vmatpush1.msra.mxu0 0.0
  %1799 = vmatprep.subr.mxu0 0.0
  %1800 = vmatpush1.msra.mxu0 0.0
  %1801 = vmatprep.subr.mxu0 0.0
  %1802 = vmatpush1.msra.mxu0 0.0
  %1803 = vmatprep.subr.mxu0 0.0
  %1804 = vmatpush1.msra.mxu0 0.0
  %1805 = vmatprep.subr.mxu0 0.0
  %1806 = vmatpush1.msra.mxu0 0.0
  %1807 = vmatprep.subr.mxu0 0.0
  %1808 = vmatpush1.msra.mxu0 0.0
  %1809 = vmatprep.subr.mxu0 0.0
  %1810 = vmatpush1.msra.mxu0 0.0
  %1811 = vmatprep.mubr.f32.mxu0 0.0
  %1812 = vmatmul.mubr.f32.gmra.mrb[0].mxu0 %v1722
  %v1813 = vpop.f32.mrb[0].mxu0
  %v1814 = vadd.f32 %v1745, %v1813
  %v1815 = vpop.f32.mrb[0].mxu0
  %1816 = vmatprep.mubr.f32.mxu0 0.0
  %1817 = vmatmul.mubr.f32.gmra.mrb[0].mxu0 %v1723
  %v1818 = vpop.f32.mrb[0].mxu0
  %v1819 = vadd.f32 %v1745, %v1818
  %v1820 = vpop.f32.mrb[0].mxu0
  %1821 = vdwg.mxu0
  %v1822 = vadd.f32 %v141, %v1814
  %v1823 = vadd.f32 %v142, %v1819
  %v1824 = vld [vmem:[%s8] sm:$0x1]
  %v1825 = vld [vmem:[%s9] sm:$0x1]
  %1826 = vadd.xlane.f32.xlu0 %v1822
  %v1827 = vpop.xlane.xlu0 %1826
  %1828 = vadd.xlane.f32.xlu0 %v1823
  %v1829 = vpop.xlane.xlu0 %1828
  %v1830 = vrcp.pop 128.0
  %v1831 = vmul.f32 %v1827, %v1830
  %v1832 = vmul.f32 %v1829, %v1830
  %v1833 = vsub.f32 %v1822, %v1831
  %v1834 = vsub.f32 %v1823, %v1832
  %v1835 = vmul.f32 %v1833, %v1833
  %v1836 = vmul.f32 %v1834, %v1834
  %1837 = vadd.xlane.f32.xlu0 %v1835
  %v1838 = vpop.xlane.xlu0 %1837
  %1839 = vadd.xlane.f32.xlu0 %v1836
  %v1840 = vpop.xlane.xlu0 %1839
  %v1841 = vmul.f32 %v1838, %v1830
  %v1842 = vmul.f32 %v1840, %v1830
  %v1843 = vadd.f32 %v1841, 1e-05
  %v1844 = vadd.f32 %v1842, 1e-05
  %v1845 = vrsqrt.pop %v1843
  %v1846 = vrsqrt.pop %v1844
  %v1847 = vmul.f32 %v1833, %v1845
  %v1848 = vmul.f32 %v1834, %v1846
  %v1850 = vlaneseq
  %v1851 = vshrl.u32 %v1850, 7
  %v1852 = vsub.s32 0, %v1851
  %v1853 = vrot.slane %v1824, %v1852
  %v1855 = vmul.f32 %v1847, %v1853
  %v1856 = vmul.f32 %v1848, %v1853
  %v1858 = vlaneseq
  %v1859 = vshrl.u32 %v1858, 7
  %v1860 = vsub.s32 0, %v1859
  %v1861 = vrot.slane %v1825, %v1860
  %v1863 = vadd.f32 %v1855, %v1861
  %v1864 = vadd.f32 %v1856, %v1861
  %v1865 = vld [vmem:[%s10] sm:$0xff]
  %v1866 = vld [vmem:[%s10 + $0x8] sm:$0xff]
  %v1867 = vld [vmem:[%s10 + $0x10] sm:$0xff]
  %v1868 = vld [vmem:[%s10 + $0x18] sm:$0xff]
  %v1869 = vld [vmem:[%s10 + $0x20] sm:$0xff]
  %v1870 = vld [vmem:[%s10 + $0x28] sm:$0xff]
  %v1871 = vld [vmem:[%s10 + $0x30] sm:$0xff]
  %v1872 = vld [vmem:[%s10 + $0x38] sm:$0xff]
  %v1873 = vld [vmem:[%s10 + $0x40] sm:$0xff]
  %v1874 = vld [vmem:[%s10 + $0x48] sm:$0xff]
  %v1875 = vld [vmem:[%s10 + $0x50] sm:$0xff]
  %v1876 = vld [vmem:[%s10 + $0x58] sm:$0xff]
  %v1877 = vld [vmem:[%s10 + $0x60] sm:$0xff]
  %v1878 = vld [vmem:[%s10 + $0x68] sm:$0xff]
  %v1879 = vld [vmem:[%s10 + $0x70] sm:$0xff]
  %v1880 = vld [vmem:[%s10 + $0x78] sm:$0xff]
  %v1881 = vld [vmem:[%s11] sm:$0x1]
  %v1883 = vlaneseq
  %v1884 = vshrl.u32 %v1883, 7
  %v1885 = vsub.s32 0, %v1884
  %v1886 = vrot.slane %v1881, %v1885
  %1888 = vmatprep.subr.mxu0 0.0
  %1889 = vmatpush1.msra.mxu0 %v1865
  %1890 = vmatprep.subr.mxu0 0.0
  %1891 = vmatpush1.msra.mxu0 %v1866
  %1892 = vmatprep.subr.mxu0 0.0
  %1893 = vmatpush1.msra.mxu0 %v1867
  %1894 = vmatprep.subr.mxu0 0.0
  %1895 = vmatpush1.msra.mxu0 %v1868
  %1896 = vmatprep.subr.mxu0 0.0
  %1897 = vmatpush1.msra.mxu0 %v1869
  %1898 = vmatprep.subr.mxu0 0.0
  %1899 = vmatpush1.msra.mxu0 %v1870
  %1900 = vmatprep.subr.mxu0 0.0
  %1901 = vmatpush1.msra.mxu0 %v1871
  %1902 = vmatprep.subr.mxu0 0.0
  %1903 = vmatpush1.msra.mxu0 %v1872
  %1904 = vmatprep.subr.mxu0 0.0
  %1905 = vmatpush1.msra.mxu0 %v1873
  %1906 = vmatprep.subr.mxu0 0.0
  %1907 = vmatpush1.msra.mxu0 %v1874
  %1908 = vmatprep.subr.mxu0 0.0
  %1909 = vmatpush1.msra.mxu0 %v1875
  %1910 = vmatprep.subr.mxu0 0.0
  %1911 = vmatpush1.msra.mxu0 %v1876
  %1912 = vmatprep.subr.mxu0 0.0
  %1913 = vmatpush1.msra.mxu0 %v1877
  %1914 = vmatprep.subr.mxu0 0.0
  %1915 = vmatpush1.msra.mxu0 %v1878
  %1916 = vmatprep.subr.mxu0 0.0
  %1917 = vmatpush1.msra.mxu0 %v1879
  %1918 = vmatprep.subr.mxu0 0.0
  %1919 = vmatpush1.msra.mxu0 %v1880
  %1920 = vmatprep.subr.mxu0 0.0
  %1921 = vmatpush1.msra.mxu0 0.0
  %1922 = vmatprep.subr.mxu0 0.0
  %1923 = vmatpush1.msra.mxu0 0.0
  %1924 = vmatprep.subr.mxu0 0.0
  %1925 = vmatpush1.msra.mxu0 0.0
  %1926 = vmatprep.subr.mxu0 0.0
  %1927 = vmatpush1.msra.mxu0 0.0
  %1928 = vmatprep.subr.mxu0 0.0
  %1929 = vmatpush1.msra.mxu0 0.0
  %1930 = vmatprep.subr.mxu0 0.0
  %1931 = vmatpush1.msra.mxu0 0.0
  %1932 = vmatprep.subr.mxu0 0.0
  %1933 = vmatpush1.msra.mxu0 0.0
  %1934 = vmatprep.subr.mxu0 0.0
  %1935 = vmatpush1.msra.mxu0 0.0
  %1936 = vmatprep.subr.mxu0 0.0
  %1937 = vmatpush1.msra.mxu0 0.0
  %1938 = vmatprep.subr.mxu0 0.0
  %1939 = vmatpush1.msra.mxu0 0.0
  %1940 = vmatprep.subr.mxu0 0.0
  %1941 = vmatpush1.msra.mxu0 0.0
  %1942 = vmatprep.subr.mxu0 0.0
  %1943 = vmatpush1.msra.mxu0 0.0
  %1944 = vmatprep.subr.mxu0 0.0
  %1945 = vmatpush1.msra.mxu0 0.0
  %1946 = vmatprep.subr.mxu0 0.0
  %1947 = vmatpush1.msra.mxu0 0.0
  %1948 = vmatprep.subr.mxu0 0.0
  %1949 = vmatpush1.msra.mxu0 0.0
  %1950 = vmatprep.subr.mxu0 0.0
  %1951 = vmatpush1.msra.mxu0 0.0
  %1952 = vmatprep.mubr.f32.mxu0 0.0
  %1953 = vmatmul.mubr.f32.gmra.mrb[0].mxu0 %v1863
  %v1954 = vpop.f32.mrb[0].mxu0
  %v1955 = vadd.f32 %v1886, %v1954
  %v1956 = vpop.f32.mrb[0].mxu0
  %1957 = vmatprep.mubr.f32.mxu0 0.0
  %1958 = vmatmul.mubr.f32.gmra.mrb[0].mxu0 %v1864
  %v1959 = vpop.f32.mrb[0].mxu0
  %v1960 = vadd.f32 %v1886, %v1959
  %v1961 = vpop.f32.mrb[0].mxu0
  %1962 = vdwg.mxu0
  %v1963 = vmax.f32 %v1955, 0.0
  %v1964 = vmax.f32 %v1960, 0.0
  %v1965 = vld [vmem:[%s12] sm:$0xff]
  %v1966 = vld [vmem:[%s12 + $0x8] sm:$0xff]
  %v1967 = vld [vmem:[%s12 + $0x10] sm:$0xff]
  %v1968 = vld [vmem:[%s12 + $0x18] sm:$0xff]
  %v1969 = vld [vmem:[%s12 + $0x20] sm:$0xff]
  %v1970 = vld [vmem:[%s12 + $0x28] sm:$0xff]
  %v1971 = vld [vmem:[%s12 + $0x30] sm:$0xff]
  %v1972 = vld [vmem:[%s12 + $0x38] sm:$0xff]
  %v1973 = vld [vmem:[%s12 + $0x40] sm:$0xff]
  %v1974 = vld [vmem:[%s12 + $0x48] sm:$0xff]
  %v1975 = vld [vmem:[%s12 + $0x50] sm:$0xff]
  %v1976 = vld [vmem:[%s12 + $0x58] sm:$0xff]
  %v1977 = vld [vmem:[%s12 + $0x60] sm:$0xff]
  %v1978 = vld [vmem:[%s12 + $0x68] sm:$0xff]
  %v1979 = vld [vmem:[%s12 + $0x70] sm:$0xff]
  %v1980 = vld [vmem:[%s12 + $0x78] sm:$0xff]
  %v1981 = vld [vmem:[%s13] sm:$0x1]
  %v1983 = vlaneseq
  %v1984 = vshrl.u32 %v1983, 7
  %v1985 = vsub.s32 0, %v1984
  %v1986 = vrot.slane %v1981, %v1985
  %1988 = vmatprep.subr.mxu0 0.0
  %1989 = vmatpush1.msra.mxu0 %v1965
  %1990 = vmatprep.subr.mxu0 0.0
  %1991 = vmatpush1.msra.mxu0 %v1966
  %1992 = vmatprep.subr.mxu0 0.0
  %1993 = vmatpush1.msra.mxu0 %v1967
  %1994 = vmatprep.subr.mxu0 0.0
  %1995 = vmatpush1.msra.mxu0 %v1968
  %1996 = vmatprep.subr.mxu0 0.0
  %1997 = vmatpush1.msra.mxu0 %v1969
  %1998 = vmatprep.subr.mxu0 0.0
  %1999 = vmatpush1.msra.mxu0 %v1970
  %2000 = vmatprep.subr.mxu0 0.0
  %2001 = vmatpush1.msra.mxu0 %v1971
  %2002 = vmatprep.subr.mxu0 0.0
  %2003 = vmatpush1.msra.mxu0 %v1972
  %2004 = vmatprep.subr.mxu0 0.0
  %2005 = vmatpush1.msra.mxu0 %v1973
  %2006 = vmatprep.subr.mxu0 0.0
  %2007 = vmatpush1.msra.mxu0 %v1974
  %2008 = vmatprep.subr.mxu0 0.0
  %2009 = vmatpush1.msra.mxu0 %v1975
  %2010 = vmatprep.subr.mxu0 0.0
  %2011 = vmatpush1.msra.mxu0 %v1976
  %2012 = vmatprep.subr.mxu0 0.0
  %2013 = vmatpush1.msra.mxu0 %v1977
  %2014 = vmatprep.subr.mxu0 0.0
  %2015 = vmatpush1.msra.mxu0 %v1978
  %2016 = vmatprep.subr.mxu0 0.0
  %2017 = vmatpush1.msra.mxu0 %v1979
  %2018 = vmatprep.subr.mxu0 0.0
  %2019 = vmatpush1.msra.mxu0 %v1980
  %2020 = vmatprep.subr.mxu0 0.0
  %2021 = vmatpush1.msra.mxu0 0.0
  %2022 = vmatprep.subr.mxu0 0.0
  %2023 = vmatpush1.msra.mxu0 0.0
  %2024 = vmatprep.subr.mxu0 0.0
  %2025 = vmatpush1.msra.mxu0 0.0
  %2026 = vmatprep.subr.mxu0 0.0
  %2027 = vmatpush1.msra.mxu0 0.0
  %2028 = vmatprep.subr.mxu0 0.0
  %2029 = vmatpush1.msra.mxu0 0.0
  %2030 = vmatprep.subr.mxu0 0.0
  %2031 = vmatpush1.msra.mxu0 0.0
  %2032 = vmatprep.subr.mxu0 0.0
  %2033 = vmatpush1.msra.mxu0 0.0
  %2034 = vmatprep.subr.mxu0 0.0
  %2035 = vmatpush1.msra.mxu0 0.0
  %2036 = vmatprep.subr.mxu0 0.0
  %2037 = vmatpush1.msra.mxu0 0.0
  %2038 = vmatprep.subr.mxu0 0.0
  %2039 = vmatpush1.msra.mxu0 0.0
  %2040 = vmatprep.subr.mxu0 0.0
  %2041 = vmatpush1.msra.mxu0 0.0
  %2042 = vmatprep.subr.mxu0 0.0
  %2043 = vmatpush1.msra.mxu0 0.0
  %2044 = vmatprep.subr.mxu0 0.0
  %2045 = vmatpush1.msra.mxu0 0.0
  %2046 = vmatprep.subr.mxu0 0.0
  %2047 = vmatpush1.msra.mxu0 0.0
  %2048 = vmatprep.subr.mxu0 0.0
  %2049 = vmatpush1.msra.mxu0 0.0
  %2050 = vmatprep.subr.mxu0 0.0
  %2051 = vmatpush1.msra.mxu0 0.0
  %2052 = vmatprep.mubr.f32.mxu0 0.0
  %2053 = vmatmul.mubr.f32.gmra.mrb[0].mxu0 %v1963
  %v2054 = vpop.f32.mrb[0].mxu0
  %v2055 = vadd.f32 %v1986, %v2054
  %v2056 = vpop.f32.mrb[0].mxu0
  %2057 = vmatprep.mubr.f32.mxu0 0.0
  %2058 = vmatmul.mubr.f32.gmra.mrb[0].mxu0 %v1964
  %v2059 = vpop.f32.mrb[0].mxu0
  %v2060 = vadd.f32 %v1986, %v2059
  %v2061 = vpop.f32.mrb[0].mxu0
  %2062 = vdwg.mxu0
  %v2063 = vadd.f32 %v1863, %v2055
  %v2064 = vadd.f32 %v1864, %v2060
  %v2065 = vld [vmem:[%s14] sm:$0x1]
  %v2066 = vld [vmem:[%s15] sm:$0x1]
  %2067 = vadd.xlane.f32.xlu0 %v2063
  %v2068 = vpop.xlane.xlu0 %2067
  %2069 = vadd.xlane.f32.xlu0 %v2064
  %v2070 = vpop.xlane.xlu0 %2069
  %v2071 = vmul.f32 %v2068, %v1830
  %v2072 = vmul.f32 %v2070, %v1830
  %v2073 = vsub.f32 %v2063, %v2071
  %v2074 = vsub.f32 %v2064, %v2072
  %v2075 = vmul.f32 %v2073, %v2073
  %v2076 = vmul.f32 %v2074, %v2074
  %2077 = vadd.xlane.f32.xlu0 %v2075
  %v2078 = vpop.xlane.xlu0 %2077
  %2079 = vadd.xlane.f32.xlu0 %v2076
  %v2080 = vpop.xlane.xlu0 %2079
  %v2081 = vmul.f32 %v2078, %v1830
  %v2082 = vmul.f32 %v2080, %v1830
  %v2083 = vadd.f32 %v2081, 1e-05
  %v2084 = vadd.f32 %v2082, 1e-05
  %v2085 = vrsqrt.pop %v2083
  %v2086 = vrsqrt.pop %v2084
  %v2087 = vmul.f32 %v2073, %v2085
  %v2088 = vmul.f32 %v2074, %v2086
  %v2090 = vlaneseq
  %v2091 = vshrl.u32 %v2090, 7
  %v2092 = vsub.s32 0, %v2091
  %v2093 = vrot.slane %v2065, %v2092
  %v2095 = vmul.f32 %v2087, %v2093
  %v2096 = vmul.f32 %v2088, %v2093
  %v2098 = vlaneseq
  %v2099 = vshrl.u32 %v2098, 7
  %v2100 = vsub.s32 0, %v2099
  %v2101 = vrot.slane %v2066, %v2100
  %v2103 = vadd.f32 %v2095, %v2101
  %v2104 = vadd.f32 %v2096, %v2101
  %s2105 = scalar_lea.vmem %s4, 384
  %v2106 = vld [vmem:[%s2105] sm:$0xff]
  %v2107 = vld [vmem:[%s2105 + $0x8] sm:$0xff]
  %v2108 = vld [vmem:[%s2105 + $0x10] sm:$0xff]
  %v2109 = vld [vmem:[%s2105 + $0x18] sm:$0xff]
  %v2110 = vld [vmem:[%s2105 + $0x20] sm:$0xff]
  %v2111 = vld [vmem:[%s2105 + $0x28] sm:$0xff]
  %v2112 = vld [vmem:[%s2105 + $0x30] sm:$0xff]
  %v2113 = vld [vmem:[%s2105 + $0x38] sm:$0xff]
  %v2114 = vld [vmem:[%s2105 + $0x40] sm:$0xff]
  %v2115 = vld [vmem:[%s2105 + $0x48] sm:$0xff]
  %v2116 = vld [vmem:[%s2105 + $0x50] sm:$0xff]
  %v2117 = vld [vmem:[%s2105 + $0x58] sm:$0xff]
  %v2118 = vld [vmem:[%s2105 + $0x60] sm:$0xff]
  %v2119 = vld [vmem:[%s2105 + $0x68] sm:$0xff]
  %v2120 = vld [vmem:[%s2105 + $0x70] sm:$0xff]
  %v2121 = vld [vmem:[%s2105 + $0x78] sm:$0xff]
  %v2122 = vld [vmem:[%s2105 + $0x80] sm:$0xff]
  %v2123 = vld [vmem:[%s2105 + $0x88] sm:$0xff]
  %v2124 = vld [vmem:[%s2105 + $0x90] sm:$0xff]
  %v2125 = vld [vmem:[%s2105 + $0x98] sm:$0xff]
  %v2126 = vld [vmem:[%s2105 + $0xa0] sm:$0xff]
  %v2127 = vld [vmem:[%s2105 + $0xa8] sm:$0xff]
  %v2128 = vld [vmem:[%s2105 + $0xb0] sm:$0xff]
  %v2129 = vld [vmem:[%s2105 + $0xb8] sm:$0xff]
  %v2130 = vld [vmem:[%s2105 + $0xc0] sm:$0xff]
  %v2131 = vld [vmem:[%s2105 + $0xc8] sm:$0xff]
  %v2132 = vld [vmem:[%s2105 + $0xd0] sm:$0xff]
  %v2133 = vld [vmem:[%s2105 + $0xd8] sm:$0xff]
  %v2134 = vld [vmem:[%s2105 + $0xe0] sm:$0xff]
  %v2135 = vld [vmem:[%s2105 + $0xe8] sm:$0xff]
  %v2136 = vld [vmem:[%s2105 + $0xf0] sm:$0xff]
  %v2137 = vld [vmem:[%s2105 + $0xf8] sm:$0xff]
  %v2138 = vld [vmem:[%s2105 + $0x100] sm:$0xff]
  %v2139 = vld [vmem:[%s2105 + $0x108] sm:$0xff]
  %v2140 = vld [vmem:[%s2105 + $0x110] sm:$0xff]
  %v2141 = vld [vmem:[%s2105 + $0x118] sm:$0xff]
  %v2142 = vld [vmem:[%s2105 + $0x120] sm:$0xff]
  %v2143 = vld [vmem:[%s2105 + $0x128] sm:$0xff]
  %v2144 = vld [vmem:[%s2105 + $0x130] sm:$0xff]
  %v2145 = vld [vmem:[%s2105 + $0x138] sm:$0xff]
  %v2146 = vld [vmem:[%s2105 + $0x140] sm:$0xff]
  %v2147 = vld [vmem:[%s2105 + $0x148] sm:$0xff]
  %v2148 = vld [vmem:[%s2105 + $0x150] sm:$0xff]
  %v2149 = vld [vmem:[%s2105 + $0x158] sm:$0xff]
  %v2150 = vld [vmem:[%s2105 + $0x160] sm:$0xff]
  %v2151 = vld [vmem:[%s2105 + $0x168] sm:$0xff]
  %v2152 = vld [vmem:[%s2105 + $0x170] sm:$0xff]
  %v2153 = vld [vmem:[%s2105 + $0x178] sm:$0xff]
  %s2154 = scalar_lea.vmem %s5, 3
  %v2155 = vld [vmem:[%s2154] sm:$0x7]
  %v2157 = vlaneseq
  %v2158 = vshrl.u32 %v2157, 7
  %v2159 = vsub.s32 0, %v2158
  %v2160 = vrot.slane %v2155, %v2159
  %v2161 = vlaneseq
  %v2162 = vshrl.u32 %v2161, 7
  %v2163 = vsub.s32 1, %v2162
  %v2164 = vrot.slane %v2155, %v2163
  %v2165 = vlaneseq
  %v2166 = vshrl.u32 %v2165, 7
  %v2167 = vsub.s32 2, %v2166
  %v2168 = vrot.slane %v2155, %v2167
  %2172 = vmatprep.subr.mxu0 %v2107
  %2173 = vmatpush1.msra.mxu0 %v2106
  %2174 = vmatprep.subr.mxu0 %v2110
  %2175 = vmatpush1.msra.mxu0 %v2109
  %2176 = vmatprep.subr.mxu0 %v2113
  %2177 = vmatpush1.msra.mxu0 %v2112
  %2178 = vmatprep.subr.mxu0 %v2116
  %2179 = vmatpush1.msra.mxu0 %v2115
  %2180 = vmatprep.subr.mxu0 %v2119
  %2181 = vmatpush1.msra.mxu0 %v2118
  %2182 = vmatprep.subr.mxu0 %v2122
  %2183 = vmatpush1.msra.mxu0 %v2121
  %2184 = vmatprep.subr.mxu0 %v2125
  %2185 = vmatpush1.msra.mxu0 %v2124
  %2186 = vmatprep.subr.mxu0 %v2128
  %2187 = vmatpush1.msra.mxu0 %v2127
  %2188 = vmatprep.subr.mxu0 %v2131
  %2189 = vmatpush1.msra.mxu0 %v2130
  %2190 = vmatprep.subr.mxu0 %v2134
  %2191 = vmatpush1.msra.mxu0 %v2133
  %2192 = vmatprep.subr.mxu0 %v2137
  %2193 = vmatpush1.msra.mxu0 %v2136
  %2194 = vmatprep.subr.mxu0 %v2140
  %2195 = vmatpush1.msra.mxu0 %v2139
  %2196 = vmatprep.subr.mxu0 %v2143
  %2197 = vmatpush1.msra.mxu0 %v2142
  %2198 = vmatprep.subr.mxu0 %v2146
  %2199 = vmatpush1.msra.mxu0 %v2145
  %2200 = vmatprep.subr.mxu0 %v2149
  %2201 = vmatpush1.msra.mxu0 %v2148
  %2202 = vmatprep.subr.mxu0 %v2152
  %2203 = vmatpush1.msra.mxu0 %v2151
  %2204 = vmatprep.subr.mxu0 0.0
  %2205 = vmatpush1.msra.mxu0 0.0
  %2206 = vmatprep.subr.mxu0 0.0
  %2207 = vmatpush1.msra.mxu0 0.0
  %2208 = vmatprep.subr.mxu0 0.0
  %2209 = vmatpush1.msra.mxu0 0.0
  %2210 = vmatprep.subr.mxu0 0.0
  %2211 = vmatpush1.msra.mxu0 0.0
  %2212 = vmatprep.subr.mxu0 0.0
  %2213 = vmatpush1.msra.mxu0 0.0
  %2214 = vmatprep.subr.mxu0 0.0
  %2215 = vmatpush1.msra.mxu0 0.0
  %2216 = vmatprep.subr.mxu0 0.0
  %2217 = vmatpush1.msra.mxu0 0.0
  %2218 = vmatprep.subr.mxu0 0.0
  %2219 = vmatpush1.msra.mxu0 0.0
  %2220 = vmatprep.subr.mxu0 0.0
  %2221 = vmatpush1.msra.mxu0 0.0
  %2222 = vmatprep.subr.mxu0 0.0
  %2223 = vmatpush1.msra.mxu0 0.0
  %2224 = vmatprep.subr.mxu0 0.0
  %2225 = vmatpush1.msra.mxu0 0.0
  %2226 = vmatprep.subr.mxu0 0.0
  %2227 = vmatpush1.msra.mxu0 0.0
  %2228 = vmatprep.subr.mxu0 0.0
  %2229 = vmatpush1.msra.mxu0 0.0
  %2230 = vmatprep.subr.mxu0 0.0
  %2231 = vmatpush1.msra.mxu0 0.0
  %2232 = vmatprep.subr.mxu0 0.0
  %2233 = vmatpush1.msra.mxu0 0.0
  %2234 = vmatprep.subr.mxu0 0.0
  %2235 = vmatpush1.msra.mxu0 0.0
  %2236 = vmatprep.mubr.f32.mxu0 0.0
  %2237 = vmatmul.mubr.f32.gmra.mrb[0].mxu0 %v2103
  %v2238 = vpop.f32.mrb[0].mxu0
  %v2239 = vadd.f32 %v2160, %v2238
  %v2240 = vpop.f32.mrb[0].mxu0
  %v2241 = vadd.f32 %v2164, %v2240
  %2242 = vmatprep.mubr.f32.mxu0 0.0
  %2243 = vmatmul.mubr.f32.gmra.mrb[0].mxu0 %v2104
  %v2244 = vpop.f32.mrb[0].mxu0
  %v2245 = vadd.f32 %v2160, %v2244
  %v2246 = vpop.f32.mrb[0].mxu0
  %v2247 = vadd.f32 %v2164, %v2246
  %2248 = vdwg.mxu0
  %2249 = vmatprep.subr.mxu0 0.0
  %2250 = vmatpush1.msra.mxu0 %v2108
  %2251 = vmatprep.subr.mxu0 0.0
  %2252 = vmatpush1.msra.mxu0 %v2111
  %2253 = vmatprep.subr.mxu0 0.0
  %2254 = vmatpush1.msra.mxu0 %v2114
  %2255 = vmatprep.subr.mxu0 0.0
  %2256 = vmatpush1.msra.mxu0 %v2117
  %2257 = vmatprep.subr.mxu0 0.0
  %2258 = vmatpush1.msra.mxu0 %v2120
  %2259 = vmatprep.subr.mxu0 0.0
  %2260 = vmatpush1.msra.mxu0 %v2123
  %2261 = vmatprep.subr.mxu0 0.0
  %2262 = vmatpush1.msra.mxu0 %v2126
  %2263 = vmatprep.subr.mxu0 0.0
  %2264 = vmatpush1.msra.mxu0 %v2129
  %2265 = vmatprep.subr.mxu0 0.0
  %2266 = vmatpush1.msra.mxu0 %v2132
  %2267 = vmatprep.subr.mxu0 0.0
  %2268 = vmatpush1.msra.mxu0 %v2135
  %2269 = vmatprep.subr.mxu0 0.0
  %2270 = vmatpush1.msra.mxu0 %v2138
  %2271 = vmatprep.subr.mxu0 0.0
  %2272 = vmatpush1.msra.mxu0 %v2141
  %2273 = vmatprep.subr.mxu0 0.0
  %2274 = vmatpush1.msra.mxu0 %v2144
  %2275 = vmatprep.subr.mxu0 0.0
  %2276 = vmatpush1.msra.mxu0 %v2147
  %2277 = vmatprep.subr.mxu0 0.0
  %2278 = vmatpush1.msra.mxu0 %v2150
  %2279 = vmatprep.subr.mxu0 0.0
  %2280 = vmatpush1.msra.mxu0 %v2153
  %2281 = vmatprep.subr.mxu0 0.0
  %2282 = vmatpush1.msra.mxu0 0.0
  %2283 = vmatprep.subr.mxu0 0.0
  %2284 = vmatpush1.msra.mxu0 0.0
  %2285 = vmatprep.subr.mxu0 0.0
  %2286 = vmatpush1.msra.mxu0 0.0
  %2287 = vmatprep.subr.mxu0 0.0
  %2288 = vmatpush1.msra.mxu0 0.0
  %2289 = vmatprep.subr.mxu0 0.0
  %2290 = vmatpush1.msra.mxu0 0.0
  %2291 = vmatprep.subr.mxu0 0.0
  %2292 = vmatpush1.msra.mxu0 0.0
  %2293 = vmatprep.subr.mxu0 0.0
  %2294 = vmatpush1.msra.mxu0 0.0
  %2295 = vmatprep.subr.mxu0 0.0
  %2296 = vmatpush1.msra.mxu0 0.0
  %2297 = vmatprep.subr.mxu0 0.0
  %2298 = vmatpush1.msra.mxu0 0.0
  %2299 = vmatprep.subr.mxu0 0.0
  %2300 = vmatpush1.msra.mxu0 0.0
  %2301 = vmatprep.subr.mxu0 0.0
  %2302 = vmatpush1.msra.mxu0 0.0
  %2303 = vmatprep.subr.mxu0 0.0
  %2304 = vmatpush1.msra.mxu0 0.0
  %2305 = vmatprep.subr.mxu0 0.0
  %2306 = vmatpush1.msra.mxu0 0.0
  %2307 = vmatprep.subr.mxu0 0.0
  %2308 = vmatpush1.msra.mxu0 0.0
  %2309 = vmatprep.subr.mxu0 0.0
  %2310 = vmatpush1.msra.mxu0 0.0
  %2311 = vmatprep.subr.mxu0 0.0
  %2312 = vmatpush1.msra.mxu0 0.0
  %2313 = vmatprep.mubr.f32.mxu0 0.0
  %2314 = vmatmul.mubr.f32.gmra.mrb[0].mxu0 %v2103
  %v2315 = vpop.f32.mrb[0].mxu0
  %v2316 = vadd.f32 %v2168, %v2315
  %v2317 = vpop.f32.mrb[0].mxu0
  %2318 = vmatprep.mubr.f32.mxu0 0.0
  %2319 = vmatmul.mubr.f32.gmra.mrb[0].mxu0 %v2104
  %v2320 = vpop.f32.mrb[0].mxu0
  %v2321 = vadd.f32 %v2168, %v2320
  %v2322 = vpop.f32.mrb[0].mxu0
  %2323 = vdwg.mxu0
  %v2325 = vsel %vm378, %v2239, 0
  %v2328 = vsel %vm378, %v2241, 0
  %2330 = vmatprep.subr.mxu0 0.0
  %2331 = vmatpush1.xpose.msra.mxu0 %v2328
  %2332 = vmatprep.subr.mxu0 0.0
  %2333 = vmatpush1.xpose.msra.mxu0 0.0
  %2334 = vmatprep.subr.mxu0 0.0
  %2335 = vmatpush1.xpose.msra.mxu0 0.0
  %2336 = vmatprep.subr.mxu0 0.0
  %2337 = vmatpush1.xpose.msra.mxu0 0.0
  %2338 = vmatprep.subr.mxu0 0.0
  %2339 = vmatpush1.xpose.msra.mxu0 0.0
  %2340 = vmatprep.subr.mxu0 0.0
  %2341 = vmatpush1.xpose.msra.mxu0 0.0
  %2342 = vmatprep.subr.mxu0 0.0
  %2343 = vmatpush1.xpose.msra.mxu0 0.0
  %2344 = vmatprep.subr.mxu0 0.0
  %2345 = vmatpush1.xpose.msra.mxu0 0.0
  %2346 = vmatprep.subr.mxu0 0.0
  %2347 = vmatpush1.xpose.msra.mxu0 0.0
  %2348 = vmatprep.subr.mxu0 0.0
  %2349 = vmatpush1.xpose.msra.mxu0 0.0
  %2350 = vmatprep.subr.mxu0 0.0
  %2351 = vmatpush1.xpose.msra.mxu0 0.0
  %2352 = vmatprep.subr.mxu0 0.0
  %2353 = vmatpush1.xpose.msra.mxu0 0.0
  %2354 = vmatprep.subr.mxu0 0.0
  %2355 = vmatpush1.xpose.msra.mxu0 0.0
  %2356 = vmatprep.subr.mxu0 0.0
  %2357 = vmatpush1.xpose.msra.mxu0 0.0
  %2358 = vmatprep.subr.mxu0 0.0
  %2359 = vmatpush1.xpose.msra.mxu0 0.0
  %2360 = vmatprep.subr.mxu0 0.0
  %2361 = vmatpush1.xpose.msra.mxu0 0.0
  %2362 = vmatprep.subr.mxu0 0.0
  %2363 = vmatpush1.xpose.msra.mxu0 0.0
  %2364 = vmatprep.subr.mxu0 0.0
  %2365 = vmatpush1.xpose.msra.mxu0 0.0
  %2366 = vmatprep.subr.mxu0 0.0
  %2367 = vmatpush1.xpose.msra.mxu0 0.0
  %2368 = vmatprep.subr.mxu0 0.0
  %2369 = vmatpush1.xpose.msra.mxu0 0.0
  %2370 = vmatprep.subr.mxu0 0.0
  %2371 = vmatpush1.xpose.msra.mxu0 0.0
  %2372 = vmatprep.subr.mxu0 0.0
  %2373 = vmatpush1.xpose.msra.mxu0 0.0
  %2374 = vmatprep.subr.mxu0 0.0
  %2375 = vmatpush1.xpose.msra.mxu0 0.0
  %2376 = vmatprep.subr.mxu0 0.0
  %2377 = vmatpush1.xpose.msra.mxu0 0.0
  %2378 = vmatprep.subr.mxu0 0.0
  %2379 = vmatpush1.xpose.msra.mxu0 0.0
  %2380 = vmatprep.subr.mxu0 0.0
  %2381 = vmatpush1.xpose.msra.mxu0 0.0
  %2382 = vmatprep.subr.mxu0 0.0
  %2383 = vmatpush1.xpose.msra.mxu0 0.0
  %2384 = vmatprep.subr.mxu0 0.0
  %2385 = vmatpush1.xpose.msra.mxu0 0.0
  %2386 = vmatprep.subr.mxu0 0.0
  %2387 = vmatpush1.xpose.msra.mxu0 0.0
  %2388 = vmatprep.subr.mxu0 0.0
  %2389 = vmatpush1.xpose.msra.mxu0 0.0
  %2390 = vmatprep.subr.mxu0 0.0
  %2391 = vmatpush1.xpose.msra.mxu0 0.0
  %2392 = vmatprep.subr.mxu0 0.0
  %2393 = vmatpush1.xpose.msra.mxu0 0.0
  %2394 = vmatprep.mubr.f32.mxu0 0.0
  %2395 = vmatmul.mubr.f32.gmra.mrb[0].mxu0 %v2325
  %v2396 = vpop.f32.mrb[0].mxu0
  %v2397 = vadd.f32 %v154, %v2396
  %v2398 = vpop.f32.mrb[0].mxu0
  %2399 = vdwg.mxu0
  %v2401 = vsel %vm378, %v2245, 0
  %v2404 = vsel %vm378, %v2247, 0
  %2406 = vmatprep.subr.mxu0 0.0
  %2407 = vmatpush1.xpose.msra.mxu0 %v2404
  %2408 = vmatprep.subr.mxu0 0.0
  %2409 = vmatpush1.xpose.msra.mxu0 0.0
  %2410 = vmatprep.subr.mxu0 0.0
  %2411 = vmatpush1.xpose.msra.mxu0 0.0
  %2412 = vmatprep.subr.mxu0 0.0
  %2413 = vmatpush1.xpose.msra.mxu0 0.0
  %2414 = vmatprep.subr.mxu0 0.0
  %2415 = vmatpush1.xpose.msra.mxu0 0.0
  %2416 = vmatprep.subr.mxu0 0.0
  %2417 = vmatpush1.xpose.msra.mxu0 0.0
  %2418 = vmatprep.subr.mxu0 0.0
  %2419 = vmatpush1.xpose.msra.mxu0 0.0
  %2420 = vmatprep.subr.mxu0 0.0
  %2421 = vmatpush1.xpose.msra.mxu0 0.0
  %2422 = vmatprep.subr.mxu0 0.0
  %2423 = vmatpush1.xpose.msra.mxu0 0.0
  %2424 = vmatprep.subr.mxu0 0.0
  %2425 = vmatpush1.xpose.msra.mxu0 0.0
  %2426 = vmatprep.subr.mxu0 0.0
  %2427 = vmatpush1.xpose.msra.mxu0 0.0
  %2428 = vmatprep.subr.mxu0 0.0
  %2429 = vmatpush1.xpose.msra.mxu0 0.0
  %2430 = vmatprep.subr.mxu0 0.0
  %2431 = vmatpush1.xpose.msra.mxu0 0.0
  %2432 = vmatprep.subr.mxu0 0.0
  %2433 = vmatpush1.xpose.msra.mxu0 0.0
  %2434 = vmatprep.subr.mxu0 0.0
  %2435 = vmatpush1.xpose.msra.mxu0 0.0
  %2436 = vmatprep.subr.mxu0 0.0
  %2437 = vmatpush1.xpose.msra.mxu0 0.0
  %2438 = vmatprep.subr.mxu0 0.0
  %2439 = vmatpush1.xpose.msra.mxu0 0.0
  %2440 = vmatprep.subr.mxu0 0.0
  %2441 = vmatpush1.xpose.msra.mxu0 0.0
  %2442 = vmatprep.subr.mxu0 0.0
  %2443 = vmatpush1.xpose.msra.mxu0 0.0
  %2444 = vmatprep.subr.mxu0 0.0
  %2445 = vmatpush1.xpose.msra.mxu0 0.0
  %2446 = vmatprep.subr.mxu0 0.0
  %2447 = vmatpush1.xpose.msra.mxu0 0.0
  %2448 = vmatprep.subr.mxu0 0.0
  %2449 = vmatpush1.xpose.msra.mxu0 0.0
  %2450 = vmatprep.subr.mxu0 0.0
  %2451 = vmatpush1.xpose.msra.mxu0 0.0
  %2452 = vmatprep.subr.mxu0 0.0
  %2453 = vmatpush1.xpose.msra.mxu0 0.0
  %2454 = vmatprep.subr.mxu0 0.0
  %2455 = vmatpush1.xpose.msra.mxu0 0.0
  %2456 = vmatprep.subr.mxu0 0.0
  %2457 = vmatpush1.xpose.msra.mxu0 0.0
  %2458 = vmatprep.subr.mxu0 0.0
  %2459 = vmatpush1.xpose.msra.mxu0 0.0
  %2460 = vmatprep.subr.mxu0 0.0
  %2461 = vmatpush1.xpose.msra.mxu0 0.0
  %2462 = vmatprep.subr.mxu0 0.0
  %2463 = vmatpush1.xpose.msra.mxu0 0.0
  %2464 = vmatprep.subr.mxu0 0.0
  %2465 = vmatpush1.xpose.msra.mxu0 0.0
  %2466 = vmatprep.subr.mxu0 0.0
  %2467 = vmatpush1.xpose.msra.mxu0 0.0
  %2468 = vmatprep.subr.mxu0 0.0
  %2469 = vmatpush1.xpose.msra.mxu0 0.0
  %2470 = vmatprep.mubr.f32.mxu0 0.0
  %2471 = vmatmul.mubr.f32.gmra.mrb[0].mxu0 %v2401
  %v2472 = vpop.f32.mrb[0].mxu0
  %v2473 = vadd.f32 %v158, %v2472
  %v2474 = vpop.f32.mrb[0].mxu0
  %2475 = vdwg.mxu0
  %v2476 = vsel %vm531, %v2397, -inf
  %2477 = vmax.xlane.f32.xlu0 %v2476
  %v2478 = vpop.xlane.xlu0 %2477
  %v2479 = vsel %vm531, %v2473, -inf
  %2480 = vmax.xlane.f32.xlu0 %v2479
  %v2481 = vpop.xlane.xlu0 %2480
  %v2482 = vsub.f32 %v2397, %v2478
  %v2483 = vsub.f32 %v2473, %v2481
  %v2484 = vmul.f32 %v2482, 1.442695
  %v2485 = vpow.pop %v2484
  %v2486 = vmul.f32 %v2483, 1.442695
  %v2487 = vpow.pop %v2486
  %v2488 = vsel %vm531, %v2485, 0.0
  %2489 = vadd.xlane.f32.xlu0 %v2488
  %v2490 = vpop.xlane.xlu0 %2489
  %v2491 = vsel %vm531, %v2487, 0.0
  %2492 = vadd.xlane.f32.xlu0 %v2491
  %v2493 = vpop.xlane.xlu0 %2492
  %v2494 = vrcp.pop %v2490
  %v2495 = vmul.f32 %v2485, %v2494
  %v2496 = vrcp.pop %v2493
  %v2497 = vmul.f32 %v2487, %v2496
  %v2499 = vsel %vm531, %v2495, 0
  %2501 = vmatprep.subr.mxu0 0.0
  %2502 = vmatpush1.msra.mxu0 %v2316
  %2503 = vmatprep.subr.mxu0 0.0
  %2504 = vmatpush1.msra.mxu0 0.0
  %2505 = vmatprep.subr.mxu0 0.0
  %2506 = vmatpush1.msra.mxu0 0.0
  %2507 = vmatprep.subr.mxu0 0.0
  %2508 = vmatpush1.msra.mxu0 0.0
  %2509 = vmatprep.subr.mxu0 0.0
  %2510 = vmatpush1.msra.mxu0 0.0
  %2511 = vmatprep.subr.mxu0 0.0
  %2512 = vmatpush1.msra.mxu0 0.0
  %2513 = vmatprep.subr.mxu0 0.0
  %2514 = vmatpush1.msra.mxu0 0.0
  %2515 = vmatprep.subr.mxu0 0.0
  %2516 = vmatpush1.msra.mxu0 0.0
  %2517 = vmatprep.subr.mxu0 0.0
  %2518 = vmatpush1.msra.mxu0 0.0
  %2519 = vmatprep.subr.mxu0 0.0
  %2520 = vmatpush1.msra.mxu0 0.0
  %2521 = vmatprep.subr.mxu0 0.0
  %2522 = vmatpush1.msra.mxu0 0.0
  %2523 = vmatprep.subr.mxu0 0.0
  %2524 = vmatpush1.msra.mxu0 0.0
  %2525 = vmatprep.subr.mxu0 0.0
  %2526 = vmatpush1.msra.mxu0 0.0
  %2527 = vmatprep.subr.mxu0 0.0
  %2528 = vmatpush1.msra.mxu0 0.0
  %2529 = vmatprep.subr.mxu0 0.0
  %2530 = vmatpush1.msra.mxu0 0.0
  %2531 = vmatprep.subr.mxu0 0.0
  %2532 = vmatpush1.msra.mxu0 0.0
  %2533 = vmatprep.subr.mxu0 0.0
  %2534 = vmatpush1.msra.mxu0 0.0
  %2535 = vmatprep.subr.mxu0 0.0
  %2536 = vmatpush1.msra.mxu0 0.0
  %2537 = vmatprep.subr.mxu0 0.0
  %2538 = vmatpush1.msra.mxu0 0.0
  %2539 = vmatprep.subr.mxu0 0.0
  %2540 = vmatpush1.msra.mxu0 0.0
  %2541 = vmatprep.subr.mxu0 0.0
  %2542 = vmatpush1.msra.mxu0 0.0
  %2543 = vmatprep.subr.mxu0 0.0
  %2544 = vmatpush1.msra.mxu0 0.0
  %2545 = vmatprep.subr.mxu0 0.0
  %2546 = vmatpush1.msra.mxu0 0.0
  %2547 = vmatprep.subr.mxu0 0.0
  %2548 = vmatpush1.msra.mxu0 0.0
  %2549 = vmatprep.subr.mxu0 0.0
  %2550 = vmatpush1.msra.mxu0 0.0
  %2551 = vmatprep.subr.mxu0 0.0
  %2552 = vmatpush1.msra.mxu0 0.0
  %2553 = vmatprep.subr.mxu0 0.0
  %2554 = vmatpush1.msra.mxu0 0.0
  %2555 = vmatprep.subr.mxu0 0.0
  %2556 = vmatpush1.msra.mxu0 0.0
  %2557 = vmatprep.subr.mxu0 0.0
  %2558 = vmatpush1.msra.mxu0 0.0
  %2559 = vmatprep.subr.mxu0 0.0
  %2560 = vmatpush1.msra.mxu0 0.0
  %2561 = vmatprep.subr.mxu0 0.0
  %2562 = vmatpush1.msra.mxu0 0.0
  %2563 = vmatprep.subr.mxu0 0.0
  %2564 = vmatpush1.msra.mxu0 0.0
  %2565 = vmatprep.mubr.f32.mxu0 0.0
  %2566 = vmatmul.mubr.f32.gmra.mrb[0].mxu0 %v2499
  %v2567 = vpop.f32.mrb[0].mxu0
  %v2568 = vadd.f32 0.0, %v2567
  %v2569 = vpop.f32.mrb[0].mxu0
  %2570 = vdwg.mxu0
  %v2572 = vsel %vm531, %v2497, 0
  %2574 = vmatprep.subr.mxu0 0.0
  %2575 = vmatpush1.msra.mxu0 %v2321
  %2576 = vmatprep.subr.mxu0 0.0
  %2577 = vmatpush1.msra.mxu0 0.0
  %2578 = vmatprep.subr.mxu0 0.0
  %2579 = vmatpush1.msra.mxu0 0.0
  %2580 = vmatprep.subr.mxu0 0.0
  %2581 = vmatpush1.msra.mxu0 0.0
  %2582 = vmatprep.subr.mxu0 0.0
  %2583 = vmatpush1.msra.mxu0 0.0
  %2584 = vmatprep.subr.mxu0 0.0
  %2585 = vmatpush1.msra.mxu0 0.0
  %2586 = vmatprep.subr.mxu0 0.0
  %2587 = vmatpush1.msra.mxu0 0.0
  %2588 = vmatprep.subr.mxu0 0.0
  %2589 = vmatpush1.msra.mxu0 0.0
  %2590 = vmatprep.subr.mxu0 0.0
  %2591 = vmatpush1.msra.mxu0 0.0
  %2592 = vmatprep.subr.mxu0 0.0
  %2593 = vmatpush1.msra.mxu0 0.0
  %2594 = vmatprep.subr.mxu0 0.0
  %2595 = vmatpush1.msra.mxu0 0.0
  %2596 = vmatprep.subr.mxu0 0.0
  %2597 = vmatpush1.msra.mxu0 0.0
  %2598 = vmatprep.subr.mxu0 0.0
  %2599 = vmatpush1.msra.mxu0 0.0
  %2600 = vmatprep.subr.mxu0 0.0
  %2601 = vmatpush1.msra.mxu0 0.0
  %2602 = vmatprep.subr.mxu0 0.0
  %2603 = vmatpush1.msra.mxu0 0.0
  %2604 = vmatprep.subr.mxu0 0.0
  %2605 = vmatpush1.msra.mxu0 0.0
  %2606 = vmatprep.subr.mxu0 0.0
  %2607 = vmatpush1.msra.mxu0 0.0
  %2608 = vmatprep.subr.mxu0 0.0
  %2609 = vmatpush1.msra.mxu0 0.0
  %2610 = vmatprep.subr.mxu0 0.0
  %2611 = vmatpush1.msra.mxu0 0.0
  %2612 = vmatprep.subr.mxu0 0.0
  %2613 = vmatpush1.msra.mxu0 0.0
  %2614 = vmatprep.subr.mxu0 0.0
  %2615 = vmatpush1.msra.mxu0 0.0
  %2616 = vmatprep.subr.mxu0 0.0
  %2617 = vmatpush1.msra.mxu0 0.0
  %2618 = vmatprep.subr.mxu0 0.0
  %2619 = vmatpush1.msra.mxu0 0.0
  %2620 = vmatprep.subr.mxu0 0.0
  %2621 = vmatpush1.msra.mxu0 0.0
  %2622 = vmatprep.subr.mxu0 0.0
  %2623 = vmatpush1.msra.mxu0 0.0
  %2624 = vmatprep.subr.mxu0 0.0
  %2625 = vmatpush1.msra.mxu0 0.0
  %2626 = vmatprep.subr.mxu0 0.0
  %2627 = vmatpush1.msra.mxu0 0.0
  %2628 = vmatprep.subr.mxu0 0.0
  %2629 = vmatpush1.msra.mxu0 0.0
  %2630 = vmatprep.subr.mxu0 0.0
  %2631 = vmatpush1.msra.mxu0 0.0
  %2632 = vmatprep.subr.mxu0 0.0
  %2633 = vmatpush1.msra.mxu0 0.0
  %2634 = vmatprep.subr.mxu0 0.0
  %2635 = vmatpush1.msra.mxu0 0.0
  %2636 = vmatprep.subr.mxu0 0.0
  %2637 = vmatpush1.msra.mxu0 0.0
  %2638 = vmatprep.mubr.f32.mxu0 0.0
  %2639 = vmatmul.mubr.f32.gmra.mrb[0].mxu0 %v2572
  %v2640 = vpop.f32.mrb[0].mxu0
  %v2641 = vadd.f32 0.0, %v2640
  %v2642 = vpop.f32.mrb[0].mxu0
  %2643 = vdwg.mxu0
  %2644 = vrot.lane.b32.xlu0 %v2239, 96
  %v2645 = vpop.permute.xlu0 %2644
  %2646 = vrot.lane.b32.xlu0 %v2241, 96
  %v2647 = vpop.permute.xlu0 %2646
  %v2648 = vsel %vm378, %v2645, 0
  %v2650 = vsel %vm378, %v2647, 0
  %2652 = vmatprep.subr.mxu0 0.0
  %2653 = vmatpush1.xpose.msra.mxu0 %v2650
  %2654 = vmatprep.subr.mxu0 0.0
  %2655 = vmatpush1.xpose.msra.mxu0 0.0
  %2656 = vmatprep.subr.mxu0 0.0
  %2657 = vmatpush1.xpose.msra.mxu0 0.0
  %2658 = vmatprep.subr.mxu0 0.0
  %2659 = vmatpush1.xpose.msra.mxu0 0.0
  %2660 = vmatprep.subr.mxu0 0.0
  %2661 = vmatpush1.xpose.msra.mxu0 0.0
  %2662 = vmatprep.subr.mxu0 0.0
  %2663 = vmatpush1.xpose.msra.mxu0 0.0
  %2664 = vmatprep.subr.mxu0 0.0
  %2665 = vmatpush1.xpose.msra.mxu0 0.0
  %2666 = vmatprep.subr.mxu0 0.0
  %2667 = vmatpush1.xpose.msra.mxu0 0.0
  %2668 = vmatprep.subr.mxu0 0.0
  %2669 = vmatpush1.xpose.msra.mxu0 0.0
  %2670 = vmatprep.subr.mxu0 0.0
  %2671 = vmatpush1.xpose.msra.mxu0 0.0
  %2672 = vmatprep.subr.mxu0 0.0
  %2673 = vmatpush1.xpose.msra.mxu0 0.0
  %2674 = vmatprep.subr.mxu0 0.0
  %2675 = vmatpush1.xpose.msra.mxu0 0.0
  %2676 = vmatprep.subr.mxu0 0.0
  %2677 = vmatpush1.xpose.msra.mxu0 0.0
  %2678 = vmatprep.subr.mxu0 0.0
  %2679 = vmatpush1.xpose.msra.mxu0 0.0
  %2680 = vmatprep.subr.mxu0 0.0
  %2681 = vmatpush1.xpose.msra.mxu0 0.0
  %2682 = vmatprep.subr.mxu0 0.0
  %2683 = vmatpush1.xpose.msra.mxu0 0.0
  %2684 = vmatprep.subr.mxu0 0.0
  %2685 = vmatpush1.xpose.msra.mxu0 0.0
  %2686 = vmatprep.subr.mxu0 0.0
  %2687 = vmatpush1.xpose.msra.mxu0 0.0
  %2688 = vmatprep.subr.mxu0 0.0
  %2689 = vmatpush1.xpose.msra.mxu0 0.0
  %2690 = vmatprep.subr.mxu0 0.0
  %2691 = vmatpush1.xpose.msra.mxu0 0.0
  %2692 = vmatprep.subr.mxu0 0.0
  %2693 = vmatpush1.xpose.msra.mxu0 0.0
  %2694 = vmatprep.subr.mxu0 0.0
  %2695 = vmatpush1.xpose.msra.mxu0 0.0
  %2696 = vmatprep.subr.mxu0 0.0
  %2697 = vmatpush1.xpose.msra.mxu0 0.0
  %2698 = vmatprep.subr.mxu0 0.0
  %2699 = vmatpush1.xpose.msra.mxu0 0.0
  %2700 = vmatprep.subr.mxu0 0.0
  %2701 = vmatpush1.xpose.msra.mxu0 0.0
  %2702 = vmatprep.subr.mxu0 0.0
  %2703 = vmatpush1.xpose.msra.mxu0 0.0
  %2704 = vmatprep.subr.mxu0 0.0
  %2705 = vmatpush1.xpose.msra.mxu0 0.0
  %2706 = vmatprep.subr.mxu0 0.0
  %2707 = vmatpush1.xpose.msra.mxu0 0.0
  %2708 = vmatprep.subr.mxu0 0.0
  %2709 = vmatpush1.xpose.msra.mxu0 0.0
  %2710 = vmatprep.subr.mxu0 0.0
  %2711 = vmatpush1.xpose.msra.mxu0 0.0
  %2712 = vmatprep.subr.mxu0 0.0
  %2713 = vmatpush1.xpose.msra.mxu0 0.0
  %2714 = vmatprep.subr.mxu0 0.0
  %2715 = vmatpush1.xpose.msra.mxu0 0.0
  %2716 = vmatprep.mubr.f32.mxu0 0.0
  %2717 = vmatmul.mubr.f32.gmra.mrb[0].mxu0 %v2648
  %v2718 = vpop.f32.mrb[0].mxu0
  %v2719 = vadd.f32 %v154, %v2718
  %v2720 = vpop.f32.mrb[0].mxu0
  %2721 = vdwg.mxu0
  %2722 = vrot.lane.b32.xlu0 %v2245, 96
  %v2723 = vpop.permute.xlu0 %2722
  %2724 = vrot.lane.b32.xlu0 %v2247, 96
  %v2725 = vpop.permute.xlu0 %2724
  %v2726 = vsel %vm378, %v2723, 0
  %v2728 = vsel %vm378, %v2725, 0
  %2730 = vmatprep.subr.mxu0 0.0
  %2731 = vmatpush1.xpose.msra.mxu0 %v2728
  %2732 = vmatprep.subr.mxu0 0.0
  %2733 = vmatpush1.xpose.msra.mxu0 0.0
  %2734 = vmatprep.subr.mxu0 0.0
  %2735 = vmatpush1.xpose.msra.mxu0 0.0
  %2736 = vmatprep.subr.mxu0 0.0
  %2737 = vmatpush1.xpose.msra.mxu0 0.0
  %2738 = vmatprep.subr.mxu0 0.0
  %2739 = vmatpush1.xpose.msra.mxu0 0.0
  %2740 = vmatprep.subr.mxu0 0.0
  %2741 = vmatpush1.xpose.msra.mxu0 0.0
  %2742 = vmatprep.subr.mxu0 0.0
  %2743 = vmatpush1.xpose.msra.mxu0 0.0
  %2744 = vmatprep.subr.mxu0 0.0
  %2745 = vmatpush1.xpose.msra.mxu0 0.0
  %2746 = vmatprep.subr.mxu0 0.0
  %2747 = vmatpush1.xpose.msra.mxu0 0.0
  %2748 = vmatprep.subr.mxu0 0.0
  %2749 = vmatpush1.xpose.msra.mxu0 0.0
  %2750 = vmatprep.subr.mxu0 0.0
  %2751 = vmatpush1.xpose.msra.mxu0 0.0
  %2752 = vmatprep.subr.mxu0 0.0
  %2753 = vmatpush1.xpose.msra.mxu0 0.0
  %2754 = vmatprep.subr.mxu0 0.0
  %2755 = vmatpush1.xpose.msra.mxu0 0.0
  %2756 = vmatprep.subr.mxu0 0.0
  %2757 = vmatpush1.xpose.msra.mxu0 0.0
  %2758 = vmatprep.subr.mxu0 0.0
  %2759 = vmatpush1.xpose.msra.mxu0 0.0
  %2760 = vmatprep.subr.mxu0 0.0
  %2761 = vmatpush1.xpose.msra.mxu0 0.0
  %2762 = vmatprep.subr.mxu0 0.0
  %2763 = vmatpush1.xpose.msra.mxu0 0.0
  %2764 = vmatprep.subr.mxu0 0.0
  %2765 = vmatpush1.xpose.msra.mxu0 0.0
  %2766 = vmatprep.subr.mxu0 0.0
  %2767 = vmatpush1.xpose.msra.mxu0 0.0
  %2768 = vmatprep.subr.mxu0 0.0
  %2769 = vmatpush1.xpose.msra.mxu0 0.0
  %2770 = vmatprep.subr.mxu0 0.0
  %2771 = vmatpush1.xpose.msra.mxu0 0.0
  %2772 = vmatprep.subr.mxu0 0.0
  %2773 = vmatpush1.xpose.msra.mxu0 0.0
  %2774 = vmatprep.subr.mxu0 0.0
  %2775 = vmatpush1.xpose.msra.mxu0 0.0
  %2776 = vmatprep.subr.mxu0 0.0
  %2777 = vmatpush1.xpose.msra.mxu0 0.0
  %2778 = vmatprep.subr.mxu0 0.0
  %2779 = vmatpush1.xpose.msra.mxu0 0.0
  %2780 = vmatprep.subr.mxu0 0.0
  %2781 = vmatpush1.xpose.msra.mxu0 0.0
  %2782 = vmatprep.subr.mxu0 0.0
  %2783 = vmatpush1.xpose.msra.mxu0 0.0
  %2784 = vmatprep.subr.mxu0 0.0
  %2785 = vmatpush1.xpose.msra.mxu0 0.0
  %2786 = vmatprep.subr.mxu0 0.0
  %2787 = vmatpush1.xpose.msra.mxu0 0.0
  %2788 = vmatprep.subr.mxu0 0.0
  %2789 = vmatpush1.xpose.msra.mxu0 0.0
  %2790 = vmatprep.subr.mxu0 0.0
  %2791 = vmatpush1.xpose.msra.mxu0 0.0
  %2792 = vmatprep.subr.mxu0 0.0
  %2793 = vmatpush1.xpose.msra.mxu0 0.0
  %2794 = vmatprep.mubr.f32.mxu0 0.0
  %2795 = vmatmul.mubr.f32.gmra.mrb[0].mxu0 %v2726
  %v2796 = vpop.f32.mrb[0].mxu0
  %v2797 = vadd.f32 %v158, %v2796
  %v2798 = vpop.f32.mrb[0].mxu0
  %2799 = vdwg.mxu0
  %v2800 = vsel %vm531, %v2719, -inf
  %2801 = vmax.xlane.f32.xlu0 %v2800
  %v2802 = vpop.xlane.xlu0 %2801
  %v2803 = vsel %vm531, %v2797, -inf
  %2804 = vmax.xlane.f32.xlu0 %v2803
  %v2805 = vpop.xlane.xlu0 %2804
  %v2806 = vsub.f32 %v2719, %v2802
  %v2807 = vsub.f32 %v2797, %v2805
  %v2808 = vmul.f32 %v2806, 1.442695
  %v2809 = vpow.pop %v2808
  %v2810 = vmul.f32 %v2807, 1.442695
  %v2811 = vpow.pop %v2810
  %v2812 = vsel %vm531, %v2809, 0.0
  %2813 = vadd.xlane.f32.xlu0 %v2812
  %v2814 = vpop.xlane.xlu0 %2813
  %v2815 = vsel %vm531, %v2811, 0.0
  %2816 = vadd.xlane.f32.xlu0 %v2815
  %v2817 = vpop.xlane.xlu0 %2816
  %v2818 = vrcp.pop %v2814
  %v2819 = vmul.f32 %v2809, %v2818
  %v2820 = vrcp.pop %v2817
  %v2821 = vmul.f32 %v2811, %v2820
  %2823 = vrot.lane.b32.xlu0 %v2316, 96
  %v2824 = vpop.permute.xlu0 %2823
  %v2827 = vsel %vm531, %v2819, 0
  %2829 = vmatprep.subr.mxu0 0.0
  %2830 = vmatpush1.msra.mxu0 %v2824
  %2831 = vmatprep.subr.mxu0 0.0
  %2832 = vmatpush1.msra.mxu0 0.0
  %2833 = vmatprep.subr.mxu0 0.0
  %2834 = vmatpush1.msra.mxu0 0.0
  %2835 = vmatprep.subr.mxu0 0.0
  %2836 = vmatpush1.msra.mxu0 0.0
  %2837 = vmatprep.subr.mxu0 0.0
  %2838 = vmatpush1.msra.mxu0 0.0
  %2839 = vmatprep.subr.mxu0 0.0
  %2840 = vmatpush1.msra.mxu0 0.0
  %2841 = vmatprep.subr.mxu0 0.0
  %2842 = vmatpush1.msra.mxu0 0.0
  %2843 = vmatprep.subr.mxu0 0.0
  %2844 = vmatpush1.msra.mxu0 0.0
  %2845 = vmatprep.subr.mxu0 0.0
  %2846 = vmatpush1.msra.mxu0 0.0
  %2847 = vmatprep.subr.mxu0 0.0
  %2848 = vmatpush1.msra.mxu0 0.0
  %2849 = vmatprep.subr.mxu0 0.0
  %2850 = vmatpush1.msra.mxu0 0.0
  %2851 = vmatprep.subr.mxu0 0.0
  %2852 = vmatpush1.msra.mxu0 0.0
  %2853 = vmatprep.subr.mxu0 0.0
  %2854 = vmatpush1.msra.mxu0 0.0
  %2855 = vmatprep.subr.mxu0 0.0
  %2856 = vmatpush1.msra.mxu0 0.0
  %2857 = vmatprep.subr.mxu0 0.0
  %2858 = vmatpush1.msra.mxu0 0.0
  %2859 = vmatprep.subr.mxu0 0.0
  %2860 = vmatpush1.msra.mxu0 0.0
  %2861 = vmatprep.subr.mxu0 0.0
  %2862 = vmatpush1.msra.mxu0 0.0
  %2863 = vmatprep.subr.mxu0 0.0
  %2864 = vmatpush1.msra.mxu0 0.0
  %2865 = vmatprep.subr.mxu0 0.0
  %2866 = vmatpush1.msra.mxu0 0.0
  %2867 = vmatprep.subr.mxu0 0.0
  %2868 = vmatpush1.msra.mxu0 0.0
  %2869 = vmatprep.subr.mxu0 0.0
  %2870 = vmatpush1.msra.mxu0 0.0
  %2871 = vmatprep.subr.mxu0 0.0
  %2872 = vmatpush1.msra.mxu0 0.0
  %2873 = vmatprep.subr.mxu0 0.0
  %2874 = vmatpush1.msra.mxu0 0.0
  %2875 = vmatprep.subr.mxu0 0.0
  %2876 = vmatpush1.msra.mxu0 0.0
  %2877 = vmatprep.subr.mxu0 0.0
  %2878 = vmatpush1.msra.mxu0 0.0
  %2879 = vmatprep.subr.mxu0 0.0
  %2880 = vmatpush1.msra.mxu0 0.0
  %2881 = vmatprep.subr.mxu0 0.0
  %2882 = vmatpush1.msra.mxu0 0.0
  %2883 = vmatprep.subr.mxu0 0.0
  %2884 = vmatpush1.msra.mxu0 0.0
  %2885 = vmatprep.subr.mxu0 0.0
  %2886 = vmatpush1.msra.mxu0 0.0
  %2887 = vmatprep.subr.mxu0 0.0
  %2888 = vmatpush1.msra.mxu0 0.0
  %2889 = vmatprep.subr.mxu0 0.0
  %2890 = vmatpush1.msra.mxu0 0.0
  %2891 = vmatprep.subr.mxu0 0.0
  %2892 = vmatpush1.msra.mxu0 0.0
  %2893 = vmatprep.mubr.f32.mxu0 0.0
  %2894 = vmatmul.mubr.f32.gmra.mrb[0].mxu0 %v2827
  %v2895 = vpop.f32.mrb[0].mxu0
  %v2896 = vadd.f32 0.0, %v2895
  %v2897 = vpop.f32.mrb[0].mxu0
  %2898 = vdwg.mxu0
  %2900 = vrot.lane.b32.xlu0 %v2321, 96
  %v2901 = vpop.permute.xlu0 %2900
  %v2904 = vsel %vm531, %v2821, 0
  %2906 = vmatprep.subr.mxu0 0.0
  %2907 = vmatpush1.msra.mxu0 %v2901
  %2908 = vmatprep.subr.mxu0 0.0
  %2909 = vmatpush1.msra.mxu0 0.0
  %2910 = vmatprep.subr.mxu0 0.0
  %2911 = vmatpush1.msra.mxu0 0.0
  %2912 = vmatprep.subr.mxu0 0.0
  %2913 = vmatpush1.msra.mxu0 0.0
  %2914 = vmatprep.subr.mxu0 0.0
  %2915 = vmatpush1.msra.mxu0 0.0
  %2916 = vmatprep.subr.mxu0 0.0
  %2917 = vmatpush1.msra.mxu0 0.0
  %2918 = vmatprep.subr.mxu0 0.0
  %2919 = vmatpush1.msra.mxu0 0.0
  %2920 = vmatprep.subr.mxu0 0.0
  %2921 = vmatpush1.msra.mxu0 0.0
  %2922 = vmatprep.subr.mxu0 0.0
  %2923 = vmatpush1.msra.mxu0 0.0
  %2924 = vmatprep.subr.mxu0 0.0
  %2925 = vmatpush1.msra.mxu0 0.0
  %2926 = vmatprep.subr.mxu0 0.0
  %2927 = vmatpush1.msra.mxu0 0.0
  %2928 = vmatprep.subr.mxu0 0.0
  %2929 = vmatpush1.msra.mxu0 0.0
  %2930 = vmatprep.subr.mxu0 0.0
  %2931 = vmatpush1.msra.mxu0 0.0
  %2932 = vmatprep.subr.mxu0 0.0
  %2933 = vmatpush1.msra.mxu0 0.0
  %2934 = vmatprep.subr.mxu0 0.0
  %2935 = vmatpush1.msra.mxu0 0.0
  %2936 = vmatprep.subr.mxu0 0.0
  %2937 = vmatpush1.msra.mxu0 0.0
  %2938 = vmatprep.subr.mxu0 0.0
  %2939 = vmatpush1.msra.mxu0 0.0
  %2940 = vmatprep.subr.mxu0 0.0
  %2941 = vmatpush1.msra.mxu0 0.0
  %2942 = vmatprep.subr.mxu0 0.0
  %2943 = vmatpush1.msra.mxu0 0.0
  %2944 = vmatprep.subr.mxu0 0.0
  %2945 = vmatpush1.msra.mxu0 0.0
  %2946 = vmatprep.subr.mxu0 0.0
  %2947 = vmatpush1.msra.mxu0 0.0
  %2948 = vmatprep.subr.mxu0 0.0
  %2949 = vmatpush1.msra.mxu0 0.0
  %2950 = vmatprep.subr.mxu0 0.0
  %2951 = vmatpush1.msra.mxu0 0.0
  %2952 = vmatprep.subr.mxu0 0.0
  %2953 = vmatpush1.msra.mxu0 0.0
  %2954 = vmatprep.subr.mxu0 0.0
  %2955 = vmatpush1.msra.mxu0 0.0
  %2956 = vmatprep.subr.mxu0 0.0
  %2957 = vmatpush1.msra.mxu0 0.0
  %2958 = vmatprep.subr.mxu0 0.0
  %2959 = vmatpush1.msra.mxu0 0.0
  %2960 = vmatprep.subr.mxu0 0.0
  %2961 = vmatpush1.msra.mxu0 0.0
  %2962 = vmatprep.subr.mxu0 0.0
  %2963 = vmatpush1.msra.mxu0 0.0
  %2964 = vmatprep.subr.mxu0 0.0
  %2965 = vmatpush1.msra.mxu0 0.0
  %2966 = vmatprep.subr.mxu0 0.0
  %2967 = vmatpush1.msra.mxu0 0.0
  %2968 = vmatprep.subr.mxu0 0.0
  %2969 = vmatpush1.msra.mxu0 0.0
  %2970 = vmatprep.mubr.f32.mxu0 0.0
  %2971 = vmatmul.mubr.f32.gmra.mrb[0].mxu0 %v2904
  %v2972 = vpop.f32.mrb[0].mxu0
  %v2973 = vadd.f32 0.0, %v2972
  %v2974 = vpop.f32.mrb[0].mxu0
  %2975 = vdwg.mxu0
  %2976 = vrot.lane.b32.xlu0 %v2239, 64
  %v2977 = vpop.permute.xlu0 %2976
  %2978 = vrot.lane.b32.xlu0 %v2241, 64
  %v2979 = vpop.permute.xlu0 %2978
  %v2980 = vsel %vm378, %v2977, 0
  %v2982 = vsel %vm378, %v2979, 0
  %2984 = vmatprep.subr.mxu0 0.0
  %2985 = vmatpush1.xpose.msra.mxu0 %v2982
  %2986 = vmatprep.subr.mxu0 0.0
  %2987 = vmatpush1.xpose.msra.mxu0 0.0
  %2988 = vmatprep.subr.mxu0 0.0
  %2989 = vmatpush1.xpose.msra.mxu0 0.0
  %2990 = vmatprep.subr.mxu0 0.0
  %2991 = vmatpush1.xpose.msra.mxu0 0.0
  %2992 = vmatprep.subr.mxu0 0.0
  %2993 = vmatpush1.xpose.msra.mxu0 0.0
  %2994 = vmatprep.subr.mxu0 0.0
  %2995 = vmatpush1.xpose.msra.mxu0 0.0
  %2996 = vmatprep.subr.mxu0 0.0
  %2997 = vmatpush1.xpose.msra.mxu0 0.0
  %2998 = vmatprep.subr.mxu0 0.0
  %2999 = vmatpush1.xpose.msra.mxu0 0.0
  %3000 = vmatprep.subr.mxu0 0.0
  %3001 = vmatpush1.xpose.msra.mxu0 0.0
  %3002 = vmatprep.subr.mxu0 0.0
  %3003 = vmatpush1.xpose.msra.mxu0 0.0
  %3004 = vmatprep.subr.mxu0 0.0
  %3005 = vmatpush1.xpose.msra.mxu0 0.0
  %3006 = vmatprep.subr.mxu0 0.0
  %3007 = vmatpush1.xpose.msra.mxu0 0.0
  %3008 = vmatprep.subr.mxu0 0.0
  %3009 = vmatpush1.xpose.msra.mxu0 0.0
  %3010 = vmatprep.subr.mxu0 0.0
  %3011 = vmatpush1.xpose.msra.mxu0 0.0
  %3012 = vmatprep.subr.mxu0 0.0
  %3013 = vmatpush1.xpose.msra.mxu0 0.0
  %3014 = vmatprep.subr.mxu0 0.0
  %3015 = vmatpush1.xpose.msra.mxu0 0.0
  %3016 = vmatprep.subr.mxu0 0.0
  %3017 = vmatpush1.xpose.msra.mxu0 0.0
  %3018 = vmatprep.subr.mxu0 0.0
  %3019 = vmatpush1.xpose.msra.mxu0 0.0
  %3020 = vmatprep.subr.mxu0 0.0
  %3021 = vmatpush1.xpose.msra.mxu0 0.0
  %3022 = vmatprep.subr.mxu0 0.0
  %3023 = vmatpush1.xpose.msra.mxu0 0.0
  %3024 = vmatprep.subr.mxu0 0.0
  %3025 = vmatpush1.xpose.msra.mxu0 0.0
  %3026 = vmatprep.subr.mxu0 0.0
  %3027 = vmatpush1.xpose.msra.mxu0 0.0
  %3028 = vmatprep.subr.mxu0 0.0
  %3029 = vmatpush1.xpose.msra.mxu0 0.0
  %3030 = vmatprep.subr.mxu0 0.0
  %3031 = vmatpush1.xpose.msra.mxu0 0.0
  %3032 = vmatprep.subr.mxu0 0.0
  %3033 = vmatpush1.xpose.msra.mxu0 0.0
  %3034 = vmatprep.subr.mxu0 0.0
  %3035 = vmatpush1.xpose.msra.mxu0 0.0
  %3036 = vmatprep.subr.mxu0 0.0
  %3037 = vmatpush1.xpose.msra.mxu0 0.0
  %3038 = vmatprep.subr.mxu0 0.0
  %3039 = vmatpush1.xpose.msra.mxu0 0.0
  %3040 = vmatprep.subr.mxu0 0.0
  %3041 = vmatpush1.xpose.msra.mxu0 0.0
  %3042 = vmatprep.subr.mxu0 0.0
  %3043 = vmatpush1.xpose.msra.mxu0 0.0
  %3044 = vmatprep.subr.mxu0 0.0
  %3045 = vmatpush1.xpose.msra.mxu0 0.0
  %3046 = vmatprep.subr.mxu0 0.0
  %3047 = vmatpush1.xpose.msra.mxu0 0.0
  %3048 = vmatprep.mubr.f32.mxu0 0.0
  %3049 = vmatmul.mubr.f32.gmra.mrb[0].mxu0 %v2980
  %v3050 = vpop.f32.mrb[0].mxu0
  %v3051 = vadd.f32 %v154, %v3050
  %v3052 = vpop.f32.mrb[0].mxu0
  %3053 = vdwg.mxu0
  %3054 = vrot.lane.b32.xlu0 %v2245, 64
  %v3055 = vpop.permute.xlu0 %3054
  %3056 = vrot.lane.b32.xlu0 %v2247, 64
  %v3057 = vpop.permute.xlu0 %3056
  %v3058 = vsel %vm378, %v3055, 0
  %v3060 = vsel %vm378, %v3057, 0
  %3062 = vmatprep.subr.mxu0 0.0
  %3063 = vmatpush1.xpose.msra.mxu0 %v3060
  %3064 = vmatprep.subr.mxu0 0.0
  %3065 = vmatpush1.xpose.msra.mxu0 0.0
  %3066 = vmatprep.subr.mxu0 0.0
  %3067 = vmatpush1.xpose.msra.mxu0 0.0
  %3068 = vmatprep.subr.mxu0 0.0
  %3069 = vmatpush1.xpose.msra.mxu0 0.0
  %3070 = vmatprep.subr.mxu0 0.0
  %3071 = vmatpush1.xpose.msra.mxu0 0.0
  %3072 = vmatprep.subr.mxu0 0.0
  %3073 = vmatpush1.xpose.msra.mxu0 0.0
  %3074 = vmatprep.subr.mxu0 0.0
  %3075 = vmatpush1.xpose.msra.mxu0 0.0
  %3076 = vmatprep.subr.mxu0 0.0
  %3077 = vmatpush1.xpose.msra.mxu0 0.0
  %3078 = vmatprep.subr.mxu0 0.0
  %3079 = vmatpush1.xpose.msra.mxu0 0.0
  %3080 = vmatprep.subr.mxu0 0.0
  %3081 = vmatpush1.xpose.msra.mxu0 0.0
  %3082 = vmatprep.subr.mxu0 0.0
  %3083 = vmatpush1.xpose.msra.mxu0 0.0
  %3084 = vmatprep.subr.mxu0 0.0
  %3085 = vmatpush1.xpose.msra.mxu0 0.0
  %3086 = vmatprep.subr.mxu0 0.0
  %3087 = vmatpush1.xpose.msra.mxu0 0.0
  %3088 = vmatprep.subr.mxu0 0.0
  %3089 = vmatpush1.xpose.msra.mxu0 0.0
  %3090 = vmatprep.subr.mxu0 0.0
  %3091 = vmatpush1.xpose.msra.mxu0 0.0
  %3092 = vmatprep.subr.mxu0 0.0
  %3093 = vmatpush1.xpose.msra.mxu0 0.0
  %3094 = vmatprep.subr.mxu0 0.0
  %3095 = vmatpush1.xpose.msra.mxu0 0.0
  %3096 = vmatprep.subr.mxu0 0.0
  %3097 = vmatpush1.xpose.msra.mxu0 0.0
  %3098 = vmatprep.subr.mxu0 0.0
  %3099 = vmatpush1.xpose.msra.mxu0 0.0
  %3100 = vmatprep.subr.mxu0 0.0
  %3101 = vmatpush1.xpose.msra.mxu0 0.0
  %3102 = vmatprep.subr.mxu0 0.0
  %3103 = vmatpush1.xpose.msra.mxu0 0.0
  %3104 = vmatprep.subr.mxu0 0.0
  %3105 = vmatpush1.xpose.msra.mxu0 0.0
  %3106 = vmatprep.subr.mxu0 0.0
  %3107 = vmatpush1.xpose.msra.mxu0 0.0
  %3108 = vmatprep.subr.mxu0 0.0
  %3109 = vmatpush1.xpose.msra.mxu0 0.0
  %3110 = vmatprep.subr.mxu0 0.0
  %3111 = vmatpush1.xpose.msra.mxu0 0.0
  %3112 = vmatprep.subr.mxu0 0.0
  %3113 = vmatpush1.xpose.msra.mxu0 0.0
  %3114 = vmatprep.subr.mxu0 0.0
  %3115 = vmatpush1.xpose.msra.mxu0 0.0
  %3116 = vmatprep.subr.mxu0 0.0
  %3117 = vmatpush1.xpose.msra.mxu0 0.0
  %3118 = vmatprep.subr.mxu0 0.0
  %3119 = vmatpush1.xpose.msra.mxu0 0.0
  %3120 = vmatprep.subr.mxu0 0.0
  %3121 = vmatpush1.xpose.msra.mxu0 0.0
  %3122 = vmatprep.subr.mxu0 0.0
  %3123 = vmatpush1.xpose.msra.mxu0 0.0
  %3124 = vmatprep.subr.mxu0 0.0
  %3125 = vmatpush1.xpose.msra.mxu0 0.0
  %3126 = vmatprep.mubr.f32.mxu0 0.0
  %3127 = vmatmul.mubr.f32.gmra.mrb[0].mxu0 %v3058
  %v3128 = vpop.f32.mrb[0].mxu0
  %v3129 = vadd.f32 %v158, %v3128
  %v3130 = vpop.f32.mrb[0].mxu0
  %3131 = vdwg.mxu0
  %v3132 = vsel %vm531, %v3051, -inf
  %3133 = vmax.xlane.f32.xlu0 %v3132
  %v3134 = vpop.xlane.xlu0 %3133
  %v3135 = vsel %vm531, %v3129, -inf
  %3136 = vmax.xlane.f32.xlu0 %v3135
  %v3137 = vpop.xlane.xlu0 %3136
  %v3138 = vsub.f32 %v3051, %v3134
  %v3139 = vsub.f32 %v3129, %v3137
  %v3140 = vmul.f32 %v3138, 1.442695
  %v3141 = vpow.pop %v3140
  %v3142 = vmul.f32 %v3139, 1.442695
  %v3143 = vpow.pop %v3142
  %v3144 = vsel %vm531, %v3141, 0.0
  %3145 = vadd.xlane.f32.xlu0 %v3144
  %v3146 = vpop.xlane.xlu0 %3145
  %v3147 = vsel %vm531, %v3143, 0.0
  %3148 = vadd.xlane.f32.xlu0 %v3147
  %v3149 = vpop.xlane.xlu0 %3148
  %v3150 = vrcp.pop %v3146
  %v3151 = vmul.f32 %v3141, %v3150
  %v3152 = vrcp.pop %v3149
  %v3153 = vmul.f32 %v3143, %v3152
  %3154 = vrot.lane.b32.xlu0 %v2316, 64
  %v3155 = vpop.permute.xlu0 %3154
  %v3158 = vsel %vm531, %v3151, 0
  %3160 = vmatprep.subr.mxu0 0.0
  %3161 = vmatpush1.msra.mxu0 %v3155
  %3162 = vmatprep.subr.mxu0 0.0
  %3163 = vmatpush1.msra.mxu0 0.0
  %3164 = vmatprep.subr.mxu0 0.0
  %3165 = vmatpush1.msra.mxu0 0.0
  %3166 = vmatprep.subr.mxu0 0.0
  %3167 = vmatpush1.msra.mxu0 0.0
  %3168 = vmatprep.subr.mxu0 0.0
  %3169 = vmatpush1.msra.mxu0 0.0
  %3170 = vmatprep.subr.mxu0 0.0
  %3171 = vmatpush1.msra.mxu0 0.0
  %3172 = vmatprep.subr.mxu0 0.0
  %3173 = vmatpush1.msra.mxu0 0.0
  %3174 = vmatprep.subr.mxu0 0.0
  %3175 = vmatpush1.msra.mxu0 0.0
  %3176 = vmatprep.subr.mxu0 0.0
  %3177 = vmatpush1.msra.mxu0 0.0
  %3178 = vmatprep.subr.mxu0 0.0
  %3179 = vmatpush1.msra.mxu0 0.0
  %3180 = vmatprep.subr.mxu0 0.0
  %3181 = vmatpush1.msra.mxu0 0.0
  %3182 = vmatprep.subr.mxu0 0.0
  %3183 = vmatpush1.msra.mxu0 0.0
  %3184 = vmatprep.subr.mxu0 0.0
  %3185 = vmatpush1.msra.mxu0 0.0
  %3186 = vmatprep.subr.mxu0 0.0
  %3187 = vmatpush1.msra.mxu0 0.0
  %3188 = vmatprep.subr.mxu0 0.0
  %3189 = vmatpush1.msra.mxu0 0.0
  %3190 = vmatprep.subr.mxu0 0.0
  %3191 = vmatpush1.msra.mxu0 0.0
  %3192 = vmatprep.subr.mxu0 0.0
  %3193 = vmatpush1.msra.mxu0 0.0
  %3194 = vmatprep.subr.mxu0 0.0
  %3195 = vmatpush1.msra.mxu0 0.0
  %3196 = vmatprep.subr.mxu0 0.0
  %3197 = vmatpush1.msra.mxu0 0.0
  %3198 = vmatprep.subr.mxu0 0.0
  %3199 = vmatpush1.msra.mxu0 0.0
  %3200 = vmatprep.subr.mxu0 0.0
  %3201 = vmatpush1.msra.mxu0 0.0
  %3202 = vmatprep.subr.mxu0 0.0
  %3203 = vmatpush1.msra.mxu0 0.0
  %3204 = vmatprep.subr.mxu0 0.0
  %3205 = vmatpush1.msra.mxu0 0.0
  %3206 = vmatprep.subr.mxu0 0.0
  %3207 = vmatpush1.msra.mxu0 0.0
  %3208 = vmatprep.subr.mxu0 0.0
  %3209 = vmatpush1.msra.mxu0 0.0
  %3210 = vmatprep.subr.mxu0 0.0
  %3211 = vmatpush1.msra.mxu0 0.0
  %3212 = vmatprep.subr.mxu0 0.0
  %3213 = vmatpush1.msra.mxu0 0.0
  %3214 = vmatprep.subr.mxu0 0.0
  %3215 = vmatpush1.msra.mxu0 0.0
  %3216 = vmatprep.subr.mxu0 0.0
  %3217 = vmatpush1.msra.mxu0 0.0
  %3218 = vmatprep.subr.mxu0 0.0
  %3219 = vmatpush1.msra.mxu0 0.0
  %3220 = vmatprep.subr.mxu0 0.0
  %3221 = vmatpush1.msra.mxu0 0.0
  %3222 = vmatprep.subr.mxu0 0.0
  %3223 = vmatpush1.msra.mxu0 0.0
  %3224 = vmatprep.mubr.f32.mxu0 0.0
  %3225 = vmatmul.mubr.f32.gmra.mrb[0].mxu0 %v3158
  %v3226 = vpop.f32.mrb[0].mxu0
  %v3227 = vadd.f32 0.0, %v3226
  %v3228 = vpop.f32.mrb[0].mxu0
  %3229 = vdwg.mxu0
  %3230 = vrot.lane.b32.xlu0 %v2321, 64
  %v3231 = vpop.permute.xlu0 %3230
  %v3234 = vsel %vm531, %v3153, 0
  %3236 = vmatprep.subr.mxu0 0.0
  %3237 = vmatpush1.msra.mxu0 %v3231
  %3238 = vmatprep.subr.mxu0 0.0
  %3239 = vmatpush1.msra.mxu0 0.0
  %3240 = vmatprep.subr.mxu0 0.0
  %3241 = vmatpush1.msra.mxu0 0.0
  %3242 = vmatprep.subr.mxu0 0.0
  %3243 = vmatpush1.msra.mxu0 0.0
  %3244 = vmatprep.subr.mxu0 0.0
  %3245 = vmatpush1.msra.mxu0 0.0
  %3246 = vmatprep.subr.mxu0 0.0
  %3247 = vmatpush1.msra.mxu0 0.0
  %3248 = vmatprep.subr.mxu0 0.0
  %3249 = vmatpush1.msra.mxu0 0.0
  %3250 = vmatprep.subr.mxu0 0.0
  %3251 = vmatpush1.msra.mxu0 0.0
  %3252 = vmatprep.subr.mxu0 0.0
  %3253 = vmatpush1.msra.mxu0 0.0
  %3254 = vmatprep.subr.mxu0 0.0
  %3255 = vmatpush1.msra.mxu0 0.0
  %3256 = vmatprep.subr.mxu0 0.0
  %3257 = vmatpush1.msra.mxu0 0.0
  %3258 = vmatprep.subr.mxu0 0.0
  %3259 = vmatpush1.msra.mxu0 0.0
  %3260 = vmatprep.subr.mxu0 0.0
  %3261 = vmatpush1.msra.mxu0 0.0
  %3262 = vmatprep.subr.mxu0 0.0
  %3263 = vmatpush1.msra.mxu0 0.0
  %3264 = vmatprep.subr.mxu0 0.0
  %3265 = vmatpush1.msra.mxu0 0.0
  %3266 = vmatprep.subr.mxu0 0.0
  %3267 = vmatpush1.msra.mxu0 0.0
  %3268 = vmatprep.subr.mxu0 0.0
  %3269 = vmatpush1.msra.mxu0 0.0
  %3270 = vmatprep.subr.mxu0 0.0
  %3271 = vmatpush1.msra.mxu0 0.0
  %3272 = vmatprep.subr.mxu0 0.0
  %3273 = vmatpush1.msra.mxu0 0.0
  %3274 = vmatprep.subr.mxu0 0.0
  %3275 = vmatpush1.msra.mxu0 0.0
  %3276 = vmatprep.subr.mxu0 0.0
  %3277 = vmatpush1.msra.mxu0 0.0
  %3278 = vmatprep.subr.mxu0 0.0
  %3279 = vmatpush1.msra.mxu0 0.0
  %3280 = vmatprep.subr.mxu0 0.0
  %3281 = vmatpush1.msra.mxu0 0.0
  %3282 = vmatprep.subr.mxu0 0.0
  %3283 = vmatpush1.msra.mxu0 0.0
  %3284 = vmatprep.subr.mxu0 0.0
  %3285 = vmatpush1.msra.mxu0 0.0
  %3286 = vmatprep.subr.mxu0 0.0
  %3287 = vmatpush1.msra.mxu0 0.0
  %3288 = vmatprep.subr.mxu0 0.0
  %3289 = vmatpush1.msra.mxu0 0.0
  %3290 = vmatprep.subr.mxu0 0.0
  %3291 = vmatpush1.msra.mxu0 0.0
  %3292 = vmatprep.subr.mxu0 0.0
  %3293 = vmatpush1.msra.mxu0 0.0
  %3294 = vmatprep.subr.mxu0 0.0
  %3295 = vmatpush1.msra.mxu0 0.0
  %3296 = vmatprep.subr.mxu0 0.0
  %3297 = vmatpush1.msra.mxu0 0.0
  %3298 = vmatprep.subr.mxu0 0.0
  %3299 = vmatpush1.msra.mxu0 0.0
  %3300 = vmatprep.mubr.f32.mxu0 0.0
  %3301 = vmatmul.mubr.f32.gmra.mrb[0].mxu0 %v3234
  %v3302 = vpop.f32.mrb[0].mxu0
  %v3303 = vadd.f32 0.0, %v3302
  %v3304 = vpop.f32.mrb[0].mxu0
  %3305 = vdwg.mxu0
  %3306 = vrot.lane.b32.xlu0 %v2239, 32
  %v3307 = vpop.permute.xlu0 %3306
  %3308 = vrot.lane.b32.xlu0 %v2241, 32
  %v3309 = vpop.permute.xlu0 %3308
  %v3310 = vsel %vm378, %v3307, 0
  %v3312 = vsel %vm378, %v3309, 0
  %3314 = vmatprep.subr.mxu0 0.0
  %3315 = vmatpush1.xpose.msra.mxu0 %v3312
  %3316 = vmatprep.subr.mxu0 0.0
  %3317 = vmatpush1.xpose.msra.mxu0 0.0
  %3318 = vmatprep.subr.mxu0 0.0
  %3319 = vmatpush1.xpose.msra.mxu0 0.0
  %3320 = vmatprep.subr.mxu0 0.0
  %3321 = vmatpush1.xpose.msra.mxu0 0.0
  %3322 = vmatprep.subr.mxu0 0.0
  %3323 = vmatpush1.xpose.msra.mxu0 0.0
  %3324 = vmatprep.subr.mxu0 0.0
  %3325 = vmatpush1.xpose.msra.mxu0 0.0
  %3326 = vmatprep.subr.mxu0 0.0
  %3327 = vmatpush1.xpose.msra.mxu0 0.0
  %3328 = vmatprep.subr.mxu0 0.0
  %3329 = vmatpush1.xpose.msra.mxu0 0.0
  %3330 = vmatprep.subr.mxu0 0.0
  %3331 = vmatpush1.xpose.msra.mxu0 0.0
  %3332 = vmatprep.subr.mxu0 0.0
  %3333 = vmatpush1.xpose.msra.mxu0 0.0
  %3334 = vmatprep.subr.mxu0 0.0
  %3335 = vmatpush1.xpose.msra.mxu0 0.0
  %3336 = vmatprep.subr.mxu0 0.0
  %3337 = vmatpush1.xpose.msra.mxu0 0.0
  %3338 = vmatprep.subr.mxu0 0.0
  %3339 = vmatpush1.xpose.msra.mxu0 0.0
  %3340 = vmatprep.subr.mxu0 0.0
  %3341 = vmatpush1.xpose.msra.mxu0 0.0
  %3342 = vmatprep.subr.mxu0 0.0
  %3343 = vmatpush1.xpose.msra.mxu0 0.0
  %3344 = vmatprep.subr.mxu0 0.0
  %3345 = vmatpush1.xpose.msra.mxu0 0.0
  %3346 = vmatprep.subr.mxu0 0.0
  %3347 = vmatpush1.xpose.msra.mxu0 0.0
  %3348 = vmatprep.subr.mxu0 0.0
  %3349 = vmatpush1.xpose.msra.mxu0 0.0
  %3350 = vmatprep.subr.mxu0 0.0
  %3351 = vmatpush1.xpose.msra.mxu0 0.0
  %3352 = vmatprep.subr.mxu0 0.0
  %3353 = vmatpush1.xpose.msra.mxu0 0.0
  %3354 = vmatprep.subr.mxu0 0.0
  %3355 = vmatpush1.xpose.msra.mxu0 0.0
  %3356 = vmatprep.subr.mxu0 0.0
  %3357 = vmatpush1.xpose.msra.mxu0 0.0
  %3358 = vmatprep.subr.mxu0 0.0
  %3359 = vmatpush1.xpose.msra.mxu0 0.0
  %3360 = vmatprep.subr.mxu0 0.0
  %3361 = vmatpush1.xpose.msra.mxu0 0.0
  %3362 = vmatprep.subr.mxu0 0.0
  %3363 = vmatpush1.xpose.msra.mxu0 0.0
  %3364 = vmatprep.subr.mxu0 0.0
  %3365 = vmatpush1.xpose.msra.mxu0 0.0
  %3366 = vmatprep.subr.mxu0 0.0
  %3367 = vmatpush1.xpose.msra.mxu0 0.0
  %3368 = vmatprep.subr.mxu0 0.0
  %3369 = vmatpush1.xpose.msra.mxu0 0.0
  %3370 = vmatprep.subr.mxu0 0.0
  %3371 = vmatpush1.xpose.msra.mxu0 0.0
  %3372 = vmatprep.subr.mxu0 0.0
  %3373 = vmatpush1.xpose.msra.mxu0 0.0
  %3374 = vmatprep.subr.mxu0 0.0
  %3375 = vmatpush1.xpose.msra.mxu0 0.0
  %3376 = vmatprep.subr.mxu0 0.0
  %3377 = vmatpush1.xpose.msra.mxu0 0.0
  %3378 = vmatprep.mubr.f32.mxu0 0.0
  %3379 = vmatmul.mubr.f32.gmra.mrb[0].mxu0 %v3310
  %v3380 = vpop.f32.mrb[0].mxu0
  %v3381 = vadd.f32 %v154, %v3380
  %v3382 = vpop.f32.mrb[0].mxu0
  %3383 = vdwg.mxu0
  %3384 = vrot.lane.b32.xlu0 %v2245, 32
  %v3385 = vpop.permute.xlu0 %3384
  %3386 = vrot.lane.b32.xlu0 %v2247, 32
  %v3387 = vpop.permute.xlu0 %3386
  %v3388 = vsel %vm378, %v3385, 0
  %v3390 = vsel %vm378, %v3387, 0
  %3392 = vmatprep.subr.mxu0 0.0
  %3393 = vmatpush1.xpose.msra.mxu0 %v3390
  %3394 = vmatprep.subr.mxu0 0.0
  %3395 = vmatpush1.xpose.msra.mxu0 0.0
  %3396 = vmatprep.subr.mxu0 0.0
  %3397 = vmatpush1.xpose.msra.mxu0 0.0
  %3398 = vmatprep.subr.mxu0 0.0
  %3399 = vmatpush1.xpose.msra.mxu0 0.0
  %3400 = vmatprep.subr.mxu0 0.0
  %3401 = vmatpush1.xpose.msra.mxu0 0.0
  %3402 = vmatprep.subr.mxu0 0.0
  %3403 = vmatpush1.xpose.msra.mxu0 0.0
  %3404 = vmatprep.subr.mxu0 0.0
  %3405 = vmatpush1.xpose.msra.mxu0 0.0
  %3406 = vmatprep.subr.mxu0 0.0
  %3407 = vmatpush1.xpose.msra.mxu0 0.0
  %3408 = vmatprep.subr.mxu0 0.0
  %3409 = vmatpush1.xpose.msra.mxu0 0.0
  %3410 = vmatprep.subr.mxu0 0.0
  %3411 = vmatpush1.xpose.msra.mxu0 0.0
  %3412 = vmatprep.subr.mxu0 0.0
  %3413 = vmatpush1.xpose.msra.mxu0 0.0
  %3414 = vmatprep.subr.mxu0 0.0
  %3415 = vmatpush1.xpose.msra.mxu0 0.0
  %3416 = vmatprep.subr.mxu0 0.0
  %3417 = vmatpush1.xpose.msra.mxu0 0.0
  %3418 = vmatprep.subr.mxu0 0.0
  %3419 = vmatpush1.xpose.msra.mxu0 0.0
  %3420 = vmatprep.subr.mxu0 0.0
  %3421 = vmatpush1.xpose.msra.mxu0 0.0
  %3422 = vmatprep.subr.mxu0 0.0
  %3423 = vmatpush1.xpose.msra.mxu0 0.0
  %3424 = vmatprep.subr.mxu0 0.0
  %3425 = vmatpush1.xpose.msra.mxu0 0.0
  %3426 = vmatprep.subr.mxu0 0.0
  %3427 = vmatpush1.xpose.msra.mxu0 0.0
  %3428 = vmatprep.subr.mxu0 0.0
  %3429 = vmatpush1.xpose.msra.mxu0 0.0
  %3430 = vmatprep.subr.mxu0 0.0
  %3431 = vmatpush1.xpose.msra.mxu0 0.0
  %3432 = vmatprep.subr.mxu0 0.0
  %3433 = vmatpush1.xpose.msra.mxu0 0.0
  %3434 = vmatprep.subr.mxu0 0.0
  %3435 = vmatpush1.xpose.msra.mxu0 0.0
  %3436 = vmatprep.subr.mxu0 0.0
  %3437 = vmatpush1.xpose.msra.mxu0 0.0
  %3438 = vmatprep.subr.mxu0 0.0
  %3439 = vmatpush1.xpose.msra.mxu0 0.0
  %3440 = vmatprep.subr.mxu0 0.0
  %3441 = vmatpush1.xpose.msra.mxu0 0.0
  %3442 = vmatprep.subr.mxu0 0.0
  %3443 = vmatpush1.xpose.msra.mxu0 0.0
  %3444 = vmatprep.subr.mxu0 0.0
  %3445 = vmatpush1.xpose.msra.mxu0 0.0
  %3446 = vmatprep.subr.mxu0 0.0
  %3447 = vmatpush1.xpose.msra.mxu0 0.0
  %3448 = vmatprep.subr.mxu0 0.0
  %3449 = vmatpush1.xpose.msra.mxu0 0.0
  %3450 = vmatprep.subr.mxu0 0.0
  %3451 = vmatpush1.xpose.msra.mxu0 0.0
  %3452 = vmatprep.subr.mxu0 0.0
  %3453 = vmatpush1.xpose.msra.mxu0 0.0
  %3454 = vmatprep.subr.mxu0 0.0
  %3455 = vmatpush1.xpose.msra.mxu0 0.0
  %3456 = vmatprep.mubr.f32.mxu0 0.0
  %3457 = vmatmul.mubr.f32.gmra.mrb[0].mxu0 %v3388
  %v3458 = vpop.f32.mrb[0].mxu0
  %v3459 = vadd.f32 %v158, %v3458
  %v3460 = vpop.f32.mrb[0].mxu0
  %3461 = vdwg.mxu0
  %v3462 = vsel %vm531, %v3381, -inf
  %3463 = vmax.xlane.f32.xlu0 %v3462
  %v3464 = vpop.xlane.xlu0 %3463
  %v3465 = vsel %vm531, %v3459, -inf
  %3466 = vmax.xlane.f32.xlu0 %v3465
  %v3467 = vpop.xlane.xlu0 %3466
  %v3468 = vsub.f32 %v3381, %v3464
  %v3469 = vsub.f32 %v3459, %v3467
  %v3470 = vmul.f32 %v3468, 1.442695
  %v3471 = vpow.pop %v3470
  %v3472 = vmul.f32 %v3469, 1.442695
  %v3473 = vpow.pop %v3472
  %v3474 = vsel %vm531, %v3471, 0.0
  %3475 = vadd.xlane.f32.xlu0 %v3474
  %v3476 = vpop.xlane.xlu0 %3475
  %v3477 = vsel %vm531, %v3473, 0.0
  %3478 = vadd.xlane.f32.xlu0 %v3477
  %v3479 = vpop.xlane.xlu0 %3478
  %v3480 = vrcp.pop %v3476
  %v3481 = vmul.f32 %v3471, %v3480
  %v3482 = vrcp.pop %v3479
  %v3483 = vmul.f32 %v3473, %v3482
  %3484 = vrot.lane.b32.xlu0 %v2316, 32
  %v3485 = vpop.permute.xlu0 %3484
  %v3488 = vsel %vm531, %v3481, 0
  %3490 = vmatprep.subr.mxu0 0.0
  %3491 = vmatpush1.msra.mxu0 %v3485
  %3492 = vmatprep.subr.mxu0 0.0
  %3493 = vmatpush1.msra.mxu0 0.0
  %3494 = vmatprep.subr.mxu0 0.0
  %3495 = vmatpush1.msra.mxu0 0.0
  %3496 = vmatprep.subr.mxu0 0.0
  %3497 = vmatpush1.msra.mxu0 0.0
  %3498 = vmatprep.subr.mxu0 0.0
  %3499 = vmatpush1.msra.mxu0 0.0
  %3500 = vmatprep.subr.mxu0 0.0
  %3501 = vmatpush1.msra.mxu0 0.0
  %3502 = vmatprep.subr.mxu0 0.0
  %3503 = vmatpush1.msra.mxu0 0.0
  %3504 = vmatprep.subr.mxu0 0.0
  %3505 = vmatpush1.msra.mxu0 0.0
  %3506 = vmatprep.subr.mxu0 0.0
  %3507 = vmatpush1.msra.mxu0 0.0
  %3508 = vmatprep.subr.mxu0 0.0
  %3509 = vmatpush1.msra.mxu0 0.0
  %3510 = vmatprep.subr.mxu0 0.0
  %3511 = vmatpush1.msra.mxu0 0.0
  %3512 = vmatprep.subr.mxu0 0.0
  %3513 = vmatpush1.msra.mxu0 0.0
  %3514 = vmatprep.subr.mxu0 0.0
  %3515 = vmatpush1.msra.mxu0 0.0
  %3516 = vmatprep.subr.mxu0 0.0
  %3517 = vmatpush1.msra.mxu0 0.0
  %3518 = vmatprep.subr.mxu0 0.0
  %3519 = vmatpush1.msra.mxu0 0.0
  %3520 = vmatprep.subr.mxu0 0.0
  %3521 = vmatpush1.msra.mxu0 0.0
  %3522 = vmatprep.subr.mxu0 0.0
  %3523 = vmatpush1.msra.mxu0 0.0
  %3524 = vmatprep.subr.mxu0 0.0
  %3525 = vmatpush1.msra.mxu0 0.0
  %3526 = vmatprep.subr.mxu0 0.0
  %3527 = vmatpush1.msra.mxu0 0.0
  %3528 = vmatprep.subr.mxu0 0.0
  %3529 = vmatpush1.msra.mxu0 0.0
  %3530 = vmatprep.subr.mxu0 0.0
  %3531 = vmatpush1.msra.mxu0 0.0
  %3532 = vmatprep.subr.mxu0 0.0
  %3533 = vmatpush1.msra.mxu0 0.0
  %3534 = vmatprep.subr.mxu0 0.0
  %3535 = vmatpush1.msra.mxu0 0.0
  %3536 = vmatprep.subr.mxu0 0.0
  %3537 = vmatpush1.msra.mxu0 0.0
  %3538 = vmatprep.subr.mxu0 0.0
  %3539 = vmatpush1.msra.mxu0 0.0
  %3540 = vmatprep.subr.mxu0 0.0
  %3541 = vmatpush1.msra.mxu0 0.0
  %3542 = vmatprep.subr.mxu0 0.0
  %3543 = vmatpush1.msra.mxu0 0.0
  %3544 = vmatprep.subr.mxu0 0.0
  %3545 = vmatpush1.msra.mxu0 0.0
  %3546 = vmatprep.subr.mxu0 0.0
  %3547 = vmatpush1.msra.mxu0 0.0
  %3548 = vmatprep.subr.mxu0 0.0
  %3549 = vmatpush1.msra.mxu0 0.0
  %3550 = vmatprep.subr.mxu0 0.0
  %3551 = vmatpush1.msra.mxu0 0.0
  %3552 = vmatprep.subr.mxu0 0.0
  %3553 = vmatpush1.msra.mxu0 0.0
  %3554 = vmatprep.mubr.f32.mxu0 0.0
  %3555 = vmatmul.mubr.f32.gmra.mrb[0].mxu0 %v3488
  %v3556 = vpop.f32.mrb[0].mxu0
  %v3557 = vadd.f32 0.0, %v3556
  %v3558 = vpop.f32.mrb[0].mxu0
  %3559 = vdwg.mxu0
  %3560 = vrot.lane.b32.xlu0 %v2321, 32
  %v3561 = vpop.permute.xlu0 %3560
  %v3564 = vsel %vm531, %v3483, 0
  %3566 = vmatprep.subr.mxu0 0.0
  %3567 = vmatpush1.msra.mxu0 %v3561
  %3568 = vmatprep.subr.mxu0 0.0
  %3569 = vmatpush1.msra.mxu0 0.0
  %3570 = vmatprep.subr.mxu0 0.0
  %3571 = vmatpush1.msra.mxu0 0.0
  %3572 = vmatprep.subr.mxu0 0.0
  %3573 = vmatpush1.msra.mxu0 0.0
  %3574 = vmatprep.subr.mxu0 0.0
  %3575 = vmatpush1.msra.mxu0 0.0
  %3576 = vmatprep.subr.mxu0 0.0
  %3577 = vmatpush1.msra.mxu0 0.0
  %3578 = vmatprep.subr.mxu0 0.0
  %3579 = vmatpush1.msra.mxu0 0.0
  %3580 = vmatprep.subr.mxu0 0.0
  %3581 = vmatpush1.msra.mxu0 0.0
  %3582 = vmatprep.subr.mxu0 0.0
  %3583 = vmatpush1.msra.mxu0 0.0
  %3584 = vmatprep.subr.mxu0 0.0
  %3585 = vmatpush1.msra.mxu0 0.0
  %3586 = vmatprep.subr.mxu0 0.0
  %3587 = vmatpush1.msra.mxu0 0.0
  %3588 = vmatprep.subr.mxu0 0.0
  %3589 = vmatpush1.msra.mxu0 0.0
  %3590 = vmatprep.subr.mxu0 0.0
  %3591 = vmatpush1.msra.mxu0 0.0
  %3592 = vmatprep.subr.mxu0 0.0
  %3593 = vmatpush1.msra.mxu0 0.0
  %3594 = vmatprep.subr.mxu0 0.0
  %3595 = vmatpush1.msra.mxu0 0.0
  %3596 = vmatprep.subr.mxu0 0.0
  %3597 = vmatpush1.msra.mxu0 0.0
  %3598 = vmatprep.subr.mxu0 0.0
  %3599 = vmatpush1.msra.mxu0 0.0
  %3600 = vmatprep.subr.mxu0 0.0
  %3601 = vmatpush1.msra.mxu0 0.0
  %3602 = vmatprep.subr.mxu0 0.0
  %3603 = vmatpush1.msra.mxu0 0.0
  %3604 = vmatprep.subr.mxu0 0.0
  %3605 = vmatpush1.msra.mxu0 0.0
  %3606 = vmatprep.subr.mxu0 0.0
  %3607 = vmatpush1.msra.mxu0 0.0
  %3608 = vmatprep.subr.mxu0 0.0
  %3609 = vmatpush1.msra.mxu0 0.0
  %3610 = vmatprep.subr.mxu0 0.0
  %3611 = vmatpush1.msra.mxu0 0.0
  %3612 = vmatprep.subr.mxu0 0.0
  %3613 = vmatpush1.msra.mxu0 0.0
  %3614 = vmatprep.subr.mxu0 0.0
  %3615 = vmatpush1.msra.mxu0 0.0
  %3616 = vmatprep.subr.mxu0 0.0
  %3617 = vmatpush1.msra.mxu0 0.0
  %3618 = vmatprep.subr.mxu0 0.0
  %3619 = vmatpush1.msra.mxu0 0.0
  %3620 = vmatprep.subr.mxu0 0.0
  %3621 = vmatpush1.msra.mxu0 0.0
  %3622 = vmatprep.subr.mxu0 0.0
  %3623 = vmatpush1.msra.mxu0 0.0
  %3624 = vmatprep.subr.mxu0 0.0
  %3625 = vmatpush1.msra.mxu0 0.0
  %3626 = vmatprep.subr.mxu0 0.0
  %3627 = vmatpush1.msra.mxu0 0.0
  %3628 = vmatprep.subr.mxu0 0.0
  %3629 = vmatpush1.msra.mxu0 0.0
  %3630 = vmatprep.mubr.f32.mxu0 0.0
  %3631 = vmatmul.mubr.f32.gmra.mrb[0].mxu0 %v3564
  %v3632 = vpop.f32.mrb[0].mxu0
  %v3633 = vadd.f32 0.0, %v3632
  %v3634 = vpop.f32.mrb[0].mxu0
  %3635 = vdwg.mxu0
  %3638 = vrot.lane.b32.xlu0 %v2896, 32
  %v3639 = vpop.permute.xlu0 %3638
  %3640 = vrot.lane.b32.xlu0 %v2973, 32
  %v3641 = vpop.permute.xlu0 %3640
  %3646 = vrot.lane.b32.xlu0 %v3227, 64
  %v3647 = vpop.permute.xlu0 %3646
  %3648 = vrot.lane.b32.xlu0 %v3303, 64
  %v3649 = vpop.permute.xlu0 %3648
  %3654 = vrot.lane.b32.xlu0 %v3557, 96
  %v3655 = vpop.permute.xlu0 %3654
  %3656 = vrot.lane.b32.xlu0 %v3633, 96
  %v3657 = vpop.permute.xlu0 %3656
  %v3660 = vsel %vm378, %v2568, %v3639
  %v3661 = vsel %vm378, %v2641, %v3641
  %v3662 = vsel %vm1718, %v3660, %v3647
  %v3663 = vsel %vm1718, %v3661, %v3649
  %v3664 = vsel %vm1721, %v3662, %v3655
  %v3665 = vsel %vm1721, %v3663, %v3657
  %s3666 = scalar_lea.vmem %s6, 128
  %v3667 = vld [vmem:[%s3666] sm:$0xff]
  %v3668 = vld [vmem:[%s3666 + $0x8] sm:$0xff]
  %v3669 = vld [vmem:[%s3666 + $0x10] sm:$0xff]
  %v3670 = vld [vmem:[%s3666 + $0x18] sm:$0xff]
  %v3671 = vld [vmem:[%s3666 + $0x20] sm:$0xff]
  %v3672 = vld [vmem:[%s3666 + $0x28] sm:$0xff]
  %v3673 = vld [vmem:[%s3666 + $0x30] sm:$0xff]
  %v3674 = vld [vmem:[%s3666 + $0x38] sm:$0xff]
  %v3675 = vld [vmem:[%s3666 + $0x40] sm:$0xff]
  %v3676 = vld [vmem:[%s3666 + $0x48] sm:$0xff]
  %v3677 = vld [vmem:[%s3666 + $0x50] sm:$0xff]
  %v3678 = vld [vmem:[%s3666 + $0x58] sm:$0xff]
  %v3679 = vld [vmem:[%s3666 + $0x60] sm:$0xff]
  %v3680 = vld [vmem:[%s3666 + $0x68] sm:$0xff]
  %v3681 = vld [vmem:[%s3666 + $0x70] sm:$0xff]
  %v3682 = vld [vmem:[%s3666 + $0x78] sm:$0xff]
  %s3683 = scalar_lea.vmem %s7, 1
  %v3684 = vld [vmem:[%s3683] sm:$0x1]
  %v3686 = vlaneseq
  %v3687 = vshrl.u32 %v3686, 7
  %v3688 = vsub.s32 0, %v3687
  %v3689 = vrot.slane %v3684, %v3688
  %3691 = vmatprep.subr.mxu0 0.0
  %3692 = vmatpush1.msra.mxu0 %v3667
  %3693 = vmatprep.subr.mxu0 0.0
  %3694 = vmatpush1.msra.mxu0 %v3668
  %3695 = vmatprep.subr.mxu0 0.0
  %3696 = vmatpush1.msra.mxu0 %v3669
  %3697 = vmatprep.subr.mxu0 0.0
  %3698 = vmatpush1.msra.mxu0 %v3670
  %3699 = vmatprep.subr.mxu0 0.0
  %3700 = vmatpush1.msra.mxu0 %v3671
  %3701 = vmatprep.subr.mxu0 0.0
  %3702 = vmatpush1.msra.mxu0 %v3672
  %3703 = vmatprep.subr.mxu0 0.0
  %3704 = vmatpush1.msra.mxu0 %v3673
  %3705 = vmatprep.subr.mxu0 0.0
  %3706 = vmatpush1.msra.mxu0 %v3674
  %3707 = vmatprep.subr.mxu0 0.0
  %3708 = vmatpush1.msra.mxu0 %v3675
  %3709 = vmatprep.subr.mxu0 0.0
  %3710 = vmatpush1.msra.mxu0 %v3676
  %3711 = vmatprep.subr.mxu0 0.0
  %3712 = vmatpush1.msra.mxu0 %v3677
  %3713 = vmatprep.subr.mxu0 0.0
  %3714 = vmatpush1.msra.mxu0 %v3678
  %3715 = vmatprep.subr.mxu0 0.0
  %3716 = vmatpush1.msra.mxu0 %v3679
  %3717 = vmatprep.subr.mxu0 0.0
  %3718 = vmatpush1.msra.mxu0 %v3680
  %3719 = vmatprep.subr.mxu0 0.0
  %3720 = vmatpush1.msra.mxu0 %v3681
  %3721 = vmatprep.subr.mxu0 0.0
  %3722 = vmatpush1.msra.mxu0 %v3682
  %3723 = vmatprep.subr.mxu0 0.0
  %3724 = vmatpush1.msra.mxu0 0.0
  %3725 = vmatprep.subr.mxu0 0.0
  %3726 = vmatpush1.msra.mxu0 0.0
  %3727 = vmatprep.subr.mxu0 0.0
  %3728 = vmatpush1.msra.mxu0 0.0
  %3729 = vmatprep.subr.mxu0 0.0
  %3730 = vmatpush1.msra.mxu0 0.0
  %3731 = vmatprep.subr.mxu0 0.0
  %3732 = vmatpush1.msra.mxu0 0.0
  %3733 = vmatprep.subr.mxu0 0.0
  %3734 = vmatpush1.msra.mxu0 0.0
  %3735 = vmatprep.subr.mxu0 0.0
  %3736 = vmatpush1.msra.mxu0 0.0
  %3737 = vmatprep.subr.mxu0 0.0
  %3738 = vmatpush1.msra.mxu0 0.0
  %3739 = vmatprep.subr.mxu0 0.0
  %3740 = vmatpush1.msra.mxu0 0.0
  %3741 = vmatprep.subr.mxu0 0.0
  %3742 = vmatpush1.msra.mxu0 0.0
  %3743 = vmatprep.subr.mxu0 0.0
  %3744 = vmatpush1.msra.mxu0 0.0
  %3745 = vmatprep.subr.mxu0 0.0
  %3746 = vmatpush1.msra.mxu0 0.0
  %3747 = vmatprep.subr.mxu0 0.0
  %3748 = vmatpush1.msra.mxu0 0.0
  %3749 = vmatprep.subr.mxu0 0.0
  %3750 = vmatpush1.msra.mxu0 0.0
  %3751 = vmatprep.subr.mxu0 0.0
  %3752 = vmatpush1.msra.mxu0 0.0
  %3753 = vmatprep.subr.mxu0 0.0
  %3754 = vmatpush1.msra.mxu0 0.0
  %3755 = vmatprep.mubr.f32.mxu0 0.0
  %3756 = vmatmul.mubr.f32.gmra.mrb[0].mxu0 %v3664
  %v3757 = vpop.f32.mrb[0].mxu0
  %v3758 = vadd.f32 %v3689, %v3757
  %v3759 = vpop.f32.mrb[0].mxu0
  %3760 = vmatprep.mubr.f32.mxu0 0.0
  %3761 = vmatmul.mubr.f32.gmra.mrb[0].mxu0 %v3665
  %v3762 = vpop.f32.mrb[0].mxu0
  %v3763 = vadd.f32 %v3689, %v3762
  %v3764 = vpop.f32.mrb[0].mxu0
  %3765 = vdwg.mxu0
  %v3766 = vadd.f32 %v2103, %v3758
  %v3767 = vadd.f32 %v2104, %v3763
  %s3768 = scalar_lea.vmem %s8, 1
  %v3769 = vld [vmem:[%s3768] sm:$0x1]
  %s3770 = scalar_lea.vmem %s9, 1
  %v3771 = vld [vmem:[%s3770] sm:$0x1]
  %3772 = vadd.xlane.f32.xlu0 %v3766
  %v3773 = vpop.xlane.xlu0 %3772
  %3774 = vadd.xlane.f32.xlu0 %v3767
  %v3775 = vpop.xlane.xlu0 %3774
  %v3776 = vmul.f32 %v3773, %v1830
  %v3777 = vmul.f32 %v3775, %v1830
  %v3778 = vsub.f32 %v3766, %v3776
  %v3779 = vsub.f32 %v3767, %v3777
  %v3780 = vmul.f32 %v3778, %v3778
  %v3781 = vmul.f32 %v3779, %v3779
  %3782 = vadd.xlane.f32.xlu0 %v3780
  %v3783 = vpop.xlane.xlu0 %3782
  %3784 = vadd.xlane.f32.xlu0 %v3781
  %v3785 = vpop.xlane.xlu0 %3784
  %v3786 = vmul.f32 %v3783, %v1830
  %v3787 = vmul.f32 %v3785, %v1830
  %v3788 = vadd.f32 %v3786, 1e-05
  %v3789 = vadd.f32 %v3787, 1e-05
  %v3790 = vrsqrt.pop %v3788
  %v3791 = vrsqrt.pop %v3789
  %v3792 = vmul.f32 %v3778, %v3790
  %v3793 = vmul.f32 %v3779, %v3791
  %v3795 = vlaneseq
  %v3796 = vshrl.u32 %v3795, 7
  %v3797 = vsub.s32 0, %v3796
  %v3798 = vrot.slane %v3769, %v3797
  %v3800 = vmul.f32 %v3792, %v3798
  %v3801 = vmul.f32 %v3793, %v3798
  %v3803 = vlaneseq
  %v3804 = vshrl.u32 %v3803, 7
  %v3805 = vsub.s32 0, %v3804
  %v3806 = vrot.slane %v3771, %v3805
  %v3808 = vadd.f32 %v3800, %v3806
  %v3809 = vadd.f32 %v3801, %v3806
  %s3810 = scalar_lea.vmem %s10, 128
  %v3811 = vld [vmem:[%s3810] sm:$0xff]
  %v3812 = vld [vmem:[%s3810 + $0x8] sm:$0xff]
  %v3813 = vld [vmem:[%s3810 + $0x10] sm:$0xff]
  %v3814 = vld [vmem:[%s3810 + $0x18] sm:$0xff]
  %v3815 = vld [vmem:[%s3810 + $0x20] sm:$0xff]
  %v3816 = vld [vmem:[%s3810 + $0x28] sm:$0xff]
  %v3817 = vld [vmem:[%s3810 + $0x30] sm:$0xff]
  %v3818 = vld [vmem:[%s3810 + $0x38] sm:$0xff]
  %v3819 = vld [vmem:[%s3810 + $0x40] sm:$0xff]
  %v3820 = vld [vmem:[%s3810 + $0x48] sm:$0xff]
  %v3821 = vld [vmem:[%s3810 + $0x50] sm:$0xff]
  %v3822 = vld [vmem:[%s3810 + $0x58] sm:$0xff]
  %v3823 = vld [vmem:[%s3810 + $0x60] sm:$0xff]
  %v3824 = vld [vmem:[%s3810 + $0x68] sm:$0xff]
  %v3825 = vld [vmem:[%s3810 + $0x70] sm:$0xff]
  %v3826 = vld [vmem:[%s3810 + $0x78] sm:$0xff]
  %s3827 = scalar_lea.vmem %s11, 1
  %v3828 = vld [vmem:[%s3827] sm:$0x1]
  %v3830 = vlaneseq
  %v3831 = vshrl.u32 %v3830, 7
  %v3832 = vsub.s32 0, %v3831
  %v3833 = vrot.slane %v3828, %v3832
  %3835 = vmatprep.subr.mxu0 0.0
  %3836 = vmatpush1.msra.mxu0 %v3811
  %3837 = vmatprep.subr.mxu0 0.0
  %3838 = vmatpush1.msra.mxu0 %v3812
  %3839 = vmatprep.subr.mxu0 0.0
  %3840 = vmatpush1.msra.mxu0 %v3813
  %3841 = vmatprep.subr.mxu0 0.0
  %3842 = vmatpush1.msra.mxu0 %v3814
  %3843 = vmatprep.subr.mxu0 0.0
  %3844 = vmatpush1.msra.mxu0 %v3815
  %3845 = vmatprep.subr.mxu0 0.0
  %3846 = vmatpush1.msra.mxu0 %v3816
  %3847 = vmatprep.subr.mxu0 0.0
  %3848 = vmatpush1.msra.mxu0 %v3817
  %3849 = vmatprep.subr.mxu0 0.0
  %3850 = vmatpush1.msra.mxu0 %v3818
  %3851 = vmatprep.subr.mxu0 0.0
  %3852 = vmatpush1.msra.mxu0 %v3819
  %3853 = vmatprep.subr.mxu0 0.0
  %3854 = vmatpush1.msra.mxu0 %v3820
  %3855 = vmatprep.subr.mxu0 0.0
  %3856 = vmatpush1.msra.mxu0 %v3821
  %3857 = vmatprep.subr.mxu0 0.0
  %3858 = vmatpush1.msra.mxu0 %v3822
  %3859 = vmatprep.subr.mxu0 0.0
  %3860 = vmatpush1.msra.mxu0 %v3823
  %3861 = vmatprep.subr.mxu0 0.0
  %3862 = vmatpush1.msra.mxu0 %v3824
  %3863 = vmatprep.subr.mxu0 0.0
  %3864 = vmatpush1.msra.mxu0 %v3825
  %3865 = vmatprep.subr.mxu0 0.0
  %3866 = vmatpush1.msra.mxu0 %v3826
  %3867 = vmatprep.subr.mxu0 0.0
  %3868 = vmatpush1.msra.mxu0 0.0
  %3869 = vmatprep.subr.mxu0 0.0
  %3870 = vmatpush1.msra.mxu0 0.0
  %3871 = vmatprep.subr.mxu0 0.0
  %3872 = vmatpush1.msra.mxu0 0.0
  %3873 = vmatprep.subr.mxu0 0.0
  %3874 = vmatpush1.msra.mxu0 0.0
  %3875 = vmatprep.subr.mxu0 0.0
  %3876 = vmatpush1.msra.mxu0 0.0
  %3877 = vmatprep.subr.mxu0 0.0
  %3878 = vmatpush1.msra.mxu0 0.0
  %3879 = vmatprep.subr.mxu0 0.0
  %3880 = vmatpush1.msra.mxu0 0.0
  %3881 = vmatprep.subr.mxu0 0.0
  %3882 = vmatpush1.msra.mxu0 0.0
  %3883 = vmatprep.subr.mxu0 0.0
  %3884 = vmatpush1.msra.mxu0 0.0
  %3885 = vmatprep.subr.mxu0 0.0
  %3886 = vmatpush1.msra.mxu0 0.0
  %3887 = vmatprep.subr.mxu0 0.0
  %3888 = vmatpush1.msra.mxu0 0.0
  %3889 = vmatprep.subr.mxu0 0.0
  %3890 = vmatpush1.msra.mxu0 0.0
  %3891 = vmatprep.subr.mxu0 0.0
  %3892 = vmatpush1.msra.mxu0 0.0
  %3893 = vmatprep.subr.mxu0 0.0
  %3894 = vmatpush1.msra.mxu0 0.0
  %3895 = vmatprep.subr.mxu0 0.0
  %3896 = vmatpush1.msra.mxu0 0.0
  %3897 = vmatprep.subr.mxu0 0.0
  %3898 = vmatpush1.msra.mxu0 0.0
  %3899 = vmatprep.mubr.f32.mxu0 0.0
  %3900 = vmatmul.mubr.f32.gmra.mrb[0].mxu0 %v3808
  %v3901 = vpop.f32.mrb[0].mxu0
  %v3902 = vadd.f32 %v3833, %v3901
  %v3903 = vpop.f32.mrb[0].mxu0
  %3904 = vmatprep.mubr.f32.mxu0 0.0
  %3905 = vmatmul.mubr.f32.gmra.mrb[0].mxu0 %v3809
  %v3906 = vpop.f32.mrb[0].mxu0
  %v3907 = vadd.f32 %v3833, %v3906
  %v3908 = vpop.f32.mrb[0].mxu0
  %3909 = vdwg.mxu0
  %v3910 = vmax.f32 %v3902, 0.0
  %v3911 = vmax.f32 %v3907, 0.0
  %s3912 = scalar_lea.vmem %s12, 128
  %v3913 = vld [vmem:[%s3912] sm:$0xff]
  %v3914 = vld [vmem:[%s3912 + $0x8] sm:$0xff]
  %v3915 = vld [vmem:[%s3912 + $0x10] sm:$0xff]
  %v3916 = vld [vmem:[%s3912 + $0x18] sm:$0xff]
  %v3917 = vld [vmem:[%s3912 + $0x20] sm:$0xff]
  %v3918 = vld [vmem:[%s3912 + $0x28] sm:$0xff]
  %v3919 = vld [vmem:[%s3912 + $0x30] sm:$0xff]
  %v3920 = vld [vmem:[%s3912 + $0x38] sm:$0xff]
  %v3921 = vld [vmem:[%s3912 + $0x40] sm:$0xff]
  %v3922 = vld [vmem:[%s3912 + $0x48] sm:$0xff]
  %v3923 = vld [vmem:[%s3912 + $0x50] sm:$0xff]
  %v3924 = vld [vmem:[%s3912 + $0x58] sm:$0xff]
  %v3925 = vld [vmem:[%s3912 + $0x60] sm:$0xff]
  %v3926 = vld [vmem:[%s3912 + $0x68] sm:$0xff]
  %v3927 = vld [vmem:[%s3912 + $0x70] sm:$0xff]
  %v3928 = vld [vmem:[%s3912 + $0x78] sm:$0xff]
  %s3929 = scalar_lea.vmem %s13, 1
  %v3930 = vld [vmem:[%s3929] sm:$0x1]
  %v3932 = vlaneseq
  %v3933 = vshrl.u32 %v3932, 7
  %v3934 = vsub.s32 0, %v3933
  %v3935 = vrot.slane %v3930, %v3934
  %3937 = vmatprep.subr.mxu0 0.0
  %3938 = vmatpush1.msra.mxu0 %v3913
  %3939 = vmatprep.subr.mxu0 0.0
  %3940 = vmatpush1.msra.mxu0 %v3914
  %3941 = vmatprep.subr.mxu0 0.0
  %3942 = vmatpush1.msra.mxu0 %v3915
  %3943 = vmatprep.subr.mxu0 0.0
  %3944 = vmatpush1.msra.mxu0 %v3916
  %3945 = vmatprep.subr.mxu0 0.0
  %3946 = vmatpush1.msra.mxu0 %v3917
  %3947 = vmatprep.subr.mxu0 0.0
  %3948 = vmatpush1.msra.mxu0 %v3918
  %3949 = vmatprep.subr.mxu0 0.0
  %3950 = vmatpush1.msra.mxu0 %v3919
  %3951 = vmatprep.subr.mxu0 0.0
  %3952 = vmatpush1.msra.mxu0 %v3920
  %3953 = vmatprep.subr.mxu0 0.0
  %3954 = vmatpush1.msra.mxu0 %v3921
  %3955 = vmatprep.subr.mxu0 0.0
  %3956 = vmatpush1.msra.mxu0 %v3922
  %3957 = vmatprep.subr.mxu0 0.0
  %3958 = vmatpush1.msra.mxu0 %v3923
  %3959 = vmatprep.subr.mxu0 0.0
  %3960 = vmatpush1.msra.mxu0 %v3924
  %3961 = vmatprep.subr.mxu0 0.0
  %3962 = vmatpush1.msra.mxu0 %v3925
  %3963 = vmatprep.subr.mxu0 0.0
  %3964 = vmatpush1.msra.mxu0 %v3926
  %3965 = vmatprep.subr.mxu0 0.0
  %3966 = vmatpush1.msra.mxu0 %v3927
  %3967 = vmatprep.subr.mxu0 0.0
  %3968 = vmatpush1.msra.mxu0 %v3928
  %3969 = vmatprep.subr.mxu0 0.0
  %3970 = vmatpush1.msra.mxu0 0.0
  %3971 = vmatprep.subr.mxu0 0.0
  %3972 = vmatpush1.msra.mxu0 0.0
  %3973 = vmatprep.subr.mxu0 0.0
  %3974 = vmatpush1.msra.mxu0 0.0
  %3975 = vmatprep.subr.mxu0 0.0
  %3976 = vmatpush1.msra.mxu0 0.0
  %3977 = vmatprep.subr.mxu0 0.0
  %3978 = vmatpush1.msra.mxu0 0.0
  %3979 = vmatprep.subr.mxu0 0.0
  %3980 = vmatpush1.msra.mxu0 0.0
  %3981 = vmatprep.subr.mxu0 0.0
  %3982 = vmatpush1.msra.mxu0 0.0
  %3983 = vmatprep.subr.mxu0 0.0
  %3984 = vmatpush1.msra.mxu0 0.0
  %3985 = vmatprep.subr.mxu0 0.0
  %3986 = vmatpush1.msra.mxu0 0.0
  %3987 = vmatprep.subr.mxu0 0.0
  %3988 = vmatpush1.msra.mxu0 0.0
  %3989 = vmatprep.subr.mxu0 0.0
  %3990 = vmatpush1.msra.mxu0 0.0
  %3991 = vmatprep.subr.mxu0 0.0
  %3992 = vmatpush1.msra.mxu0 0.0
  %3993 = vmatprep.subr.mxu0 0.0
  %3994 = vmatpush1.msra.mxu0 0.0
  %3995 = vmatprep.subr.mxu0 0.0
  %3996 = vmatpush1.msra.mxu0 0.0
  %3997 = vmatprep.subr.mxu0 0.0
  %3998 = vmatpush1.msra.mxu0 0.0
  %3999 = vmatprep.subr.mxu0 0.0
  %4000 = vmatpush1.msra.mxu0 0.0
  %4001 = vmatprep.mubr.f32.mxu0 0.0
  %4002 = vmatmul.mubr.f32.gmra.mrb[0].mxu0 %v3910
  %v4003 = vpop.f32.mrb[0].mxu0
  %v4004 = vadd.f32 %v3935, %v4003
  %v4005 = vpop.f32.mrb[0].mxu0
  %4006 = vmatprep.mubr.f32.mxu0 0.0
  %4007 = vmatmul.mubr.f32.gmra.mrb[0].mxu0 %v3911
  %v4008 = vpop.f32.mrb[0].mxu0
  %v4009 = vadd.f32 %v3935, %v4008
  %v4010 = vpop.f32.mrb[0].mxu0
  %4011 = vdwg.mxu0
  %v4012 = vadd.f32 %v3808, %v4004
  %v4013 = vadd.f32 %v3809, %v4009
  %s4014 = scalar_lea.vmem %s14, 1
  %v4015 = vld [vmem:[%s4014] sm:$0x1]
  %s4016 = scalar_lea.vmem %s15, 1
  %v4017 = vld [vmem:[%s4016] sm:$0x1]
  %4018 = vadd.xlane.f32.xlu0 %v4012
  %v4019 = vpop.xlane.xlu0 %4018
  %4020 = vadd.xlane.f32.xlu0 %v4013
  %v4021 = vpop.xlane.xlu0 %4020
  %v4022 = vmul.f32 %v4019, %v1830
  %v4023 = vmul.f32 %v4021, %v1830
  %v4024 = vsub.f32 %v4012, %v4022
  %v4025 = vsub.f32 %v4013, %v4023
  %v4026 = vmul.f32 %v4024, %v4024
  %v4027 = vmul.f32 %v4025, %v4025
  %4028 = vadd.xlane.f32.xlu0 %v4026
  %v4029 = vpop.xlane.xlu0 %4028
  %4030 = vadd.xlane.f32.xlu0 %v4027
  %v4031 = vpop.xlane.xlu0 %4030
  %v4032 = vmul.f32 %v4029, %v1830
  %v4033 = vmul.f32 %v4031, %v1830
  %v4034 = vadd.f32 %v4032, 1e-05
  %v4035 = vadd.f32 %v4033, 1e-05
  %v4036 = vrsqrt.pop %v4034
  %v4037 = vrsqrt.pop %v4035
  %v4038 = vmul.f32 %v4024, %v4036
  %v4039 = vmul.f32 %v4025, %v4037
  %v4041 = vlaneseq
  %v4042 = vshrl.u32 %v4041, 7
  %v4043 = vsub.s32 0, %v4042
  %v4044 = vrot.slane %v4015, %v4043
  %v4046 = vmul.f32 %v4038, %v4044
  %v4047 = vmul.f32 %v4039, %v4044
  %v4049 = vlaneseq
  %v4050 = vshrl.u32 %v4049, 7
  %v4051 = vsub.s32 0, %v4050
  %v4052 = vrot.slane %v4017, %v4051
  %v4054 = vadd.f32 %v4046, %v4052
  %v4055 = vadd.f32 %v4047, %v4052
  %s4056 = scalar_lea.vmem %s4, 768
  %v4057 = vld [vmem:[%s4056] sm:$0xff]
  %v4058 = vld [vmem:[%s4056 + $0x8] sm:$0xff]
  %v4059 = vld [vmem:[%s4056 + $0x10] sm:$0xff]
  %v4060 = vld [vmem:[%s4056 + $0x18] sm:$0xff]
  %v4061 = vld [vmem:[%s4056 + $0x20] sm:$0xff]
  %v4062 = vld [vmem:[%s4056 + $0x28] sm:$0xff]
  %v4063 = vld [vmem:[%s4056 + $0x30] sm:$0xff]
  %v4064 = vld [vmem:[%s4056 + $0x38] sm:$0xff]
  %v4065 = vld [vmem:[%s4056 + $0x40] sm:$0xff]
  %v4066 = vld [vmem:[%s4056 + $0x48] sm:$0xff]
  %v4067 = vld [vmem:[%s4056 + $0x50] sm:$0xff]
  %v4068 = vld [vmem:[%s4056 + $0x58] sm:$0xff]
  %v4069 = vld [vmem:[%s4056 + $0x60] sm:$0xff]
  %v4070 = vld [vmem:[%s4056 + $0x68] sm:$0xff]
  %v4071 = vld [vmem:[%s4056 + $0x70] sm:$0xff]
  %v4072 = vld [vmem:[%s4056 + $0x78] sm:$0xff]
  %v4073 = vld [vmem:[%s4056 + $0x80] sm:$0xff]
  %v4074 = vld [vmem:[%s4056 + $0x88] sm:$0xff]
  %v4075 = vld [vmem:[%s4056 + $0x90] sm:$0xff]
  %v4076 = vld [vmem:[%s4056 + $0x98] sm:$0xff]
  %v4077 = vld [vmem:[%s4056 + $0xa0] sm:$0xff]
  %v4078 = vld [vmem:[%s4056 + $0xa8] sm:$0xff]
  %v4079 = vld [vmem:[%s4056 + $0xb0] sm:$0xff]
  %v4080 = vld [vmem:[%s4056 + $0xb8] sm:$0xff]
  %v4081 = vld [vmem:[%s4056 + $0xc0] sm:$0xff]
  %v4082 = vld [vmem:[%s4056 + $0xc8] sm:$0xff]
  %v4083 = vld [vmem:[%s4056 + $0xd0] sm:$0xff]
  %v4084 = vld [vmem:[%s4056 + $0xd8] sm:$0xff]
  %v4085 = vld [vmem:[%s4056 + $0xe0] sm:$0xff]
  %v4086 = vld [vmem:[%s4056 + $0xe8] sm:$0xff]
  %v4087 = vld [vmem:[%s4056 + $0xf0] sm:$0xff]
  %v4088 = vld [vmem:[%s4056 + $0xf8] sm:$0xff]
  %v4089 = vld [vmem:[%s4056 + $0x100] sm:$0xff]
  %v4090 = vld [vmem:[%s4056 + $0x108] sm:$0xff]
  %v4091 = vld [vmem:[%s4056 + $0x110] sm:$0xff]
  %v4092 = vld [vmem:[%s4056 + $0x118] sm:$0xff]
  %v4093 = vld [vmem:[%s4056 + $0x120] sm:$0xff]
  %v4094 = vld [vmem:[%s4056 + $0x128] sm:$0xff]
  %v4095 = vld [vmem:[%s4056 + $0x130] sm:$0xff]
  %v4096 = vld [vmem:[%s4056 + $0x138] sm:$0xff]
  %v4097 = vld [vmem:[%s4056 + $0x140] sm:$0xff]
  %v4098 = vld [vmem:[%s4056 + $0x148] sm:$0xff]
  %v4099 = vld [vmem:[%s4056 + $0x150] sm:$0xff]
  %v4100 = vld [vmem:[%s4056 + $0x158] sm:$0xff]
  %v4101 = vld [vmem:[%s4056 + $0x160] sm:$0xff]
  %v4102 = vld [vmem:[%s4056 + $0x168] sm:$0xff]
  %v4103 = vld [vmem:[%s4056 + $0x170] sm:$0xff]
  %v4104 = vld [vmem:[%s4056 + $0x178] sm:$0xff]
  %s4105 = scalar_lea.vmem %s5, 6
  %v4106 = vld [vmem:[%s4105] sm:$0x7]
  %v4108 = vlaneseq
  %v4109 = vshrl.u32 %v4108, 7
  %v4110 = vsub.s32 0, %v4109
  %v4111 = vrot.slane %v4106, %v4110
  %v4112 = vlaneseq
  %v4113 = vshrl.u32 %v4112, 7
  %v4114 = vsub.s32 1, %v4113
  %v4115 = vrot.slane %v4106, %v4114
  %v4116 = vlaneseq
  %v4117 = vshrl.u32 %v4116, 7
  %v4118 = vsub.s32 2, %v4117
  %v4119 = vrot.slane %v4106, %v4118
  %4123 = vmatprep.subr.mxu0 %v4058
  %4124 = vmatpush1.msra.mxu0 %v4057
  %4125 = vmatprep.subr.mxu0 %v4061
  %4126 = vmatpush1.msra.mxu0 %v4060
  %4127 = vmatprep.subr.mxu0 %v4064
  %4128 = vmatpush1.msra.mxu0 %v4063
  %4129 = vmatprep.subr.mxu0 %v4067
  %4130 = vmatpush1.msra.mxu0 %v4066
  %4131 = vmatprep.subr.mxu0 %v4070
  %4132 = vmatpush1.msra.mxu0 %v4069
  %4133 = vmatprep.subr.mxu0 %v4073
  %4134 = vmatpush1.msra.mxu0 %v4072
  %4135 = vmatprep.subr.mxu0 %v4076
  %4136 = vmatpush1.msra.mxu0 %v4075
  %4137 = vmatprep.subr.mxu0 %v4079
  %4138 = vmatpush1.msra.mxu0 %v4078
  %4139 = vmatprep.subr.mxu0 %v4082
  %4140 = vmatpush1.msra.mxu0 %v4081
  %4141 = vmatprep.subr.mxu0 %v4085
  %4142 = vmatpush1.msra.mxu0 %v4084
  %4143 = vmatprep.subr.mxu0 %v4088
  %4144 = vmatpush1.msra.mxu0 %v4087
  %4145 = vmatprep.subr.mxu0 %v4091
  %4146 = vmatpush1.msra.mxu0 %v4090
  %4147 = vmatprep.subr.mxu0 %v4094
  %4148 = vmatpush1.msra.mxu0 %v4093
  %4149 = vmatprep.subr.mxu0 %v4097
  %4150 = vmatpush1.msra.mxu0 %v4096
  %4151 = vmatprep.subr.mxu0 %v4100
  %4152 = vmatpush1.msra.mxu0 %v4099
  %4153 = vmatprep.subr.mxu0 %v4103
  %4154 = vmatpush1.msra.mxu0 %v4102
  %4155 = vmatprep.subr.mxu0 0.0
  %4156 = vmatpush1.msra.mxu0 0.0
  %4157 = vmatprep.subr.mxu0 0.0
  %4158 = vmatpush1.msra.mxu0 0.0
  %4159 = vmatprep.subr.mxu0 0.0
  %4160 = vmatpush1.msra.mxu0 0.0
  %4161 = vmatprep.subr.mxu0 0.0
  %4162 = vmatpush1.msra.mxu0 0.0
  %4163 = vmatprep.subr.mxu0 0.0
  %4164 = vmatpush1.msra.mxu0 0.0
  %4165 = vmatprep.subr.mxu0 0.0
  %4166 = vmatpush1.msra.mxu0 0.0
  %4167 = vmatprep.subr.mxu0 0.0
  %4168 = vmatpush1.msra.mxu0 0.0
  %4169 = vmatprep.subr.mxu0 0.0
  %4170 = vmatpush1.msra.mxu0 0.0
  %4171 = vmatprep.subr.mxu0 0.0
  %4172 = vmatpush1.msra.mxu0 0.0
  %4173 = vmatprep.subr.mxu0 0.0
  %4174 = vmatpush1.msra.mxu0 0.0
  %4175 = vmatprep.subr.mxu0 0.0
  %4176 = vmatpush1.msra.mxu0 0.0
  %4177 = vmatprep.subr.mxu0 0.0
  %4178 = vmatpush1.msra.mxu0 0.0
  %4179 = vmatprep.subr.mxu0 0.0
  %4180 = vmatpush1.msra.mxu0 0.0
  %4181 = vmatprep.subr.mxu0 0.0
  %4182 = vmatpush1.msra.mxu0 0.0
  %4183 = vmatprep.subr.mxu0 0.0
  %4184 = vmatpush1.msra.mxu0 0.0
  %4185 = vmatprep.subr.mxu0 0.0
  %4186 = vmatpush1.msra.mxu0 0.0
  %4187 = vmatprep.mubr.f32.mxu0 0.0
  %4188 = vmatmul.mubr.f32.gmra.mrb[0].mxu0 %v4054
  %v4189 = vpop.f32.mrb[0].mxu0
  %v4190 = vadd.f32 %v4111, %v4189
  %v4191 = vpop.f32.mrb[0].mxu0
  %v4192 = vadd.f32 %v4115, %v4191
  %4193 = vmatprep.mubr.f32.mxu0 0.0
  %4194 = vmatmul.mubr.f32.gmra.mrb[0].mxu0 %v4055
  %v4195 = vpop.f32.mrb[0].mxu0
  %v4196 = vadd.f32 %v4111, %v4195
  %v4197 = vpop.f32.mrb[0].mxu0
  %v4198 = vadd.f32 %v4115, %v4197
  %4199 = vdwg.mxu0
  %4200 = vmatprep.subr.mxu0 0.0
  %4201 = vmatpush1.msra.mxu0 %v4059
  %4202 = vmatprep.subr.mxu0 0.0
  %4203 = vmatpush1.msra.mxu0 %v4062
  %4204 = vmatprep.subr.mxu0 0.0
  %4205 = vmatpush1.msra.mxu0 %v4065
  %4206 = vmatprep.subr.mxu0 0.0
  %4207 = vmatpush1.msra.mxu0 %v4068
  %4208 = vmatprep.subr.mxu0 0.0
  %4209 = vmatpush1.msra.mxu0 %v4071
  %4210 = vmatprep.subr.mxu0 0.0
  %4211 = vmatpush1.msra.mxu0 %v4074
  %4212 = vmatprep.subr.mxu0 0.0
  %4213 = vmatpush1.msra.mxu0 %v4077
  %4214 = vmatprep.subr.mxu0 0.0
  %4215 = vmatpush1.msra.mxu0 %v4080
  %4216 = vmatprep.subr.mxu0 0.0
  %4217 = vmatpush1.msra.mxu0 %v4083
  %4218 = vmatprep.subr.mxu0 0.0
  %4219 = vmatpush1.msra.mxu0 %v4086
  %4220 = vmatprep.subr.mxu0 0.0
  %4221 = vmatpush1.msra.mxu0 %v4089
  %4222 = vmatprep.subr.mxu0 0.0
  %4223 = vmatpush1.msra.mxu0 %v4092
  %4224 = vmatprep.subr.mxu0 0.0
  %4225 = vmatpush1.msra.mxu0 %v4095
  %4226 = vmatprep.subr.mxu0 0.0
  %4227 = vmatpush1.msra.mxu0 %v4098
  %4228 = vmatprep.subr.mxu0 0.0
  %4229 = vmatpush1.msra.mxu0 %v4101
  %4230 = vmatprep.subr.mxu0 0.0
  %4231 = vmatpush1.msra.mxu0 %v4104
  %4232 = vmatprep.subr.mxu0 0.0
  %4233 = vmatpush1.msra.mxu0 0.0
  %4234 = vmatprep.subr.mxu0 0.0
  %4235 = vmatpush1.msra.mxu0 0.0
  %4236 = vmatprep.subr.mxu0 0.0
  %4237 = vmatpush1.msra.mxu0 0.0
  %4238 = vmatprep.subr.mxu0 0.0
  %4239 = vmatpush1.msra.mxu0 0.0
  %4240 = vmatprep.subr.mxu0 0.0
  %4241 = vmatpush1.msra.mxu0 0.0
  %4242 = vmatprep.subr.mxu0 0.0
  %4243 = vmatpush1.msra.mxu0 0.0
  %4244 = vmatprep.subr.mxu0 0.0
  %4245 = vmatpush1.msra.mxu0 0.0
  %4246 = vmatprep.subr.mxu0 0.0
  %4247 = vmatpush1.msra.mxu0 0.0
  %4248 = vmatprep.subr.mxu0 0.0
  %4249 = vmatpush1.msra.mxu0 0.0
  %4250 = vmatprep.subr.mxu0 0.0
  %4251 = vmatpush1.msra.mxu0 0.0
  %4252 = vmatprep.subr.mxu0 0.0
  %4253 = vmatpush1.msra.mxu0 0.0
  %4254 = vmatprep.subr.mxu0 0.0
  %4255 = vmatpush1.msra.mxu0 0.0
  %4256 = vmatprep.subr.mxu0 0.0
  %4257 = vmatpush1.msra.mxu0 0.0
  %4258 = vmatprep.subr.mxu0 0.0
  %4259 = vmatpush1.msra.mxu0 0.0
  %4260 = vmatprep.subr.mxu0 0.0
  %4261 = vmatpush1.msra.mxu0 0.0
  %4262 = vmatprep.subr.mxu0 0.0
  %4263 = vmatpush1.msra.mxu0 0.0
  %4264 = vmatprep.mubr.f32.mxu0 0.0
  %4265 = vmatmul.mubr.f32.gmra.mrb[0].mxu0 %v4054
  %v4266 = vpop.f32.mrb[0].mxu0
  %v4267 = vadd.f32 %v4119, %v4266
  %v4268 = vpop.f32.mrb[0].mxu0
  %4269 = vmatprep.mubr.f32.mxu0 0.0
  %4270 = vmatmul.mubr.f32.gmra.mrb[0].mxu0 %v4055
  %v4271 = vpop.f32.mrb[0].mxu0
  %v4272 = vadd.f32 %v4119, %v4271
  %v4273 = vpop.f32.mrb[0].mxu0
  %4274 = vdwg.mxu0
  %v4276 = vsel %vm378, %v4190, 0
  %v4279 = vsel %vm378, %v4192, 0
  %4281 = vmatprep.subr.mxu0 0.0
  %4282 = vmatpush1.xpose.msra.mxu0 %v4279
  %4283 = vmatprep.subr.mxu0 0.0
  %4284 = vmatpush1.xpose.msra.mxu0 0.0
  %4285 = vmatprep.subr.mxu0 0.0
  %4286 = vmatpush1.xpose.msra.mxu0 0.0
  %4287 = vmatprep.subr.mxu0 0.0
  %4288 = vmatpush1.xpose.msra.mxu0 0.0
  %4289 = vmatprep.subr.mxu0 0.0
  %4290 = vmatpush1.xpose.msra.mxu0 0.0
  %4291 = vmatprep.subr.mxu0 0.0
  %4292 = vmatpush1.xpose.msra.mxu0 0.0
  %4293 = vmatprep.subr.mxu0 0.0
  %4294 = vmatpush1.xpose.msra.mxu0 0.0
  %4295 = vmatprep.subr.mxu0 0.0
  %4296 = vmatpush1.xpose.msra.mxu0 0.0
  %4297 = vmatprep.subr.mxu0 0.0
  %4298 = vmatpush1.xpose.msra.mxu0 0.0
  %4299 = vmatprep.subr.mxu0 0.0
  %4300 = vmatpush1.xpose.msra.mxu0 0.0
  %4301 = vmatprep.subr.mxu0 0.0
  %4302 = vmatpush1.xpose.msra.mxu0 0.0
  %4303 = vmatprep.subr.mxu0 0.0
  %4304 = vmatpush1.xpose.msra.mxu0 0.0
  %4305 = vmatprep.subr.mxu0 0.0
  %4306 = vmatpush1.xpose.msra.mxu0 0.0
  %4307 = vmatprep.subr.mxu0 0.0
  %4308 = vmatpush1.xpose.msra.mxu0 0.0
  %4309 = vmatprep.subr.mxu0 0.0
  %4310 = vmatpush1.xpose.msra.mxu0 0.0
  %4311 = vmatprep.subr.mxu0 0.0
  %4312 = vmatpush1.xpose.msra.mxu0 0.0
  %4313 = vmatprep.subr.mxu0 0.0
  %4314 = vmatpush1.xpose.msra.mxu0 0.0
  %4315 = vmatprep.subr.mxu0 0.0
  %4316 = vmatpush1.xpose.msra.mxu0 0.0
  %4317 = vmatprep.subr.mxu0 0.0
  %4318 = vmatpush1.xpose.msra.mxu0 0.0
  %4319 = vmatprep.subr.mxu0 0.0
  %4320 = vmatpush1.xpose.msra.mxu0 0.0
  %4321 = vmatprep.subr.mxu0 0.0
  %4322 = vmatpush1.xpose.msra.mxu0 0.0
  %4323 = vmatprep.subr.mxu0 0.0
  %4324 = vmatpush1.xpose.msra.mxu0 0.0
  %4325 = vmatprep.subr.mxu0 0.0
  %4326 = vmatpush1.xpose.msra.mxu0 0.0
  %4327 = vmatprep.subr.mxu0 0.0
  %4328 = vmatpush1.xpose.msra.mxu0 0.0
  %4329 = vmatprep.subr.mxu0 0.0
  %4330 = vmatpush1.xpose.msra.mxu0 0.0
  %4331 = vmatprep.subr.mxu0 0.0
  %4332 = vmatpush1.xpose.msra.mxu0 0.0
  %4333 = vmatprep.subr.mxu0 0.0
  %4334 = vmatpush1.xpose.msra.mxu0 0.0
  %4335 = vmatprep.subr.mxu0 0.0
  %4336 = vmatpush1.xpose.msra.mxu0 0.0
  %4337 = vmatprep.subr.mxu0 0.0
  %4338 = vmatpush1.xpose.msra.mxu0 0.0
  %4339 = vmatprep.subr.mxu0 0.0
  %4340 = vmatpush1.xpose.msra.mxu0 0.0
  %4341 = vmatprep.subr.mxu0 0.0
  %4342 = vmatpush1.xpose.msra.mxu0 0.0
  %4343 = vmatprep.subr.mxu0 0.0
  %4344 = vmatpush1.xpose.msra.mxu0 0.0
  %4345 = vmatprep.mubr.f32.mxu0 0.0
  %4346 = vmatmul.mubr.f32.gmra.mrb[0].mxu0 %v4276
  %v4347 = vpop.f32.mrb[0].mxu0
  %v4348 = vadd.f32 %v154, %v4347
  %v4349 = vpop.f32.mrb[0].mxu0
  %4350 = vdwg.mxu0
  %v4352 = vsel %vm378, %v4196, 0
  %v4355 = vsel %vm378, %v4198, 0
  %4357 = vmatprep.subr.mxu0 0.0
  %4358 = vmatpush1.xpose.msra.mxu0 %v4355
  %4359 = vmatprep.subr.mxu0 0.0
  %4360 = vmatpush1.xpose.msra.mxu0 0.0
  %4361 = vmatprep.subr.mxu0 0.0
  %4362 = vmatpush1.xpose.msra.mxu0 0.0
  %4363 = vmatprep.subr.mxu0 0.0
  %4364 = vmatpush1.xpose.msra.mxu0 0.0
  %4365 = vmatprep.subr.mxu0 0.0
  %4366 = vmatpush1.xpose.msra.mxu0 0.0
  %4367 = vmatprep.subr.mxu0 0.0
  %4368 = vmatpush1.xpose.msra.mxu0 0.0
  %4369 = vmatprep.subr.mxu0 0.0
  %4370 = vmatpush1.xpose.msra.mxu0 0.0
  %4371 = vmatprep.subr.mxu0 0.0
  %4372 = vmatpush1.xpose.msra.mxu0 0.0
  %4373 = vmatprep.subr.mxu0 0.0
  %4374 = vmatpush1.xpose.msra.mxu0 0.0
  %4375 = vmatprep.subr.mxu0 0.0
  %4376 = vmatpush1.xpose.msra.mxu0 0.0
  %4377 = vmatprep.subr.mxu0 0.0
  %4378 = vmatpush1.xpose.msra.mxu0 0.0
  %4379 = vmatprep.subr.mxu0 0.0
  %4380 = vmatpush1.xpose.msra.mxu0 0.0
  %4381 = vmatprep.subr.mxu0 0.0
  %4382 = vmatpush1.xpose.msra.mxu0 0.0
  %4383 = vmatprep.subr.mxu0 0.0
  %4384 = vmatpush1.xpose.msra.mxu0 0.0
  %4385 = vmatprep.subr.mxu0 0.0
  %4386 = vmatpush1.xpose.msra.mxu0 0.0
  %4387 = vmatprep.subr.mxu0 0.0
  %4388 = vmatpush1.xpose.msra.mxu0 0.0
  %4389 = vmatprep.subr.mxu0 0.0
  %4390 = vmatpush1.xpose.msra.mxu0 0.0
  %4391 = vmatprep.subr.mxu0 0.0
  %4392 = vmatpush1.xpose.msra.mxu0 0.0
  %4393 = vmatprep.subr.mxu0 0.0
  %4394 = vmatpush1.xpose.msra.mxu0 0.0
  %4395 = vmatprep.subr.mxu0 0.0
  %4396 = vmatpush1.xpose.msra.mxu0 0.0
  %4397 = vmatprep.subr.mxu0 0.0
  %4398 = vmatpush1.xpose.msra.mxu0 0.0
  %4399 = vmatprep.subr.mxu0 0.0
  %4400 = vmatpush1.xpose.msra.mxu0 0.0
  %4401 = vmatprep.subr.mxu0 0.0
  %4402 = vmatpush1.xpose.msra.mxu0 0.0
  %4403 = vmatprep.subr.mxu0 0.0
  %4404 = vmatpush1.xpose.msra.mxu0 0.0
  %4405 = vmatprep.subr.mxu0 0.0
  %4406 = vmatpush1.xpose.msra.mxu0 0.0
  %4407 = vmatprep.subr.mxu0 0.0
  %4408 = vmatpush1.xpose.msra.mxu0 0.0
  %4409 = vmatprep.subr.mxu0 0.0
  %4410 = vmatpush1.xpose.msra.mxu0 0.0
  %4411 = vmatprep.subr.mxu0 0.0
  %4412 = vmatpush1.xpose.msra.mxu0 0.0
  %4413 = vmatprep.subr.mxu0 0.0
  %4414 = vmatpush1.xpose.msra.mxu0 0.0
  %4415 = vmatprep.subr.mxu0 0.0
  %4416 = vmatpush1.xpose.msra.mxu0 0.0
  %4417 = vmatprep.subr.mxu0 0.0
  %4418 = vmatpush1.xpose.msra.mxu0 0.0
  %4419 = vmatprep.subr.mxu0 0.0
  %4420 = vmatpush1.xpose.msra.mxu0 0.0
  %4421 = vmatprep.mubr.f32.mxu0 0.0
  %4422 = vmatmul.mubr.f32.gmra.mrb[0].mxu0 %v4352
  %v4423 = vpop.f32.mrb[0].mxu0
  %v4424 = vadd.f32 %v158, %v4423
  %v4425 = vpop.f32.mrb[0].mxu0
  %4426 = vdwg.mxu0
  %v4427 = vsel %vm531, %v4348, -inf
  %4428 = vmax.xlane.f32.xlu0 %v4427
  %v4429 = vpop.xlane.xlu0 %4428
  %v4430 = vsel %vm531, %v4424, -inf
  %4431 = vmax.xlane.f32.xlu0 %v4430
  %v4432 = vpop.xlane.xlu0 %4431
  %v4433 = vsub.f32 %v4348, %v4429
  %v4434 = vsub.f32 %v4424, %v4432
  %v4435 = vmul.f32 %v4433, 1.442695
  %v4436 = vpow.pop %v4435
  %v4437 = vmul.f32 %v4434, 1.442695
  %v4438 = vpow.pop %v4437
  %v4439 = vsel %vm531, %v4436, 0.0
  %4440 = vadd.xlane.f32.xlu0 %v4439
  %v4441 = vpop.xlane.xlu0 %4440
  %v4442 = vsel %vm531, %v4438, 0.0
  %4443 = vadd.xlane.f32.xlu0 %v4442
  %v4444 = vpop.xlane.xlu0 %4443
  %v4445 = vrcp.pop %v4441
  %v4446 = vmul.f32 %v4436, %v4445
  %v4447 = vrcp.pop %v4444
  %v4448 = vmul.f32 %v4438, %v4447
  %v4450 = vsel %vm531, %v4446, 0
  %4452 = vmatprep.subr.mxu0 0.0
  %4453 = vmatpush1.msra.mxu0 %v4267
  %4454 = vmatprep.subr.mxu0 0.0
  %4455 = vmatpush1.msra.mxu0 0.0
  %4456 = vmatprep.subr.mxu0 0.0
  %4457 = vmatpush1.msra.mxu0 0.0
  %4458 = vmatprep.subr.mxu0 0.0
  %4459 = vmatpush1.msra.mxu0 0.0
  %4460 = vmatprep.subr.mxu0 0.0
  %4461 = vmatpush1.msra.mxu0 0.0
  %4462 = vmatprep.subr.mxu0 0.0
  %4463 = vmatpush1.msra.mxu0 0.0
  %4464 = vmatprep.subr.mxu0 0.0
  %4465 = vmatpush1.msra.mxu0 0.0
  %4466 = vmatprep.subr.mxu0 0.0
  %4467 = vmatpush1.msra.mxu0 0.0
  %4468 = vmatprep.subr.mxu0 0.0
  %4469 = vmatpush1.msra.mxu0 0.0
  %4470 = vmatprep.subr.mxu0 0.0
  %4471 = vmatpush1.msra.mxu0 0.0
  %4472 = vmatprep.subr.mxu0 0.0
  %4473 = vmatpush1.msra.mxu0 0.0
  %4474 = vmatprep.subr.mxu0 0.0
  %4475 = vmatpush1.msra.mxu0 0.0
  %4476 = vmatprep.subr.mxu0 0.0
  %4477 = vmatpush1.msra.mxu0 0.0
  %4478 = vmatprep.subr.mxu0 0.0
  %4479 = vmatpush1.msra.mxu0 0.0
  %4480 = vmatprep.subr.mxu0 0.0
  %4481 = vmatpush1.msra.mxu0 0.0
  %4482 = vmatprep.subr.mxu0 0.0
  %4483 = vmatpush1.msra.mxu0 0.0
  %4484 = vmatprep.subr.mxu0 0.0
  %4485 = vmatpush1.msra.mxu0 0.0
  %4486 = vmatprep.subr.mxu0 0.0
  %4487 = vmatpush1.msra.mxu0 0.0
  %4488 = vmatprep.subr.mxu0 0.0
  %4489 = vmatpush1.msra.mxu0 0.0
  %4490 = vmatprep.subr.mxu0 0.0
  %4491 = vmatpush1.msra.mxu0 0.0
  %4492 = vmatprep.subr.mxu0 0.0
  %4493 = vmatpush1.msra.mxu0 0.0
  %4494 = vmatprep.subr.mxu0 0.0
  %4495 = vmatpush1.msra.mxu0 0.0
  %4496 = vmatprep.subr.mxu0 0.0
  %4497 = vmatpush1.msra.mxu0 0.0
  %4498 = vmatprep.subr.mxu0 0.0
  %4499 = vmatpush1.msra.mxu0 0.0
  %4500 = vmatprep.subr.mxu0 0.0
  %4501 = vmatpush1.msra.mxu0 0.0
  %4502 = vmatprep.subr.mxu0 0.0
  %4503 = vmatpush1.msra.mxu0 0.0
  %4504 = vmatprep.subr.mxu0 0.0
  %4505 = vmatpush1.msra.mxu0 0.0
  %4506 = vmatprep.subr.mxu0 0.0
  %4507 = vmatpush1.msra.mxu0 0.0
  %4508 = vmatprep.subr.mxu0 0.0
  %4509 = vmatpush1.msra.mxu0 0.0
  %4510 = vmatprep.subr.mxu0 0.0
  %4511 = vmatpush1.msra.mxu0 0.0
  %4512 = vmatprep.subr.mxu0 0.0
  %4513 = vmatpush1.msra.mxu0 0.0
  %4514 = vmatprep.subr.mxu0 0.0
  %4515 = vmatpush1.msra.mxu0 0.0
  %4516 = vmatprep.mubr.f32.mxu0 0.0
  %4517 = vmatmul.mubr.f32.gmra.mrb[0].mxu0 %v4450
  %v4518 = vpop.f32.mrb[0].mxu0
  %v4519 = vadd.f32 0.0, %v4518
  %v4520 = vpop.f32.mrb[0].mxu0
  %4521 = vdwg.mxu0
  %v4523 = vsel %vm531, %v4448, 0
  %4525 = vmatprep.subr.mxu0 0.0
  %4526 = vmatpush1.msra.mxu0 %v4272
  %4527 = vmatprep.subr.mxu0 0.0
  %4528 = vmatpush1.msra.mxu0 0.0
  %4529 = vmatprep.subr.mxu0 0.0
  %4530 = vmatpush1.msra.mxu0 0.0
  %4531 = vmatprep.subr.mxu0 0.0
  %4532 = vmatpush1.msra.mxu0 0.0
  %4533 = vmatprep.subr.mxu0 0.0
  %4534 = vmatpush1.msra.mxu0 0.0
  %4535 = vmatprep.subr.mxu0 0.0
  %4536 = vmatpush1.msra.mxu0 0.0
  %4537 = vmatprep.subr.mxu0 0.0
  %4538 = vmatpush1.msra.mxu0 0.0
  %4539 = vmatprep.subr.mxu0 0.0
  %4540 = vmatpush1.msra.mxu0 0.0
  %4541 = vmatprep.subr.mxu0 0.0
  %4542 = vmatpush1.msra.mxu0 0.0
  %4543 = vmatprep.subr.mxu0 0.0
  %4544 = vmatpush1.msra.mxu0 0.0
  %4545 = vmatprep.subr.mxu0 0.0
  %4546 = vmatpush1.msra.mxu0 0.0
  %4547 = vmatprep.subr.mxu0 0.0
  %4548 = vmatpush1.msra.mxu0 0.0
  %4549 = vmatprep.subr.mxu0 0.0
  %4550 = vmatpush1.msra.mxu0 0.0
  %4551 = vmatprep.subr.mxu0 0.0
  %4552 = vmatpush1.msra.mxu0 0.0
  %4553 = vmatprep.subr.mxu0 0.0
  %4554 = vmatpush1.msra.mxu0 0.0
  %4555 = vmatprep.subr.mxu0 0.0
  %4556 = vmatpush1.msra.mxu0 0.0
  %4557 = vmatprep.subr.mxu0 0.0
  %4558 = vmatpush1.msra.mxu0 0.0
  %4559 = vmatprep.subr.mxu0 0.0
  %4560 = vmatpush1.msra.mxu0 0.0
  %4561 = vmatprep.subr.mxu0 0.0
  %4562 = vmatpush1.msra.mxu0 0.0
  %4563 = vmatprep.subr.mxu0 0.0
  %4564 = vmatpush1.msra.mxu0 0.0
  %4565 = vmatprep.subr.mxu0 0.0
  %4566 = vmatpush1.msra.mxu0 0.0
  %4567 = vmatprep.subr.mxu0 0.0
  %4568 = vmatpush1.msra.mxu0 0.0
  %4569 = vmatprep.subr.mxu0 0.0
  %4570 = vmatpush1.msra.mxu0 0.0
  %4571 = vmatprep.subr.mxu0 0.0
  %4572 = vmatpush1.msra.mxu0 0.0
  %4573 = vmatprep.subr.mxu0 0.0
  %4574 = vmatpush1.msra.mxu0 0.0
  %4575 = vmatprep.subr.mxu0 0.0
  %4576 = vmatpush1.msra.mxu0 0.0
  %4577 = vmatprep.subr.mxu0 0.0
  %4578 = vmatpush1.msra.mxu0 0.0
  %4579 = vmatprep.subr.mxu0 0.0
  %4580 = vmatpush1.msra.mxu0 0.0
  %4581 = vmatprep.subr.mxu0 0.0
  %4582 = vmatpush1.msra.mxu0 0.0
  %4583 = vmatprep.subr.mxu0 0.0
  %4584 = vmatpush1.msra.mxu0 0.0
  %4585 = vmatprep.subr.mxu0 0.0
  %4586 = vmatpush1.msra.mxu0 0.0
  %4587 = vmatprep.subr.mxu0 0.0
  %4588 = vmatpush1.msra.mxu0 0.0
  %4589 = vmatprep.mubr.f32.mxu0 0.0
  %4590 = vmatmul.mubr.f32.gmra.mrb[0].mxu0 %v4523
  %v4591 = vpop.f32.mrb[0].mxu0
  %v4592 = vadd.f32 0.0, %v4591
  %v4593 = vpop.f32.mrb[0].mxu0
  %4594 = vdwg.mxu0
  %4595 = vrot.lane.b32.xlu0 %v4190, 96
  %v4596 = vpop.permute.xlu0 %4595
  %4597 = vrot.lane.b32.xlu0 %v4192, 96
  %v4598 = vpop.permute.xlu0 %4597
  %v4599 = vsel %vm378, %v4596, 0
  %v4601 = vsel %vm378, %v4598, 0
  %4603 = vmatprep.subr.mxu0 0.0
  %4604 = vmatpush1.xpose.msra.mxu0 %v4601
  %4605 = vmatprep.subr.mxu0 0.0
  %4606 = vmatpush1.xpose.msra.mxu0 0.0
  %4607 = vmatprep.subr.mxu0 0.0
  %4608 = vmatpush1.xpose.msra.mxu0 0.0
  %4609 = vmatprep.subr.mxu0 0.0
  %4610 = vmatpush1.xpose.msra.mxu0 0.0
  %4611 = vmatprep.subr.mxu0 0.0
  %4612 = vmatpush1.xpose.msra.mxu0 0.0
  %4613 = vmatprep.subr.mxu0 0.0
  %4614 = vmatpush1.xpose.msra.mxu0 0.0
  %4615 = vmatprep.subr.mxu0 0.0
  %4616 = vmatpush1.xpose.msra.mxu0 0.0
  %4617 = vmatprep.subr.mxu0 0.0
  %4618 = vmatpush1.xpose.msra.mxu0 0.0
  %4619 = vmatprep.subr.mxu0 0.0
  %4620 = vmatpush1.xpose.msra.mxu0 0.0
  %4621 = vmatprep.subr.mxu0 0.0
  %4622 = vmatpush1.xpose.msra.mxu0 0.0
  %4623 = vmatprep.subr.mxu0 0.0
  %4624 = vmatpush1.xpose.msra.mxu0 0.0
  %4625 = vmatprep.subr.mxu0 0.0
  %4626 = vmatpush1.xpose.msra.mxu0 0.0
  %4627 = vmatprep.subr.mxu0 0.0
  %4628 = vmatpush1.xpose.msra.mxu0 0.0
  %4629 = vmatprep.subr.mxu0 0.0
  %4630 = vmatpush1.xpose.msra.mxu0 0.0
  %4631 = vmatprep.subr.mxu0 0.0
  %4632 = vmatpush1.xpose.msra.mxu0 0.0
  %4633 = vmatprep.subr.mxu0 0.0
  %4634 = vmatpush1.xpose.msra.mxu0 0.0
  %4635 = vmatprep.subr.mxu0 0.0
  %4636 = vmatpush1.xpose.msra.mxu0 0.0
  %4637 = vmatprep.subr.mxu0 0.0
  %4638 = vmatpush1.xpose.msra.mxu0 0.0
  %4639 = vmatprep.subr.mxu0 0.0
  %4640 = vmatpush1.xpose.msra.mxu0 0.0
  %4641 = vmatprep.subr.mxu0 0.0
  %4642 = vmatpush1.xpose.msra.mxu0 0.0
  %4643 = vmatprep.subr.mxu0 0.0
  %4644 = vmatpush1.xpose.msra.mxu0 0.0
  %4645 = vmatprep.subr.mxu0 0.0
  %4646 = vmatpush1.xpose.msra.mxu0 0.0
  %4647 = vmatprep.subr.mxu0 0.0
  %4648 = vmatpush1.xpose.msra.mxu0 0.0
  %4649 = vmatprep.subr.mxu0 0.0
  %4650 = vmatpush1.xpose.msra.mxu0 0.0
  %4651 = vmatprep.subr.mxu0 0.0
  %4652 = vmatpush1.xpose.msra.mxu0 0.0
  %4653 = vmatprep.subr.mxu0 0.0
  %4654 = vmatpush1.xpose.msra.mxu0 0.0
  %4655 = vmatprep.subr.mxu0 0.0
  %4656 = vmatpush1.xpose.msra.mxu0 0.0
  %4657 = vmatprep.subr.mxu0 0.0
  %4658 = vmatpush1.xpose.msra.mxu0 0.0
  %4659 = vmatprep.subr.mxu0 0.0
  %4660 = vmatpush1.xpose.msra.mxu0 0.0
  %4661 = vmatprep.subr.mxu0 0.0
  %4662 = vmatpush1.xpose.msra.mxu0 0.0
  %4663 = vmatprep.subr.mxu0 0.0
  %4664 = vmatpush1.xpose.msra.mxu0 0.0
  %4665 = vmatprep.subr.mxu0 0.0
  %4666 = vmatpush1.xpose.msra.mxu0 0.0
  %4667 = vmatprep.mubr.f32.mxu0 0.0
  %4668 = vmatmul.mubr.f32.gmra.mrb[0].mxu0 %v4599
  %v4669 = vpop.f32.mrb[0].mxu0
  %v4670 = vadd.f32 %v154, %v4669
  %v4671 = vpop.f32.mrb[0].mxu0
  %4672 = vdwg.mxu0
  %4673 = vrot.lane.b32.xlu0 %v4196, 96
  %v4674 = vpop.permute.xlu0 %4673
  %4675 = vrot.lane.b32.xlu0 %v4198, 96
  %v4676 = vpop.permute.xlu0 %4675
  %v4677 = vsel %vm378, %v4674, 0
  %v4679 = vsel %vm378, %v4676, 0
  %4681 = vmatprep.subr.mxu0 0.0
  %4682 = vmatpush1.xpose.msra.mxu0 %v4679
  %4683 = vmatprep.subr.mxu0 0.0
  %4684 = vmatpush1.xpose.msra.mxu0 0.0
  %4685 = vmatprep.subr.mxu0 0.0
  %4686 = vmatpush1.xpose.msra.mxu0 0.0
  %4687 = vmatprep.subr.mxu0 0.0
  %4688 = vmatpush1.xpose.msra.mxu0 0.0
  %4689 = vmatprep.subr.mxu0 0.0
  %4690 = vmatpush1.xpose.msra.mxu0 0.0
  %4691 = vmatprep.subr.mxu0 0.0
  %4692 = vmatpush1.xpose.msra.mxu0 0.0
  %4693 = vmatprep.subr.mxu0 0.0
  %4694 = vmatpush1.xpose.msra.mxu0 0.0
  %4695 = vmatprep.subr.mxu0 0.0
  %4696 = vmatpush1.xpose.msra.mxu0 0.0
  %4697 = vmatprep.subr.mxu0 0.0
  %4698 = vmatpush1.xpose.msra.mxu0 0.0
  %4699 = vmatprep.subr.mxu0 0.0
  %4700 = vmatpush1.xpose.msra.mxu0 0.0
  %4701 = vmatprep.subr.mxu0 0.0
  %4702 = vmatpush1.xpose.msra.mxu0 0.0
  %4703 = vmatprep.subr.mxu0 0.0
  %4704 = vmatpush1.xpose.msra.mxu0 0.0
  %4705 = vmatprep.subr.mxu0 0.0
  %4706 = vmatpush1.xpose.msra.mxu0 0.0
  %4707 = vmatprep.subr.mxu0 0.0
  %4708 = vmatpush1.xpose.msra.mxu0 0.0
  %4709 = vmatprep.subr.mxu0 0.0
  %4710 = vmatpush1.xpose.msra.mxu0 0.0
  %4711 = vmatprep.subr.mxu0 0.0
  %4712 = vmatpush1.xpose.msra.mxu0 0.0
  %4713 = vmatprep.subr.mxu0 0.0
  %4714 = vmatpush1.xpose.msra.mxu0 0.0
  %4715 = vmatprep.subr.mxu0 0.0
  %4716 = vmatpush1.xpose.msra.mxu0 0.0
  %4717 = vmatprep.subr.mxu0 0.0
  %4718 = vmatpush1.xpose.msra.mxu0 0.0
  %4719 = vmatprep.subr.mxu0 0.0
  %4720 = vmatpush1.xpose.msra.mxu0 0.0
  %4721 = vmatprep.subr.mxu0 0.0
  %4722 = vmatpush1.xpose.msra.mxu0 0.0
  %4723 = vmatprep.subr.mxu0 0.0
  %4724 = vmatpush1.xpose.msra.mxu0 0.0
  %4725 = vmatprep.subr.mxu0 0.0
  %4726 = vmatpush1.xpose.msra.mxu0 0.0
  %4727 = vmatprep.subr.mxu0 0.0
  %4728 = vmatpush1.xpose.msra.mxu0 0.0
  %4729 = vmatprep.subr.mxu0 0.0
  %4730 = vmatpush1.xpose.msra.mxu0 0.0
  %4731 = vmatprep.subr.mxu0 0.0
  %4732 = vmatpush1.xpose.msra.mxu0 0.0
  %4733 = vmatprep.subr.mxu0 0.0
  %4734 = vmatpush1.xpose.msra.mxu0 0.0
  %4735 = vmatprep.subr.mxu0 0.0
  %4736 = vmatpush1.xpose.msra.mxu0 0.0
  %4737 = vmatprep.subr.mxu0 0.0
  %4738 = vmatpush1.xpose.msra.mxu0 0.0
  %4739 = vmatprep.subr.mxu0 0.0
  %4740 = vmatpush1.xpose.msra.mxu0 0.0
  %4741 = vmatprep.subr.mxu0 0.0
  %4742 = vmatpush1.xpose.msra.mxu0 0.0
  %4743 = vmatprep.subr.mxu0 0.0
  %4744 = vmatpush1.xpose.msra.mxu0 0.0
  %4745 = vmatprep.mubr.f32.mxu0 0.0
  %4746 = vmatmul.mubr.f32.gmra.mrb[0].mxu0 %v4677
  %v4747 = vpop.f32.mrb[0].mxu0
  %v4748 = vadd.f32 %v158, %v4747
  %v4749 = vpop.f32.mrb[0].mxu0
  %4750 = vdwg.mxu0
  %v4751 = vsel %vm531, %v4670, -inf
  %4752 = vmax.xlane.f32.xlu0 %v4751
  %v4753 = vpop.xlane.xlu0 %4752
  %v4754 = vsel %vm531, %v4748, -inf
  %4755 = vmax.xlane.f32.xlu0 %v4754
  %v4756 = vpop.xlane.xlu0 %4755
  %v4757 = vsub.f32 %v4670, %v4753
  %v4758 = vsub.f32 %v4748, %v4756
  %v4759 = vmul.f32 %v4757, 1.442695
  %v4760 = vpow.pop %v4759
  %v4761 = vmul.f32 %v4758, 1.442695
  %v4762 = vpow.pop %v4761
  %v4763 = vsel %vm531, %v4760, 0.0
  %4764 = vadd.xlane.f32.xlu0 %v4763
  %v4765 = vpop.xlane.xlu0 %4764
  %v4766 = vsel %vm531, %v4762, 0.0
  %4767 = vadd.xlane.f32.xlu0 %v4766
  %v4768 = vpop.xlane.xlu0 %4767
  %v4769 = vrcp.pop %v4765
  %v4770 = vmul.f32 %v4760, %v4769
  %v4771 = vrcp.pop %v4768
  %v4772 = vmul.f32 %v4762, %v4771
  %4774 = vrot.lane.b32.xlu0 %v4267, 96
  %v4775 = vpop.permute.xlu0 %4774
  %v4778 = vsel %vm531, %v4770, 0
  %4780 = vmatprep.subr.mxu0 0.0
  %4781 = vmatpush1.msra.mxu0 %v4775
  %4782 = vmatprep.subr.mxu0 0.0
  %4783 = vmatpush1.msra.mxu0 0.0
  %4784 = vmatprep.subr.mxu0 0.0
  %4785 = vmatpush1.msra.mxu0 0.0
  %4786 = vmatprep.subr.mxu0 0.0
  %4787 = vmatpush1.msra.mxu0 0.0
  %4788 = vmatprep.subr.mxu0 0.0
  %4789 = vmatpush1.msra.mxu0 0.0
  %4790 = vmatprep.subr.mxu0 0.0
  %4791 = vmatpush1.msra.mxu0 0.0
  %4792 = vmatprep.subr.mxu0 0.0
  %4793 = vmatpush1.msra.mxu0 0.0
  %4794 = vmatprep.subr.mxu0 0.0
  %4795 = vmatpush1.msra.mxu0 0.0
  %4796 = vmatprep.subr.mxu0 0.0
  %4797 = vmatpush1.msra.mxu0 0.0
  %4798 = vmatprep.subr.mxu0 0.0
  %4799 = vmatpush1.msra.mxu0 0.0
  %4800 = vmatprep.subr.mxu0 0.0
  %4801 = vmatpush1.msra.mxu0 0.0
  %4802 = vmatprep.subr.mxu0 0.0
  %4803 = vmatpush1.msra.mxu0 0.0
  %4804 = vmatprep.subr.mxu0 0.0
  %4805 = vmatpush1.msra.mxu0 0.0
  %4806 = vmatprep.subr.mxu0 0.0
  %4807 = vmatpush1.msra.mxu0 0.0
  %4808 = vmatprep.subr.mxu0 0.0
  %4809 = vmatpush1.msra.mxu0 0.0
  %4810 = vmatprep.subr.mxu0 0.0
  %4811 = vmatpush1.msra.mxu0 0.0
  %4812 = vmatprep.subr.mxu0 0.0
  %4813 = vmatpush1.msra.mxu0 0.0
  %4814 = vmatprep.subr.mxu0 0.0
  %4815 = vmatpush1.msra.mxu0 0.0
  %4816 = vmatprep.subr.mxu0 0.0
  %4817 = vmatpush1.msra.mxu0 0.0
  %4818 = vmatprep.subr.mxu0 0.0
  %4819 = vmatpush1.msra.mxu0 0.0
  %4820 = vmatprep.subr.mxu0 0.0
  %4821 = vmatpush1.msra.mxu0 0.0
  %4822 = vmatprep.subr.mxu0 0.0
  %4823 = vmatpush1.msra.mxu0 0.0
  %4824 = vmatprep.subr.mxu0 0.0
  %4825 = vmatpush1.msra.mxu0 0.0
  %4826 = vmatprep.subr.mxu0 0.0
  %4827 = vmatpush1.msra.mxu0 0.0
  %4828 = vmatprep.subr.mxu0 0.0
  %4829 = vmatpush1.msra.mxu0 0.0
  %4830 = vmatprep.subr.mxu0 0.0
  %4831 = vmatpush1.msra.mxu0 0.0
  %4832 = vmatprep.subr.mxu0 0.0
  %4833 = vmatpush1.msra.mxu0 0.0
  %4834 = vmatprep.subr.mxu0 0.0
  %4835 = vmatpush1.msra.mxu0 0.0
  %4836 = vmatprep.subr.mxu0 0.0
  %4837 = vmatpush1.msra.mxu0 0.0
  %4838 = vmatprep.subr.mxu0 0.0
  %4839 = vmatpush1.msra.mxu0 0.0
  %4840 = vmatprep.subr.mxu0 0.0
  %4841 = vmatpush1.msra.mxu0 0.0
  %4842 = vmatprep.subr.mxu0 0.0
  %4843 = vmatpush1.msra.mxu0 0.0
  %4844 = vmatprep.mubr.f32.mxu0 0.0
  %4845 = vmatmul.mubr.f32.gmra.mrb[0].mxu0 %v4778
  %v4846 = vpop.f32.mrb[0].mxu0
  %v4847 = vadd.f32 0.0, %v4846
  %v4848 = vpop.f32.mrb[0].mxu0
  %4849 = vdwg.mxu0
  %4851 = vrot.lane.b32.xlu0 %v4272, 96
  %v4852 = vpop.permute.xlu0 %4851
  %v4855 = vsel %vm531, %v4772, 0
  %4857 = vmatprep.subr.mxu0 0.0
  %4858 = vmatpush1.msra.mxu0 %v4852
  %4859 = vmatprep.subr.mxu0 0.0
  %4860 = vmatpush1.msra.mxu0 0.0
  %4861 = vmatprep.subr.mxu0 0.0
  %4862 = vmatpush1.msra.mxu0 0.0
  %4863 = vmatprep.subr.mxu0 0.0
  %4864 = vmatpush1.msra.mxu0 0.0
  %4865 = vmatprep.subr.mxu0 0.0
  %4866 = vmatpush1.msra.mxu0 0.0
  %4867 = vmatprep.subr.mxu0 0.0
  %4868 = vmatpush1.msra.mxu0 0.0
  %4869 = vmatprep.subr.mxu0 0.0
  %4870 = vmatpush1.msra.mxu0 0.0
  %4871 = vmatprep.subr.mxu0 0.0
  %4872 = vmatpush1.msra.mxu0 0.0
  %4873 = vmatprep.subr.mxu0 0.0
  %4874 = vmatpush1.msra.mxu0 0.0
  %4875 = vmatprep.subr.mxu0 0.0
  %4876 = vmatpush1.msra.mxu0 0.0
  %4877 = vmatprep.subr.mxu0 0.0
  %4878 = vmatpush1.msra.mxu0 0.0
  %4879 = vmatprep.subr.mxu0 0.0
  %4880 = vmatpush1.msra.mxu0 0.0
  %4881 = vmatprep.subr.mxu0 0.0
  %4882 = vmatpush1.msra.mxu0 0.0
  %4883 = vmatprep.subr.mxu0 0.0
  %4884 = vmatpush1.msra.mxu0 0.0
  %4885 = vmatprep.subr.mxu0 0.0
  %4886 = vmatpush1.msra.mxu0 0.0
  %4887 = vmatprep.subr.mxu0 0.0
  %4888 = vmatpush1.msra.mxu0 0.0
  %4889 = vmatprep.subr.mxu0 0.0
  %4890 = vmatpush1.msra.mxu0 0.0
  %4891 = vmatprep.subr.mxu0 0.0
  %4892 = vmatpush1.msra.mxu0 0.0
  %4893 = vmatprep.subr.mxu0 0.0
  %4894 = vmatpush1.msra.mxu0 0.0
  %4895 = vmatprep.subr.mxu0 0.0
  %4896 = vmatpush1.msra.mxu0 0.0
  %4897 = vmatprep.subr.mxu0 0.0
  %4898 = vmatpush1.msra.mxu0 0.0
  %4899 = vmatprep.subr.mxu0 0.0
  %4900 = vmatpush1.msra.mxu0 0.0
  %4901 = vmatprep.subr.mxu0 0.0
  %4902 = vmatpush1.msra.mxu0 0.0
  %4903 = vmatprep.subr.mxu0 0.0
  %4904 = vmatpush1.msra.mxu0 0.0
  %4905 = vmatprep.subr.mxu0 0.0
  %4906 = vmatpush1.msra.mxu0 0.0
  %4907 = vmatprep.subr.mxu0 0.0
  %4908 = vmatpush1.msra.mxu0 0.0
  %4909 = vmatprep.subr.mxu0 0.0
  %4910 = vmatpush1.msra.mxu0 0.0
  %4911 = vmatprep.subr.mxu0 0.0
  %4912 = vmatpush1.msra.mxu0 0.0
  %4913 = vmatprep.subr.mxu0 0.0
  %4914 = vmatpush1.msra.mxu0 0.0
  %4915 = vmatprep.subr.mxu0 0.0
  %4916 = vmatpush1.msra.mxu0 0.0
  %4917 = vmatprep.subr.mxu0 0.0
  %4918 = vmatpush1.msra.mxu0 0.0
  %4919 = vmatprep.subr.mxu0 0.0
  %4920 = vmatpush1.msra.mxu0 0.0
  %4921 = vmatprep.mubr.f32.mxu0 0.0
  %4922 = vmatmul.mubr.f32.gmra.mrb[0].mxu0 %v4855
  %v4923 = vpop.f32.mrb[0].mxu0
  %v4924 = vadd.f32 0.0, %v4923
  %v4925 = vpop.f32.mrb[0].mxu0
  %4926 = vdwg.mxu0
  %4927 = vrot.lane.b32.xlu0 %v4190, 64
  %v4928 = vpop.permute.xlu0 %4927
  %4929 = vrot.lane.b32.xlu0 %v4192, 64
  %v4930 = vpop.permute.xlu0 %4929
  %v4931 = vsel %vm378, %v4928, 0
  %v4933 = vsel %vm378, %v4930, 0
  %4935 = vmatprep.subr.mxu0 0.0
  %4936 = vmatpush1.xpose.msra.mxu0 %v4933
  %4937 = vmatprep.subr.mxu0 0.0
  %4938 = vmatpush1.xpose.msra.mxu0 0.0
  %4939 = vmatprep.subr.mxu0 0.0
  %4940 = vmatpush1.xpose.msra.mxu0 0.0
  %4941 = vmatprep.subr.mxu0 0.0
  %4942 = vmatpush1.xpose.msra.mxu0 0.0
  %4943 = vmatprep.subr.mxu0 0.0
  %4944 = vmatpush1.xpose.msra.mxu0 0.0
  %4945 = vmatprep.subr.mxu0 0.0
  %4946 = vmatpush1.xpose.msra.mxu0 0.0
  %4947 = vmatprep.subr.mxu0 0.0
  %4948 = vmatpush1.xpose.msra.mxu0 0.0
  %4949 = vmatprep.subr.mxu0 0.0
  %4950 = vmatpush1.xpose.msra.mxu0 0.0
  %4951 = vmatprep.subr.mxu0 0.0
  %4952 = vmatpush1.xpose.msra.mxu0 0.0
  %4953 = vmatprep.subr.mxu0 0.0
  %4954 = vmatpush1.xpose.msra.mxu0 0.0
  %4955 = vmatprep.subr.mxu0 0.0
  %4956 = vmatpush1.xpose.msra.mxu0 0.0
  %4957 = vmatprep.subr.mxu0 0.0
  %4958 = vmatpush1.xpose.msra.mxu0 0.0
  %4959 = vmatprep.subr.mxu0 0.0
  %4960 = vmatpush1.xpose.msra.mxu0 0.0
  %4961 = vmatprep.subr.mxu0 0.0
  %4962 = vmatpush1.xpose.msra.mxu0 0.0
  %4963 = vmatprep.subr.mxu0 0.0
  %4964 = vmatpush1.xpose.msra.mxu0 0.0
  %4965 = vmatprep.subr.mxu0 0.0
  %4966 = vmatpush1.xpose.msra.mxu0 0.0
  %4967 = vmatprep.subr.mxu0 0.0
  %4968 = vmatpush1.xpose.msra.mxu0 0.0
  %4969 = vmatprep.subr.mxu0 0.0
  %4970 = vmatpush1.xpose.msra.mxu0 0.0
  %4971 = vmatprep.subr.mxu0 0.0
  %4972 = vmatpush1.xpose.msra.mxu0 0.0
  %4973 = vmatprep.subr.mxu0 0.0
  %4974 = vmatpush1.xpose.msra.mxu0 0.0
  %4975 = vmatprep.subr.mxu0 0.0
  %4976 = vmatpush1.xpose.msra.mxu0 0.0
  %4977 = vmatprep.subr.mxu0 0.0
  %4978 = vmatpush1.xpose.msra.mxu0 0.0
  %4979 = vmatprep.subr.mxu0 0.0
  %4980 = vmatpush1.xpose.msra.mxu0 0.0
  %4981 = vmatprep.subr.mxu0 0.0
  %4982 = vmatpush1.xpose.msra.mxu0 0.0
  %4983 = vmatprep.subr.mxu0 0.0
  %4984 = vmatpush1.xpose.msra.mxu0 0.0
  %4985 = vmatprep.subr.mxu0 0.0
  %4986 = vmatpush1.xpose.msra.mxu0 0.0
  %4987 = vmatprep.subr.mxu0 0.0
  %4988 = vmatpush1.xpose.msra.mxu0 0.0
  %4989 = vmatprep.subr.mxu0 0.0
  %4990 = vmatpush1.xpose.msra.mxu0 0.0
  %4991 = vmatprep.subr.mxu0 0.0
  %4992 = vmatpush1.xpose.msra.mxu0 0.0
  %4993 = vmatprep.subr.mxu0 0.0
  %4994 = vmatpush1.xpose.msra.mxu0 0.0
  %4995 = vmatprep.subr.mxu0 0.0
  %4996 = vmatpush1.xpose.msra.mxu0 0.0
  %4997 = vmatprep.subr.mxu0 0.0
  %4998 = vmatpush1.xpose.msra.mxu0 0.0
  %4999 = vmatprep.mubr.f32.mxu0 0.0
  %5000 = vmatmul.mubr.f32.gmra.mrb[0].mxu0 %v4931
  %v5001 = vpop.f32.mrb[0].mxu0
  %v5002 = vadd.f32 %v154, %v5001
  %v5003 = vpop.f32.mrb[0].mxu0
  %5004 = vdwg.mxu0
  %5005 = vrot.lane.b32.xlu0 %v4196, 64
  %v5006 = vpop.permute.xlu0 %5005
  %5007 = vrot.lane.b32.xlu0 %v4198, 64
  %v5008 = vpop.permute.xlu0 %5007
  %v5009 = vsel %vm378, %v5006, 0
  %v5011 = vsel %vm378, %v5008, 0
  %5013 = vmatprep.subr.mxu0 0.0
  %5014 = vmatpush1.xpose.msra.mxu0 %v5011
  %5015 = vmatprep.subr.mxu0 0.0
  %5016 = vmatpush1.xpose.msra.mxu0 0.0
  %5017 = vmatprep.subr.mxu0 0.0
  %5018 = vmatpush1.xpose.msra.mxu0 0.0
  %5019 = vmatprep.subr.mxu0 0.0
  %5020 = vmatpush1.xpose.msra.mxu0 0.0
  %5021 = vmatprep.subr.mxu0 0.0
  %5022 = vmatpush1.xpose.msra.mxu0 0.0
  %5023 = vmatprep.subr.mxu0 0.0
  %5024 = vmatpush1.xpose.msra.mxu0 0.0
  %5025 = vmatprep.subr.mxu0 0.0
  %5026 = vmatpush1.xpose.msra.mxu0 0.0
  %5027 = vmatprep.subr.mxu0 0.0
  %5028 = vmatpush1.xpose.msra.mxu0 0.0
  %5029 = vmatprep.subr.mxu0 0.0
  %5030 = vmatpush1.xpose.msra.mxu0 0.0
  %5031 = vmatprep.subr.mxu0 0.0
  %5032 = vmatpush1.xpose.msra.mxu0 0.0
  %5033 = vmatprep.subr.mxu0 0.0
  %5034 = vmatpush1.xpose.msra.mxu0 0.0
  %5035 = vmatprep.subr.mxu0 0.0
  %5036 = vmatpush1.xpose.msra.mxu0 0.0
  %5037 = vmatprep.subr.mxu0 0.0
  %5038 = vmatpush1.xpose.msra.mxu0 0.0
  %5039 = vmatprep.subr.mxu0 0.0
  %5040 = vmatpush1.xpose.msra.mxu0 0.0
  %5041 = vmatprep.subr.mxu0 0.0
  %5042 = vmatpush1.xpose.msra.mxu0 0.0
  %5043 = vmatprep.subr.mxu0 0.0
  %5044 = vmatpush1.xpose.msra.mxu0 0.0
  %5045 = vmatprep.subr.mxu0 0.0
  %5046 = vmatpush1.xpose.msra.mxu0 0.0
  %5047 = vmatprep.subr.mxu0 0.0
  %5048 = vmatpush1.xpose.msra.mxu0 0.0
  %5049 = vmatprep.subr.mxu0 0.0
  %5050 = vmatpush1.xpose.msra.mxu0 0.0
  %5051 = vmatprep.subr.mxu0 0.0
  %5052 = vmatpush1.xpose.msra.mxu0 0.0
  %5053 = vmatprep.subr.mxu0 0.0
  %5054 = vmatpush1.xpose.msra.mxu0 0.0
  %5055 = vmatprep.subr.mxu0 0.0
  %5056 = vmatpush1.xpose.msra.mxu0 0.0
  %5057 = vmatprep.subr.mxu0 0.0
  %5058 = vmatpush1.xpose.msra.mxu0 0.0
  %5059 = vmatprep.subr.mxu0 0.0
  %5060 = vmatpush1.xpose.msra.mxu0 0.0
  %5061 = vmatprep.subr.mxu0 0.0
  %5062 = vmatpush1.xpose.msra.mxu0 0.0
  %5063 = vmatprep.subr.mxu0 0.0
  %5064 = vmatpush1.xpose.msra.mxu0 0.0
  %5065 = vmatprep.subr.mxu0 0.0
  %5066 = vmatpush1.xpose.msra.mxu0 0.0
  %5067 = vmatprep.subr.mxu0 0.0
  %5068 = vmatpush1.xpose.msra.mxu0 0.0
  %5069 = vmatprep.subr.mxu0 0.0
  %5070 = vmatpush1.xpose.msra.mxu0 0.0
  %5071 = vmatprep.subr.mxu0 0.0
  %5072 = vmatpush1.xpose.msra.mxu0 0.0
  %5073 = vmatprep.subr.mxu0 0.0
  %5074 = vmatpush1.xpose.msra.mxu0 0.0
  %5075 = vmatprep.subr.mxu0 0.0
  %5076 = vmatpush1.xpose.msra.mxu0 0.0
  %5077 = vmatprep.mubr.f32.mxu0 0.0
  %5078 = vmatmul.mubr.f32.gmra.mrb[0].mxu0 %v5009
  %v5079 = vpop.f32.mrb[0].mxu0
  %v5080 = vadd.f32 %v158, %v5079
  %v5081 = vpop.f32.mrb[0].mxu0
  %5082 = vdwg.mxu0
  %v5083 = vsel %vm531, %v5002, -inf
  %5084 = vmax.xlane.f32.xlu0 %v5083
  %v5085 = vpop.xlane.xlu0 %5084
  %v5086 = vsel %vm531, %v5080, -inf
  %5087 = vmax.xlane.f32.xlu0 %v5086
  %v5088 = vpop.xlane.xlu0 %5087
  %v5089 = vsub.f32 %v5002, %v5085
  %v5090 = vsub.f32 %v5080, %v5088
  %v5091 = vmul.f32 %v5089, 1.442695
  %v5092 = vpow.pop %v5091
  %v5093 = vmul.f32 %v5090, 1.442695
  %v5094 = vpow.pop %v5093
  %v5095 = vsel %vm531, %v5092, 0.0
  %5096 = vadd.xlane.f32.xlu0 %v5095
  %v5097 = vpop.xlane.xlu0 %5096
  %v5098 = vsel %vm531, %v5094, 0.0
  %5099 = vadd.xlane.f32.xlu0 %v5098
  %v5100 = vpop.xlane.xlu0 %5099
  %v5101 = vrcp.pop %v5097
  %v5102 = vmul.f32 %v5092, %v5101
  %v5103 = vrcp.pop %v5100
  %v5104 = vmul.f32 %v5094, %v5103
  %5105 = vrot.lane.b32.xlu0 %v4267, 64
  %v5106 = vpop.permute.xlu0 %5105
  %v5109 = vsel %vm531, %v5102, 0
  %5111 = vmatprep.subr.mxu0 0.0
  %5112 = vmatpush1.msra.mxu0 %v5106
  %5113 = vmatprep.subr.mxu0 0.0
  %5114 = vmatpush1.msra.mxu0 0.0
  %5115 = vmatprep.subr.mxu0 0.0
  %5116 = vmatpush1.msra.mxu0 0.0
  %5117 = vmatprep.subr.mxu0 0.0
  %5118 = vmatpush1.msra.mxu0 0.0
  %5119 = vmatprep.subr.mxu0 0.0
  %5120 = vmatpush1.msra.mxu0 0.0
  %5121 = vmatprep.subr.mxu0 0.0
  %5122 = vmatpush1.msra.mxu0 0.0
  %5123 = vmatprep.subr.mxu0 0.0
  %5124 = vmatpush1.msra.mxu0 0.0
  %5125 = vmatprep.subr.mxu0 0.0
  %5126 = vmatpush1.msra.mxu0 0.0
  %5127 = vmatprep.subr.mxu0 0.0
  %5128 = vmatpush1.msra.mxu0 0.0
  %5129 = vmatprep.subr.mxu0 0.0
  %5130 = vmatpush1.msra.mxu0 0.0
  %5131 = vmatprep.subr.mxu0 0.0
  %5132 = vmatpush1.msra.mxu0 0.0
  %5133 = vmatprep.subr.mxu0 0.0
  %5134 = vmatpush1.msra.mxu0 0.0
  %5135 = vmatprep.subr.mxu0 0.0
  %5136 = vmatpush1.msra.mxu0 0.0
  %5137 = vmatprep.subr.mxu0 0.0
  %5138 = vmatpush1.msra.mxu0 0.0
  %5139 = vmatprep.subr.mxu0 0.0
  %5140 = vmatpush1.msra.mxu0 0.0
  %5141 = vmatprep.subr.mxu0 0.0
  %5142 = vmatpush1.msra.mxu0 0.0
  %5143 = vmatprep.subr.mxu0 0.0
  %5144 = vmatpush1.msra.mxu0 0.0
  %5145 = vmatprep.subr.mxu0 0.0
  %5146 = vmatpush1.msra.mxu0 0.0
  %5147 = vmatprep.subr.mxu0 0.0
  %5148 = vmatpush1.msra.mxu0 0.0
  %5149 = vmatprep.subr.mxu0 0.0
  %5150 = vmatpush1.msra.mxu0 0.0
  %5151 = vmatprep.subr.mxu0 0.0
  %5152 = vmatpush1.msra.mxu0 0.0
  %5153 = vmatprep.subr.mxu0 0.0
  %5154 = vmatpush1.msra.mxu0 0.0
  %5155 = vmatprep.subr.mxu0 0.0
  %5156 = vmatpush1.msra.mxu0 0.0
  %5157 = vmatprep.subr.mxu0 0.0
  %5158 = vmatpush1.msra.mxu0 0.0
  %5159 = vmatprep.subr.mxu0 0.0
  %5160 = vmatpush1.msra.mxu0 0.0
  %5161 = vmatprep.subr.mxu0 0.0
  %5162 = vmatpush1.msra.mxu0 0.0
  %5163 = vmatprep.subr.mxu0 0.0
  %5164 = vmatpush1.msra.mxu0 0.0
  %5165 = vmatprep.subr.mxu0 0.0
  %5166 = vmatpush1.msra.mxu0 0.0
  %5167 = vmatprep.subr.mxu0 0.0
  %5168 = vmatpush1.msra.mxu0 0.0
  %5169 = vmatprep.subr.mxu0 0.0
  %5170 = vmatpush1.msra.mxu0 0.0
  %5171 = vmatprep.subr.mxu0 0.0
  %5172 = vmatpush1.msra.mxu0 0.0
  %5173 = vmatprep.subr.mxu0 0.0
  %5174 = vmatpush1.msra.mxu0 0.0
  %5175 = vmatprep.mubr.f32.mxu0 0.0
  %5176 = vmatmul.mubr.f32.gmra.mrb[0].mxu0 %v5109
  %v5177 = vpop.f32.mrb[0].mxu0
  %v5178 = vadd.f32 0.0, %v5177
  %v5179 = vpop.f32.mrb[0].mxu0
  %5180 = vdwg.mxu0
  %5181 = vrot.lane.b32.xlu0 %v4272, 64
  %v5182 = vpop.permute.xlu0 %5181
  %v5185 = vsel %vm531, %v5104, 0
  %5187 = vmatprep.subr.mxu0 0.0
  %5188 = vmatpush1.msra.mxu0 %v5182
  %5189 = vmatprep.subr.mxu0 0.0
  %5190 = vmatpush1.msra.mxu0 0.0
  %5191 = vmatprep.subr.mxu0 0.0
  %5192 = vmatpush1.msra.mxu0 0.0
  %5193 = vmatprep.subr.mxu0 0.0
  %5194 = vmatpush1.msra.mxu0 0.0
  %5195 = vmatprep.subr.mxu0 0.0
  %5196 = vmatpush1.msra.mxu0 0.0
  %5197 = vmatprep.subr.mxu0 0.0
  %5198 = vmatpush1.msra.mxu0 0.0
  %5199 = vmatprep.subr.mxu0 0.0
  %5200 = vmatpush1.msra.mxu0 0.0
  %5201 = vmatprep.subr.mxu0 0.0
  %5202 = vmatpush1.msra.mxu0 0.0
  %5203 = vmatprep.subr.mxu0 0.0
  %5204 = vmatpush1.msra.mxu0 0.0
  %5205 = vmatprep.subr.mxu0 0.0
  %5206 = vmatpush1.msra.mxu0 0.0
  %5207 = vmatprep.subr.mxu0 0.0
  %5208 = vmatpush1.msra.mxu0 0.0
  %5209 = vmatprep.subr.mxu0 0.0
  %5210 = vmatpush1.msra.mxu0 0.0
  %5211 = vmatprep.subr.mxu0 0.0
  %5212 = vmatpush1.msra.mxu0 0.0
  %5213 = vmatprep.subr.mxu0 0.0
  %5214 = vmatpush1.msra.mxu0 0.0
  %5215 = vmatprep.subr.mxu0 0.0
  %5216 = vmatpush1.msra.mxu0 0.0
  %5217 = vmatprep.subr.mxu0 0.0
  %5218 = vmatpush1.msra.mxu0 0.0
  %5219 = vmatprep.subr.mxu0 0.0
  %5220 = vmatpush1.msra.mxu0 0.0
  %5221 = vmatprep.subr.mxu0 0.0
  %5222 = vmatpush1.msra.mxu0 0.0
  %5223 = vmatprep.subr.mxu0 0.0
  %5224 = vmatpush1.msra.mxu0 0.0
  %5225 = vmatprep.subr.mxu0 0.0
  %5226 = vmatpush1.msra.mxu0 0.0
  %5227 = vmatprep.subr.mxu0 0.0
  %5228 = vmatpush1.msra.mxu0 0.0
  %5229 = vmatprep.subr.mxu0 0.0
  %5230 = vmatpush1.msra.mxu0 0.0
  %5231 = vmatprep.subr.mxu0 0.0
  %5232 = vmatpush1.msra.mxu0 0.0
  %5233 = vmatprep.subr.mxu0 0.0
  %5234 = vmatpush1.msra.mxu0 0.0
  %5235 = vmatprep.subr.mxu0 0.0
  %5236 = vmatpush1.msra.mxu0 0.0
  %5237 = vmatprep.subr.mxu0 0.0
  %5238 = vmatpush1.msra.mxu0 0.0
  %5239 = vmatprep.subr.mxu0 0.0
  %5240 = vmatpush1.msra.mxu0 0.0
  %5241 = vmatprep.subr.mxu0 0.0
  %5242 = vmatpush1.msra.mxu0 0.0
  %5243 = vmatprep.subr.mxu0 0.0
  %5244 = vmatpush1.msra.mxu0 0.0
  %5245 = vmatprep.subr.mxu0 0.0
  %5246 = vmatpush1.msra.mxu0 0.0
  %5247 = vmatprep.subr.mxu0 0.0
  %5248 = vmatpush1.msra.mxu0 0.0
  %5249 = vmatprep.subr.mxu0 0.0
  %5250 = vmatpush1.msra.mxu0 0.0
  %5251 = vmatprep.mubr.f32.mxu0 0.0
  %5252 = vmatmul.mubr.f32.gmra.mrb[0].mxu0 %v5185
  %v5253 = vpop.f32.mrb[0].mxu0
  %v5254 = vadd.f32 0.0, %v5253
  %v5255 = vpop.f32.mrb[0].mxu0
  %5256 = vdwg.mxu0
  %5257 = vrot.lane.b32.xlu0 %v4190, 32
  %v5258 = vpop.permute.xlu0 %5257
  %5259 = vrot.lane.b32.xlu0 %v4192, 32
  %v5260 = vpop.permute.xlu0 %5259
  %v5261 = vsel %vm378, %v5258, 0
  %v5263 = vsel %vm378, %v5260, 0
  %5265 = vmatprep.subr.mxu0 0.0
  %5266 = vmatpush1.xpose.msra.mxu0 %v5263
  %5267 = vmatprep.subr.mxu0 0.0
  %5268 = vmatpush1.xpose.msra.mxu0 0.0
  %5269 = vmatprep.subr.mxu0 0.0
  %5270 = vmatpush1.xpose.msra.mxu0 0.0
  %5271 = vmatprep.subr.mxu0 0.0
  %5272 = vmatpush1.xpose.msra.mxu0 0.0
  %5273 = vmatprep.subr.mxu0 0.0
  %5274 = vmatpush1.xpose.msra.mxu0 0.0
  %5275 = vmatprep.subr.mxu0 0.0
  %5276 = vmatpush1.xpose.msra.mxu0 0.0
  %5277 = vmatprep.subr.mxu0 0.0
  %5278 = vmatpush1.xpose.msra.mxu0 0.0
  %5279 = vmatprep.subr.mxu0 0.0
  %5280 = vmatpush1.xpose.msra.mxu0 0.0
  %5281 = vmatprep.subr.mxu0 0.0
  %5282 = vmatpush1.xpose.msra.mxu0 0.0
  %5283 = vmatprep.subr.mxu0 0.0
  %5284 = vmatpush1.xpose.msra.mxu0 0.0
  %5285 = vmatprep.subr.mxu0 0.0
  %5286 = vmatpush1.xpose.msra.mxu0 0.0
  %5287 = vmatprep.subr.mxu0 0.0
  %5288 = vmatpush1.xpose.msra.mxu0 0.0
  %5289 = vmatprep.subr.mxu0 0.0
  %5290 = vmatpush1.xpose.msra.mxu0 0.0
  %5291 = vmatprep.subr.mxu0 0.0
  %5292 = vmatpush1.xpose.msra.mxu0 0.0
  %5293 = vmatprep.subr.mxu0 0.0
  %5294 = vmatpush1.xpose.msra.mxu0 0.0
  %5295 = vmatprep.subr.mxu0 0.0
  %5296 = vmatpush1.xpose.msra.mxu0 0.0
  %5297 = vmatprep.subr.mxu0 0.0
  %5298 = vmatpush1.xpose.msra.mxu0 0.0
  %5299 = vmatprep.subr.mxu0 0.0
  %5300 = vmatpush1.xpose.msra.mxu0 0.0
  %5301 = vmatprep.subr.mxu0 0.0
  %5302 = vmatpush1.xpose.msra.mxu0 0.0
  %5303 = vmatprep.subr.mxu0 0.0
  %5304 = vmatpush1.xpose.msra.mxu0 0.0
  %5305 = vmatprep.subr.mxu0 0.0
  %5306 = vmatpush1.xpose.msra.mxu0 0.0
  %5307 = vmatprep.subr.mxu0 0.0
  %5308 = vmatpush1.xpose.msra.mxu0 0.0
  %5309 = vmatprep.subr.mxu0 0.0
  %5310 = vmatpush1.xpose.msra.mxu0 0.0
  %5311 = vmatprep.subr.mxu0 0.0
  %5312 = vmatpush1.xpose.msra.mxu0 0.0
  %5313 = vmatprep.subr.mxu0 0.0
  %5314 = vmatpush1.xpose.msra.mxu0 0.0
  %5315 = vmatprep.subr.mxu0 0.0
  %5316 = vmatpush1.xpose.msra.mxu0 0.0
  %5317 = vmatprep.subr.mxu0 0.0
  %5318 = vmatpush1.xpose.msra.mxu0 0.0
  %5319 = vmatprep.subr.mxu0 0.0
  %5320 = vmatpush1.xpose.msra.mxu0 0.0
  %5321 = vmatprep.subr.mxu0 0.0
  %5322 = vmatpush1.xpose.msra.mxu0 0.0
  %5323 = vmatprep.subr.mxu0 0.0
  %5324 = vmatpush1.xpose.msra.mxu0 0.0
  %5325 = vmatprep.subr.mxu0 0.0
  %5326 = vmatpush1.xpose.msra.mxu0 0.0
  %5327 = vmatprep.subr.mxu0 0.0
  %5328 = vmatpush1.xpose.msra.mxu0 0.0
  %5329 = vmatprep.mubr.f32.mxu0 0.0
  %5330 = vmatmul.mubr.f32.gmra.mrb[0].mxu0 %v5261
  %v5331 = vpop.f32.mrb[0].mxu0
  %v5332 = vadd.f32 %v154, %v5331
  %v5333 = vpop.f32.mrb[0].mxu0
  %5334 = vdwg.mxu0
  %5335 = vrot.lane.b32.xlu0 %v4196, 32
  %v5336 = vpop.permute.xlu0 %5335
  %5337 = vrot.lane.b32.xlu0 %v4198, 32
  %v5338 = vpop.permute.xlu0 %5337
  %v5339 = vsel %vm378, %v5336, 0
  %v5341 = vsel %vm378, %v5338, 0
  %5343 = vmatprep.subr.mxu0 0.0
  %5344 = vmatpush1.xpose.msra.mxu0 %v5341
  %5345 = vmatprep.subr.mxu0 0.0
  %5346 = vmatpush1.xpose.msra.mxu0 0.0
  %5347 = vmatprep.subr.mxu0 0.0
  %5348 = vmatpush1.xpose.msra.mxu0 0.0
  %5349 = vmatprep.subr.mxu0 0.0
  %5350 = vmatpush1.xpose.msra.mxu0 0.0
  %5351 = vmatprep.subr.mxu0 0.0
  %5352 = vmatpush1.xpose.msra.mxu0 0.0
  %5353 = vmatprep.subr.mxu0 0.0
  %5354 = vmatpush1.xpose.msra.mxu0 0.0
  %5355 = vmatprep.subr.mxu0 0.0
  %5356 = vmatpush1.xpose.msra.mxu0 0.0
  %5357 = vmatprep.subr.mxu0 0.0
  %5358 = vmatpush1.xpose.msra.mxu0 0.0
  %5359 = vmatprep.subr.mxu0 0.0
  %5360 = vmatpush1.xpose.msra.mxu0 0.0
  %5361 = vmatprep.subr.mxu0 0.0
  %5362 = vmatpush1.xpose.msra.mxu0 0.0
  %5363 = vmatprep.subr.mxu0 0.0
  %5364 = vmatpush1.xpose.msra.mxu0 0.0
  %5365 = vmatprep.subr.mxu0 0.0
  %5366 = vmatpush1.xpose.msra.mxu0 0.0
  %5367 = vmatprep.subr.mxu0 0.0
  %5368 = vmatpush1.xpose.msra.mxu0 0.0
  %5369 = vmatprep.subr.mxu0 0.0
  %5370 = vmatpush1.xpose.msra.mxu0 0.0
  %5371 = vmatprep.subr.mxu0 0.0
  %5372 = vmatpush1.xpose.msra.mxu0 0.0
  %5373 = vmatprep.subr.mxu0 0.0
  %5374 = vmatpush1.xpose.msra.mxu0 0.0
  %5375 = vmatprep.subr.mxu0 0.0
  %5376 = vmatpush1.xpose.msra.mxu0 0.0
  %5377 = vmatprep.subr.mxu0 0.0
  %5378 = vmatpush1.xpose.msra.mxu0 0.0
  %5379 = vmatprep.subr.mxu0 0.0
  %5380 = vmatpush1.xpose.msra.mxu0 0.0
  %5381 = vmatprep.subr.mxu0 0.0
  %5382 = vmatpush1.xpose.msra.mxu0 0.0
  %5383 = vmatprep.subr.mxu0 0.0
  %5384 = vmatpush1.xpose.msra.mxu0 0.0
  %5385 = vmatprep.subr.mxu0 0.0
  %5386 = vmatpush1.xpose.msra.mxu0 0.0
  %5387 = vmatprep.subr.mxu0 0.0
  %5388 = vmatpush1.xpose.msra.mxu0 0.0
  %5389 = vmatprep.subr.mxu0 0.0
  %5390 = vmatpush1.xpose.msra.mxu0 0.0
  %5391 = vmatprep.subr.mxu0 0.0
  %5392 = vmatpush1.xpose.msra.mxu0 0.0
  %5393 = vmatprep.subr.mxu0 0.0
  %5394 = vmatpush1.xpose.msra.mxu0 0.0
  %5395 = vmatprep.subr.mxu0 0.0
  %5396 = vmatpush1.xpose.msra.mxu0 0.0
  %5397 = vmatprep.subr.mxu0 0.0
  %5398 = vmatpush1.xpose.msra.mxu0 0.0
  %5399 = vmatprep.subr.mxu0 0.0
  %5400 = vmatpush1.xpose.msra.mxu0 0.0
  %5401 = vmatprep.subr.mxu0 0.0
  %5402 = vmatpush1.xpose.msra.mxu0 0.0
  %5403 = vmatprep.subr.mxu0 0.0
  %5404 = vmatpush1.xpose.msra.mxu0 0.0
  %5405 = vmatprep.subr.mxu0 0.0
  %5406 = vmatpush1.xpose.msra.mxu0 0.0
  %5407 = vmatprep.mubr.f32.mxu0 0.0
  %5408 = vmatmul.mubr.f32.gmra.mrb[0].mxu0 %v5339
  %v5409 = vpop.f32.mrb[0].mxu0
  %v5410 = vadd.f32 %v158, %v5409
  %v5411 = vpop.f32.mrb[0].mxu0
  %5412 = vdwg.mxu0
  %v5413 = vsel %vm531, %v5332, -inf
  %5414 = vmax.xlane.f32.xlu0 %v5413
  %v5415 = vpop.xlane.xlu0 %5414
  %v5416 = vsel %vm531, %v5410, -inf
  %5417 = vmax.xlane.f32.xlu0 %v5416
  %v5418 = vpop.xlane.xlu0 %5417
  %v5419 = vsub.f32 %v5332, %v5415
  %v5420 = vsub.f32 %v5410, %v5418
  %v5421 = vmul.f32 %v5419, 1.442695
  %v5422 = vpow.pop %v5421
  %v5423 = vmul.f32 %v5420, 1.442695
  %v5424 = vpow.pop %v5423
  %v5425 = vsel %vm531, %v5422, 0.0
  %5426 = vadd.xlane.f32.xlu0 %v5425
  %v5427 = vpop.xlane.xlu0 %5426
  %v5428 = vsel %vm531, %v5424, 0.0
  %5429 = vadd.xlane.f32.xlu0 %v5428
  %v5430 = vpop.xlane.xlu0 %5429
  %v5431 = vrcp.pop %v5427
  %v5432 = vmul.f32 %v5422, %v5431
  %v5433 = vrcp.pop %v5430
  %v5434 = vmul.f32 %v5424, %v5433
  %5435 = vrot.lane.b32.xlu0 %v4267, 32
  %v5436 = vpop.permute.xlu0 %5435
  %v5439 = vsel %vm531, %v5432, 0
  %5441 = vmatprep.subr.mxu0 0.0
  %5442 = vmatpush1.msra.mxu0 %v5436
  %5443 = vmatprep.subr.mxu0 0.0
  %5444 = vmatpush1.msra.mxu0 0.0
  %5445 = vmatprep.subr.mxu0 0.0
  %5446 = vmatpush1.msra.mxu0 0.0
  %5447 = vmatprep.subr.mxu0 0.0
  %5448 = vmatpush1.msra.mxu0 0.0
  %5449 = vmatprep.subr.mxu0 0.0
  %5450 = vmatpush1.msra.mxu0 0.0
  %5451 = vmatprep.subr.mxu0 0.0
  %5452 = vmatpush1.msra.mxu0 0.0
  %5453 = vmatprep.subr.mxu0 0.0
  %5454 = vmatpush1.msra.mxu0 0.0
  %5455 = vmatprep.subr.mxu0 0.0
  %5456 = vmatpush1.msra.mxu0 0.0
  %5457 = vmatprep.subr.mxu0 0.0
  %5458 = vmatpush1.msra.mxu0 0.0
  %5459 = vmatprep.subr.mxu0 0.0
  %5460 = vmatpush1.msra.mxu0 0.0
  %5461 = vmatprep.subr.mxu0 0.0
  %5462 = vmatpush1.msra.mxu0 0.0
  %5463 = vmatprep.subr.mxu0 0.0
  %5464 = vmatpush1.msra.mxu0 0.0
  %5465 = vmatprep.subr.mxu0 0.0
  %5466 = vmatpush1.msra.mxu0 0.0
  %5467 = vmatprep.subr.mxu0 0.0
  %5468 = vmatpush1.msra.mxu0 0.0
  %5469 = vmatprep.subr.mxu0 0.0
  %5470 = vmatpush1.msra.mxu0 0.0
  %5471 = vmatprep.subr.mxu0 0.0
  %5472 = vmatpush1.msra.mxu0 0.0
  %5473 = vmatprep.subr.mxu0 0.0
  %5474 = vmatpush1.msra.mxu0 0.0
  %5475 = vmatprep.subr.mxu0 0.0
  %5476 = vmatpush1.msra.mxu0 0.0
  %5477 = vmatprep.subr.mxu0 0.0
  %5478 = vmatpush1.msra.mxu0 0.0
  %5479 = vmatprep.subr.mxu0 0.0
  %5480 = vmatpush1.msra.mxu0 0.0
  %5481 = vmatprep.subr.mxu0 0.0
  %5482 = vmatpush1.msra.mxu0 0.0
  %5483 = vmatprep.subr.mxu0 0.0
  %5484 = vmatpush1.msra.mxu0 0.0
  %5485 = vmatprep.subr.mxu0 0.0
  %5486 = vmatpush1.msra.mxu0 0.0
  %5487 = vmatprep.subr.mxu0 0.0
  %5488 = vmatpush1.msra.mxu0 0.0
  %5489 = vmatprep.subr.mxu0 0.0
  %5490 = vmatpush1.msra.mxu0 0.0
  %5491 = vmatprep.subr.mxu0 0.0
  %5492 = vmatpush1.msra.mxu0 0.0
  %5493 = vmatprep.subr.mxu0 0.0
  %5494 = vmatpush1.msra.mxu0 0.0
  %5495 = vmatprep.subr.mxu0 0.0
  %5496 = vmatpush1.msra.mxu0 0.0
  %5497 = vmatprep.subr.mxu0 0.0
  %5498 = vmatpush1.msra.mxu0 0.0
  %5499 = vmatprep.subr.mxu0 0.0
  %5500 = vmatpush1.msra.mxu0 0.0
  %5501 = vmatprep.subr.mxu0 0.0
  %5502 = vmatpush1.msra.mxu0 0.0
  %5503 = vmatprep.subr.mxu0 0.0
  %5504 = vmatpush1.msra.mxu0 0.0
  %5505 = vmatprep.mubr.f32.mxu0 0.0
  %5506 = vmatmul.mubr.f32.gmra.mrb[0].mxu0 %v5439
  %v5507 = vpop.f32.mrb[0].mxu0
  %v5508 = vadd.f32 0.0, %v5507
  %v5509 = vpop.f32.mrb[0].mxu0
  %5510 = vdwg.mxu0
  %5511 = vrot.lane.b32.xlu0 %v4272, 32
  %v5512 = vpop.permute.xlu0 %5511
  %v5515 = vsel %vm531, %v5434, 0
  %5517 = vmatprep.subr.mxu0 0.0
  %5518 = vmatpush1.msra.mxu0 %v5512
  %5519 = vmatprep.subr.mxu0 0.0
  %5520 = vmatpush1.msra.mxu0 0.0
  %5521 = vmatprep.subr.mxu0 0.0
  %5522 = vmatpush1.msra.mxu0 0.0
  %5523 = vmatprep.subr.mxu0 0.0
  %5524 = vmatpush1.msra.mxu0 0.0
  %5525 = vmatprep.subr.mxu0 0.0
  %5526 = vmatpush1.msra.mxu0 0.0
  %5527 = vmatprep.subr.mxu0 0.0
  %5528 = vmatpush1.msra.mxu0 0.0
  %5529 = vmatprep.subr.mxu0 0.0
  %5530 = vmatpush1.msra.mxu0 0.0
  %5531 = vmatprep.subr.mxu0 0.0
  %5532 = vmatpush1.msra.mxu0 0.0
  %5533 = vmatprep.subr.mxu0 0.0
  %5534 = vmatpush1.msra.mxu0 0.0
  %5535 = vmatprep.subr.mxu0 0.0
  %5536 = vmatpush1.msra.mxu0 0.0
  %5537 = vmatprep.subr.mxu0 0.0
  %5538 = vmatpush1.msra.mxu0 0.0
  %5539 = vmatprep.subr.mxu0 0.0
  %5540 = vmatpush1.msra.mxu0 0.0
  %5541 = vmatprep.subr.mxu0 0.0
  %5542 = vmatpush1.msra.mxu0 0.0
  %5543 = vmatprep.subr.mxu0 0.0
  %5544 = vmatpush1.msra.mxu0 0.0
  %5545 = vmatprep.subr.mxu0 0.0
  %5546 = vmatpush1.msra.mxu0 0.0
  %5547 = vmatprep.subr.mxu0 0.0
  %5548 = vmatpush1.msra.mxu0 0.0
  %5549 = vmatprep.subr.mxu0 0.0
  %5550 = vmatpush1.msra.mxu0 0.0
  %5551 = vmatprep.subr.mxu0 0.0
  %5552 = vmatpush1.msra.mxu0 0.0
  %5553 = vmatprep.subr.mxu0 0.0
  %5554 = vmatpush1.msra.mxu0 0.0
  %5555 = vmatprep.subr.mxu0 0.0
  %5556 = vmatpush1.msra.mxu0 0.0
  %5557 = vmatprep.subr.mxu0 0.0
  %5558 = vmatpush1.msra.mxu0 0.0
  %5559 = vmatprep.subr.mxu0 0.0
  %5560 = vmatpush1.msra.mxu0 0.0
  %5561 = vmatprep.subr.mxu0 0.0
  %5562 = vmatpush1.msra.mxu0 0.0
  %5563 = vmatprep.subr.mxu0 0.0
  %5564 = vmatpush1.msra.mxu0 0.0
  %5565 = vmatprep.subr.mxu0 0.0
  %5566 = vmatpush1.msra.mxu0 0.0
  %5567 = vmatprep.subr.mxu0 0.0
  %5568 = vmatpush1.msra.mxu0 0.0
  %5569 = vmatprep.subr.mxu0 0.0
  %5570 = vmatpush1.msra.mxu0 0.0
  %5571 = vmatprep.subr.mxu0 0.0
  %5572 = vmatpush1.msra.mxu0 0.0
  %5573 = vmatprep.subr.mxu0 0.0
  %5574 = vmatpush1.msra.mxu0 0.0
  %5575 = vmatprep.subr.mxu0 0.0
  %5576 = vmatpush1.msra.mxu0 0.0
  %5577 = vmatprep.subr.mxu0 0.0
  %5578 = vmatpush1.msra.mxu0 0.0
  %5579 = vmatprep.subr.mxu0 0.0
  %5580 = vmatpush1.msra.mxu0 0.0
  %5581 = vmatprep.mubr.f32.mxu0 0.0
  %5582 = vmatmul.mubr.f32.gmra.mrb[0].mxu0 %v5515
  %v5583 = vpop.f32.mrb[0].mxu0
  %v5584 = vadd.f32 0.0, %v5583
  %v5585 = vpop.f32.mrb[0].mxu0
  %5586 = vdwg.mxu0
  %5589 = vrot.lane.b32.xlu0 %v4847, 32
  %v5590 = vpop.permute.xlu0 %5589
  %5591 = vrot.lane.b32.xlu0 %v4924, 32
  %v5592 = vpop.permute.xlu0 %5591
  %5597 = vrot.lane.b32.xlu0 %v5178, 64
  %v5598 = vpop.permute.xlu0 %5597
  %5599 = vrot.lane.b32.xlu0 %v5254, 64
  %v5600 = vpop.permute.xlu0 %5599
  %5605 = vrot.lane.b32.xlu0 %v5508, 96
  %v5606 = vpop.permute.xlu0 %5605
  %5607 = vrot.lane.b32.xlu0 %v5584, 96
  %v5608 = vpop.permute.xlu0 %5607
  %v5611 = vsel %vm378, %v4519, %v5590
  %v5612 = vsel %vm378, %v4592, %v5592
  %v5613 = vsel %vm1718, %v5611, %v5598
  %v5614 = vsel %vm1718, %v5612, %v5600
  %v5615 = vsel %vm1721, %v5613, %v5606
  %v5616 = vsel %vm1721, %v5614, %v5608
  %s5617 = scalar_lea.vmem %s6, 256
  %v5618 = vld [vmem:[%s5617] sm:$0xff]
  %v5619 = vld [vmem:[%s5617 + $0x8] sm:$0xff]
  %v5620 = vld [vmem:[%s5617 + $0x10] sm:$0xff]
  %v5621 = vld [vmem:[%s5617 + $0x18] sm:$0xff]
  %v5622 = vld [vmem:[%s5617 + $0x20] sm:$0xff]
  %v5623 = vld [vmem:[%s5617 + $0x28] sm:$0xff]
  %v5624 = vld [vmem:[%s5617 + $0x30] sm:$0xff]
  %v5625 = vld [vmem:[%s5617 + $0x38] sm:$0xff]
  %v5626 = vld [vmem:[%s5617 + $0x40] sm:$0xff]
  %v5627 = vld [vmem:[%s5617 + $0x48] sm:$0xff]
  %v5628 = vld [vmem:[%s5617 + $0x50] sm:$0xff]
  %v5629 = vld [vmem:[%s5617 + $0x58] sm:$0xff]
  %v5630 = vld [vmem:[%s5617 + $0x60] sm:$0xff]
  %v5631 = vld [vmem:[%s5617 + $0x68] sm:$0xff]
  %v5632 = vld [vmem:[%s5617 + $0x70] sm:$0xff]
  %v5633 = vld [vmem:[%s5617 + $0x78] sm:$0xff]
  %s5634 = scalar_lea.vmem %s7, 2
  %v5635 = vld [vmem:[%s5634] sm:$0x1]
  %v5637 = vlaneseq
  %v5638 = vshrl.u32 %v5637, 7
  %v5639 = vsub.s32 0, %v5638
  %v5640 = vrot.slane %v5635, %v5639
  %5642 = vmatprep.subr.mxu0 0.0
  %5643 = vmatpush1.msra.mxu0 %v5618
  %5644 = vmatprep.subr.mxu0 0.0
  %5645 = vmatpush1.msra.mxu0 %v5619
  %5646 = vmatprep.subr.mxu0 0.0
  %5647 = vmatpush1.msra.mxu0 %v5620
  %5648 = vmatprep.subr.mxu0 0.0
  %5649 = vmatpush1.msra.mxu0 %v5621
  %5650 = vmatprep.subr.mxu0 0.0
  %5651 = vmatpush1.msra.mxu0 %v5622
  %5652 = vmatprep.subr.mxu0 0.0
  %5653 = vmatpush1.msra.mxu0 %v5623
  %5654 = vmatprep.subr.mxu0 0.0
  %5655 = vmatpush1.msra.mxu0 %v5624
  %5656 = vmatprep.subr.mxu0 0.0
  %5657 = vmatpush1.msra.mxu0 %v5625
  %5658 = vmatprep.subr.mxu0 0.0
  %5659 = vmatpush1.msra.mxu0 %v5626
  %5660 = vmatprep.subr.mxu0 0.0
  %5661 = vmatpush1.msra.mxu0 %v5627
  %5662 = vmatprep.subr.mxu0 0.0
  %5663 = vmatpush1.msra.mxu0 %v5628
  %5664 = vmatprep.subr.mxu0 0.0
  %5665 = vmatpush1.msra.mxu0 %v5629
  %5666 = vmatprep.subr.mxu0 0.0
  %5667 = vmatpush1.msra.mxu0 %v5630
  %5668 = vmatprep.subr.mxu0 0.0
  %5669 = vmatpush1.msra.mxu0 %v5631
  %5670 = vmatprep.subr.mxu0 0.0
  %5671 = vmatpush1.msra.mxu0 %v5632
  %5672 = vmatprep.subr.mxu0 0.0
  %5673 = vmatpush1.msra.mxu0 %v5633
  %5674 = vmatprep.subr.mxu0 0.0
  %5675 = vmatpush1.msra.mxu0 0.0
  %5676 = vmatprep.subr.mxu0 0.0
  %5677 = vmatpush1.msra.mxu0 0.0
  %5678 = vmatprep.subr.mxu0 0.0
  %5679 = vmatpush1.msra.mxu0 0.0
  %5680 = vmatprep.subr.mxu0 0.0
  %5681 = vmatpush1.msra.mxu0 0.0
  %5682 = vmatprep.subr.mxu0 0.0
  %5683 = vmatpush1.msra.mxu0 0.0
  %5684 = vmatprep.subr.mxu0 0.0
  %5685 = vmatpush1.msra.mxu0 0.0
  %5686 = vmatprep.subr.mxu0 0.0
  %5687 = vmatpush1.msra.mxu0 0.0
  %5688 = vmatprep.subr.mxu0 0.0
  %5689 = vmatpush1.msra.mxu0 0.0
  %5690 = vmatprep.subr.mxu0 0.0
  %5691 = vmatpush1.msra.mxu0 0.0
  %5692 = vmatprep.subr.mxu0 0.0
  %5693 = vmatpush1.msra.mxu0 0.0
  %5694 = vmatprep.subr.mxu0 0.0
  %5695 = vmatpush1.msra.mxu0 0.0
  %5696 = vmatprep.subr.mxu0 0.0
  %5697 = vmatpush1.msra.mxu0 0.0
  %5698 = vmatprep.subr.mxu0 0.0
  %5699 = vmatpush1.msra.mxu0 0.0
  %5700 = vmatprep.subr.mxu0 0.0
  %5701 = vmatpush1.msra.mxu0 0.0
  %5702 = vmatprep.subr.mxu0 0.0
  %5703 = vmatpush1.msra.mxu0 0.0
  %5704 = vmatprep.subr.mxu0 0.0
  %5705 = vmatpush1.msra.mxu0 0.0
  %5706 = vmatprep.mubr.f32.mxu0 0.0
  %5707 = vmatmul.mubr.f32.gmra.mrb[0].mxu0 %v5615
  %v5708 = vpop.f32.mrb[0].mxu0
  %v5709 = vadd.f32 %v5640, %v5708
  %v5710 = vpop.f32.mrb[0].mxu0
  %5711 = vmatprep.mubr.f32.mxu0 0.0
  %5712 = vmatmul.mubr.f32.gmra.mrb[0].mxu0 %v5616
  %v5713 = vpop.f32.mrb[0].mxu0
  %v5714 = vadd.f32 %v5640, %v5713
  %v5715 = vpop.f32.mrb[0].mxu0
  %5716 = vdwg.mxu0
  %v5717 = vadd.f32 %v4054, %v5709
  %v5718 = vadd.f32 %v4055, %v5714
  %s5719 = scalar_lea.vmem %s8, 2
  %v5720 = vld [vmem:[%s5719] sm:$0x1]
  %s5721 = scalar_lea.vmem %s9, 2
  %v5722 = vld [vmem:[%s5721] sm:$0x1]
  %5723 = vadd.xlane.f32.xlu0 %v5717
  %v5724 = vpop.xlane.xlu0 %5723
  %5725 = vadd.xlane.f32.xlu0 %v5718
  %v5726 = vpop.xlane.xlu0 %5725
  %v5727 = vmul.f32 %v5724, %v1830
  %v5728 = vmul.f32 %v5726, %v1830
  %v5729 = vsub.f32 %v5717, %v5727
  %v5730 = vsub.f32 %v5718, %v5728
  %v5731 = vmul.f32 %v5729, %v5729
  %v5732 = vmul.f32 %v5730, %v5730
  %5733 = vadd.xlane.f32.xlu0 %v5731
  %v5734 = vpop.xlane.xlu0 %5733
  %5735 = vadd.xlane.f32.xlu0 %v5732
  %v5736 = vpop.xlane.xlu0 %5735
  %v5737 = vmul.f32 %v5734, %v1830
  %v5738 = vmul.f32 %v5736, %v1830
  %v5739 = vadd.f32 %v5737, 1e-05
  %v5740 = vadd.f32 %v5738, 1e-05
  %v5741 = vrsqrt.pop %v5739
  %v5742 = vrsqrt.pop %v5740
  %v5743 = vmul.f32 %v5729, %v5741
  %v5744 = vmul.f32 %v5730, %v5742
  %v5746 = vlaneseq
  %v5747 = vshrl.u32 %v5746, 7
  %v5748 = vsub.s32 0, %v5747
  %v5749 = vrot.slane %v5720, %v5748
  %v5751 = vmul.f32 %v5743, %v5749
  %v5752 = vmul.f32 %v5744, %v5749
  %v5754 = vlaneseq
  %v5755 = vshrl.u32 %v5754, 7
  %v5756 = vsub.s32 0, %v5755
  %v5757 = vrot.slane %v5722, %v5756
  %v5759 = vadd.f32 %v5751, %v5757
  %v5760 = vadd.f32 %v5752, %v5757
  %s5761 = scalar_lea.vmem %s10, 256
  %v5762 = vld [vmem:[%s5761] sm:$0xff]
  %v5763 = vld [vmem:[%s5761 + $0x8] sm:$0xff]
  %v5764 = vld [vmem:[%s5761 + $0x10] sm:$0xff]
  %v5765 = vld [vmem:[%s5761 + $0x18] sm:$0xff]
  %v5766 = vld [vmem:[%s5761 + $0x20] sm:$0xff]
  %v5767 = vld [vmem:[%s5761 + $0x28] sm:$0xff]
  %v5768 = vld [vmem:[%s5761 + $0x30] sm:$0xff]
  %v5769 = vld [vmem:[%s5761 + $0x38] sm:$0xff]
  %v5770 = vld [vmem:[%s5761 + $0x40] sm:$0xff]
  %v5771 = vld [vmem:[%s5761 + $0x48] sm:$0xff]
  %v5772 = vld [vmem:[%s5761 + $0x50] sm:$0xff]
  %v5773 = vld [vmem:[%s5761 + $0x58] sm:$0xff]
  %v5774 = vld [vmem:[%s5761 + $0x60] sm:$0xff]
  %v5775 = vld [vmem:[%s5761 + $0x68] sm:$0xff]
  %v5776 = vld [vmem:[%s5761 + $0x70] sm:$0xff]
  %v5777 = vld [vmem:[%s5761 + $0x78] sm:$0xff]
  %s5778 = scalar_lea.vmem %s11, 2
  %v5779 = vld [vmem:[%s5778] sm:$0x1]
  %v5781 = vlaneseq
  %v5782 = vshrl.u32 %v5781, 7
  %v5783 = vsub.s32 0, %v5782
  %v5784 = vrot.slane %v5779, %v5783
  %5786 = vmatprep.subr.mxu0 0.0
  %5787 = vmatpush1.msra.mxu0 %v5762
  %5788 = vmatprep.subr.mxu0 0.0
  %5789 = vmatpush1.msra.mxu0 %v5763
  %5790 = vmatprep.subr.mxu0 0.0
  %5791 = vmatpush1.msra.mxu0 %v5764
  %5792 = vmatprep.subr.mxu0 0.0
  %5793 = vmatpush1.msra.mxu0 %v5765
  %5794 = vmatprep.subr.mxu0 0.0
  %5795 = vmatpush1.msra.mxu0 %v5766
  %5796 = vmatprep.subr.mxu0 0.0
  %5797 = vmatpush1.msra.mxu0 %v5767
  %5798 = vmatprep.subr.mxu0 0.0
  %5799 = vmatpush1.msra.mxu0 %v5768
  %5800 = vmatprep.subr.mxu0 0.0
  %5801 = vmatpush1.msra.mxu0 %v5769
  %5802 = vmatprep.subr.mxu0 0.0
  %5803 = vmatpush1.msra.mxu0 %v5770
  %5804 = vmatprep.subr.mxu0 0.0
  %5805 = vmatpush1.msra.mxu0 %v5771
  %5806 = vmatprep.subr.mxu0 0.0
  %5807 = vmatpush1.msra.mxu0 %v5772
  %5808 = vmatprep.subr.mxu0 0.0
  %5809 = vmatpush1.msra.mxu0 %v5773
  %5810 = vmatprep.subr.mxu0 0.0
  %5811 = vmatpush1.msra.mxu0 %v5774
  %5812 = vmatprep.subr.mxu0 0.0
  %5813 = vmatpush1.msra.mxu0 %v5775
  %5814 = vmatprep.subr.mxu0 0.0
  %5815 = vmatpush1.msra.mxu0 %v5776
  %5816 = vmatprep.subr.mxu0 0.0
  %5817 = vmatpush1.msra.mxu0 %v5777
  %5818 = vmatprep.subr.mxu0 0.0
  %5819 = vmatpush1.msra.mxu0 0.0
  %5820 = vmatprep.subr.mxu0 0.0
  %5821 = vmatpush1.msra.mxu0 0.0
  %5822 = vmatprep.subr.mxu0 0.0
  %5823 = vmatpush1.msra.mxu0 0.0
  %5824 = vmatprep.subr.mxu0 0.0
  %5825 = vmatpush1.msra.mxu0 0.0
  %5826 = vmatprep.subr.mxu0 0.0
  %5827 = vmatpush1.msra.mxu0 0.0
  %5828 = vmatprep.subr.mxu0 0.0
  %5829 = vmatpush1.msra.mxu0 0.0
  %5830 = vmatprep.subr.mxu0 0.0
  %5831 = vmatpush1.msra.mxu0 0.0
  %5832 = vmatprep.subr.mxu0 0.0
  %5833 = vmatpush1.msra.mxu0 0.0
  %5834 = vmatprep.subr.mxu0 0.0
  %5835 = vmatpush1.msra.mxu0 0.0
  %5836 = vmatprep.subr.mxu0 0.0
  %5837 = vmatpush1.msra.mxu0 0.0
  %5838 = vmatprep.subr.mxu0 0.0
  %5839 = vmatpush1.msra.mxu0 0.0
  %5840 = vmatprep.subr.mxu0 0.0
  %5841 = vmatpush1.msra.mxu0 0.0
  %5842 = vmatprep.subr.mxu0 0.0
  %5843 = vmatpush1.msra.mxu0 0.0
  %5844 = vmatprep.subr.mxu0 0.0
  %5845 = vmatpush1.msra.mxu0 0.0
  %5846 = vmatprep.subr.mxu0 0.0
  %5847 = vmatpush1.msra.mxu0 0.0
  %5848 = vmatprep.subr.mxu0 0.0
  %5849 = vmatpush1.msra.mxu0 0.0
  %5850 = vmatprep.mubr.f32.mxu0 0.0
  %5851 = vmatmul.mubr.f32.gmra.mrb[0].mxu0 %v5759
  %v5852 = vpop.f32.mrb[0].mxu0
  %v5853 = vadd.f32 %v5784, %v5852
  %v5854 = vpop.f32.mrb[0].mxu0
  %5855 = vmatprep.mubr.f32.mxu0 0.0
  %5856 = vmatmul.mubr.f32.gmra.mrb[0].mxu0 %v5760
  %v5857 = vpop.f32.mrb[0].mxu0
  %v5858 = vadd.f32 %v5784, %v5857
  %v5859 = vpop.f32.mrb[0].mxu0
  %5860 = vdwg.mxu0
  %v5861 = vmax.f32 %v5853, 0.0
  %v5862 = vmax.f32 %v5858, 0.0
  %s5863 = scalar_lea.vmem %s12, 256
  %v5864 = vld [vmem:[%s5863] sm:$0xff]
  %v5865 = vld [vmem:[%s5863 + $0x8] sm:$0xff]
  %v5866 = vld [vmem:[%s5863 + $0x10] sm:$0xff]
  %v5867 = vld [vmem:[%s5863 + $0x18] sm:$0xff]
  %v5868 = vld [vmem:[%s5863 + $0x20] sm:$0xff]
  %v5869 = vld [vmem:[%s5863 + $0x28] sm:$0xff]
  %v5870 = vld [vmem:[%s5863 + $0x30] sm:$0xff]
  %v5871 = vld [vmem:[%s5863 + $0x38] sm:$0xff]
  %v5872 = vld [vmem:[%s5863 + $0x40] sm:$0xff]
  %v5873 = vld [vmem:[%s5863 + $0x48] sm:$0xff]
  %v5874 = vld [vmem:[%s5863 + $0x50] sm:$0xff]
  %v5875 = vld [vmem:[%s5863 + $0x58] sm:$0xff]
  %v5876 = vld [vmem:[%s5863 + $0x60] sm:$0xff]
  %v5877 = vld [vmem:[%s5863 + $0x68] sm:$0xff]
  %v5878 = vld [vmem:[%s5863 + $0x70] sm:$0xff]
  %v5879 = vld [vmem:[%s5863 + $0x78] sm:$0xff]
  %s5880 = scalar_lea.vmem %s13, 2
  %v5881 = vld [vmem:[%s5880] sm:$0x1]
  %v5883 = vlaneseq
  %v5884 = vshrl.u32 %v5883, 7
  %v5885 = vsub.s32 0, %v5884
  %v5886 = vrot.slane %v5881, %v5885
  %5888 = vmatprep.subr.mxu0 0.0
  %5889 = vmatpush1.msra.mxu0 %v5864
  %5890 = vmatprep.subr.mxu0 0.0
  %5891 = vmatpush1.msra.mxu0 %v5865
  %5892 = vmatprep.subr.mxu0 0.0
  %5893 = vmatpush1.msra.mxu0 %v5866
  %5894 = vmatprep.subr.mxu0 0.0
  %5895 = vmatpush1.msra.mxu0 %v5867
  %5896 = vmatprep.subr.mxu0 0.0
  %5897 = vmatpush1.msra.mxu0 %v5868
  %5898 = vmatprep.subr.mxu0 0.0
  %5899 = vmatpush1.msra.mxu0 %v5869
  %5900 = vmatprep.subr.mxu0 0.0
  %5901 = vmatpush1.msra.mxu0 %v5870
  %5902 = vmatprep.subr.mxu0 0.0
  %5903 = vmatpush1.msra.mxu0 %v5871
  %5904 = vmatprep.subr.mxu0 0.0
  %5905 = vmatpush1.msra.mxu0 %v5872
  %5906 = vmatprep.subr.mxu0 0.0
  %5907 = vmatpush1.msra.mxu0 %v5873
  %5908 = vmatprep.subr.mxu0 0.0
  %5909 = vmatpush1.msra.mxu0 %v5874
  %5910 = vmatprep.subr.mxu0 0.0
  %5911 = vmatpush1.msra.mxu0 %v5875
  %5912 = vmatprep.subr.mxu0 0.0
  %5913 = vmatpush1.msra.mxu0 %v5876
  %5914 = vmatprep.subr.mxu0 0.0
  %5915 = vmatpush1.msra.mxu0 %v5877
  %5916 = vmatprep.subr.mxu0 0.0
  %5917 = vmatpush1.msra.mxu0 %v5878
  %5918 = vmatprep.subr.mxu0 0.0
  %5919 = vmatpush1.msra.mxu0 %v5879
  %5920 = vmatprep.subr.mxu0 0.0
  %5921 = vmatpush1.msra.mxu0 0.0
  %5922 = vmatprep.subr.mxu0 0.0
  %5923 = vmatpush1.msra.mxu0 0.0
  %5924 = vmatprep.subr.mxu0 0.0
  %5925 = vmatpush1.msra.mxu0 0.0
  %5926 = vmatprep.subr.mxu0 0.0
  %5927 = vmatpush1.msra.mxu0 0.0
  %5928 = vmatprep.subr.mxu0 0.0
  %5929 = vmatpush1.msra.mxu0 0.0
  %5930 = vmatprep.subr.mxu0 0.0
  %5931 = vmatpush1.msra.mxu0 0.0
  %5932 = vmatprep.subr.mxu0 0.0
  %5933 = vmatpush1.msra.mxu0 0.0
  %5934 = vmatprep.subr.mxu0 0.0
  %5935 = vmatpush1.msra.mxu0 0.0
  %5936 = vmatprep.subr.mxu0 0.0
  %5937 = vmatpush1.msra.mxu0 0.0
  %5938 = vmatprep.subr.mxu0 0.0
  %5939 = vmatpush1.msra.mxu0 0.0
  %5940 = vmatprep.subr.mxu0 0.0
  %5941 = vmatpush1.msra.mxu0 0.0
  %5942 = vmatprep.subr.mxu0 0.0
  %5943 = vmatpush1.msra.mxu0 0.0
  %5944 = vmatprep.subr.mxu0 0.0
  %5945 = vmatpush1.msra.mxu0 0.0
  %5946 = vmatprep.subr.mxu0 0.0
  %5947 = vmatpush1.msra.mxu0 0.0
  %5948 = vmatprep.subr.mxu0 0.0
  %5949 = vmatpush1.msra.mxu0 0.0
  %5950 = vmatprep.subr.mxu0 0.0
  %5951 = vmatpush1.msra.mxu0 0.0
  %5952 = vmatprep.mubr.f32.mxu0 0.0
  %5953 = vmatmul.mubr.f32.gmra.mrb[0].mxu0 %v5861
  %v5954 = vpop.f32.mrb[0].mxu0
  %v5955 = vadd.f32 %v5886, %v5954
  %v5956 = vpop.f32.mrb[0].mxu0
  %5957 = vmatprep.mubr.f32.mxu0 0.0
  %5958 = vmatmul.mubr.f32.gmra.mrb[0].mxu0 %v5862
  %v5959 = vpop.f32.mrb[0].mxu0
  %v5960 = vadd.f32 %v5886, %v5959
  %v5961 = vpop.f32.mrb[0].mxu0
  %5962 = vdwg.mxu0
  %v5963 = vadd.f32 %v5759, %v5955
  %v5964 = vadd.f32 %v5760, %v5960
  %s5965 = scalar_lea.vmem %s14, 2
  %v5966 = vld [vmem:[%s5965] sm:$0x1]
  %s5967 = scalar_lea.vmem %s15, 2
  %v5968 = vld [vmem:[%s5967] sm:$0x1]
  %5969 = vadd.xlane.f32.xlu0 %v5963
  %v5970 = vpop.xlane.xlu0 %5969
  %5971 = vadd.xlane.f32.xlu0 %v5964
  %v5972 = vpop.xlane.xlu0 %5971
  %v5973 = vmul.f32 %v5970, %v1830
  %v5974 = vmul.f32 %v5972, %v1830
  %v5975 = vsub.f32 %v5963, %v5973
  %v5976 = vsub.f32 %v5964, %v5974
  %v5977 = vmul.f32 %v5975, %v5975
  %v5978 = vmul.f32 %v5976, %v5976
  %5979 = vadd.xlane.f32.xlu0 %v5977
  %v5980 = vpop.xlane.xlu0 %5979
  %5981 = vadd.xlane.f32.xlu0 %v5978
  %v5982 = vpop.xlane.xlu0 %5981
  %v5983 = vmul.f32 %v5980, %v1830
  %v5984 = vmul.f32 %v5982, %v1830
  %v5985 = vadd.f32 %v5983, 1e-05
  %v5986 = vadd.f32 %v5984, 1e-05
  %v5987 = vrsqrt.pop %v5985
  %v5988 = vrsqrt.pop %v5986
  %v5989 = vmul.f32 %v5975, %v5987
  %v5990 = vmul.f32 %v5976, %v5988
  %v5992 = vlaneseq
  %v5993 = vshrl.u32 %v5992, 7
  %v5994 = vsub.s32 0, %v5993
  %v5995 = vrot.slane %v5966, %v5994
  %v5997 = vmul.f32 %v5989, %v5995
  %v5998 = vmul.f32 %v5990, %v5995
  %v6000 = vlaneseq
  %v6001 = vshrl.u32 %v6000, 7
  %v6002 = vsub.s32 0, %v6001
  %v6003 = vrot.slane %v5968, %v6002
  %v6005 = vadd.f32 %v5997, %v6003
  %v6006 = vadd.f32 %v5998, %v6003
  %s6007 = scalar_lea.vmem %s4, 1152
  %v6008 = vld [vmem:[%s6007] sm:$0xff]
  %v6009 = vld [vmem:[%s6007 + $0x8] sm:$0xff]
  %v6010 = vld [vmem:[%s6007 + $0x10] sm:$0xff]
  %v6011 = vld [vmem:[%s6007 + $0x18] sm:$0xff]
  %v6012 = vld [vmem:[%s6007 + $0x20] sm:$0xff]
  %v6013 = vld [vmem:[%s6007 + $0x28] sm:$0xff]
  %v6014 = vld [vmem:[%s6007 + $0x30] sm:$0xff]
  %v6015 = vld [vmem:[%s6007 + $0x38] sm:$0xff]
  %v6016 = vld [vmem:[%s6007 + $0x40] sm:$0xff]
  %v6017 = vld [vmem:[%s6007 + $0x48] sm:$0xff]
  %v6018 = vld [vmem:[%s6007 + $0x50] sm:$0xff]
  %v6019 = vld [vmem:[%s6007 + $0x58] sm:$0xff]
  %v6020 = vld [vmem:[%s6007 + $0x60] sm:$0xff]
  %v6021 = vld [vmem:[%s6007 + $0x68] sm:$0xff]
  %v6022 = vld [vmem:[%s6007 + $0x70] sm:$0xff]
  %v6023 = vld [vmem:[%s6007 + $0x78] sm:$0xff]
  %v6024 = vld [vmem:[%s6007 + $0x80] sm:$0xff]
  %v6025 = vld [vmem:[%s6007 + $0x88] sm:$0xff]
  %v6026 = vld [vmem:[%s6007 + $0x90] sm:$0xff]
  %v6027 = vld [vmem:[%s6007 + $0x98] sm:$0xff]
  %v6028 = vld [vmem:[%s6007 + $0xa0] sm:$0xff]
  %v6029 = vld [vmem:[%s6007 + $0xa8] sm:$0xff]
  %v6030 = vld [vmem:[%s6007 + $0xb0] sm:$0xff]
  %v6031 = vld [vmem:[%s6007 + $0xb8] sm:$0xff]
  %v6032 = vld [vmem:[%s6007 + $0xc0] sm:$0xff]
  %v6033 = vld [vmem:[%s6007 + $0xc8] sm:$0xff]
  %v6034 = vld [vmem:[%s6007 + $0xd0] sm:$0xff]
  %v6035 = vld [vmem:[%s6007 + $0xd8] sm:$0xff]
  %v6036 = vld [vmem:[%s6007 + $0xe0] sm:$0xff]
  %v6037 = vld [vmem:[%s6007 + $0xe8] sm:$0xff]
  %v6038 = vld [vmem:[%s6007 + $0xf0] sm:$0xff]
  %v6039 = vld [vmem:[%s6007 + $0xf8] sm:$0xff]
  %v6040 = vld [vmem:[%s6007 + $0x100] sm:$0xff]
  %v6041 = vld [vmem:[%s6007 + $0x108] sm:$0xff]
  %v6042 = vld [vmem:[%s6007 + $0x110] sm:$0xff]
  %v6043 = vld [vmem:[%s6007 + $0x118] sm:$0xff]
  %v6044 = vld [vmem:[%s6007 + $0x120] sm:$0xff]
  %v6045 = vld [vmem:[%s6007 + $0x128] sm:$0xff]
  %v6046 = vld [vmem:[%s6007 + $0x130] sm:$0xff]
  %v6047 = vld [vmem:[%s6007 + $0x138] sm:$0xff]
  %v6048 = vld [vmem:[%s6007 + $0x140] sm:$0xff]
  %v6049 = vld [vmem:[%s6007 + $0x148] sm:$0xff]
  %v6050 = vld [vmem:[%s6007 + $0x150] sm:$0xff]
  %v6051 = vld [vmem:[%s6007 + $0x158] sm:$0xff]
  %v6052 = vld [vmem:[%s6007 + $0x160] sm:$0xff]
  %v6053 = vld [vmem:[%s6007 + $0x168] sm:$0xff]
  %v6054 = vld [vmem:[%s6007 + $0x170] sm:$0xff]
  %v6055 = vld [vmem:[%s6007 + $0x178] sm:$0xff]
  %s6056 = scalar_lea.vmem %s5, 9
  %v6057 = vld [vmem:[%s6056] sm:$0x7]
  %v6059 = vlaneseq
  %v6060 = vshrl.u32 %v6059, 7
  %v6061 = vsub.s32 0, %v6060
  %v6062 = vrot.slane %v6057, %v6061
  %v6063 = vlaneseq
  %v6064 = vshrl.u32 %v6063, 7
  %v6065 = vsub.s32 1, %v6064
  %v6066 = vrot.slane %v6057, %v6065
  %v6067 = vlaneseq
  %v6068 = vshrl.u32 %v6067, 7
  %v6069 = vsub.s32 2, %v6068
  %v6070 = vrot.slane %v6057, %v6069
  %6074 = vmatprep.subr.mxu0 %v6009
  %6075 = vmatpush1.msra.mxu0 %v6008
  %6076 = vmatprep.subr.mxu0 %v6012
  %6077 = vmatpush1.msra.mxu0 %v6011
  %6078 = vmatprep.subr.mxu0 %v6015
  %6079 = vmatpush1.msra.mxu0 %v6014
  %6080 = vmatprep.subr.mxu0 %v6018
  %6081 = vmatpush1.msra.mxu0 %v6017
  %6082 = vmatprep.subr.mxu0 %v6021
  %6083 = vmatpush1.msra.mxu0 %v6020
  %6084 = vmatprep.subr.mxu0 %v6024
  %6085 = vmatpush1.msra.mxu0 %v6023
  %6086 = vmatprep.subr.mxu0 %v6027
  %6087 = vmatpush1.msra.mxu0 %v6026
  %6088 = vmatprep.subr.mxu0 %v6030
  %6089 = vmatpush1.msra.mxu0 %v6029
  %6090 = vmatprep.subr.mxu0 %v6033
  %6091 = vmatpush1.msra.mxu0 %v6032
  %6092 = vmatprep.subr.mxu0 %v6036
  %6093 = vmatpush1.msra.mxu0 %v6035
  %6094 = vmatprep.subr.mxu0 %v6039
  %6095 = vmatpush1.msra.mxu0 %v6038
  %6096 = vmatprep.subr.mxu0 %v6042
  %6097 = vmatpush1.msra.mxu0 %v6041
  %6098 = vmatprep.subr.mxu0 %v6045
  %6099 = vmatpush1.msra.mxu0 %v6044
  %6100 = vmatprep.subr.mxu0 %v6048
  %6101 = vmatpush1.msra.mxu0 %v6047
  %6102 = vmatprep.subr.mxu0 %v6051
  %6103 = vmatpush1.msra.mxu0 %v6050
  %6104 = vmatprep.subr.mxu0 %v6054
  %6105 = vmatpush1.msra.mxu0 %v6053
  %6106 = vmatprep.subr.mxu0 0.0
  %6107 = vmatpush1.msra.mxu0 0.0
  %6108 = vmatprep.subr.mxu0 0.0
  %6109 = vmatpush1.msra.mxu0 0.0
  %6110 = vmatprep.subr.mxu0 0.0
  %6111 = vmatpush1.msra.mxu0 0.0
  %6112 = vmatprep.subr.mxu0 0.0
  %6113 = vmatpush1.msra.mxu0 0.0
  %6114 = vmatprep.subr.mxu0 0.0
  %6115 = vmatpush1.msra.mxu0 0.0
  %6116 = vmatprep.subr.mxu0 0.0
  %6117 = vmatpush1.msra.mxu0 0.0
  %6118 = vmatprep.subr.mxu0 0.0
  %6119 = vmatpush1.msra.mxu0 0.0
  %6120 = vmatprep.subr.mxu0 0.0
  %6121 = vmatpush1.msra.mxu0 0.0
  %6122 = vmatprep.subr.mxu0 0.0
  %6123 = vmatpush1.msra.mxu0 0.0
  %6124 = vmatprep.subr.mxu0 0.0
  %6125 = vmatpush1.msra.mxu0 0.0
  %6126 = vmatprep.subr.mxu0 0.0
  %6127 = vmatpush1.msra.mxu0 0.0
  %6128 = vmatprep.subr.mxu0 0.0
  %6129 = vmatpush1.msra.mxu0 0.0
  %6130 = vmatprep.subr.mxu0 0.0
  %6131 = vmatpush1.msra.mxu0 0.0
  %6132 = vmatprep.subr.mxu0 0.0
  %6133 = vmatpush1.msra.mxu0 0.0
  %6134 = vmatprep.subr.mxu0 0.0
  %6135 = vmatpush1.msra.mxu0 0.0
  %6136 = vmatprep.subr.mxu0 0.0
  %6137 = vmatpush1.msra.mxu0 0.0
  %6138 = vmatprep.mubr.f32.mxu0 0.0
  %6139 = vmatmul.mubr.f32.gmra.mrb[0].mxu0 %v6005
  %v6140 = vpop.f32.mrb[0].mxu0
  %v6141 = vadd.f32 %v6062, %v6140
  %v6142 = vpop.f32.mrb[0].mxu0
  %v6143 = vadd.f32 %v6066, %v6142
  %6144 = vmatprep.mubr.f32.mxu0 0.0
  %6145 = vmatmul.mubr.f32.gmra.mrb[0].mxu0 %v6006
  %v6146 = vpop.f32.mrb[0].mxu0
  %v6147 = vadd.f32 %v6062, %v6146
  %v6148 = vpop.f32.mrb[0].mxu0
  %v6149 = vadd.f32 %v6066, %v6148
  %6150 = vdwg.mxu0
  %6151 = vmatprep.subr.mxu0 0.0
  %6152 = vmatpush1.msra.mxu0 %v6010
  %6153 = vmatprep.subr.mxu0 0.0
  %6154 = vmatpush1.msra.mxu0 %v6013
  %6155 = vmatprep.subr.mxu0 0.0
  %6156 = vmatpush1.msra.mxu0 %v6016
  %6157 = vmatprep.subr.mxu0 0.0
  %6158 = vmatpush1.msra.mxu0 %v6019
  %6159 = vmatprep.subr.mxu0 0.0
  %6160 = vmatpush1.msra.mxu0 %v6022
  %6161 = vmatprep.subr.mxu0 0.0
  %6162 = vmatpush1.msra.mxu0 %v6025
  %6163 = vmatprep.subr.mxu0 0.0
  %6164 = vmatpush1.msra.mxu0 %v6028
  %6165 = vmatprep.subr.mxu0 0.0
  %6166 = vmatpush1.msra.mxu0 %v6031
  %6167 = vmatprep.subr.mxu0 0.0
  %6168 = vmatpush1.msra.mxu0 %v6034
  %6169 = vmatprep.subr.mxu0 0.0
  %6170 = vmatpush1.msra.mxu0 %v6037
  %6171 = vmatprep.subr.mxu0 0.0
  %6172 = vmatpush1.msra.mxu0 %v6040
  %6173 = vmatprep.subr.mxu0 0.0
  %6174 = vmatpush1.msra.mxu0 %v6043
  %6175 = vmatprep.subr.mxu0 0.0
  %6176 = vmatpush1.msra.mxu0 %v6046
  %6177 = vmatprep.subr.mxu0 0.0
  %6178 = vmatpush1.msra.mxu0 %v6049
  %6179 = vmatprep.subr.mxu0 0.0
  %6180 = vmatpush1.msra.mxu0 %v6052
  %6181 = vmatprep.subr.mxu0 0.0
  %6182 = vmatpush1.msra.mxu0 %v6055
  %6183 = vmatprep.subr.mxu0 0.0
  %6184 = vmatpush1.msra.mxu0 0.0
  %6185 = vmatprep.subr.mxu0 0.0
  %6186 = vmatpush1.msra.mxu0 0.0
  %6187 = vmatprep.subr.mxu0 0.0
  %6188 = vmatpush1.msra.mxu0 0.0
  %6189 = vmatprep.subr.mxu0 0.0
  %6190 = vmatpush1.msra.mxu0 0.0
  %6191 = vmatprep.subr.mxu0 0.0
  %6192 = vmatpush1.msra.mxu0 0.0
  %6193 = vmatprep.subr.mxu0 0.0
  %6194 = vmatpush1.msra.mxu0 0.0
  %6195 = vmatprep.subr.mxu0 0.0
  %6196 = vmatpush1.msra.mxu0 0.0
  %6197 = vmatprep.subr.mxu0 0.0
  %6198 = vmatpush1.msra.mxu0 0.0
  %6199 = vmatprep.subr.mxu0 0.0
  %6200 = vmatpush1.msra.mxu0 0.0
  %6201 = vmatprep.subr.mxu0 0.0
  %6202 = vmatpush1.msra.mxu0 0.0
  %6203 = vmatprep.subr.mxu0 0.0
  %6204 = vmatpush1.msra.mxu0 0.0
  %6205 = vmatprep.subr.mxu0 0.0
  %6206 = vmatpush1.msra.mxu0 0.0
  %6207 = vmatprep.subr.mxu0 0.0
  %6208 = vmatpush1.msra.mxu0 0.0
  %6209 = vmatprep.subr.mxu0 0.0
  %6210 = vmatpush1.msra.mxu0 0.0
  %6211 = vmatprep.subr.mxu0 0.0
  %6212 = vmatpush1.msra.mxu0 0.0
  %6213 = vmatprep.subr.mxu0 0.0
  %6214 = vmatpush1.msra.mxu0 0.0
  %6215 = vmatprep.mubr.f32.mxu0 0.0
  %6216 = vmatmul.mubr.f32.gmra.mrb[0].mxu0 %v6005
  %v6217 = vpop.f32.mrb[0].mxu0
  %v6218 = vadd.f32 %v6070, %v6217
  %v6219 = vpop.f32.mrb[0].mxu0
  %6220 = vmatprep.mubr.f32.mxu0 0.0
  %6221 = vmatmul.mubr.f32.gmra.mrb[0].mxu0 %v6006
  %v6222 = vpop.f32.mrb[0].mxu0
  %v6223 = vadd.f32 %v6070, %v6222
  %v6224 = vpop.f32.mrb[0].mxu0
  %6225 = vdwg.mxu0
  %v6227 = vsel %vm378, %v6141, 0
  %v6230 = vsel %vm378, %v6143, 0
  %6232 = vmatprep.subr.mxu0 0.0
  %6233 = vmatpush1.xpose.msra.mxu0 %v6230
  %6234 = vmatprep.subr.mxu0 0.0
  %6235 = vmatpush1.xpose.msra.mxu0 0.0
  %6236 = vmatprep.subr.mxu0 0.0
  %6237 = vmatpush1.xpose.msra.mxu0 0.0
  %6238 = vmatprep.subr.mxu0 0.0
  %6239 = vmatpush1.xpose.msra.mxu0 0.0
  %6240 = vmatprep.subr.mxu0 0.0
  %6241 = vmatpush1.xpose.msra.mxu0 0.0
  %6242 = vmatprep.subr.mxu0 0.0
  %6243 = vmatpush1.xpose.msra.mxu0 0.0
  %6244 = vmatprep.subr.mxu0 0.0
  %6245 = vmatpush1.xpose.msra.mxu0 0.0
  %6246 = vmatprep.subr.mxu0 0.0
  %6247 = vmatpush1.xpose.msra.mxu0 0.0
  %6248 = vmatprep.subr.mxu0 0.0
  %6249 = vmatpush1.xpose.msra.mxu0 0.0
  %6250 = vmatprep.subr.mxu0 0.0
  %6251 = vmatpush1.xpose.msra.mxu0 0.0
  %6252 = vmatprep.subr.mxu0 0.0
  %6253 = vmatpush1.xpose.msra.mxu0 0.0
  %6254 = vmatprep.subr.mxu0 0.0
  %6255 = vmatpush1.xpose.msra.mxu0 0.0
  %6256 = vmatprep.subr.mxu0 0.0
  %6257 = vmatpush1.xpose.msra.mxu0 0.0
  %6258 = vmatprep.subr.mxu0 0.0
  %6259 = vmatpush1.xpose.msra.mxu0 0.0
  %6260 = vmatprep.subr.mxu0 0.0
  %6261 = vmatpush1.xpose.msra.mxu0 0.0
  %6262 = vmatprep.subr.mxu0 0.0
  %6263 = vmatpush1.xpose.msra.mxu0 0.0
  %6264 = vmatprep.subr.mxu0 0.0
  %6265 = vmatpush1.xpose.msra.mxu0 0.0
  %6266 = vmatprep.subr.mxu0 0.0
  %6267 = vmatpush1.xpose.msra.mxu0 0.0
  %6268 = vmatprep.subr.mxu0 0.0
  %6269 = vmatpush1.xpose.msra.mxu0 0.0
  %6270 = vmatprep.subr.mxu0 0.0
  %6271 = vmatpush1.xpose.msra.mxu0 0.0
  %6272 = vmatprep.subr.mxu0 0.0
  %6273 = vmatpush1.xpose.msra.mxu0 0.0
  %6274 = vmatprep.subr.mxu0 0.0
  %6275 = vmatpush1.xpose.msra.mxu0 0.0
  %6276 = vmatprep.subr.mxu0 0.0
  %6277 = vmatpush1.xpose.msra.mxu0 0.0
  %6278 = vmatprep.subr.mxu0 0.0
  %6279 = vmatpush1.xpose.msra.mxu0 0.0
  %6280 = vmatprep.subr.mxu0 0.0
  %6281 = vmatpush1.xpose.msra.mxu0 0.0
  %6282 = vmatprep.subr.mxu0 0.0
  %6283 = vmatpush1.xpose.msra.mxu0 0.0
  %6284 = vmatprep.subr.mxu0 0.0
  %6285 = vmatpush1.xpose.msra.mxu0 0.0
  %6286 = vmatprep.subr.mxu0 0.0
  %6287 = vmatpush1.xpose.msra.mxu0 0.0
  %6288 = vmatprep.subr.mxu0 0.0
  %6289 = vmatpush1.xpose.msra.mxu0 0.0
  %6290 = vmatprep.subr.mxu0 0.0
  %6291 = vmatpush1.xpose.msra.mxu0 0.0
  %6292 = vmatprep.subr.mxu0 0.0
  %6293 = vmatpush1.xpose.msra.mxu0 0.0
  %6294 = vmatprep.subr.mxu0 0.0
  %6295 = vmatpush1.xpose.msra.mxu0 0.0
  %6296 = vmatprep.mubr.f32.mxu0 0.0
  %6297 = vmatmul.mubr.f32.gmra.mrb[0].mxu0 %v6227
  %v6298 = vpop.f32.mrb[0].mxu0
  %v6299 = vadd.f32 %v154, %v6298
  %v6300 = vpop.f32.mrb[0].mxu0
  %6301 = vdwg.mxu0
  %v6303 = vsel %vm378, %v6147, 0
  %v6306 = vsel %vm378, %v6149, 0
  %6308 = vmatprep.subr.mxu0 0.0
  %6309 = vmatpush1.xpose.msra.mxu0 %v6306
  %6310 = vmatprep.subr.mxu0 0.0
  %6311 = vmatpush1.xpose.msra.mxu0 0.0
  %6312 = vmatprep.subr.mxu0 0.0
  %6313 = vmatpush1.xpose.msra.mxu0 0.0
  %6314 = vmatprep.subr.mxu0 0.0
  %6315 = vmatpush1.xpose.msra.mxu0 0.0
  %6316 = vmatprep.subr.mxu0 0.0
  %6317 = vmatpush1.xpose.msra.mxu0 0.0
  %6318 = vmatprep.subr.mxu0 0.0
  %6319 = vmatpush1.xpose.msra.mxu0 0.0
  %6320 = vmatprep.subr.mxu0 0.0
  %6321 = vmatpush1.xpose.msra.mxu0 0.0
  %6322 = vmatprep.subr.mxu0 0.0
  %6323 = vmatpush1.xpose.msra.mxu0 0.0
  %6324 = vmatprep.subr.mxu0 0.0
  %6325 = vmatpush1.xpose.msra.mxu0 0.0
  %6326 = vmatprep.subr.mxu0 0.0
  %6327 = vmatpush1.xpose.msra.mxu0 0.0
  %6328 = vmatprep.subr.mxu0 0.0
  %6329 = vmatpush1.xpose.msra.mxu0 0.0
  %6330 = vmatprep.subr.mxu0 0.0
  %6331 = vmatpush1.xpose.msra.mxu0 0.0
  %6332 = vmatprep.subr.mxu0 0.0
  %6333 = vmatpush1.xpose.msra.mxu0 0.0
  %6334 = vmatprep.subr.mxu0 0.0
  %6335 = vmatpush1.xpose.msra.mxu0 0.0
  %6336 = vmatprep.subr.mxu0 0.0
  %6337 = vmatpush1.xpose.msra.mxu0 0.0
  %6338 = vmatprep.subr.mxu0 0.0
  %6339 = vmatpush1.xpose.msra.mxu0 0.0
  %6340 = vmatprep.subr.mxu0 0.0
  %6341 = vmatpush1.xpose.msra.mxu0 0.0
  %6342 = vmatprep.subr.mxu0 0.0
  %6343 = vmatpush1.xpose.msra.mxu0 0.0
  %6344 = vmatprep.subr.mxu0 0.0
  %6345 = vmatpush1.xpose.msra.mxu0 0.0
  %6346 = vmatprep.subr.mxu0 0.0
  %6347 = vmatpush1.xpose.msra.mxu0 0.0
  %6348 = vmatprep.subr.mxu0 0.0
  %6349 = vmatpush1.xpose.msra.mxu0 0.0
  %6350 = vmatprep.subr.mxu0 0.0
  %6351 = vmatpush1.xpose.msra.mxu0 0.0
  %6352 = vmatprep.subr.mxu0 0.0
  %6353 = vmatpush1.xpose.msra.mxu0 0.0
  %6354 = vmatprep.subr.mxu0 0.0
  %6355 = vmatpush1.xpose.msra.mxu0 0.0
  %6356 = vmatprep.subr.mxu0 0.0
  %6357 = vmatpush1.xpose.msra.mxu0 0.0
  %6358 = vmatprep.subr.mxu0 0.0
  %6359 = vmatpush1.xpose.msra.mxu0 0.0
  %6360 = vmatprep.subr.mxu0 0.0
  %6361 = vmatpush1.xpose.msra.mxu0 0.0
  %6362 = vmatprep.subr.mxu0 0.0
  %6363 = vmatpush1.xpose.msra.mxu0 0.0
  %6364 = vmatprep.subr.mxu0 0.0
  %6365 = vmatpush1.xpose.msra.mxu0 0.0
  %6366 = vmatprep.subr.mxu0 0.0
  %6367 = vmatpush1.xpose.msra.mxu0 0.0
  %6368 = vmatprep.subr.mxu0 0.0
  %6369 = vmatpush1.xpose.msra.mxu0 0.0
  %6370 = vmatprep.subr.mxu0 0.0
  %6371 = vmatpush1.xpose.msra.mxu0 0.0
  %6372 = vmatprep.mubr.f32.mxu0 0.0
  %6373 = vmatmul.mubr.f32.gmra.mrb[0].mxu0 %v6303
  %v6374 = vpop.f32.mrb[0].mxu0
  %v6375 = vadd.f32 %v158, %v6374
  %v6376 = vpop.f32.mrb[0].mxu0
  %6377 = vdwg.mxu0
  %v6378 = vsel %vm531, %v6299, -inf
  %6379 = vmax.xlane.f32.xlu0 %v6378
  %v6380 = vpop.xlane.xlu0 %6379
  %v6381 = vsel %vm531, %v6375, -inf
  %6382 = vmax.xlane.f32.xlu0 %v6381
  %v6383 = vpop.xlane.xlu0 %6382
  %v6384 = vsub.f32 %v6299, %v6380
  %v6385 = vsub.f32 %v6375, %v6383
  %v6386 = vmul.f32 %v6384, 1.442695
  %v6387 = vpow.pop %v6386
  %v6388 = vmul.f32 %v6385, 1.442695
  %v6389 = vpow.pop %v6388
  %v6390 = vsel %vm531, %v6387, 0.0
  %6391 = vadd.xlane.f32.xlu0 %v6390
  %v6392 = vpop.xlane.xlu0 %6391
  %v6393 = vsel %vm531, %v6389, 0.0
  %6394 = vadd.xlane.f32.xlu0 %v6393
  %v6395 = vpop.xlane.xlu0 %6394
  %v6396 = vrcp.pop %v6392
  %v6397 = vmul.f32 %v6387, %v6396
  %v6398 = vrcp.pop %v6395
  %v6399 = vmul.f32 %v6389, %v6398
  %v6401 = vsel %vm531, %v6397, 0
  %6403 = vmatprep.subr.mxu0 0.0
  %6404 = vmatpush1.msra.mxu0 %v6218
  %6405 = vmatprep.subr.mxu0 0.0
  %6406 = vmatpush1.msra.mxu0 0.0
  %6407 = vmatprep.subr.mxu0 0.0
  %6408 = vmatpush1.msra.mxu0 0.0
  %6409 = vmatprep.subr.mxu0 0.0
  %6410 = vmatpush1.msra.mxu0 0.0
  %6411 = vmatprep.subr.mxu0 0.0
  %6412 = vmatpush1.msra.mxu0 0.0
  %6413 = vmatprep.subr.mxu0 0.0
  %6414 = vmatpush1.msra.mxu0 0.0
  %6415 = vmatprep.subr.mxu0 0.0
  %6416 = vmatpush1.msra.mxu0 0.0
  %6417 = vmatprep.subr.mxu0 0.0
  %6418 = vmatpush1.msra.mxu0 0.0
  %6419 = vmatprep.subr.mxu0 0.0
  %6420 = vmatpush1.msra.mxu0 0.0
  %6421 = vmatprep.subr.mxu0 0.0
  %6422 = vmatpush1.msra.mxu0 0.0
  %6423 = vmatprep.subr.mxu0 0.0
  %6424 = vmatpush1.msra.mxu0 0.0
  %6425 = vmatprep.subr.mxu0 0.0
  %6426 = vmatpush1.msra.mxu0 0.0
  %6427 = vmatprep.subr.mxu0 0.0
  %6428 = vmatpush1.msra.mxu0 0.0
  %6429 = vmatprep.subr.mxu0 0.0
  %6430 = vmatpush1.msra.mxu0 0.0
  %6431 = vmatprep.subr.mxu0 0.0
  %6432 = vmatpush1.msra.mxu0 0.0
  %6433 = vmatprep.subr.mxu0 0.0
  %6434 = vmatpush1.msra.mxu0 0.0
  %6435 = vmatprep.subr.mxu0 0.0
  %6436 = vmatpush1.msra.mxu0 0.0
  %6437 = vmatprep.subr.mxu0 0.0
  %6438 = vmatpush1.msra.mxu0 0.0
  %6439 = vmatprep.subr.mxu0 0.0
  %6440 = vmatpush1.msra.mxu0 0.0
  %6441 = vmatprep.subr.mxu0 0.0
  %6442 = vmatpush1.msra.mxu0 0.0
  %6443 = vmatprep.subr.mxu0 0.0
  %6444 = vmatpush1.msra.mxu0 0.0
  %6445 = vmatprep.subr.mxu0 0.0
  %6446 = vmatpush1.msra.mxu0 0.0
  %6447 = vmatprep.subr.mxu0 0.0
  %6448 = vmatpush1.msra.mxu0 0.0
  %6449 = vmatprep.subr.mxu0 0.0
  %6450 = vmatpush1.msra.mxu0 0.0
  %6451 = vmatprep.subr.mxu0 0.0
  %6452 = vmatpush1.msra.mxu0 0.0
  %6453 = vmatprep.subr.mxu0 0.0
  %6454 = vmatpush1.msra.mxu0 0.0
  %6455 = vmatprep.subr.mxu0 0.0
  %6456 = vmatpush1.msra.mxu0 0.0
  %6457 = vmatprep.subr.mxu0 0.0
  %6458 = vmatpush1.msra.mxu0 0.0
  %6459 = vmatprep.subr.mxu0 0.0
  %6460 = vmatpush1.msra.mxu0 0.0
  %6461 = vmatprep.subr.mxu0 0.0
  %6462 = vmatpush1.msra.mxu0 0.0
  %6463 = vmatprep.subr.mxu0 0.0
  %6464 = vmatpush1.msra.mxu0 0.0
  %6465 = vmatprep.subr.mxu0 0.0
  %6466 = vmatpush1.msra.mxu0 0.0
  %6467 = vmatprep.mubr.f32.mxu0 0.0
  %6468 = vmatmul.mubr.f32.gmra.mrb[0].mxu0 %v6401
  %v6469 = vpop.f32.mrb[0].mxu0
  %v6470 = vadd.f32 0.0, %v6469
  %v6471 = vpop.f32.mrb[0].mxu0
  %6472 = vdwg.mxu0
  %v6474 = vsel %vm531, %v6399, 0
  %6476 = vmatprep.subr.mxu0 0.0
  %6477 = vmatpush1.msra.mxu0 %v6223
  %6478 = vmatprep.subr.mxu0 0.0
  %6479 = vmatpush1.msra.mxu0 0.0
  %6480 = vmatprep.subr.mxu0 0.0
  %6481 = vmatpush1.msra.mxu0 0.0
  %6482 = vmatprep.subr.mxu0 0.0
  %6483 = vmatpush1.msra.mxu0 0.0
  %6484 = vmatprep.subr.mxu0 0.0
  %6485 = vmatpush1.msra.mxu0 0.0
  %6486 = vmatprep.subr.mxu0 0.0
  %6487 = vmatpush1.msra.mxu0 0.0
  %6488 = vmatprep.subr.mxu0 0.0
  %6489 = vmatpush1.msra.mxu0 0.0
  %6490 = vmatprep.subr.mxu0 0.0
  %6491 = vmatpush1.msra.mxu0 0.0
  %6492 = vmatprep.subr.mxu0 0.0
  %6493 = vmatpush1.msra.mxu0 0.0
  %6494 = vmatprep.subr.mxu0 0.0
  %6495 = vmatpush1.msra.mxu0 0.0
  %6496 = vmatprep.subr.mxu0 0.0
  %6497 = vmatpush1.msra.mxu0 0.0
  %6498 = vmatprep.subr.mxu0 0.0
  %6499 = vmatpush1.msra.mxu0 0.0
  %6500 = vmatprep.subr.mxu0 0.0
  %6501 = vmatpush1.msra.mxu0 0.0
  %6502 = vmatprep.subr.mxu0 0.0
  %6503 = vmatpush1.msra.mxu0 0.0
  %6504 = vmatprep.subr.mxu0 0.0
  %6505 = vmatpush1.msra.mxu0 0.0
  %6506 = vmatprep.subr.mxu0 0.0
  %6507 = vmatpush1.msra.mxu0 0.0
  %6508 = vmatprep.subr.mxu0 0.0
  %6509 = vmatpush1.msra.mxu0 0.0
  %6510 = vmatprep.subr.mxu0 0.0
  %6511 = vmatpush1.msra.mxu0 0.0
  %6512 = vmatprep.subr.mxu0 0.0
  %6513 = vmatpush1.msra.mxu0 0.0
  %6514 = vmatprep.subr.mxu0 0.0
  %6515 = vmatpush1.msra.mxu0 0.0
  %6516 = vmatprep.subr.mxu0 0.0
  %6517 = vmatpush1.msra.mxu0 0.0
  %6518 = vmatprep.subr.mxu0 0.0
  %6519 = vmatpush1.msra.mxu0 0.0
  %6520 = vmatprep.subr.mxu0 0.0
  %6521 = vmatpush1.msra.mxu0 0.0
  %6522 = vmatprep.subr.mxu0 0.0
  %6523 = vmatpush1.msra.mxu0 0.0
  %6524 = vmatprep.subr.mxu0 0.0
  %6525 = vmatpush1.msra.mxu0 0.0
  %6526 = vmatprep.subr.mxu0 0.0
  %6527 = vmatpush1.msra.mxu0 0.0
  %6528 = vmatprep.subr.mxu0 0.0
  %6529 = vmatpush1.msra.mxu0 0.0
  %6530 = vmatprep.subr.mxu0 0.0
  %6531 = vmatpush1.msra.mxu0 0.0
  %6532 = vmatprep.subr.mxu0 0.0
  %6533 = vmatpush1.msra.mxu0 0.0
  %6534 = vmatprep.subr.mxu0 0.0
  %6535 = vmatpush1.msra.mxu0 0.0
  %6536 = vmatprep.subr.mxu0 0.0
  %6537 = vmatpush1.msra.mxu0 0.0
  %6538 = vmatprep.subr.mxu0 0.0
  %6539 = vmatpush1.msra.mxu0 0.0
  %6540 = vmatprep.mubr.f32.mxu0 0.0
  %6541 = vmatmul.mubr.f32.gmra.mrb[0].mxu0 %v6474
  %v6542 = vpop.f32.mrb[0].mxu0
  %v6543 = vadd.f32 0.0, %v6542
  %v6544 = vpop.f32.mrb[0].mxu0
  %6545 = vdwg.mxu0
  %6546 = vrot.lane.b32.xlu0 %v6141, 96
  %v6547 = vpop.permute.xlu0 %6546
  %6548 = vrot.lane.b32.xlu0 %v6143, 96
  %v6549 = vpop.permute.xlu0 %6548
  %v6550 = vsel %vm378, %v6547, 0
  %v6552 = vsel %vm378, %v6549, 0
  %6554 = vmatprep.subr.mxu0 0.0
  %6555 = vmatpush1.xpose.msra.mxu0 %v6552
  %6556 = vmatprep.subr.mxu0 0.0
  %6557 = vmatpush1.xpose.msra.mxu0 0.0
  %6558 = vmatprep.subr.mxu0 0.0
  %6559 = vmatpush1.xpose.msra.mxu0 0.0
  %6560 = vmatprep.subr.mxu0 0.0
  %6561 = vmatpush1.xpose.msra.mxu0 0.0
  %6562 = vmatprep.subr.mxu0 0.0
  %6563 = vmatpush1.xpose.msra.mxu0 0.0
  %6564 = vmatprep.subr.mxu0 0.0
  %6565 = vmatpush1.xpose.msra.mxu0 0.0
  %6566 = vmatprep.subr.mxu0 0.0
  %6567 = vmatpush1.xpose.msra.mxu0 0.0
  %6568 = vmatprep.subr.mxu0 0.0
  %6569 = vmatpush1.xpose.msra.mxu0 0.0
  %6570 = vmatprep.subr.mxu0 0.0
  %6571 = vmatpush1.xpose.msra.mxu0 0.0
  %6572 = vmatprep.subr.mxu0 0.0
  %6573 = vmatpush1.xpose.msra.mxu0 0.0
  %6574 = vmatprep.subr.mxu0 0.0
  %6575 = vmatpush1.xpose.msra.mxu0 0.0
  %6576 = vmatprep.subr.mxu0 0.0
  %6577 = vmatpush1.xpose.msra.mxu0 0.0
  %6578 = vmatprep.subr.mxu0 0.0
  %6579 = vmatpush1.xpose.msra.mxu0 0.0
  %6580 = vmatprep.subr.mxu0 0.0
  %6581 = vmatpush1.xpose.msra.mxu0 0.0
  %6582 = vmatprep.subr.mxu0 0.0
  %6583 = vmatpush1.xpose.msra.mxu0 0.0
  %6584 = vmatprep.subr.mxu0 0.0
  %6585 = vmatpush1.xpose.msra.mxu0 0.0
  %6586 = vmatprep.subr.mxu0 0.0
  %6587 = vmatpush1.xpose.msra.mxu0 0.0
  %6588 = vmatprep.subr.mxu0 0.0
  %6589 = vmatpush1.xpose.msra.mxu0 0.0
  %6590 = vmatprep.subr.mxu0 0.0
  %6591 = vmatpush1.xpose.msra.mxu0 0.0
  %6592 = vmatprep.subr.mxu0 0.0
  %6593 = vmatpush1.xpose.msra.mxu0 0.0
  %6594 = vmatprep.subr.mxu0 0.0
  %6595 = vmatpush1.xpose.msra.mxu0 0.0
  %6596 = vmatprep.subr.mxu0 0.0
  %6597 = vmatpush1.xpose.msra.mxu0 0.0
  %6598 = vmatprep.subr.mxu0 0.0
  %6599 = vmatpush1.xpose.msra.mxu0 0.0
  %6600 = vmatprep.subr.mxu0 0.0
  %6601 = vmatpush1.xpose.msra.mxu0 0.0
  %6602 = vmatprep.subr.mxu0 0.0
  %6603 = vmatpush1.xpose.msra.mxu0 0.0
  %6604 = vmatprep.subr.mxu0 0.0
  %6605 = vmatpush1.xpose.msra.mxu0 0.0
  %6606 = vmatprep.subr.mxu0 0.0
  %6607 = vmatpush1.xpose.msra.mxu0 0.0
  %6608 = vmatprep.subr.mxu0 0.0
  %6609 = vmatpush1.xpose.msra.mxu0 0.0
  %6610 = vmatprep.subr.mxu0 0.0
  %6611 = vmatpush1.xpose.msra.mxu0 0.0
  %6612 = vmatprep.subr.mxu0 0.0
  %6613 = vmatpush1.xpose.msra.mxu0 0.0
  %6614 = vmatprep.subr.mxu0 0.0
  %6615 = vmatpush1.xpose.msra.mxu0 0.0
  %6616 = vmatprep.subr.mxu0 0.0
  %6617 = vmatpush1.xpose.msra.mxu0 0.0
  %6618 = vmatprep.mubr.f32.mxu0 0.0
  %6619 = vmatmul.mubr.f32.gmra.mrb[0].mxu0 %v6550
  %v6620 = vpop.f32.mrb[0].mxu0
  %v6621 = vadd.f32 %v154, %v6620
  %v6622 = vpop.f32.mrb[0].mxu0
  %6623 = vdwg.mxu0
  %6624 = vrot.lane.b32.xlu0 %v6147, 96
  %v6625 = vpop.permute.xlu0 %6624
  %6626 = vrot.lane.b32.xlu0 %v6149, 96
  %v6627 = vpop.permute.xlu0 %6626
  %v6628 = vsel %vm378, %v6625, 0
  %v6630 = vsel %vm378, %v6627, 0
  %6632 = vmatprep.subr.mxu0 0.0
  %6633 = vmatpush1.xpose.msra.mxu0 %v6630
  %6634 = vmatprep.subr.mxu0 0.0
  %6635 = vmatpush1.xpose.msra.mxu0 0.0
  %6636 = vmatprep.subr.mxu0 0.0
  %6637 = vmatpush1.xpose.msra.mxu0 0.0
  %6638 = vmatprep.subr.mxu0 0.0
  %6639 = vmatpush1.xpose.msra.mxu0 0.0
  %6640 = vmatprep.subr.mxu0 0.0
  %6641 = vmatpush1.xpose.msra.mxu0 0.0
  %6642 = vmatprep.subr.mxu0 0.0
  %6643 = vmatpush1.xpose.msra.mxu0 0.0
  %6644 = vmatprep.subr.mxu0 0.0
  %6645 = vmatpush1.xpose.msra.mxu0 0.0
  %6646 = vmatprep.subr.mxu0 0.0
  %6647 = vmatpush1.xpose.msra.mxu0 0.0
  %6648 = vmatprep.subr.mxu0 0.0
  %6649 = vmatpush1.xpose.msra.mxu0 0.0
  %6650 = vmatprep.subr.mxu0 0.0
  %6651 = vmatpush1.xpose.msra.mxu0 0.0
  %6652 = vmatprep.subr.mxu0 0.0
  %6653 = vmatpush1.xpose.msra.mxu0 0.0
  %6654 = vmatprep.subr.mxu0 0.0
  %6655 = vmatpush1.xpose.msra.mxu0 0.0
  %6656 = vmatprep.subr.mxu0 0.0
  %6657 = vmatpush1.xpose.msra.mxu0 0.0
  %6658 = vmatprep.subr.mxu0 0.0
  %6659 = vmatpush1.xpose.msra.mxu0 0.0
  %6660 = vmatprep.subr.mxu0 0.0
  %6661 = vmatpush1.xpose.msra.mxu0 0.0
  %6662 = vmatprep.subr.mxu0 0.0
  %6663 = vmatpush1.xpose.msra.mxu0 0.0
  %6664 = vmatprep.subr.mxu0 0.0
  %6665 = vmatpush1.xpose.msra.mxu0 0.0
  %6666 = vmatprep.subr.mxu0 0.0
  %6667 = vmatpush1.xpose.msra.mxu0 0.0
  %6668 = vmatprep.subr.mxu0 0.0
  %6669 = vmatpush1.xpose.msra.mxu0 0.0
  %6670 = vmatprep.subr.mxu0 0.0
  %6671 = vmatpush1.xpose.msra.mxu0 0.0
  %6672 = vmatprep.subr.mxu0 0.0
  %6673 = vmatpush1.xpose.msra.mxu0 0.0
  %6674 = vmatprep.subr.mxu0 0.0
  %6675 = vmatpush1.xpose.msra.mxu0 0.0
  %6676 = vmatprep.subr.mxu0 0.0
  %6677 = vmatpush1.xpose.msra.mxu0 0.0
  %6678 = vmatprep.subr.mxu0 0.0
  %6679 = vmatpush1.xpose.msra.mxu0 0.0
  %6680 = vmatprep.subr.mxu0 0.0
  %6681 = vmatpush1.xpose.msra.mxu0 0.0
  %6682 = vmatprep.subr.mxu0 0.0
  %6683 = vmatpush1.xpose.msra.mxu0 0.0
  %6684 = vmatprep.subr.mxu0 0.0
  %6685 = vmatpush1.xpose.msra.mxu0 0.0
  %6686 = vmatprep.subr.mxu0 0.0
  %6687 = vmatpush1.xpose.msra.mxu0 0.0
  %6688 = vmatprep.subr.mxu0 0.0
  %6689 = vmatpush1.xpose.msra.mxu0 0.0
  %6690 = vmatprep.subr.mxu0 0.0
  %6691 = vmatpush1.xpose.msra.mxu0 0.0
  %6692 = vmatprep.subr.mxu0 0.0
  %6693 = vmatpush1.xpose.msra.mxu0 0.0
  %6694 = vmatprep.subr.mxu0 0.0
  %6695 = vmatpush1.xpose.msra.mxu0 0.0
  %6696 = vmatprep.mubr.f32.mxu0 0.0
  %6697 = vmatmul.mubr.f32.gmra.mrb[0].mxu0 %v6628
  %v6698 = vpop.f32.mrb[0].mxu0
  %v6699 = vadd.f32 %v158, %v6698
  %v6700 = vpop.f32.mrb[0].mxu0
  %6701 = vdwg.mxu0
  %v6702 = vsel %vm531, %v6621, -inf
  %6703 = vmax.xlane.f32.xlu0 %v6702
  %v6704 = vpop.xlane.xlu0 %6703
  %v6705 = vsel %vm531, %v6699, -inf
  %6706 = vmax.xlane.f32.xlu0 %v6705
  %v6707 = vpop.xlane.xlu0 %6706
  %v6708 = vsub.f32 %v6621, %v6704
  %v6709 = vsub.f32 %v6699, %v6707
  %v6710 = vmul.f32 %v6708, 1.442695
  %v6711 = vpow.pop %v6710
  %v6712 = vmul.f32 %v6709, 1.442695
  %v6713 = vpow.pop %v6712
  %v6714 = vsel %vm531, %v6711, 0.0
  %6715 = vadd.xlane.f32.xlu0 %v6714
  %v6716 = vpop.xlane.xlu0 %6715
  %v6717 = vsel %vm531, %v6713, 0.0
  %6718 = vadd.xlane.f32.xlu0 %v6717
  %v6719 = vpop.xlane.xlu0 %6718
  %v6720 = vrcp.pop %v6716
  %v6721 = vmul.f32 %v6711, %v6720
  %v6722 = vrcp.pop %v6719
  %v6723 = vmul.f32 %v6713, %v6722
  %6725 = vrot.lane.b32.xlu0 %v6218, 96
  %v6726 = vpop.permute.xlu0 %6725
  %v6729 = vsel %vm531, %v6721, 0
  %6731 = vmatprep.subr.mxu0 0.0
  %6732 = vmatpush1.msra.mxu0 %v6726
  %6733 = vmatprep.subr.mxu0 0.0
  %6734 = vmatpush1.msra.mxu0 0.0
  %6735 = vmatprep.subr.mxu0 0.0
  %6736 = vmatpush1.msra.mxu0 0.0
  %6737 = vmatprep.subr.mxu0 0.0
  %6738 = vmatpush1.msra.mxu0 0.0
  %6739 = vmatprep.subr.mxu0 0.0
  %6740 = vmatpush1.msra.mxu0 0.0
  %6741 = vmatprep.subr.mxu0 0.0
  %6742 = vmatpush1.msra.mxu0 0.0
  %6743 = vmatprep.subr.mxu0 0.0
  %6744 = vmatpush1.msra.mxu0 0.0
  %6745 = vmatprep.subr.mxu0 0.0
  %6746 = vmatpush1.msra.mxu0 0.0
  %6747 = vmatprep.subr.mxu0 0.0
  %6748 = vmatpush1.msra.mxu0 0.0
  %6749 = vmatprep.subr.mxu0 0.0
  %6750 = vmatpush1.msra.mxu0 0.0
  %6751 = vmatprep.subr.mxu0 0.0
  %6752 = vmatpush1.msra.mxu0 0.0
  %6753 = vmatprep.subr.mxu0 0.0
  %6754 = vmatpush1.msra.mxu0 0.0
  %6755 = vmatprep.subr.mxu0 0.0
  %6756 = vmatpush1.msra.mxu0 0.0
  %6757 = vmatprep.subr.mxu0 0.0
  %6758 = vmatpush1.msra.mxu0 0.0
  %6759 = vmatprep.subr.mxu0 0.0
  %6760 = vmatpush1.msra.mxu0 0.0
  %6761 = vmatprep.subr.mxu0 0.0
  %6762 = vmatpush1.msra.mxu0 0.0
  %6763 = vmatprep.subr.mxu0 0.0
  %6764 = vmatpush1.msra.mxu0 0.0
  %6765 = vmatprep.subr.mxu0 0.0
  %6766 = vmatpush1.msra.mxu0 0.0
  %6767 = vmatprep.subr.mxu0 0.0
  %6768 = vmatpush1.msra.mxu0 0.0
  %6769 = vmatprep.subr.mxu0 0.0
  %6770 = vmatpush1.msra.mxu0 0.0
  %6771 = vmatprep.subr.mxu0 0.0
  %6772 = vmatpush1.msra.mxu0 0.0
  %6773 = vmatprep.subr.mxu0 0.0
  %6774 = vmatpush1.msra.mxu0 0.0
  %6775 = vmatprep.subr.mxu0 0.0
  %6776 = vmatpush1.msra.mxu0 0.0
  %6777 = vmatprep.subr.mxu0 0.0
  %6778 = vmatpush1.msra.mxu0 0.0
  %6779 = vmatprep.subr.mxu0 0.0
  %6780 = vmatpush1.msra.mxu0 0.0
  %6781 = vmatprep.subr.mxu0 0.0
  %6782 = vmatpush1.msra.mxu0 0.0
  %6783 = vmatprep.subr.mxu0 0.0
  %6784 = vmatpush1.msra.mxu0 0.0
  %6785 = vmatprep.subr.mxu0 0.0
  %6786 = vmatpush1.msra.mxu0 0.0
  %6787 = vmatprep.subr.mxu0 0.0
  %6788 = vmatpush1.msra.mxu0 0.0
  %6789 = vmatprep.subr.mxu0 0.0
  %6790 = vmatpush1.msra.mxu0 0.0
  %6791 = vmatprep.subr.mxu0 0.0
  %6792 = vmatpush1.msra.mxu0 0.0
  %6793 = vmatprep.subr.mxu0 0.0
  %6794 = vmatpush1.msra.mxu0 0.0
  %6795 = vmatprep.mubr.f32.mxu0 0.0
  %6796 = vmatmul.mubr.f32.gmra.mrb[0].mxu0 %v6729
  %v6797 = vpop.f32.mrb[0].mxu0
  %v6798 = vadd.f32 0.0, %v6797
  %v6799 = vpop.f32.mrb[0].mxu0
  %6800 = vdwg.mxu0
  %6802 = vrot.lane.b32.xlu0 %v6223, 96
  %v6803 = vpop.permute.xlu0 %6802
  %v6806 = vsel %vm531, %v6723, 0
  %6808 = vmatprep.subr.mxu0 0.0
  %6809 = vmatpush1.msra.mxu0 %v6803
  %6810 = vmatprep.subr.mxu0 0.0
  %6811 = vmatpush1.msra.mxu0 0.0
  %6812 = vmatprep.subr.mxu0 0.0
  %6813 = vmatpush1.msra.mxu0 0.0
  %6814 = vmatprep.subr.mxu0 0.0
  %6815 = vmatpush1.msra.mxu0 0.0
  %6816 = vmatprep.subr.mxu0 0.0
  %6817 = vmatpush1.msra.mxu0 0.0
  %6818 = vmatprep.subr.mxu0 0.0
  %6819 = vmatpush1.msra.mxu0 0.0
  %6820 = vmatprep.subr.mxu0 0.0
  %6821 = vmatpush1.msra.mxu0 0.0
  %6822 = vmatprep.subr.mxu0 0.0
  %6823 = vmatpush1.msra.mxu0 0.0
  %6824 = vmatprep.subr.mxu0 0.0
  %6825 = vmatpush1.msra.mxu0 0.0
  %6826 = vmatprep.subr.mxu0 0.0
  %6827 = vmatpush1.msra.mxu0 0.0
  %6828 = vmatprep.subr.mxu0 0.0
  %6829 = vmatpush1.msra.mxu0 0.0
  %6830 = vmatprep.subr.mxu0 0.0
  %6831 = vmatpush1.msra.mxu0 0.0
  %6832 = vmatprep.subr.mxu0 0.0
  %6833 = vmatpush1.msra.mxu0 0.0
  %6834 = vmatprep.subr.mxu0 0.0
  %6835 = vmatpush1.msra.mxu0 0.0
  %6836 = vmatprep.subr.mxu0 0.0
  %6837 = vmatpush1.msra.mxu0 0.0
  %6838 = vmatprep.subr.mxu0 0.0
  %6839 = vmatpush1.msra.mxu0 0.0
  %6840 = vmatprep.subr.mxu0 0.0
  %6841 = vmatpush1.msra.mxu0 0.0
  %6842 = vmatprep.subr.mxu0 0.0
  %6843 = vmatpush1.msra.mxu0 0.0
  %6844 = vmatprep.subr.mxu0 0.0
  %6845 = vmatpush1.msra.mxu0 0.0
  %6846 = vmatprep.subr.mxu0 0.0
  %6847 = vmatpush1.msra.mxu0 0.0
  %6848 = vmatprep.subr.mxu0 0.0
  %6849 = vmatpush1.msra.mxu0 0.0
  %6850 = vmatprep.subr.mxu0 0.0
  %6851 = vmatpush1.msra.mxu0 0.0
  %6852 = vmatprep.subr.mxu0 0.0
  %6853 = vmatpush1.msra.mxu0 0.0
  %6854 = vmatprep.subr.mxu0 0.0
  %6855 = vmatpush1.msra.mxu0 0.0
  %6856 = vmatprep.subr.mxu0 0.0
  %6857 = vmatpush1.msra.mxu0 0.0
  %6858 = vmatprep.subr.mxu0 0.0
  %6859 = vmatpush1.msra.mxu0 0.0
  %6860 = vmatprep.subr.mxu0 0.0
  %6861 = vmatpush1.msra.mxu0 0.0
  %6862 = vmatprep.subr.mxu0 0.0
  %6863 = vmatpush1.msra.mxu0 0.0
  %6864 = vmatprep.subr.mxu0 0.0
  %6865 = vmatpush1.msra.mxu0 0.0
  %6866 = vmatprep.subr.mxu0 0.0
  %6867 = vmatpush1.msra.mxu0 0.0
  %6868 = vmatprep.subr.mxu0 0.0
  %6869 = vmatpush1.msra.mxu0 0.0
  %6870 = vmatprep.subr.mxu0 0.0
  %6871 = vmatpush1.msra.mxu0 0.0
  %6872 = vmatprep.mubr.f32.mxu0 0.0
  %6873 = vmatmul.mubr.f32.gmra.mrb[0].mxu0 %v6806
  %v6874 = vpop.f32.mrb[0].mxu0
  %v6875 = vadd.f32 0.0, %v6874
  %v6876 = vpop.f32.mrb[0].mxu0
  %6877 = vdwg.mxu0
  %6878 = vrot.lane.b32.xlu0 %v6141, 64
  %v6879 = vpop.permute.xlu0 %6878
  %6880 = vrot.lane.b32.xlu0 %v6143, 64
  %v6881 = vpop.permute.xlu0 %6880
  %v6882 = vsel %vm378, %v6879, 0
  %v6884 = vsel %vm378, %v6881, 0
  %6886 = vmatprep.subr.mxu0 0.0
  %6887 = vmatpush1.xpose.msra.mxu0 %v6884
  %6888 = vmatprep.subr.mxu0 0.0
  %6889 = vmatpush1.xpose.msra.mxu0 0.0
  %6890 = vmatprep.subr.mxu0 0.0
  %6891 = vmatpush1.xpose.msra.mxu0 0.0
  %6892 = vmatprep.subr.mxu0 0.0
  %6893 = vmatpush1.xpose.msra.mxu0 0.0
  %6894 = vmatprep.subr.mxu0 0.0
  %6895 = vmatpush1.xpose.msra.mxu0 0.0
  %6896 = vmatprep.subr.mxu0 0.0
  %6897 = vmatpush1.xpose.msra.mxu0 0.0
  %6898 = vmatprep.subr.mxu0 0.0
  %6899 = vmatpush1.xpose.msra.mxu0 0.0
  %6900 = vmatprep.subr.mxu0 0.0
  %6901 = vmatpush1.xpose.msra.mxu0 0.0
  %6902 = vmatprep.subr.mxu0 0.0
  %6903 = vmatpush1.xpose.msra.mxu0 0.0
  %6904 = vmatprep.subr.mxu0 0.0
  %6905 = vmatpush1.xpose.msra.mxu0 0.0
  %6906 = vmatprep.subr.mxu0 0.0
  %6907 = vmatpush1.xpose.msra.mxu0 0.0
  %6908 = vmatprep.subr.mxu0 0.0
  %6909 = vmatpush1.xpose.msra.mxu0 0.0
  %6910 = vmatprep.subr.mxu0 0.0
  %6911 = vmatpush1.xpose.msra.mxu0 0.0
  %6912 = vmatprep.subr.mxu0 0.0
  %6913 = vmatpush1.xpose.msra.mxu0 0.0
  %6914 = vmatprep.subr.mxu0 0.0
  %6915 = vmatpush1.xpose.msra.mxu0 0.0
  %6916 = vmatprep.subr.mxu0 0.0
  %6917 = vmatpush1.xpose.msra.mxu0 0.0
  %6918 = vmatprep.subr.mxu0 0.0
  %6919 = vmatpush1.xpose.msra.mxu0 0.0
  %6920 = vmatprep.subr.mxu0 0.0
  %6921 = vmatpush1.xpose.msra.mxu0 0.0
  %6922 = vmatprep.subr.mxu0 0.0
  %6923 = vmatpush1.xpose.msra.mxu0 0.0
  %6924 = vmatprep.subr.mxu0 0.0
  %6925 = vmatpush1.xpose.msra.mxu0 0.0
  %6926 = vmatprep.subr.mxu0 0.0
  %6927 = vmatpush1.xpose.msra.mxu0 0.0
  %6928 = vmatprep.subr.mxu0 0.0
  %6929 = vmatpush1.xpose.msra.mxu0 0.0
  %6930 = vmatprep.subr.mxu0 0.0
  %6931 = vmatpush1.xpose.msra.mxu0 0.0
  %6932 = vmatprep.subr.mxu0 0.0
  %6933 = vmatpush1.xpose.msra.mxu0 0.0
  %6934 = vmatprep.subr.mxu0 0.0
  %6935 = vmatpush1.xpose.msra.mxu0 0.0
  %6936 = vmatprep.subr.mxu0 0.0
  %6937 = vmatpush1.xpose.msra.mxu0 0.0
  %6938 = vmatprep.subr.mxu0 0.0
  %6939 = vmatpush1.xpose.msra.mxu0 0.0
  %6940 = vmatprep.subr.mxu0 0.0
  %6941 = vmatpush1.xpose.msra.mxu0 0.0
  %6942 = vmatprep.subr.mxu0 0.0
  %6943 = vmatpush1.xpose.msra.mxu0 0.0
  %6944 = vmatprep.subr.mxu0 0.0
  %6945 = vmatpush1.xpose.msra.mxu0 0.0
  %6946 = vmatprep.subr.mxu0 0.0
  %6947 = vmatpush1.xpose.msra.mxu0 0.0
  %6948 = vmatprep.subr.mxu0 0.0
  %6949 = vmatpush1.xpose.msra.mxu0 0.0
  %6950 = vmatprep.mubr.f32.mxu0 0.0
  %6951 = vmatmul.mubr.f32.gmra.mrb[0].mxu0 %v6882
  %v6952 = vpop.f32.mrb[0].mxu0
  %v6953 = vadd.f32 %v154, %v6952
  %v6954 = vpop.f32.mrb[0].mxu0
  %6955 = vdwg.mxu0
  %6956 = vrot.lane.b32.xlu0 %v6147, 64
  %v6957 = vpop.permute.xlu0 %6956
  %6958 = vrot.lane.b32.xlu0 %v6149, 64
  %v6959 = vpop.permute.xlu0 %6958
  %v6960 = vsel %vm378, %v6957, 0
  %v6962 = vsel %vm378, %v6959, 0
  %6964 = vmatprep.subr.mxu0 0.0
  %6965 = vmatpush1.xpose.msra.mxu0 %v6962
  %6966 = vmatprep.subr.mxu0 0.0
  %6967 = vmatpush1.xpose.msra.mxu0 0.0
  %6968 = vmatprep.subr.mxu0 0.0
  %6969 = vmatpush1.xpose.msra.mxu0 0.0
  %6970 = vmatprep.subr.mxu0 0.0
  %6971 = vmatpush1.xpose.msra.mxu0 0.0
  %6972 = vmatprep.subr.mxu0 0.0
  %6973 = vmatpush1.xpose.msra.mxu0 0.0
  %6974 = vmatprep.subr.mxu0 0.0
  %6975 = vmatpush1.xpose.msra.mxu0 0.0
  %6976 = vmatprep.subr.mxu0 0.0
  %6977 = vmatpush1.xpose.msra.mxu0 0.0
  %6978 = vmatprep.subr.mxu0 0.0
  %6979 = vmatpush1.xpose.msra.mxu0 0.0
  %6980 = vmatprep.subr.mxu0 0.0
  %6981 = vmatpush1.xpose.msra.mxu0 0.0
  %6982 = vmatprep.subr.mxu0 0.0
  %6983 = vmatpush1.xpose.msra.mxu0 0.0
  %6984 = vmatprep.subr.mxu0 0.0
  %6985 = vmatpush1.xpose.msra.mxu0 0.0
  %6986 = vmatprep.subr.mxu0 0.0
  %6987 = vmatpush1.xpose.msra.mxu0 0.0
  %6988 = vmatprep.subr.mxu0 0.0
  %6989 = vmatpush1.xpose.msra.mxu0 0.0
  %6990 = vmatprep.subr.mxu0 0.0
  %6991 = vmatpush1.xpose.msra.mxu0 0.0
  %6992 = vmatprep.subr.mxu0 0.0
  %6993 = vmatpush1.xpose.msra.mxu0 0.0
  %6994 = vmatprep.subr.mxu0 0.0
  %6995 = vmatpush1.xpose.msra.mxu0 0.0
  %6996 = vmatprep.subr.mxu0 0.0
  %6997 = vmatpush1.xpose.msra.mxu0 0.0
  %6998 = vmatprep.subr.mxu0 0.0
  %6999 = vmatpush1.xpose.msra.mxu0 0.0
  %7000 = vmatprep.subr.mxu0 0.0
  %7001 = vmatpush1.xpose.msra.mxu0 0.0
  %7002 = vmatprep.subr.mxu0 0.0
  %7003 = vmatpush1.xpose.msra.mxu0 0.0
  %7004 = vmatprep.subr.mxu0 0.0
  %7005 = vmatpush1.xpose.msra.mxu0 0.0
  %7006 = vmatprep.subr.mxu0 0.0
  %7007 = vmatpush1.xpose.msra.mxu0 0.0
  %7008 = vmatprep.subr.mxu0 0.0
  %7009 = vmatpush1.xpose.msra.mxu0 0.0
  %7010 = vmatprep.subr.mxu0 0.0
  %7011 = vmatpush1.xpose.msra.mxu0 0.0
  %7012 = vmatprep.subr.mxu0 0.0
  %7013 = vmatpush1.xpose.msra.mxu0 0.0
  %7014 = vmatprep.subr.mxu0 0.0
  %7015 = vmatpush1.xpose.msra.mxu0 0.0
  %7016 = vmatprep.subr.mxu0 0.0
  %7017 = vmatpush1.xpose.msra.mxu0 0.0
  %7018 = vmatprep.subr.mxu0 0.0
  %7019 = vmatpush1.xpose.msra.mxu0 0.0
  %7020 = vmatprep.subr.mxu0 0.0
  %7021 = vmatpush1.xpose.msra.mxu0 0.0
  %7022 = vmatprep.subr.mxu0 0.0
  %7023 = vmatpush1.xpose.msra.mxu0 0.0
  %7024 = vmatprep.subr.mxu0 0.0
  %7025 = vmatpush1.xpose.msra.mxu0 0.0
  %7026 = vmatprep.subr.mxu0 0.0
  %7027 = vmatpush1.xpose.msra.mxu0 0.0
  %7028 = vmatprep.mubr.f32.mxu0 0.0
  %7029 = vmatmul.mubr.f32.gmra.mrb[0].mxu0 %v6960
  %v7030 = vpop.f32.mrb[0].mxu0
  %v7031 = vadd.f32 %v158, %v7030
  %v7032 = vpop.f32.mrb[0].mxu0
  %7033 = vdwg.mxu0
  %v7034 = vsel %vm531, %v6953, -inf
  %7035 = vmax.xlane.f32.xlu0 %v7034
  %v7036 = vpop.xlane.xlu0 %7035
  %v7037 = vsel %vm531, %v7031, -inf
  %7038 = vmax.xlane.f32.xlu0 %v7037
  %v7039 = vpop.xlane.xlu0 %7038
  %v7040 = vsub.f32 %v6953, %v7036
  %v7041 = vsub.f32 %v7031, %v7039
  %v7042 = vmul.f32 %v7040, 1.442695
  %v7043 = vpow.pop %v7042
  %v7044 = vmul.f32 %v7041, 1.442695
  %v7045 = vpow.pop %v7044
  %v7046 = vsel %vm531, %v7043, 0.0
  %7047 = vadd.xlane.f32.xlu0 %v7046
  %v7048 = vpop.xlane.xlu0 %7047
  %v7049 = vsel %vm531, %v7045, 0.0
  %7050 = vadd.xlane.f32.xlu0 %v7049
  %v7051 = vpop.xlane.xlu0 %7050
  %v7052 = vrcp.pop %v7048
  %v7053 = vmul.f32 %v7043, %v7052
  %v7054 = vrcp.pop %v7051
  %v7055 = vmul.f32 %v7045, %v7054
  %7056 = vrot.lane.b32.xlu0 %v6218, 64
  %v7057 = vpop.permute.xlu0 %7056
  %v7060 = vsel %vm531, %v7053, 0
  %7062 = vmatprep.subr.mxu0 0.0
  %7063 = vmatpush1.msra.mxu0 %v7057
  %7064 = vmatprep.subr.mxu0 0.0
  %7065 = vmatpush1.msra.mxu0 0.0
  %7066 = vmatprep.subr.mxu0 0.0
  %7067 = vmatpush1.msra.mxu0 0.0
  %7068 = vmatprep.subr.mxu0 0.0
  %7069 = vmatpush1.msra.mxu0 0.0
  %7070 = vmatprep.subr.mxu0 0.0
  %7071 = vmatpush1.msra.mxu0 0.0
  %7072 = vmatprep.subr.mxu0 0.0
  %7073 = vmatpush1.msra.mxu0 0.0
  %7074 = vmatprep.subr.mxu0 0.0
  %7075 = vmatpush1.msra.mxu0 0.0
  %7076 = vmatprep.subr.mxu0 0.0
  %7077 = vmatpush1.msra.mxu0 0.0
  %7078 = vmatprep.subr.mxu0 0.0
  %7079 = vmatpush1.msra.mxu0 0.0
  %7080 = vmatprep.subr.mxu0 0.0
  %7081 = vmatpush1.msra.mxu0 0.0
  %7082 = vmatprep.subr.mxu0 0.0
  %7083 = vmatpush1.msra.mxu0 0.0
  %7084 = vmatprep.subr.mxu0 0.0
  %7085 = vmatpush1.msra.mxu0 0.0
  %7086 = vmatprep.subr.mxu0 0.0
  %7087 = vmatpush1.msra.mxu0 0.0
  %7088 = vmatprep.subr.mxu0 0.0
  %7089 = vmatpush1.msra.mxu0 0.0
  %7090 = vmatprep.subr.mxu0 0.0
  %7091 = vmatpush1.msra.mxu0 0.0
  %7092 = vmatprep.subr.mxu0 0.0
  %7093 = vmatpush1.msra.mxu0 0.0
  %7094 = vmatprep.subr.mxu0 0.0
  %7095 = vmatpush1.msra.mxu0 0.0
  %7096 = vmatprep.subr.mxu0 0.0
  %7097 = vmatpush1.msra.mxu0 0.0
  %7098 = vmatprep.subr.mxu0 0.0
  %7099 = vmatpush1.msra.mxu0 0.0
  %7100 = vmatprep.subr.mxu0 0.0
  %7101 = vmatpush1.msra.mxu0 0.0
  %7102 = vmatprep.subr.mxu0 0.0
  %7103 = vmatpush1.msra.mxu0 0.0
  %7104 = vmatprep.subr.mxu0 0.0
  %7105 = vmatpush1.msra.mxu0 0.0
  %7106 = vmatprep.subr.mxu0 0.0
  %7107 = vmatpush1.msra.mxu0 0.0
  %7108 = vmatprep.subr.mxu0 0.0
  %7109 = vmatpush1.msra.mxu0 0.0
  %7110 = vmatprep.subr.mxu0 0.0
  %7111 = vmatpush1.msra.mxu0 0.0
  %7112 = vmatprep.subr.mxu0 0.0
  %7113 = vmatpush1.msra.mxu0 0.0
  %7114 = vmatprep.subr.mxu0 0.0
  %7115 = vmatpush1.msra.mxu0 0.0
  %7116 = vmatprep.subr.mxu0 0.0
  %7117 = vmatpush1.msra.mxu0 0.0
  %7118 = vmatprep.subr.mxu0 0.0
  %7119 = vmatpush1.msra.mxu0 0.0
  %7120 = vmatprep.subr.mxu0 0.0
  %7121 = vmatpush1.msra.mxu0 0.0
  %7122 = vmatprep.subr.mxu0 0.0
  %7123 = vmatpush1.msra.mxu0 0.0
  %7124 = vmatprep.subr.mxu0 0.0
  %7125 = vmatpush1.msra.mxu0 0.0
  %7126 = vmatprep.mubr.f32.mxu0 0.0
  %7127 = vmatmul.mubr.f32.gmra.mrb[0].mxu0 %v7060
  %v7128 = vpop.f32.mrb[0].mxu0
  %v7129 = vadd.f32 0.0, %v7128
  %v7130 = vpop.f32.mrb[0].mxu0
  %7131 = vdwg.mxu0
  %7132 = vrot.lane.b32.xlu0 %v6223, 64
  %v7133 = vpop.permute.xlu0 %7132
  %v7136 = vsel %vm531, %v7055, 0
  %7138 = vmatprep.subr.mxu0 0.0
  %7139 = vmatpush1.msra.mxu0 %v7133
  %7140 = vmatprep.subr.mxu0 0.0
  %7141 = vmatpush1.msra.mxu0 0.0
  %7142 = vmatprep.subr.mxu0 0.0
  %7143 = vmatpush1.msra.mxu0 0.0
  %7144 = vmatprep.subr.mxu0 0.0
  %7145 = vmatpush1.msra.mxu0 0.0
  %7146 = vmatprep.subr.mxu0 0.0
  %7147 = vmatpush1.msra.mxu0 0.0
  %7148 = vmatprep.subr.mxu0 0.0
  %7149 = vmatpush1.msra.mxu0 0.0
  %7150 = vmatprep.subr.mxu0 0.0
  %7151 = vmatpush1.msra.mxu0 0.0
  %7152 = vmatprep.subr.mxu0 0.0
  %7153 = vmatpush1.msra.mxu0 0.0
  %7154 = vmatprep.subr.mxu0 0.0
  %7155 = vmatpush1.msra.mxu0 0.0
  %7156 = vmatprep.subr.mxu0 0.0
  %7157 = vmatpush1.msra.mxu0 0.0
  %7158 = vmatprep.subr.mxu0 0.0
  %7159 = vmatpush1.msra.mxu0 0.0
  %7160 = vmatprep.subr.mxu0 0.0
  %7161 = vmatpush1.msra.mxu0 0.0
  %7162 = vmatprep.subr.mxu0 0.0
  %7163 = vmatpush1.msra.mxu0 0.0
  %7164 = vmatprep.subr.mxu0 0.0
  %7165 = vmatpush1.msra.mxu0 0.0
  %7166 = vmatprep.subr.mxu0 0.0
  %7167 = vmatpush1.msra.mxu0 0.0
  %7168 = vmatprep.subr.mxu0 0.0
  %7169 = vmatpush1.msra.mxu0 0.0
  %7170 = vmatprep.subr.mxu0 0.0
  %7171 = vmatpush1.msra.mxu0 0.0
  %7172 = vmatprep.subr.mxu0 0.0
  %7173 = vmatpush1.msra.mxu0 0.0
  %7174 = vmatprep.subr.mxu0 0.0
  %7175 = vmatpush1.msra.mxu0 0.0
  %7176 = vmatprep.subr.mxu0 0.0
  %7177 = vmatpush1.msra.mxu0 0.0
  %7178 = vmatprep.subr.mxu0 0.0
  %7179 = vmatpush1.msra.mxu0 0.0
  %7180 = vmatprep.subr.mxu0 0.0
  %7181 = vmatpush1.msra.mxu0 0.0
  %7182 = vmatprep.subr.mxu0 0.0
  %7183 = vmatpush1.msra.mxu0 0.0
  %7184 = vmatprep.subr.mxu0 0.0
  %7185 = vmatpush1.msra.mxu0 0.0
  %7186 = vmatprep.subr.mxu0 0.0
  %7187 = vmatpush1.msra.mxu0 0.0
  %7188 = vmatprep.subr.mxu0 0.0
  %7189 = vmatpush1.msra.mxu0 0.0
  %7190 = vmatprep.subr.mxu0 0.0
  %7191 = vmatpush1.msra.mxu0 0.0
  %7192 = vmatprep.subr.mxu0 0.0
  %7193 = vmatpush1.msra.mxu0 0.0
  %7194 = vmatprep.subr.mxu0 0.0
  %7195 = vmatpush1.msra.mxu0 0.0
  %7196 = vmatprep.subr.mxu0 0.0
  %7197 = vmatpush1.msra.mxu0 0.0
  %7198 = vmatprep.subr.mxu0 0.0
  %7199 = vmatpush1.msra.mxu0 0.0
  %7200 = vmatprep.subr.mxu0 0.0
  %7201 = vmatpush1.msra.mxu0 0.0
  %7202 = vmatprep.mubr.f32.mxu0 0.0
  %7203 = vmatmul.mubr.f32.gmra.mrb[0].mxu0 %v7136
  %v7204 = vpop.f32.mrb[0].mxu0
  %v7205 = vadd.f32 0.0, %v7204
  %v7206 = vpop.f32.mrb[0].mxu0
  %7207 = vdwg.mxu0
  %7208 = vrot.lane.b32.xlu0 %v6141, 32
  %v7209 = vpop.permute.xlu0 %7208
  %7210 = vrot.lane.b32.xlu0 %v6143, 32
  %v7211 = vpop.permute.xlu0 %7210
  %v7212 = vsel %vm378, %v7209, 0
  %v7214 = vsel %vm378, %v7211, 0
  %7216 = vmatprep.subr.mxu0 0.0
  %7217 = vmatpush1.xpose.msra.mxu0 %v7214
  %7218 = vmatprep.subr.mxu0 0.0
  %7219 = vmatpush1.xpose.msra.mxu0 0.0
  %7220 = vmatprep.subr.mxu0 0.0
  %7221 = vmatpush1.xpose.msra.mxu0 0.0
  %7222 = vmatprep.subr.mxu0 0.0
  %7223 = vmatpush1.xpose.msra.mxu0 0.0
  %7224 = vmatprep.subr.mxu0 0.0
  %7225 = vmatpush1.xpose.msra.mxu0 0.0
  %7226 = vmatprep.subr.mxu0 0.0
  %7227 = vmatpush1.xpose.msra.mxu0 0.0
  %7228 = vmatprep.subr.mxu0 0.0
  %7229 = vmatpush1.xpose.msra.mxu0 0.0
  %7230 = vmatprep.subr.mxu0 0.0
  %7231 = vmatpush1.xpose.msra.mxu0 0.0
  %7232 = vmatprep.subr.mxu0 0.0
  %7233 = vmatpush1.xpose.msra.mxu0 0.0
  %7234 = vmatprep.subr.mxu0 0.0
  %7235 = vmatpush1.xpose.msra.mxu0 0.0
  %7236 = vmatprep.subr.mxu0 0.0
  %7237 = vmatpush1.xpose.msra.mxu0 0.0
  %7238 = vmatprep.subr.mxu0 0.0
  %7239 = vmatpush1.xpose.msra.mxu0 0.0
  %7240 = vmatprep.subr.mxu0 0.0
  %7241 = vmatpush1.xpose.msra.mxu0 0.0
  %7242 = vmatprep.subr.mxu0 0.0
  %7243 = vmatpush1.xpose.msra.mxu0 0.0
  %7244 = vmatprep.subr.mxu0 0.0
  %7245 = vmatpush1.xpose.msra.mxu0 0.0
  %7246 = vmatprep.subr.mxu0 0.0
  %7247 = vmatpush1.xpose.msra.mxu0 0.0
  %7248 = vmatprep.subr.mxu0 0.0
  %7249 = vmatpush1.xpose.msra.mxu0 0.0
  %7250 = vmatprep.subr.mxu0 0.0
  %7251 = vmatpush1.xpose.msra.mxu0 0.0
  %7252 = vmatprep.subr.mxu0 0.0
  %7253 = vmatpush1.xpose.msra.mxu0 0.0
  %7254 = vmatprep.subr.mxu0 0.0
  %7255 = vmatpush1.xpose.msra.mxu0 0.0
  %7256 = vmatprep.subr.mxu0 0.0
  %7257 = vmatpush1.xpose.msra.mxu0 0.0
  %7258 = vmatprep.subr.mxu0 0.0
  %7259 = vmatpush1.xpose.msra.mxu0 0.0
  %7260 = vmatprep.subr.mxu0 0.0
  %7261 = vmatpush1.xpose.msra.mxu0 0.0
  %7262 = vmatprep.subr.mxu0 0.0
  %7263 = vmatpush1.xpose.msra.mxu0 0.0
  %7264 = vmatprep.subr.mxu0 0.0
  %7265 = vmatpush1.xpose.msra.mxu0 0.0
  %7266 = vmatprep.subr.mxu0 0.0
  %7267 = vmatpush1.xpose.msra.mxu0 0.0
  %7268 = vmatprep.subr.mxu0 0.0
  %7269 = vmatpush1.xpose.msra.mxu0 0.0
  %7270 = vmatprep.subr.mxu0 0.0
  %7271 = vmatpush1.xpose.msra.mxu0 0.0
  %7272 = vmatprep.subr.mxu0 0.0
  %7273 = vmatpush1.xpose.msra.mxu0 0.0
  %7274 = vmatprep.subr.mxu0 0.0
  %7275 = vmatpush1.xpose.msra.mxu0 0.0
  %7276 = vmatprep.subr.mxu0 0.0
  %7277 = vmatpush1.xpose.msra.mxu0 0.0
  %7278 = vmatprep.subr.mxu0 0.0
  %7279 = vmatpush1.xpose.msra.mxu0 0.0
  %7280 = vmatprep.mubr.f32.mxu0 0.0
  %7281 = vmatmul.mubr.f32.gmra.mrb[0].mxu0 %v7212
  %v7282 = vpop.f32.mrb[0].mxu0
  %v7283 = vadd.f32 %v154, %v7282
  %v7284 = vpop.f32.mrb[0].mxu0
  %7285 = vdwg.mxu0
  %7286 = vrot.lane.b32.xlu0 %v6147, 32
  %v7287 = vpop.permute.xlu0 %7286
  %7288 = vrot.lane.b32.xlu0 %v6149, 32
  %v7289 = vpop.permute.xlu0 %7288
  %v7290 = vsel %vm378, %v7287, 0
  %v7292 = vsel %vm378, %v7289, 0
  %7294 = vmatprep.subr.mxu0 0.0
  %7295 = vmatpush1.xpose.msra.mxu0 %v7292
  %7296 = vmatprep.subr.mxu0 0.0
  %7297 = vmatpush1.xpose.msra.mxu0 0.0
  %7298 = vmatprep.subr.mxu0 0.0
  %7299 = vmatpush1.xpose.msra.mxu0 0.0
  %7300 = vmatprep.subr.mxu0 0.0
  %7301 = vmatpush1.xpose.msra.mxu0 0.0
  %7302 = vmatprep.subr.mxu0 0.0
  %7303 = vmatpush1.xpose.msra.mxu0 0.0
  %7304 = vmatprep.subr.mxu0 0.0
  %7305 = vmatpush1.xpose.msra.mxu0 0.0
  %7306 = vmatprep.subr.mxu0 0.0
  %7307 = vmatpush1.xpose.msra.mxu0 0.0
  %7308 = vmatprep.subr.mxu0 0.0
  %7309 = vmatpush1.xpose.msra.mxu0 0.0
  %7310 = vmatprep.subr.mxu0 0.0
  %7311 = vmatpush1.xpose.msra.mxu0 0.0
  %7312 = vmatprep.subr.mxu0 0.0
  %7313 = vmatpush1.xpose.msra.mxu0 0.0
  %7314 = vmatprep.subr.mxu0 0.0
  %7315 = vmatpush1.xpose.msra.mxu0 0.0
  %7316 = vmatprep.subr.mxu0 0.0
  %7317 = vmatpush1.xpose.msra.mxu0 0.0
  %7318 = vmatprep.subr.mxu0 0.0
  %7319 = vmatpush1.xpose.msra.mxu0 0.0
  %7320 = vmatprep.subr.mxu0 0.0
  %7321 = vmatpush1.xpose.msra.mxu0 0.0
  %7322 = vmatprep.subr.mxu0 0.0
  %7323 = vmatpush1.xpose.msra.mxu0 0.0
  %7324 = vmatprep.subr.mxu0 0.0
  %7325 = vmatpush1.xpose.msra.mxu0 0.0
  %7326 = vmatprep.subr.mxu0 0.0
  %7327 = vmatpush1.xpose.msra.mxu0 0.0
  %7328 = vmatprep.subr.mxu0 0.0
  %7329 = vmatpush1.xpose.msra.mxu0 0.0
  %7330 = vmatprep.subr.mxu0 0.0
  %7331 = vmatpush1.xpose.msra.mxu0 0.0
  %7332 = vmatprep.subr.mxu0 0.0
  %7333 = vmatpush1.xpose.msra.mxu0 0.0
  %7334 = vmatprep.subr.mxu0 0.0
  %7335 = vmatpush1.xpose.msra.mxu0 0.0
  %7336 = vmatprep.subr.mxu0 0.0
  %7337 = vmatpush1.xpose.msra.mxu0 0.0
  %7338 = vmatprep.subr.mxu0 0.0
  %7339 = vmatpush1.xpose.msra.mxu0 0.0
  %7340 = vmatprep.subr.mxu0 0.0
  %7341 = vmatpush1.xpose.msra.mxu0 0.0
  %7342 = vmatprep.subr.mxu0 0.0
  %7343 = vmatpush1.xpose.msra.mxu0 0.0
  %7344 = vmatprep.subr.mxu0 0.0
  %7345 = vmatpush1.xpose.msra.mxu0 0.0
  %7346 = vmatprep.subr.mxu0 0.0
  %7347 = vmatpush1.xpose.msra.mxu0 0.0
  %7348 = vmatprep.subr.mxu0 0.0
  %7349 = vmatpush1.xpose.msra.mxu0 0.0
  %7350 = vmatprep.subr.mxu0 0.0
  %7351 = vmatpush1.xpose.msra.mxu0 0.0
  %7352 = vmatprep.subr.mxu0 0.0
  %7353 = vmatpush1.xpose.msra.mxu0 0.0
  %7354 = vmatprep.subr.mxu0 0.0
  %7355 = vmatpush1.xpose.msra.mxu0 0.0
  %7356 = vmatprep.subr.mxu0 0.0
  %7357 = vmatpush1.xpose.msra.mxu0 0.0
  %7358 = vmatprep.mubr.f32.mxu0 0.0
  %7359 = vmatmul.mubr.f32.gmra.mrb[0].mxu0 %v7290
  %v7360 = vpop.f32.mrb[0].mxu0
  %v7361 = vadd.f32 %v158, %v7360
  %v7362 = vpop.f32.mrb[0].mxu0
  %7363 = vdwg.mxu0
  %v7364 = vsel %vm531, %v7283, -inf
  %7365 = vmax.xlane.f32.xlu0 %v7364
  %v7366 = vpop.xlane.xlu0 %7365
  %v7367 = vsel %vm531, %v7361, -inf
  %7368 = vmax.xlane.f32.xlu0 %v7367
  %v7369 = vpop.xlane.xlu0 %7368
  %v7370 = vsub.f32 %v7283, %v7366
  %v7371 = vsub.f32 %v7361, %v7369
  %v7372 = vmul.f32 %v7370, 1.442695
  %v7373 = vpow.pop %v7372
  %v7374 = vmul.f32 %v7371, 1.442695
  %v7375 = vpow.pop %v7374
  %v7376 = vsel %vm531, %v7373, 0.0
  %7377 = vadd.xlane.f32.xlu0 %v7376
  %v7378 = vpop.xlane.xlu0 %7377
  %v7379 = vsel %vm531, %v7375, 0.0
  %7380 = vadd.xlane.f32.xlu0 %v7379
  %v7381 = vpop.xlane.xlu0 %7380
  %v7382 = vrcp.pop %v7378
  %v7383 = vmul.f32 %v7373, %v7382
  %v7384 = vrcp.pop %v7381
  %v7385 = vmul.f32 %v7375, %v7384
  %7386 = vrot.lane.b32.xlu0 %v6218, 32
  %v7387 = vpop.permute.xlu0 %7386
  %v7390 = vsel %vm531, %v7383, 0
  %7392 = vmatprep.subr.mxu0 0.0
  %7393 = vmatpush1.msra.mxu0 %v7387
  %7394 = vmatprep.subr.mxu0 0.0
  %7395 = vmatpush1.msra.mxu0 0.0
  %7396 = vmatprep.subr.mxu0 0.0
  %7397 = vmatpush1.msra.mxu0 0.0
  %7398 = vmatprep.subr.mxu0 0.0
  %7399 = vmatpush1.msra.mxu0 0.0
  %7400 = vmatprep.subr.mxu0 0.0
  %7401 = vmatpush1.msra.mxu0 0.0
  %7402 = vmatprep.subr.mxu0 0.0
  %7403 = vmatpush1.msra.mxu0 0.0
  %7404 = vmatprep.subr.mxu0 0.0
  %7405 = vmatpush1.msra.mxu0 0.0
  %7406 = vmatprep.subr.mxu0 0.0
  %7407 = vmatpush1.msra.mxu0 0.0
  %7408 = vmatprep.subr.mxu0 0.0
  %7409 = vmatpush1.msra.mxu0 0.0
  %7410 = vmatprep.subr.mxu0 0.0
  %7411 = vmatpush1.msra.mxu0 0.0
  %7412 = vmatprep.subr.mxu0 0.0
  %7413 = vmatpush1.msra.mxu0 0.0
  %7414 = vmatprep.subr.mxu0 0.0
  %7415 = vmatpush1.msra.mxu0 0.0
  %7416 = vmatprep.subr.mxu0 0.0
  %7417 = vmatpush1.msra.mxu0 0.0
  %7418 = vmatprep.subr.mxu0 0.0
  %7419 = vmatpush1.msra.mxu0 0.0
  %7420 = vmatprep.subr.mxu0 0.0
  %7421 = vmatpush1.msra.mxu0 0.0
  %7422 = vmatprep.subr.mxu0 0.0
  %7423 = vmatpush1.msra.mxu0 0.0
  %7424 = vmatprep.subr.mxu0 0.0
  %7425 = vmatpush1.msra.mxu0 0.0
  %7426 = vmatprep.subr.mxu0 0.0
  %7427 = vmatpush1.msra.mxu0 0.0
  %7428 = vmatprep.subr.mxu0 0.0
  %7429 = vmatpush1.msra.mxu0 0.0
  %7430 = vmatprep.subr.mxu0 0.0
  %7431 = vmatpush1.msra.mxu0 0.0
  %7432 = vmatprep.subr.mxu0 0.0
  %7433 = vmatpush1.msra.mxu0 0.0
  %7434 = vmatprep.subr.mxu0 0.0
  %7435 = vmatpush1.msra.mxu0 0.0
  %7436 = vmatprep.subr.mxu0 0.0
  %7437 = vmatpush1.msra.mxu0 0.0
  %7438 = vmatprep.subr.mxu0 0.0
  %7439 = vmatpush1.msra.mxu0 0.0
  %7440 = vmatprep.subr.mxu0 0.0
  %7441 = vmatpush1.msra.mxu0 0.0
  %7442 = vmatprep.subr.mxu0 0.0
  %7443 = vmatpush1.msra.mxu0 0.0
  %7444 = vmatprep.subr.mxu0 0.0
  %7445 = vmatpush1.msra.mxu0 0.0
  %7446 = vmatprep.subr.mxu0 0.0
  %7447 = vmatpush1.msra.mxu0 0.0
  %7448 = vmatprep.subr.mxu0 0.0
  %7449 = vmatpush1.msra.mxu0 0.0
  %7450 = vmatprep.subr.mxu0 0.0
  %7451 = vmatpush1.msra.mxu0 0.0
  %7452 = vmatprep.subr.mxu0 0.0
  %7453 = vmatpush1.msra.mxu0 0.0
  %7454 = vmatprep.subr.mxu0 0.0
  %7455 = vmatpush1.msra.mxu0 0.0
  %7456 = vmatprep.mubr.f32.mxu0 0.0
  %7457 = vmatmul.mubr.f32.gmra.mrb[0].mxu0 %v7390
  %v7458 = vpop.f32.mrb[0].mxu0
  %v7459 = vadd.f32 0.0, %v7458
  %v7460 = vpop.f32.mrb[0].mxu0
  %7461 = vdwg.mxu0
  %7462 = vrot.lane.b32.xlu0 %v6223, 32
  %v7463 = vpop.permute.xlu0 %7462
  %v7466 = vsel %vm531, %v7385, 0
  %7468 = vmatprep.subr.mxu0 0.0
  %7469 = vmatpush1.msra.mxu0 %v7463
  %7470 = vmatprep.subr.mxu0 0.0
  %7471 = vmatpush1.msra.mxu0 0.0
  %7472 = vmatprep.subr.mxu0 0.0
  %7473 = vmatpush1.msra.mxu0 0.0
  %7474 = vmatprep.subr.mxu0 0.0
  %7475 = vmatpush1.msra.mxu0 0.0
  %7476 = vmatprep.subr.mxu0 0.0
  %7477 = vmatpush1.msra.mxu0 0.0
  %7478 = vmatprep.subr.mxu0 0.0
  %7479 = vmatpush1.msra.mxu0 0.0
  %7480 = vmatprep.subr.mxu0 0.0
  %7481 = vmatpush1.msra.mxu0 0.0
  %7482 = vmatprep.subr.mxu0 0.0
  %7483 = vmatpush1.msra.mxu0 0.0
  %7484 = vmatprep.subr.mxu0 0.0
  %7485 = vmatpush1.msra.mxu0 0.0
  %7486 = vmatprep.subr.mxu0 0.0
  %7487 = vmatpush1.msra.mxu0 0.0
  %7488 = vmatprep.subr.mxu0 0.0
  %7489 = vmatpush1.msra.mxu0 0.0
  %7490 = vmatprep.subr.mxu0 0.0
  %7491 = vmatpush1.msra.mxu0 0.0
  %7492 = vmatprep.subr.mxu0 0.0
  %7493 = vmatpush1.msra.mxu0 0.0
  %7494 = vmatprep.subr.mxu0 0.0
  %7495 = vmatpush1.msra.mxu0 0.0
  %7496 = vmatprep.subr.mxu0 0.0
  %7497 = vmatpush1.msra.mxu0 0.0
  %7498 = vmatprep.subr.mxu0 0.0
  %7499 = vmatpush1.msra.mxu0 0.0
  %7500 = vmatprep.subr.mxu0 0.0
  %7501 = vmatpush1.msra.mxu0 0.0
  %7502 = vmatprep.subr.mxu0 0.0
  %7503 = vmatpush1.msra.mxu0 0.0
  %7504 = vmatprep.subr.mxu0 0.0
  %7505 = vmatpush1.msra.mxu0 0.0
  %7506 = vmatprep.subr.mxu0 0.0
  %7507 = vmatpush1.msra.mxu0 0.0
  %7508 = vmatprep.subr.mxu0 0.0
  %7509 = vmatpush1.msra.mxu0 0.0
  %7510 = vmatprep.subr.mxu0 0.0
  %7511 = vmatpush1.msra.mxu0 0.0
  %7512 = vmatprep.subr.mxu0 0.0
  %7513 = vmatpush1.msra.mxu0 0.0
  %7514 = vmatprep.subr.mxu0 0.0
  %7515 = vmatpush1.msra.mxu0 0.0
  %7516 = vmatprep.subr.mxu0 0.0
  %7517 = vmatpush1.msra.mxu0 0.0
  %7518 = vmatprep.subr.mxu0 0.0
  %7519 = vmatpush1.msra.mxu0 0.0
  %7520 = vmatprep.subr.mxu0 0.0
  %7521 = vmatpush1.msra.mxu0 0.0
  %7522 = vmatprep.subr.mxu0 0.0
  %7523 = vmatpush1.msra.mxu0 0.0
  %7524 = vmatprep.subr.mxu0 0.0
  %7525 = vmatpush1.msra.mxu0 0.0
  %7526 = vmatprep.subr.mxu0 0.0
  %7527 = vmatpush1.msra.mxu0 0.0
  %7528 = vmatprep.subr.mxu0 0.0
  %7529 = vmatpush1.msra.mxu0 0.0
  %7530 = vmatprep.subr.mxu0 0.0
  %7531 = vmatpush1.msra.mxu0 0.0
  %7532 = vmatprep.mubr.f32.mxu0 0.0
  %7533 = vmatmul.mubr.f32.gmra.mrb[0].mxu0 %v7466
  %v7534 = vpop.f32.mrb[0].mxu0
  %v7535 = vadd.f32 0.0, %v7534
  %v7536 = vpop.f32.mrb[0].mxu0
  %7537 = vdwg.mxu0
  %7540 = vrot.lane.b32.xlu0 %v6798, 32
  %v7541 = vpop.permute.xlu0 %7540
  %7542 = vrot.lane.b32.xlu0 %v6875, 32
  %v7543 = vpop.permute.xlu0 %7542
  %7548 = vrot.lane.b32.xlu0 %v7129, 64
  %v7549 = vpop.permute.xlu0 %7548
  %7550 = vrot.lane.b32.xlu0 %v7205, 64
  %v7551 = vpop.permute.xlu0 %7550
  %7556 = vrot.lane.b32.xlu0 %v7459, 96
  %v7557 = vpop.permute.xlu0 %7556
  %7558 = vrot.lane.b32.xlu0 %v7535, 96
  %v7559 = vpop.permute.xlu0 %7558
  %v7562 = vsel %vm378, %v6470, %v7541
  %v7563 = vsel %vm378, %v6543, %v7543
  %v7564 = vsel %vm1718, %v7562, %v7549
  %v7565 = vsel %vm1718, %v7563, %v7551
  %v7566 = vsel %vm1721, %v7564, %v7557
  %v7567 = vsel %vm1721, %v7565, %v7559
  %s7568 = scalar_lea.vmem %s6, 384
  %v7569 = vld [vmem:[%s7568] sm:$0xff]
  %v7570 = vld [vmem:[%s7568 + $0x8] sm:$0xff]
  %v7571 = vld [vmem:[%s7568 + $0x10] sm:$0xff]
  %v7572 = vld [vmem:[%s7568 + $0x18] sm:$0xff]
  %v7573 = vld [vmem:[%s7568 + $0x20] sm:$0xff]
  %v7574 = vld [vmem:[%s7568 + $0x28] sm:$0xff]
  %v7575 = vld [vmem:[%s7568 + $0x30] sm:$0xff]
  %v7576 = vld [vmem:[%s7568 + $0x38] sm:$0xff]
  %v7577 = vld [vmem:[%s7568 + $0x40] sm:$0xff]
  %v7578 = vld [vmem:[%s7568 + $0x48] sm:$0xff]
  %v7579 = vld [vmem:[%s7568 + $0x50] sm:$0xff]
  %v7580 = vld [vmem:[%s7568 + $0x58] sm:$0xff]
  %v7581 = vld [vmem:[%s7568 + $0x60] sm:$0xff]
  %v7582 = vld [vmem:[%s7568 + $0x68] sm:$0xff]
  %v7583 = vld [vmem:[%s7568 + $0x70] sm:$0xff]
  %v7584 = vld [vmem:[%s7568 + $0x78] sm:$0xff]
  %s7585 = scalar_lea.vmem %s7, 3
  %v7586 = vld [vmem:[%s7585] sm:$0x1]
  %v7588 = vlaneseq
  %v7589 = vshrl.u32 %v7588, 7
  %v7590 = vsub.s32 0, %v7589
  %v7591 = vrot.slane %v7586, %v7590
  %7593 = vmatprep.subr.mxu0 0.0
  %7594 = vmatpush1.msra.mxu0 %v7569
  %7595 = vmatprep.subr.mxu0 0.0
  %7596 = vmatpush1.msra.mxu0 %v7570
  %7597 = vmatprep.subr.mxu0 0.0
  %7598 = vmatpush1.msra.mxu0 %v7571
  %7599 = vmatprep.subr.mxu0 0.0
  %7600 = vmatpush1.msra.mxu0 %v7572
  %7601 = vmatprep.subr.mxu0 0.0
  %7602 = vmatpush1.msra.mxu0 %v7573
  %7603 = vmatprep.subr.mxu0 0.0
  %7604 = vmatpush1.msra.mxu0 %v7574
  %7605 = vmatprep.subr.mxu0 0.0
  %7606 = vmatpush1.msra.mxu0 %v7575
  %7607 = vmatprep.subr.mxu0 0.0
  %7608 = vmatpush1.msra.mxu0 %v7576
  %7609 = vmatprep.subr.mxu0 0.0
  %7610 = vmatpush1.msra.mxu0 %v7577
  %7611 = vmatprep.subr.mxu0 0.0
  %7612 = vmatpush1.msra.mxu0 %v7578
  %7613 = vmatprep.subr.mxu0 0.0
  %7614 = vmatpush1.msra.mxu0 %v7579
  %7615 = vmatprep.subr.mxu0 0.0
  %7616 = vmatpush1.msra.mxu0 %v7580
  %7617 = vmatprep.subr.mxu0 0.0
  %7618 = vmatpush1.msra.mxu0 %v7581
  %7619 = vmatprep.subr.mxu0 0.0
  %7620 = vmatpush1.msra.mxu0 %v7582
  %7621 = vmatprep.subr.mxu0 0.0
  %7622 = vmatpush1.msra.mxu0 %v7583
  %7623 = vmatprep.subr.mxu0 0.0
  %7624 = vmatpush1.msra.mxu0 %v7584
  %7625 = vmatprep.subr.mxu0 0.0
  %7626 = vmatpush1.msra.mxu0 0.0
  %7627 = vmatprep.subr.mxu0 0.0
  %7628 = vmatpush1.msra.mxu0 0.0
  %7629 = vmatprep.subr.mxu0 0.0
  %7630 = vmatpush1.msra.mxu0 0.0
  %7631 = vmatprep.subr.mxu0 0.0
  %7632 = vmatpush1.msra.mxu0 0.0
  %7633 = vmatprep.subr.mxu0 0.0
  %7634 = vmatpush1.msra.mxu0 0.0
  %7635 = vmatprep.subr.mxu0 0.0
  %7636 = vmatpush1.msra.mxu0 0.0
  %7637 = vmatprep.subr.mxu0 0.0
  %7638 = vmatpush1.msra.mxu0 0.0
  %7639 = vmatprep.subr.mxu0 0.0
  %7640 = vmatpush1.msra.mxu0 0.0
  %7641 = vmatprep.subr.mxu0 0.0
  %7642 = vmatpush1.msra.mxu0 0.0
  %7643 = vmatprep.subr.mxu0 0.0
  %7644 = vmatpush1.msra.mxu0 0.0
  %7645 = vmatprep.subr.mxu0 0.0
  %7646 = vmatpush1.msra.mxu0 0.0
  %7647 = vmatprep.subr.mxu0 0.0
  %7648 = vmatpush1.msra.mxu0 0.0
  %7649 = vmatprep.subr.mxu0 0.0
  %7650 = vmatpush1.msra.mxu0 0.0
  %7651 = vmatprep.subr.mxu0 0.0
  %7652 = vmatpush1.msra.mxu0 0.0
  %7653 = vmatprep.subr.mxu0 0.0
  %7654 = vmatpush1.msra.mxu0 0.0
  %7655 = vmatprep.subr.mxu0 0.0
  %7656 = vmatpush1.msra.mxu0 0.0
  %7657 = vmatprep.mubr.f32.mxu0 0.0
  %7658 = vmatmul.mubr.f32.gmra.mrb[0].mxu0 %v7566
  %v7659 = vpop.f32.mrb[0].mxu0
  %v7660 = vadd.f32 %v7591, %v7659
  %v7661 = vpop.f32.mrb[0].mxu0
  %7662 = vmatprep.mubr.f32.mxu0 0.0
  %7663 = vmatmul.mubr.f32.gmra.mrb[0].mxu0 %v7567
  %v7664 = vpop.f32.mrb[0].mxu0
  %v7665 = vadd.f32 %v7591, %v7664
  %v7666 = vpop.f32.mrb[0].mxu0
  %7667 = vdwg.mxu0
  %v7668 = vadd.f32 %v6005, %v7660
  %v7669 = vadd.f32 %v6006, %v7665
  %s7670 = scalar_lea.vmem %s8, 3
  %v7671 = vld [vmem:[%s7670] sm:$0x1]
  %s7672 = scalar_lea.vmem %s9, 3
  %v7673 = vld [vmem:[%s7672] sm:$0x1]
  %7674 = vadd.xlane.f32.xlu0 %v7668
  %v7675 = vpop.xlane.xlu0 %7674
  %7676 = vadd.xlane.f32.xlu0 %v7669
  %v7677 = vpop.xlane.xlu0 %7676
  %v7678 = vmul.f32 %v7675, %v1830
  %v7679 = vmul.f32 %v7677, %v1830
  %v7680 = vsub.f32 %v7668, %v7678
  %v7681 = vsub.f32 %v7669, %v7679
  %v7682 = vmul.f32 %v7680, %v7680
  %v7683 = vmul.f32 %v7681, %v7681
  %7684 = vadd.xlane.f32.xlu0 %v7682
  %v7685 = vpop.xlane.xlu0 %7684
  %7686 = vadd.xlane.f32.xlu0 %v7683
  %v7687 = vpop.xlane.xlu0 %7686
  %v7688 = vmul.f32 %v7685, %v1830
  %v7689 = vmul.f32 %v7687, %v1830
  %v7690 = vadd.f32 %v7688, 1e-05
  %v7691 = vadd.f32 %v7689, 1e-05
  %v7692 = vrsqrt.pop %v7690
  %v7693 = vrsqrt.pop %v7691
  %v7694 = vmul.f32 %v7680, %v7692
  %v7695 = vmul.f32 %v7681, %v7693
  %v7697 = vlaneseq
  %v7698 = vshrl.u32 %v7697, 7
  %v7699 = vsub.s32 0, %v7698
  %v7700 = vrot.slane %v7671, %v7699
  %v7702 = vmul.f32 %v7694, %v7700
  %v7703 = vmul.f32 %v7695, %v7700
  %v7705 = vlaneseq
  %v7706 = vshrl.u32 %v7705, 7
  %v7707 = vsub.s32 0, %v7706
  %v7708 = vrot.slane %v7673, %v7707
  %v7710 = vadd.f32 %v7702, %v7708
  %v7711 = vadd.f32 %v7703, %v7708
  %s7712 = scalar_lea.vmem %s10, 384
  %v7713 = vld [vmem:[%s7712] sm:$0xff]
  %v7714 = vld [vmem:[%s7712 + $0x8] sm:$0xff]
  %v7715 = vld [vmem:[%s7712 + $0x10] sm:$0xff]
  %v7716 = vld [vmem:[%s7712 + $0x18] sm:$0xff]
  %v7717 = vld [vmem:[%s7712 + $0x20] sm:$0xff]
  %v7718 = vld [vmem:[%s7712 + $0x28] sm:$0xff]
  %v7719 = vld [vmem:[%s7712 + $0x30] sm:$0xff]
  %v7720 = vld [vmem:[%s7712 + $0x38] sm:$0xff]
  %v7721 = vld [vmem:[%s7712 + $0x40] sm:$0xff]
  %v7722 = vld [vmem:[%s7712 + $0x48] sm:$0xff]
  %v7723 = vld [vmem:[%s7712 + $0x50] sm:$0xff]
  %v7724 = vld [vmem:[%s7712 + $0x58] sm:$0xff]
  %v7725 = vld [vmem:[%s7712 + $0x60] sm:$0xff]
  %v7726 = vld [vmem:[%s7712 + $0x68] sm:$0xff]
  %v7727 = vld [vmem:[%s7712 + $0x70] sm:$0xff]
  %v7728 = vld [vmem:[%s7712 + $0x78] sm:$0xff]
  %s7729 = scalar_lea.vmem %s11, 3
  %v7730 = vld [vmem:[%s7729] sm:$0x1]
  %v7732 = vlaneseq
  %v7733 = vshrl.u32 %v7732, 7
  %v7734 = vsub.s32 0, %v7733
  %v7735 = vrot.slane %v7730, %v7734
  %7737 = vmatprep.subr.mxu0 0.0
  %7738 = vmatpush1.msra.mxu0 %v7713
  %7739 = vmatprep.subr.mxu0 0.0
  %7740 = vmatpush1.msra.mxu0 %v7714
  %7741 = vmatprep.subr.mxu0 0.0
  %7742 = vmatpush1.msra.mxu0 %v7715
  %7743 = vmatprep.subr.mxu0 0.0
  %7744 = vmatpush1.msra.mxu0 %v7716
  %7745 = vmatprep.subr.mxu0 0.0
  %7746 = vmatpush1.msra.mxu0 %v7717
  %7747 = vmatprep.subr.mxu0 0.0
  %7748 = vmatpush1.msra.mxu0 %v7718
  %7749 = vmatprep.subr.mxu0 0.0
  %7750 = vmatpush1.msra.mxu0 %v7719
  %7751 = vmatprep.subr.mxu0 0.0
  %7752 = vmatpush1.msra.mxu0 %v7720
  %7753 = vmatprep.subr.mxu0 0.0
  %7754 = vmatpush1.msra.mxu0 %v7721
  %7755 = vmatprep.subr.mxu0 0.0
  %7756 = vmatpush1.msra.mxu0 %v7722
  %7757 = vmatprep.subr.mxu0 0.0
  %7758 = vmatpush1.msra.mxu0 %v7723
  %7759 = vmatprep.subr.mxu0 0.0
  %7760 = vmatpush1.msra.mxu0 %v7724
  %7761 = vmatprep.subr.mxu0 0.0
  %7762 = vmatpush1.msra.mxu0 %v7725
  %7763 = vmatprep.subr.mxu0 0.0
  %7764 = vmatpush1.msra.mxu0 %v7726
  %7765 = vmatprep.subr.mxu0 0.0
  %7766 = vmatpush1.msra.mxu0 %v7727
  %7767 = vmatprep.subr.mxu0 0.0
  %7768 = vmatpush1.msra.mxu0 %v7728
  %7769 = vmatprep.subr.mxu0 0.0
  %7770 = vmatpush1.msra.mxu0 0.0
  %7771 = vmatprep.subr.mxu0 0.0
  %7772 = vmatpush1.msra.mxu0 0.0
  %7773 = vmatprep.subr.mxu0 0.0
  %7774 = vmatpush1.msra.mxu0 0.0
  %7775 = vmatprep.subr.mxu0 0.0
  %7776 = vmatpush1.msra.mxu0 0.0
  %7777 = vmatprep.subr.mxu0 0.0
  %7778 = vmatpush1.msra.mxu0 0.0
  %7779 = vmatprep.subr.mxu0 0.0
  %7780 = vmatpush1.msra.mxu0 0.0
  %7781 = vmatprep.subr.mxu0 0.0
  %7782 = vmatpush1.msra.mxu0 0.0
  %7783 = vmatprep.subr.mxu0 0.0
  %7784 = vmatpush1.msra.mxu0 0.0
  %7785 = vmatprep.subr.mxu0 0.0
  %7786 = vmatpush1.msra.mxu0 0.0
  %7787 = vmatprep.subr.mxu0 0.0
  %7788 = vmatpush1.msra.mxu0 0.0
  %7789 = vmatprep.subr.mxu0 0.0
  %7790 = vmatpush1.msra.mxu0 0.0
  %7791 = vmatprep.subr.mxu0 0.0
  %7792 = vmatpush1.msra.mxu0 0.0
  %7793 = vmatprep.subr.mxu0 0.0
  %7794 = vmatpush1.msra.mxu0 0.0
  %7795 = vmatprep.subr.mxu0 0.0
  %7796 = vmatpush1.msra.mxu0 0.0
  %7797 = vmatprep.subr.mxu0 0.0
  %7798 = vmatpush1.msra.mxu0 0.0
  %7799 = vmatprep.subr.mxu0 0.0
  %7800 = vmatpush1.msra.mxu0 0.0
  %7801 = vmatprep.mubr.f32.mxu0 0.0
  %7802 = vmatmul.mubr.f32.gmra.mrb[0].mxu0 %v7710
  %v7803 = vpop.f32.mrb[0].mxu0
  %v7804 = vadd.f32 %v7735, %v7803
  %v7805 = vpop.f32.mrb[0].mxu0
  %7806 = vmatprep.mubr.f32.mxu0 0.0
  %7807 = vmatmul.mubr.f32.gmra.mrb[0].mxu0 %v7711
  %v7808 = vpop.f32.mrb[0].mxu0
  %v7809 = vadd.f32 %v7735, %v7808
  %v7810 = vpop.f32.mrb[0].mxu0
  %7811 = vdwg.mxu0
  %v7812 = vmax.f32 %v7804, 0.0
  %v7813 = vmax.f32 %v7809, 0.0
  %s7814 = scalar_lea.vmem %s12, 384
  %v7815 = vld [vmem:[%s7814] sm:$0xff]
  %v7816 = vld [vmem:[%s7814 + $0x8] sm:$0xff]
  %v7817 = vld [vmem:[%s7814 + $0x10] sm:$0xff]
  %v7818 = vld [vmem:[%s7814 + $0x18] sm:$0xff]
  %v7819 = vld [vmem:[%s7814 + $0x20] sm:$0xff]
  %v7820 = vld [vmem:[%s7814 + $0x28] sm:$0xff]
  %v7821 = vld [vmem:[%s7814 + $0x30] sm:$0xff]
  %v7822 = vld [vmem:[%s7814 + $0x38] sm:$0xff]
  %v7823 = vld [vmem:[%s7814 + $0x40] sm:$0xff]
  %v7824 = vld [vmem:[%s7814 + $0x48] sm:$0xff]
  %v7825 = vld [vmem:[%s7814 + $0x50] sm:$0xff]
  %v7826 = vld [vmem:[%s7814 + $0x58] sm:$0xff]
  %v7827 = vld [vmem:[%s7814 + $0x60] sm:$0xff]
  %v7828 = vld [vmem:[%s7814 + $0x68] sm:$0xff]
  %v7829 = vld [vmem:[%s7814 + $0x70] sm:$0xff]
  %v7830 = vld [vmem:[%s7814 + $0x78] sm:$0xff]
  %s7831 = scalar_lea.vmem %s13, 3
  %v7832 = vld [vmem:[%s7831] sm:$0x1]
  %v7834 = vlaneseq
  %v7835 = vshrl.u32 %v7834, 7
  %v7836 = vsub.s32 0, %v7835
  %v7837 = vrot.slane %v7832, %v7836
  %7839 = vmatprep.subr.mxu0 0.0
  %7840 = vmatpush1.msra.mxu0 %v7815
  %7841 = vmatprep.subr.mxu0 0.0
  %7842 = vmatpush1.msra.mxu0 %v7816
  %7843 = vmatprep.subr.mxu0 0.0
  %7844 = vmatpush1.msra.mxu0 %v7817
  %7845 = vmatprep.subr.mxu0 0.0
  %7846 = vmatpush1.msra.mxu0 %v7818
  %7847 = vmatprep.subr.mxu0 0.0
  %7848 = vmatpush1.msra.mxu0 %v7819
  %7849 = vmatprep.subr.mxu0 0.0
  %7850 = vmatpush1.msra.mxu0 %v7820
  %7851 = vmatprep.subr.mxu0 0.0
  %7852 = vmatpush1.msra.mxu0 %v7821
  %7853 = vmatprep.subr.mxu0 0.0
  %7854 = vmatpush1.msra.mxu0 %v7822
  %7855 = vmatprep.subr.mxu0 0.0
  %7856 = vmatpush1.msra.mxu0 %v7823
  %7857 = vmatprep.subr.mxu0 0.0
  %7858 = vmatpush1.msra.mxu0 %v7824
  %7859 = vmatprep.subr.mxu0 0.0
  %7860 = vmatpush1.msra.mxu0 %v7825
  %7861 = vmatprep.subr.mxu0 0.0
  %7862 = vmatpush1.msra.mxu0 %v7826
  %7863 = vmatprep.subr.mxu0 0.0
  %7864 = vmatpush1.msra.mxu0 %v7827
  %7865 = vmatprep.subr.mxu0 0.0
  %7866 = vmatpush1.msra.mxu0 %v7828
  %7867 = vmatprep.subr.mxu0 0.0
  %7868 = vmatpush1.msra.mxu0 %v7829
  %7869 = vmatprep.subr.mxu0 0.0
  %7870 = vmatpush1.msra.mxu0 %v7830
  %7871 = vmatprep.subr.mxu0 0.0
  %7872 = vmatpush1.msra.mxu0 0.0
  %7873 = vmatprep.subr.mxu0 0.0
  %7874 = vmatpush1.msra.mxu0 0.0
  %7875 = vmatprep.subr.mxu0 0.0
  %7876 = vmatpush1.msra.mxu0 0.0
  %7877 = vmatprep.subr.mxu0 0.0
  %7878 = vmatpush1.msra.mxu0 0.0
  %7879 = vmatprep.subr.mxu0 0.0
  %7880 = vmatpush1.msra.mxu0 0.0
  %7881 = vmatprep.subr.mxu0 0.0
  %7882 = vmatpush1.msra.mxu0 0.0
  %7883 = vmatprep.subr.mxu0 0.0
  %7884 = vmatpush1.msra.mxu0 0.0
  %7885 = vmatprep.subr.mxu0 0.0
  %7886 = vmatpush1.msra.mxu0 0.0
  %7887 = vmatprep.subr.mxu0 0.0
  %7888 = vmatpush1.msra.mxu0 0.0
  %7889 = vmatprep.subr.mxu0 0.0
  %7890 = vmatpush1.msra.mxu0 0.0
  %7891 = vmatprep.subr.mxu0 0.0
  %7892 = vmatpush1.msra.mxu0 0.0
  %7893 = vmatprep.subr.mxu0 0.0
  %7894 = vmatpush1.msra.mxu0 0.0
  %7895 = vmatprep.subr.mxu0 0.0
  %7896 = vmatpush1.msra.mxu0 0.0
  %7897 = vmatprep.subr.mxu0 0.0
  %7898 = vmatpush1.msra.mxu0 0.0
  %7899 = vmatprep.subr.mxu0 0.0
  %7900 = vmatpush1.msra.mxu0 0.0
  %7901 = vmatprep.subr.mxu0 0.0
  %7902 = vmatpush1.msra.mxu0 0.0
  %7903 = vmatprep.mubr.f32.mxu0 0.0
  %7904 = vmatmul.mubr.f32.gmra.mrb[0].mxu0 %v7812
  %v7905 = vpop.f32.mrb[0].mxu0
  %v7906 = vadd.f32 %v7837, %v7905
  %v7907 = vpop.f32.mrb[0].mxu0
  %7908 = vmatprep.mubr.f32.mxu0 0.0
  %7909 = vmatmul.mubr.f32.gmra.mrb[0].mxu0 %v7813
  %v7910 = vpop.f32.mrb[0].mxu0
  %v7911 = vadd.f32 %v7837, %v7910
  %v7912 = vpop.f32.mrb[0].mxu0
  %7913 = vdwg.mxu0
  %v7914 = vadd.f32 %v7710, %v7906
  %v7915 = vadd.f32 %v7711, %v7911
  %s7916 = scalar_lea.vmem %s14, 3
  %v7917 = vld [vmem:[%s7916] sm:$0x1]
  %s7918 = scalar_lea.vmem %s15, 3
  %v7919 = vld [vmem:[%s7918] sm:$0x1]
  %7920 = vadd.xlane.f32.xlu0 %v7914
  %v7921 = vpop.xlane.xlu0 %7920
  %7922 = vadd.xlane.f32.xlu0 %v7915
  %v7923 = vpop.xlane.xlu0 %7922
  %v7924 = vmul.f32 %v7921, %v1830
  %v7925 = vmul.f32 %v7923, %v1830
  %v7926 = vsub.f32 %v7914, %v7924
  %v7927 = vsub.f32 %v7915, %v7925
  %v7928 = vmul.f32 %v7926, %v7926
  %v7929 = vmul.f32 %v7927, %v7927
  %7930 = vadd.xlane.f32.xlu0 %v7928
  %v7931 = vpop.xlane.xlu0 %7930
  %7932 = vadd.xlane.f32.xlu0 %v7929
  %v7933 = vpop.xlane.xlu0 %7932
  %v7934 = vmul.f32 %v7931, %v1830
  %v7935 = vmul.f32 %v7933, %v1830
  %v7936 = vadd.f32 %v7934, 1e-05
  %v7937 = vadd.f32 %v7935, 1e-05
  %v7938 = vrsqrt.pop %v7936
  %v7939 = vrsqrt.pop %v7937
  %v7940 = vmul.f32 %v7926, %v7938
  %v7941 = vmul.f32 %v7927, %v7939
  %v7943 = vlaneseq
  %v7944 = vshrl.u32 %v7943, 7
  %v7945 = vsub.s32 0, %v7944
  %v7946 = vrot.slane %v7917, %v7945
  %v7948 = vmul.f32 %v7940, %v7946
  %v7949 = vmul.f32 %v7941, %v7946
  %v7951 = vlaneseq
  %v7952 = vshrl.u32 %v7951, 7
  %v7953 = vsub.s32 0, %v7952
  %v7954 = vrot.slane %v7919, %v7953
  %v7956 = vadd.f32 %v7948, %v7954
  %v7957 = vadd.f32 %v7949, %v7954
  %v7958 = vrot.slane %v7956, 4
  %v7959 = vadd.f32 %v7956, %v7958
  %v7960 = vrot.slane %v7959, 2
  %v7961 = vadd.f32 %v7959, %v7960
  %v7962 = vrot.slane %v7961, 1
  %v7963 = vadd.f32 %v7961, %v7962
  %v7964 = vrot.slane %v7957, 4
  %v7965 = vadd.f32 %v7957, %v7964
  %v7966 = vrot.slane %v7965, 2
  %v7967 = vadd.f32 %v7965, %v7966
  %v7968 = vrot.slane %v7967, 1
  %v7969 = vadd.f32 %v7967, %v7968
  %v7970 = vmul.f32 %v7963, %v90
  %v7971 = vmul.f32 %v7969, %v90
  %v7972 = vld [vmem:[%s16] sm:$0xff]
  %v7973 = vld [vmem:[%s16 + $0x8] sm:$0xff]
  %v7974 = vld [vmem:[%s16 + $0x10] sm:$0xff]
  %v7975 = vld [vmem:[%s16 + $0x18] sm:$0xff]
  %v7976 = vld [vmem:[%s16 + $0x20] sm:$0xff]
  %v7977 = vld [vmem:[%s16 + $0x28] sm:$0xff]
  %v7978 = vld [vmem:[%s16 + $0x30] sm:$0xff]
  %v7979 = vld [vmem:[%s16 + $0x38] sm:$0xff]
  %v7980 = vld [vmem:[%s16 + $0x40] sm:$0xff]
  %v7981 = vld [vmem:[%s16 + $0x48] sm:$0xff]
  %v7982 = vld [vmem:[%s16 + $0x50] sm:$0xff]
  %v7983 = vld [vmem:[%s16 + $0x58] sm:$0xff]
  %v7984 = vld [vmem:[%s16 + $0x60] sm:$0xff]
  %v7985 = vld [vmem:[%s16 + $0x68] sm:$0xff]
  %v7986 = vld [vmem:[%s16 + $0x70] sm:$0xff]
  %v7987 = vld [vmem:[%s16 + $0x78] sm:$0xff]
  %v7988 = vld [vmem:[%s17] sm:$0x1]
  %v7990 = vlaneseq
  %v7991 = vshrl.u32 %v7990, 7
  %v7992 = vsub.s32 0, %v7991
  %v7993 = vrot.slane %v7988, %v7992
  %vm7997 = vcmask 1041409
  %v7998 = vsel %vm7997, %v7971, %v7970
  %8000 = vmatprep.subr.mxu0 0.0
  %8001 = vmatpush1.msra.mxu0 %v7972
  %8002 = vmatprep.subr.mxu0 0.0
  %8003 = vmatpush1.msra.mxu0 %v7973
  %8004 = vmatprep.subr.mxu0 0.0
  %8005 = vmatpush1.msra.mxu0 %v7974
  %8006 = vmatprep.subr.mxu0 0.0
  %8007 = vmatpush1.msra.mxu0 %v7975
  %8008 = vmatprep.subr.mxu0 0.0
  %8009 = vmatpush1.msra.mxu0 %v7976
  %8010 = vmatprep.subr.mxu0 0.0
  %8011 = vmatpush1.msra.mxu0 %v7977
  %8012 = vmatprep.subr.mxu0 0.0
  %8013 = vmatpush1.msra.mxu0 %v7978
  %8014 = vmatprep.subr.mxu0 0.0
  %8015 = vmatpush1.msra.mxu0 %v7979
  %8016 = vmatprep.subr.mxu0 0.0
  %8017 = vmatpush1.msra.mxu0 %v7980
  %8018 = vmatprep.subr.mxu0 0.0
  %8019 = vmatpush1.msra.mxu0 %v7981
  %8020 = vmatprep.subr.mxu0 0.0
  %8021 = vmatpush1.msra.mxu0 %v7982
  %8022 = vmatprep.subr.mxu0 0.0
  %8023 = vmatpush1.msra.mxu0 %v7983
  %8024 = vmatprep.subr.mxu0 0.0
  %8025 = vmatpush1.msra.mxu0 %v7984
  %8026 = vmatprep.subr.mxu0 0.0
  %8027 = vmatpush1.msra.mxu0 %v7985
  %8028 = vmatprep.subr.mxu0 0.0
  %8029 = vmatpush1.msra.mxu0 %v7986
  %8030 = vmatprep.subr.mxu0 0.0
  %8031 = vmatpush1.msra.mxu0 %v7987
  %8032 = vmatprep.subr.mxu0 0.0
  %8033 = vmatpush1.msra.mxu0 0.0
  %8034 = vmatprep.subr.mxu0 0.0
  %8035 = vmatpush1.msra.mxu0 0.0
  %8036 = vmatprep.subr.mxu0 0.0
  %8037 = vmatpush1.msra.mxu0 0.0
  %8038 = vmatprep.subr.mxu0 0.0
  %8039 = vmatpush1.msra.mxu0 0.0
  %8040 = vmatprep.subr.mxu0 0.0
  %8041 = vmatpush1.msra.mxu0 0.0
  %8042 = vmatprep.subr.mxu0 0.0
  %8043 = vmatpush1.msra.mxu0 0.0
  %8044 = vmatprep.subr.mxu0 0.0
  %8045 = vmatpush1.msra.mxu0 0.0
  %8046 = vmatprep.subr.mxu0 0.0
  %8047 = vmatpush1.msra.mxu0 0.0
  %8048 = vmatprep.subr.mxu0 0.0
  %8049 = vmatpush1.msra.mxu0 0.0
  %8050 = vmatprep.subr.mxu0 0.0
  %8051 = vmatpush1.msra.mxu0 0.0
  %8052 = vmatprep.subr.mxu0 0.0
  %8053 = vmatpush1.msra.mxu0 0.0
  %8054 = vmatprep.subr.mxu0 0.0
  %8055 = vmatpush1.msra.mxu0 0.0
  %8056 = vmatprep.subr.mxu0 0.0
  %8057 = vmatpush1.msra.mxu0 0.0
  %8058 = vmatprep.subr.mxu0 0.0
  %8059 = vmatpush1.msra.mxu0 0.0
  %8060 = vmatprep.subr.mxu0 0.0
  %8061 = vmatpush1.msra.mxu0 0.0
  %8062 = vmatprep.subr.mxu0 0.0
  %8063 = vmatpush1.msra.mxu0 0.0
  %8064 = vmatprep.mubr.f32.mxu0 0.0
  %8065 = vmatmul.mubr.f32.gmra.mrb[0].mxu0 %v7998
  %v8066 = vpop.f32.mrb[0].mxu0
  %v8067 = vadd.f32 %v7993, %v8066
  %v8068 = vpop.f32.mrb[0].mxu0
  %8069 = vdwg.mxu0
  %vm8070 = vcmp.ge.f32.partialorder %v8067, 0.0
  %v8071 = vmul.f32 %v8067, 0.01
  %v8072 = vsel %vm8070, %v8067, %v8071
  %v8073 = vld [vmem:[%s18] sm:$0xff]
  %v8074 = vld [vmem:[%s18 + $0x8] sm:$0xff]
  %v8075 = vld [vmem:[%s18 + $0x10] sm:$0xff]
  %v8076 = vld [vmem:[%s18 + $0x18] sm:$0xff]
  %v8077 = vld [vmem:[%s18 + $0x20] sm:$0xff]
  %v8078 = vld [vmem:[%s18 + $0x28] sm:$0xff]
  %v8079 = vld [vmem:[%s18 + $0x30] sm:$0xff]
  %v8080 = vld [vmem:[%s18 + $0x38] sm:$0xff]
  %v8081 = vld [vmem:[%s18 + $0x40] sm:$0xff]
  %v8082 = vld [vmem:[%s18 + $0x48] sm:$0xff]
  %v8083 = vld [vmem:[%s18 + $0x50] sm:$0xff]
  %v8084 = vld [vmem:[%s18 + $0x58] sm:$0xff]
  %v8085 = vld [vmem:[%s18 + $0x60] sm:$0xff]
  %v8086 = vld [vmem:[%s18 + $0x68] sm:$0xff]
  %v8087 = vld [vmem:[%s18 + $0x70] sm:$0xff]
  %v8088 = vld [vmem:[%s18 + $0x78] sm:$0xff]
  %v8089 = vld [vmem:[%s19] sm:$0x1]
  %v8091 = vlaneseq
  %v8092 = vshrl.u32 %v8091, 7
  %v8093 = vsub.s32 0, %v8092
  %v8094 = vrot.slane %v8089, %v8093
  %8096 = vmatprep.subr.mxu0 0.0
  %8097 = vmatpush1.msra.mxu0 %v8073
  %8098 = vmatprep.subr.mxu0 0.0
  %8099 = vmatpush1.msra.mxu0 %v8074
  %8100 = vmatprep.subr.mxu0 0.0
  %8101 = vmatpush1.msra.mxu0 %v8075
  %8102 = vmatprep.subr.mxu0 0.0
  %8103 = vmatpush1.msra.mxu0 %v8076
  %8104 = vmatprep.subr.mxu0 0.0
  %8105 = vmatpush1.msra.mxu0 %v8077
  %8106 = vmatprep.subr.mxu0 0.0
  %8107 = vmatpush1.msra.mxu0 %v8078
  %8108 = vmatprep.subr.mxu0 0.0
  %8109 = vmatpush1.msra.mxu0 %v8079
  %8110 = vmatprep.subr.mxu0 0.0
  %8111 = vmatpush1.msra.mxu0 %v8080
  %8112 = vmatprep.subr.mxu0 0.0
  %8113 = vmatpush1.msra.mxu0 %v8081
  %8114 = vmatprep.subr.mxu0 0.0
  %8115 = vmatpush1.msra.mxu0 %v8082
  %8116 = vmatprep.subr.mxu0 0.0
  %8117 = vmatpush1.msra.mxu0 %v8083
  %8118 = vmatprep.subr.mxu0 0.0
  %8119 = vmatpush1.msra.mxu0 %v8084
  %8120 = vmatprep.subr.mxu0 0.0
  %8121 = vmatpush1.msra.mxu0 %v8085
  %8122 = vmatprep.subr.mxu0 0.0
  %8123 = vmatpush1.msra.mxu0 %v8086
  %8124 = vmatprep.subr.mxu0 0.0
  %8125 = vmatpush1.msra.mxu0 %v8087
  %8126 = vmatprep.subr.mxu0 0.0
  %8127 = vmatpush1.msra.mxu0 %v8088
  %8128 = vmatprep.subr.mxu0 0.0
  %8129 = vmatpush1.msra.mxu0 0.0
  %8130 = vmatprep.subr.mxu0 0.0
  %8131 = vmatpush1.msra.mxu0 0.0
  %8132 = vmatprep.subr.mxu0 0.0
  %8133 = vmatpush1.msra.mxu0 0.0
  %8134 = vmatprep.subr.mxu0 0.0
  %8135 = vmatpush1.msra.mxu0 0.0
  %8136 = vmatprep.subr.mxu0 0.0
  %8137 = vmatpush1.msra.mxu0 0.0
  %8138 = vmatprep.subr.mxu0 0.0
  %8139 = vmatpush1.msra.mxu0 0.0
  %8140 = vmatprep.subr.mxu0 0.0
  %8141 = vmatpush1.msra.mxu0 0.0
  %8142 = vmatprep.subr.mxu0 0.0
  %8143 = vmatpush1.msra.mxu0 0.0
  %8144 = vmatprep.subr.mxu0 0.0
  %8145 = vmatpush1.msra.mxu0 0.0
  %8146 = vmatprep.subr.mxu0 0.0
  %8147 = vmatpush1.msra.mxu0 0.0
  %8148 = vmatprep.subr.mxu0 0.0
  %8149 = vmatpush1.msra.mxu0 0.0
  %8150 = vmatprep.subr.mxu0 0.0
  %8151 = vmatpush1.msra.mxu0 0.0
  %8152 = vmatprep.subr.mxu0 0.0
  %8153 = vmatpush1.msra.mxu0 0.0
  %8154 = vmatprep.subr.mxu0 0.0
  %8155 = vmatpush1.msra.mxu0 0.0
  %8156 = vmatprep.subr.mxu0 0.0
  %8157 = vmatpush1.msra.mxu0 0.0
  %8158 = vmatprep.subr.mxu0 0.0
  %8159 = vmatpush1.msra.mxu0 0.0
  %8160 = vmatprep.mubr.f32.mxu0 0.0
  %8161 = vmatmul.mubr.f32.gmra.mrb[0].mxu0 %v8072
  %v8162 = vpop.f32.mrb[0].mxu0
  %v8163 = vadd.f32 %v8094, %v8162
  %v8164 = vpop.f32.mrb[0].mxu0
  %8165 = vdwg.mxu0
  %vm8166 = vcmp.ge.f32.partialorder %v8163, 0.0
  %v8167 = vmul.f32 %v8163, 0.01
  %v8168 = vsel %vm8166, %v8163, %v8167
  %v8169 = vld [vmem:[%s20] sm:$0x1]
  %v8171 = vlaneseq
  %v8172 = vshrl.u32 %v8171, 7
  %v8173 = vsub.s32 0, %v8172
  %v8174 = vrot.slane %v8169, %v8173
  %v8176 = vmul.f32 %v8168, %v8174
  %vm8177 = vcmask 1041408
  %v8178 = vsel %vm8177, %v8176, 0.0
  %8179 = vadd.xlane.f32.xlu0 %v8178
  %v8180 = vpop.xlane.xlu0 %8179
  %v8181 = vld [vmem:[#allocation2] sm:$0x1]
  %v8183 = vlaneseq
  %v8184 = vshrl.u32 %v8183, 7
  %v8185 = vsub.s32 0, %v8184
  %v8186 = vrot.slane %v8181, %v8185
  %v8188 = vadd.f32 %v8180, %v8186
  %8190 = vset.pattern.permute.xlu0 0
  %8191 = vperm.xlu0 %8190, %v8188
  %v8192 = vpop.permute.xlu0 %8191
  %8194 = vst [vmem:[%s22] sm:$0x3] %v8192
  // Predicated region
  $region90: #{shape_ebm_forward.1} parent=0 // pred_check
    _
  $region91: #{shape_ebm_forward.1} parent=0 // pred_check_branch
    %8196 = sbr.rel (0) target = $region93
  $region92: #{shape_ebm_forward.1} parent=0 // pred_region
    _
  $region93: #{shape_ebm_forward.1} parent=0 // pred_fallthru
    _
  // Predicated region
  $region94: #{shape_ebm_forward.1} parent=0 // pred_check
    _
  $region95: #{shape_ebm_forward.1} parent=0 // pred_check_branch
    %8198 = sbr.rel (0) target = $region97
  $region96: #{shape_ebm_forward.1} parent=0 // pred_region
    _
  $region97: #{shape_ebm_forward.1} parent=0 // pred_fallthru
    _

</llo_original>
